<compile_context>
chip_gen: v5e
topology: v5e:2x2
jax: 0.10.0
libtpu: 0.0.40
codegen_flags: <defaults>
</compile_context>

<pallas_src>
from functools import partial

import jax
import jax.numpy as jnp
import numpy as np
from jax import lax
from jax.experimental import pallas as pl
from jax.experimental.pallas import tpu as pltpu  # noqa: F401  (standard preamble)

# Full-f32 matmul precision so the one-time weight folding and the pure-JAX
# reference match the kernel's f32 MXU math tightly (the TPU default matmul
# precision would otherwise inject bf16 rounding into the comparison).
jax.config.update("jax_default_matmul_precision", "float32")


# ----------------------------- fused kernel ---------------------------------
def _fused_forward_kernel(H, T, T_dec, vocab,
                          tok_ref,                      # (T*Bp, 1) int32, time-major
                          gi_table,                     # (vocab, 3H) = embedding @ W_ih_enc
                          e_bih, e_whh, e_bhh,          # (1,3H) (H,3H) (1,3H)
                          wcd, bcd,                     # (H,3H) (1,3H) folded MLP -> dec gates
                          d_whh, d_bhh,                 # (H,3H) (1,3H)
                          wf, bf,                       # (H,out) (1,out)
                          out_ref):                     # (Bp, out)
    f32 = jnp.float32
    Bp = out_ref.shape[0]

    def gru_cell(gi, gh, h_prev):
        # PyTorch nn.GRU gate order: r, z, n ; r multiplies (W_hn h + b_hn).
        r = jax.nn.sigmoid(gi[:, :H] + gh[:, :H])
        z = jax.nn.sigmoid(gi[:, H:2 * H] + gh[:, H:2 * H])
        n = jnp.tanh(gi[:, 2 * H:] + r * gh[:, 2 * H:])
        return (1.0 - z) * n + z * h_prev

    # ---- embedding + encoder input-gate projection for ALL timesteps at once:
    #      one-hot(tokens) @ (embedding @ W_ih_enc) selects exact table rows -----
    tok = tok_ref[...]                                                 # (T*Bp, 1)
    onehot = (tok == lax.broadcasted_iota(jnp.int32, (T * Bp, vocab), 1)).astype(f32)
    gi_all = jnp.dot(onehot, gi_table[...], preferred_element_type=f32) + e_bih[...]

    # ---- encoder GRU: only h @ W_hh stays serial --------------------------------
    whh_e = e_whh[...]
    bhh_e = e_bhh[...]
    h = jnp.zeros((Bp, H), f32)
    for t in range(T):                      # static unroll, T is small
        gi_t = gi_all[t * Bp:(t + 1) * Bp, :]
        gh_t = jnp.dot(h, whh_e, preferred_element_type=f32) + bhh_e
        h = gru_cell(gi_t, gh_t, h)

    # ---- folded (6-layer MLP -> decoder GRU input gates): ONE affine map --------
    gi_dec = jnp.dot(h, wcd[...], preferred_element_type=f32) + bcd[...]   # (Bp, 3H)

    # ---- decoder GRU: every timestep input is identical -> gi reused ------------
    whh_d = d_whh[...]
    bhh_d = d_bhh[...]

    def dec_step(_, h_carry):
        gh = jnp.dot(h_carry, whh_d, preferred_element_type=f32) + bhh_d
        return gru_cell(gi_dec, gh, h_carry)

    h_dec = lax.fori_loop(0, T_dec, dec_step, jnp.zeros((Bp, H), f32), unroll=True)

    # ---- final linear ------------------------------------------------------------
    # NOTE: output lane dim (64) < 128 -> masked store; negligible at this size.
    out_ref[...] = (jnp.dot(h_dec, wf[...], preferred_element_type=f32)
                    + bf[...]).astype(out_ref.dtype)


# -------------------------- one-time algebraic fold --------------------------
def fold_params(params):
    """Fold the model into kernel-ready weights.  Call OUTSIDE the hot path."""
    eg, dg = params["enc_gru"], params["dec_gru"]
    H = eg["whh"].shape[0]

    # Embedding folded into the encoder input-gate projection.
    gi_table = params["embedding"] @ eg["wih"]                         # (vocab, 3H)

    # The 6 Linear layers (no nonlinearities) compose to a single affine map.
    Wc = jnp.eye(H, dtype=jnp.float32)
    bc = jnp.zeros((1, H), jnp.float32)
    for layer in params["encoder"] + params["decoder"]:
        Wc = Wc @ layer["w"]
        bc = bc @ layer["w"] + layer["b"]

    # ... and that map folds into the decoder GRU input projection.
    wcd = Wc @ dg["wih"]                                               # (H, 3H)
    bcd = bc @ dg["wih"] + dg["bih"]                                   # (1, 3H)

    # PyTorch quirk: x.unsqueeze(1).repeat(1, x.size(1), 1) uses the decoder-MLP
    # output dim (== dec GRU input dim) as the number of decoder timesteps; in
    # this model it equals hidden_size.  Guard that assumption.
    assert dg["wih"].shape[0] == dg["whh"].shape[0], (
        "decoder GRU input dim must equal hidden dim for T_dec = hidden_size")

    return dict(gi_table=gi_table,
                e_bih=eg["bih"], e_whh=eg["whh"], e_bhh=eg["bhh"],
                wcd=wcd, bcd=bcd,
                d_whh=dg["whh"], d_bhh=dg["bhh"],
                wf=params["final"]["w"], bf=params["final"]["b"])


# ------------------------------ forward wrapper ------------------------------
def autoencoder_forward(folded, tokens):
    """tokens: (B, T) int32.  Returns (B, input_size) f32."""
    B, T = tokens.shape
    H = folded["e_whh"].shape[0]
    vocab = folded["gi_table"].shape[0]
    out_dim = folded["wf"].shape[1]
    T_dec = folded["d_whh"].shape[0]          # == hidden_size (asserted in fold_params)

    # Pad batch to a sublane multiple; padded rows use token 0 and are sliced off.
    Bp = ((B + 7) // 8) * 8
    tok_tm = (jnp.zeros((T, Bp), jnp.int32)
                 .at[:, :B].set(tokens.T)
                 .reshape(T * Bp, 1))         # time-major: row index = t*Bp + b

    weight_names = ("gi_table", "e_bih", "e_whh", "e_bhh",
                    "wcd", "bcd", "d_whh", "d_bhh", "wf", "bf")
    weights = [folded[k] for k in weight_names]

    # Advisory cost for XLA's scheduler (long-latency, low-FLOP custom call).
    flops = (2 * (T * Bp) * vocab * 3 * H         # one-hot gate matmul
             + 2 * T * Bp * H * 3 * H             # encoder recurrence
             + 2 * Bp * H * 3 * H                 # folded MLP -> decoder gates
             + 2 * T_dec * Bp * H * 3 * H         # decoder recurrence
             + 2 * Bp * H * out_dim)              # final linear
    transcendentals = (T + T_dec) * Bp * 3 * H
    bytes_accessed = 4 * (int(tok_tm.size) + sum(int(w.size) for w in weights)
                          + Bp * out_dim)

    out = pl.pallas_call(
        partial(_fused_forward_kernel, H, T, T_dec, vocab),
        out_shape=jax.ShapeDtypeStruct((Bp, out_dim), jnp.float32),
        cost_estimate=pl.CostEstimate(flops=flops,
                                      transcendentals=transcendentals,
                                      bytes_accessed=bytes_accessed),
    )(tok_tm, *weights)
    return out[:B]


# ------------------------------ parameters -----------------------------------
def init_params(key, input_size, encoding_dim, hidden_size, embedding_dim):
    """Linear as (in, out) with bias (1, out); GRU as W_ih (in, 3H), W_hh (H, 3H),
    biases (1, 3H); gate order r, z, n (matches torch.nn.GRU)."""
    H, E = hidden_size, embedding_dim
    keys = iter(jax.random.split(key, 24))

    def w(shape, scale=0.1):
        return (scale * jax.random.normal(next(keys), shape)).astype(jnp.float32)

    def gru(in_dim):
        return dict(wih=w((in_dim, 3 * H)), whh=w((H, 3 * H)),
                    bih=w((1, 3 * H)), bhh=w((1, 3 * H)))

    def lin(din, dout):
        return dict(w=w((din, dout)), b=w((1, dout)))

    return dict(
        embedding=w((input_size, E)),
        enc_gru=gru(E),
        encoder=[lin(H, H), lin(H, H // 2), lin(H // 2, encoding_dim)],
        decoder=[lin(encoding_dim, H // 2), lin(H // 2, H), lin(H, H)],
        dec_gru=gru(H),
        final=lin(H, input_size),
    )


# ------------------------- pure-JAX reference (check) -------------------------
def _ref_gru_final(x_btd, wih, whh, bih, bhh):
    B, T, _ = x_btd.shape
    H = whh.shape[0]
    h = jnp.zeros((B, H), jnp.float32)
    for t in range(T):
        gi = x_btd[:, t, :] @ wih + bih
        gh = h @ whh + bhh
        r = jax.nn.sigmoid(gi[:, :H] + gh[:, :H])
        z = jax.nn.sigmoid(gi[:, H:2 * H] + gh[:, H:2 * H])
        n = jnp.tanh(gi[:, 2 * H:] + r * gh[:, 2 * H:])
        h = (1.0 - z) * n + z * h
    return h


def _ref_forward(params, tokens):
    emb = jnp.take(params["embedding"], tokens, axis=0)
    eg, dg = params["enc_gru"], params["dec_gru"]
    x = _ref_gru_final(emb, eg["wih"], eg["whh"], eg["bih"], eg["bhh"])
    for layer in params["encoder"] + params["decoder"]:
        x = x @ layer["w"] + layer["b"]
    B, H = x.shape
    x_rep = jnp.broadcast_to(x[:, None, :], (B, H, H))   # repeat(1, x.size(1), 1) quirk
    h_dec = _ref_gru_final(x_rep, dg["wih"], dg["whh"], dg["bih"], dg["bhh"])
    return h_dec @ params["final"]["w"] + params["final"]["b"]


# ----------------------------------- main -------------------------------------
if __name__ == "__main__":
    input_size, encoding_dim, hidden_size, embedding_dim = 64, 8, 32, 16
    B, T = 2, 8

    key = jax.random.PRNGKey(0)
    pkey, xkey = jax.random.split(key)
    params = init_params(pkey, input_size, encoding_dim, hidden_size, embedding_dim)
    tokens = jax.random.randint(xkey, (B, T), 0, input_size, dtype=jnp.int32)

    # One-time fold (outside the jitted hot path).
    folded = fold_params(params)

    fwd = jax.jit(autoencoder_forward)
    out = jax.block_until_ready(fwd(folded, tokens))
    assert out.shape == (B, input_size), out.shape

    ref = jax.block_until_ready(_ref_forward(params, tokens))
    np.testing.assert_allclose(np.asarray(out), np.asarray(ref), rtol=1e-4, atol=1e-4)

    print("KERNEL_OK")
</pallas_src>

<mosaic_0001>
module attributes {stable_mosaic.version = 11 : i64} {
  func.func @_fused_forward_kernel(%arg0: memref<64x1xi32, #tpu.memory_space<vmem>>, %arg1: memref<64x96xf32, #tpu.memory_space<vmem>>, %arg2: memref<1x96xf32, #tpu.memory_space<vmem>>, %arg3: memref<32x96xf32, #tpu.memory_space<vmem>>, %arg4: memref<1x96xf32, #tpu.memory_space<vmem>>, %arg5: memref<32x96xf32, #tpu.memory_space<vmem>>, %arg6: memref<1x96xf32, #tpu.memory_space<vmem>>, %arg7: memref<32x96xf32, #tpu.memory_space<vmem>>, %arg8: memref<1x96xf32, #tpu.memory_space<vmem>>, %arg9: memref<32x64xf32, #tpu.memory_space<vmem>>, %arg10: memref<1x64xf32, #tpu.memory_space<vmem>>, %arg11: memref<8x64xf32, #tpu.memory_space<vmem>>) attributes {dimension_semantics = [], scalar_prefetch = 0 : i64, scratch_operands = 0 : i64, tpu.core_type = #tpu.core_type<tc>} {
    %c0 = arith.constant 0 : index
    %c0_0 = arith.constant 0 : index
    %0 = vector.load %arg0[%c0, %c0_0] : memref<64x1xi32, #tpu.memory_space<vmem>>, vector<64x1xi32>
    %1 = tpu.iota {dimensions = array<i32: 1>} : vector<64x64xi32>
    %2 = vector.broadcast %0 : vector<64x1xi32> to vector<64x64xi32>
    %3 = arith.cmpi eq, %2, %1 : vector<64x64xi32>
    %4 = arith.extui %3 : vector<64x64xi1> to vector<64x64xi32>
    %5 = arith.sitofp %4 : vector<64x64xi32> to vector<64x64xf32>
    %c0_1 = arith.constant 0 : index
    %c0_2 = arith.constant 0 : index
    %6 = vector.load %arg1[%c0_1, %c0_2] : memref<64x96xf32, #tpu.memory_space<vmem>>, vector<64x96xf32>
    %cst = arith.constant dense<0.000000e+00> : vector<64x96xf32>
    %7 = tpu.matmul %5, %6, %cst {dimension_numbers = #tpu.dot_dimension_numbers<[1], [0], [0], [1], [0, 0, 1, 1], [], []>, precision = #tpu.contract_precision<fp32>} : vector<64x64xf32>, vector<64x96xf32>, vector<64x96xf32> -> vector<64x96xf32>
    %c0_3 = arith.constant 0 : index
    %c0_4 = arith.constant 0 : index
    %8 = vector.load %arg2[%c0_3, %c0_4] : memref<1x96xf32, #tpu.memory_space<vmem>>, vector<1x96xf32>
    %9 = vector.broadcast %8 : vector<1x96xf32> to vector<64x96xf32>
    %10 = arith.addf %7, %9 : vector<64x96xf32>
    %c0_5 = arith.constant 0 : index
    %c0_6 = arith.constant 0 : index
    %11 = vector.load %arg3[%c0_5, %c0_6] : memref<32x96xf32, #tpu.memory_space<vmem>>, vector<32x96xf32>
    %c0_7 = arith.constant 0 : index
    %c0_8 = arith.constant 0 : index
    %12 = vector.load %arg4[%c0_7, %c0_8] : memref<1x96xf32, #tpu.memory_space<vmem>>, vector<1x96xf32>
    %cst_9 = arith.constant 0.000000e+00 : f32
    %13 = vector.broadcast %cst_9 : f32 to vector<8x32xf32>
    %14 = vector.extract_strided_slice %10 {offsets = [0, 0], sizes = [8, 96], strides = [1, 1]} : vector<64x96xf32> to vector<8x96xf32>
    %cst_10 = arith.constant dense<0.000000e+00> : vector<8x96xf32>
    %15 = tpu.matmul %13, %11, %cst_10 {dimension_numbers = #tpu.dot_dimension_numbers<[1], [0], [0], [1], [0, 0, 1, 1], [], []>, precision = #tpu.contract_precision<fp32>} : vector<8x32xf32>, vector<32x96xf32>, vector<8x96xf32> -> vector<8x96xf32>
    %16 = vector.broadcast %12 : vector<1x96xf32> to vector<8x96xf32>
    %17 = arith.addf %15, %16 : vector<8x96xf32>
    %18 = vector.extract_strided_slice %14 {offsets = [0, 0], sizes = [8, 32], strides = [1, 1]} : vector<8x96xf32> to vector<8x32xf32>
    %19 = vector.extract_strided_slice %17 {offsets = [0, 0], sizes = [8, 32], strides = [1, 1]} : vector<8x96xf32> to vector<8x32xf32>
    %20 = arith.addf %18, %19 : vector<8x32xf32>
    %21 = arith.negf %20 : vector<8x32xf32>
    %22 = math.exp %21 : vector<8x32xf32>
    %cst_11 = arith.constant 1.000000e+00 : f32
    %23 = vector.broadcast %cst_11 : f32 to vector<8x32xf32>
    %24 = arith.addf %23, %22 : vector<8x32xf32>
    %25 = arith.divf %23, %24 : vector<8x32xf32>
    %26 = vector.extract_strided_slice %14 {offsets = [0, 32], sizes = [8, 32], strides = [1, 1]} : vector<8x96xf32> to vector<8x32xf32>
    %27 = vector.extract_strided_slice %17 {offsets = [0, 32], sizes = [8, 32], strides = [1, 1]} : vector<8x96xf32> to vector<8x32xf32>
    %28 = arith.addf %26, %27 : vector<8x32xf32>
    %29 = arith.negf %28 : vector<8x32xf32>
    %30 = math.exp %29 : vector<8x32xf32>
    %cst_12 = arith.constant 1.000000e+00 : f32
    %31 = vector.broadcast %cst_12 : f32 to vector<8x32xf32>
    %32 = arith.addf %31, %30 : vector<8x32xf32>
    %33 = arith.divf %31, %32 : vector<8x32xf32>
    %34 = vector.extract_strided_slice %14 {offsets = [0, 64], sizes = [8, 32], strides = [1, 1]} : vector<8x96xf32> to vector<8x32xf32>
    %35 = vector.extract_strided_slice %17 {offsets = [0, 64], sizes = [8, 32], strides = [1, 1]} : vector<8x96xf32> to vector<8x32xf32>
    %36 = arith.mulf %25, %35 : vector<8x32xf32>
    %37 = arith.addf %34, %36 : vector<8x32xf32>
    %38 = math.tanh %37 : vector<8x32xf32>
    %cst_13 = arith.constant 1.000000e+00 : f32
    %39 = vector.broadcast %cst_13 : f32 to vector<8x32xf32>
    %40 = arith.subf %39, %33 : vector<8x32xf32>
    %41 = arith.mulf %40, %38 : vector<8x32xf32>
    %42 = arith.mulf %33, %13 : vector<8x32xf32>
    %43 = arith.addf %41, %42 : vector<8x32xf32>
    %44 = vector.extract_strided_slice %10 {offsets = [8, 0], sizes = [8, 96], strides = [1, 1]} : vector<64x96xf32> to vector<8x96xf32>
    %cst_14 = arith.constant dense<0.000000e+00> : vector<8x96xf32>
    %45 = tpu.matmul %43, %11, %cst_14 {dimension_numbers = #tpu.dot_dimension_numbers<[1], [0], [0], [1], [0, 0, 1, 1], [], []>, precision = #tpu.contract_precision<fp32>} : vector<8x32xf32>, vector<32x96xf32>, vector<8x96xf32> -> vector<8x96xf32>
    %46 = vector.broadcast %12 : vector<1x96xf32> to vector<8x96xf32>
    %47 = arith.addf %45, %46 : vector<8x96xf32>
    %48 = vector.extract_strided_slice %44 {offsets = [0, 0], sizes = [8, 32], strides = [1, 1]} : vector<8x96xf32> to vector<8x32xf32>
    %49 = vector.extract_strided_slice %47 {offsets = [0, 0], sizes = [8, 32], strides = [1, 1]} : vector<8x96xf32> to vector<8x32xf32>
    %50 = arith.addf %48, %49 : vector<8x32xf32>
    %51 = arith.negf %50 : vector<8x32xf32>
    %52 = math.exp %51 : vector<8x32xf32>
    %cst_15 = arith.constant 1.000000e+00 : f32
    %53 = vector.broadcast %cst_15 : f32 to vector<8x32xf32>
    %54 = arith.addf %53, %52 : vector<8x32xf32>
    %55 = arith.divf %53, %54 : vector<8x32xf32>
    %56 = vector.extract_strided_slice %44 {offsets = [0, 32], sizes = [8, 32], strides = [1, 1]} : vector<8x96xf32> to vector<8x32xf32>
    %57 = vector.extract_strided_slice %47 {offsets = [0, 32], sizes = [8, 32], strides = [1, 1]} : vector<8x96xf32> to vector<8x32xf32>
    %58 = arith.addf %56, %57 : vector<8x32xf32>
    %59 = arith.negf %58 : vector<8x32xf32>
    %60 = math.exp %59 : vector<8x32xf32>
    %cst_16 = arith.constant 1.000000e+00 : f32
    %61 = vector.broadcast %cst_16 : f32 to vector<8x32xf32>
    %62 = arith.addf %61, %60 : vector<8x32xf32>
    %63 = arith.divf %61, %62 : vector<8x32xf32>
    %64 = vector.extract_strided_slice %44 {offsets = [0, 64], sizes = [8, 32], strides = [1, 1]} : vector<8x96xf32> to vector<8x32xf32>
    %65 = vector.extract_strided_slice %47 {offsets = [0, 64], sizes = [8, 32], strides = [1, 1]} : vector<8x96xf32> to vector<8x32xf32>
    %66 = arith.mulf %55, %65 : vector<8x32xf32>
    %67 = arith.addf %64, %66 : vector<8x32xf32>
    %68 = math.tanh %67 : vector<8x32xf32>
    %cst_17 = arith.constant 1.000000e+00 : f32
    %69 = vector.broadcast %cst_17 : f32 to vector<8x32xf32>
    %70 = arith.subf %69, %63 : vector<8x32xf32>
    %71 = arith.mulf %70, %68 : vector<8x32xf32>
    %72 = arith.mulf %63, %43 : vector<8x32xf32>
    %73 = arith.addf %71, %72 : vector<8x32xf32>
    %74 = vector.extract_strided_slice %10 {offsets = [16, 0], sizes = [8, 96], strides = [1, 1]} : vector<64x96xf32> to vector<8x96xf32>
    %cst_18 = arith.constant dense<0.000000e+00> : vector<8x96xf32>
    %75 = tpu.matmul %73, %11, %cst_18 {dimension_numbers = #tpu.dot_dimension_numbers<[1], [0], [0], [1], [0, 0, 1, 1], [], []>, precision = #tpu.contract_precision<fp32>} : vector<8x32xf32>, vector<32x96xf32>, vector<8x96xf32> -> vector<8x96xf32>
    %76 = vector.broadcast %12 : vector<1x96xf32> to vector<8x96xf32>
    %77 = arith.addf %75, %76 : vector<8x96xf32>
    %78 = vector.extract_strided_slice %74 {offsets = [0, 0], sizes = [8, 32], strides = [1, 1]} : vector<8x96xf32> to vector<8x32xf32>
    %79 = vector.extract_strided_slice %77 {offsets = [0, 0], sizes = [8, 32], strides = [1, 1]} : vector<8x96xf32> to vector<8x32xf32>
    %80 = arith.addf %78, %79 : vector<8x32xf32>
    %81 = arith.negf %80 : vector<8x32xf32>
    %82 = math.exp %81 : vector<8x32xf32>
    %cst_19 = arith.constant 1.000000e+00 : f32
    %83 = vector.broadcast %cst_19 : f32 to vector<8x32xf32>
    %84 = arith.addf %83, %82 : vector<8x32xf32>
    %85 = arith.divf %83, %84 : vector<8x32xf32>
    %86 = vector.extract_strided_slice %74 {offsets = [0, 32], sizes = [8, 32], strides = [1, 1]} : vector<8x96xf32> to vector<8x32xf32>
    %87 = vector.extract_strided_slice %77 {offsets = [0, 32], sizes = [8, 32], strides = [1, 1]} : vector<8x96xf32> to vector<8x32xf32>
    %88 = arith.addf %86, %87 : vector<8x32xf32>
    %89 = arith.negf %88 : vector<8x32xf32>
    %90 = math.exp %89 : vector<8x32xf32>
    %cst_20 = arith.constant 1.000000e+00 : f32
    %91 = vector.broadcast %cst_20 : f32 to vector<8x32xf32>
    %92 = arith.addf %91, %90 : vector<8x32xf32>
    %93 = arith.divf %91, %92 : vector<8x32xf32>
    %94 = vector.extract_strided_slice %74 {offsets = [0, 64], sizes = [8, 32], strides = [1, 1]} : vector<8x96xf32> to vector<8x32xf32>
    %95 = vector.extract_strided_slice %77 {offsets = [0, 64], sizes = [8, 32], strides = [1, 1]} : vector<8x96xf32> to vector<8x32xf32>
    %96 = arith.mulf %85, %95 : vector<8x32xf32>
    %97 = arith.addf %94, %96 : vector<8x32xf32>
    %98 = math.tanh %97 : vector<8x32xf32>
    %cst_21 = arith.constant 1.000000e+00 : f32
    %99 = vector.broadcast %cst_21 : f32 to vector<8x32xf32>
    %100 = arith.subf %99, %93 : vector<8x32xf32>
    %101 = arith.mulf %100, %98 : vector<8x32xf32>
    %102 = arith.mulf %93, %73 : vector<8x32xf32>
    %103 = arith.addf %101, %102 : vector<8x32xf32>
    %104 = vector.extract_strided_slice %10 {offsets = [24, 0], sizes = [8, 96], strides = [1, 1]} : vector<64x96xf32> to vector<8x96xf32>
    %cst_22 = arith.constant dense<0.000000e+00> : vector<8x96xf32>
    %105 = tpu.matmul %103, %11, %cst_22 {dimension_numbers = #tpu.dot_dimension_numbers<[1], [0], [0], [1], [0, 0, 1, 1], [], []>, precision = #tpu.contract_precision<fp32>} : vector<8x32xf32>, vector<32x96xf32>, vector<8x96xf32> -> vector<8x96xf32>
    %106 = vector.broadcast %12 : vector<1x96xf32> to vector<8x96xf32>
    %107 = arith.addf %105, %106 : vector<8x96xf32>
    %108 = vector.extract_strided_slice %104 {offsets = [0, 0], sizes = [8, 32], strides = [1, 1]} : vector<8x96xf32> to vector<8x32xf32>
    %109 = vector.extract_strided_slice %107 {offsets = [0, 0], sizes = [8, 32], strides = [1, 1]} : vector<8x96xf32> to vector<8x32xf32>
    %110 = arith.addf %108, %109 : vector<8x32xf32>
    %111 = arith.negf %110 : vector<8x32xf32>
    %112 = math.exp %111 : vector<8x32xf32>
    %cst_23 = arith.constant 1.000000e+00 : f32
    %113 = vector.broadcast %cst_23 : f32 to vector<8x32xf32>
    %114 = arith.addf %113, %112 : vector<8x32xf32>
    %115 = arith.divf %113, %114 : vector<8x32xf32>
    %116 = vector.extract_strided_slice %104 {offsets = [0, 32], sizes = [8, 32], strides = [1, 1]} : vector<8x96xf32> to vector<8x32xf32>
    %117 = vector.extract_strided_slice %107 {offsets = [0, 32], sizes = [8, 32], strides = [1, 1]} : vector<8x96xf32> to vector<8x32xf32>
    %118 = arith.addf %116, %117 : vector<8x32xf32>
    %119 = arith.negf %118 : vector<8x32xf32>
    %120 = math.exp %119 : vector<8x32xf32>
    %cst_24 = arith.constant 1.000000e+00 : f32
    %121 = vector.broadcast %cst_24 : f32 to vector<8x32xf32>
    %122 = arith.addf %121, %120 : vector<8x32xf32>
    %123 = arith.divf %121, %122 : vector<8x32xf32>
    %124 = vector.extract_strided_slice %104 {offsets = [0, 64], sizes = [8, 32], strides = [1, 1]} : vector<8x96xf32> to vector<8x32xf32>
    %125 = vector.extract_strided_slice %107 {offsets = [0, 64], sizes = [8, 32], strides = [1, 1]} : vector<8x96xf32> to vector<8x32xf32>
    %126 = arith.mulf %115, %125 : vector<8x32xf32>
    %127 = arith.addf %124, %126 : vector<8x32xf32>
    %128 = math.tanh %127 : vector<8x32xf32>
    %cst_25 = arith.constant 1.000000e+00 : f32
    %129 = vector.broadcast %cst_25 : f32 to vector<8x32xf32>
    %130 = arith.subf %129, %123 : vector<8x32xf32>
    %131 = arith.mulf %130, %128 : vector<8x32xf32>
    %132 = arith.mulf %123, %103 : vector<8x32xf32>
    %133 = arith.addf %131, %132 : vector<8x32xf32>
    %134 = vector.extract_strided_slice %10 {offsets = [32, 0], sizes = [8, 96], strides = [1, 1]} : vector<64x96xf32> to vector<8x96xf32>
    %cst_26 = arith.constant dense<0.000000e+00> : vector<8x96xf32>
    %135 = tpu.matmul %133, %11, %cst_26 {dimension_numbers = #tpu.dot_dimension_numbers<[1], [0], [0], [1], [0, 0, 1, 1], [], []>, precision = #tpu.contract_precision<fp32>} : vector<8x32xf32>, vector<32x96xf32>, vector<8x96xf32> -> vector<8x96xf32>
    %136 = vector.broadcast %12 : vector<1x96xf32> to vector<8x96xf32>
    %137 = arith.addf %135, %136 : vector<8x96xf32>
    %138 = vector.extract_strided_slice %134 {offsets = [0, 0], sizes = [8, 32], strides = [1, 1]} : vector<8x96xf32> to vector<8x32xf32>
    %139 = vector.extract_strided_slice %137 {offsets = [0, 0], sizes = [8, 32], strides = [1, 1]} : vector<8x96xf32> to vector<8x32xf32>
    %140 = arith.addf %138, %139 : vector<8x32xf32>
    %141 = arith.negf %140 : vector<8x32xf32>
    %142 = math.exp %141 : vector<8x32xf32>
    %cst_27 = arith.constant 1.000000e+00 : f32
    %143 = vector.broadcast %cst_27 : f32 to vector<8x32xf32>
    %144 = arith.addf %143, %142 : vector<8x32xf32>
    %145 = arith.divf %143, %144 : vector<8x32xf32>
    %146 = vector.extract_strided_slice %134 {offsets = [0, 32], sizes = [8, 32], strides = [1, 1]} : vector<8x96xf32> to vector<8x32xf32>
    %147 = vector.extract_strided_slice %137 {offsets = [0, 32], sizes = [8, 32], strides = [1, 1]} : vector<8x96xf32> to vector<8x32xf32>
    %148 = arith.addf %146, %147 : vector<8x32xf32>
    %149 = arith.negf %148 : vector<8x32xf32>
    %150 = math.exp %149 : vector<8x32xf32>
    %cst_28 = arith.constant 1.000000e+00 : f32
    %151 = vector.broadcast %cst_28 : f32 to vector<8x32xf32>
    %152 = arith.addf %151, %150 : vector<8x32xf32>
    %153 = arith.divf %151, %152 : vector<8x32xf32>
    %154 = vector.extract_strided_slice %134 {offsets = [0, 64], sizes = [8, 32], strides = [1, 1]} : vector<8x96xf32> to vector<8x32xf32>
    %155 = vector.extract_strided_slice %137 {offsets = [0, 64], sizes = [8, 32], strides = [1, 1]} : vector<8x96xf32> to vector<8x32xf32>
    %156 = arith.mulf %145, %155 : vector<8x32xf32>
    %157 = arith.addf %154, %156 : vector<8x32xf32>
    %158 = math.tanh %157 : vector<8x32xf32>
    %cst_29 = arith.constant 1.000000e+00 : f32
    %159 = vector.broadcast %cst_29 : f32 to vector<8x32xf32>
    %160 = arith.subf %159, %153 : vector<8x32xf32>
    %161 = arith.mulf %160, %158 : vector<8x32xf32>
    %162 = arith.mulf %153, %133 : vector<8x32xf32>
    %163 = arith.addf %161, %162 : vector<8x32xf32>
    %164 = vector.extract_strided_slice %10 {offsets = [40, 0], sizes = [8, 96], strides = [1, 1]} : vector<64x96xf32> to vector<8x96xf32>
    %cst_30 = arith.constant dense<0.000000e+00> : vector<8x96xf32>
    %165 = tpu.matmul %163, %11, %cst_30 {dimension_numbers = #tpu.dot_dimension_numbers<[1], [0], [0], [1], [0, 0, 1, 1], [], []>, precision = #tpu.contract_precision<fp32>} : vector<8x32xf32>, vector<32x96xf32>, vector<8x96xf32> -> vector<8x96xf32>
    %166 = vector.broadcast %12 : vector<1x96xf32> to vector<8x96xf32>
    %167 = arith.addf %165, %166 : vector<8x96xf32>
    %168 = vector.extract_strided_slice %164 {offsets = [0, 0], sizes = [8, 32], strides = [1, 1]} : vector<8x96xf32> to vector<8x32xf32>
    %169 = vector.extract_strided_slice %167 {offsets = [0, 0], sizes = [8, 32], strides = [1, 1]} : vector<8x96xf32> to vector<8x32xf32>
    %170 = arith.addf %168, %169 : vector<8x32xf32>
    %171 = arith.negf %170 : vector<8x32xf32>
    %172 = math.exp %171 : vector<8x32xf32>
    %cst_31 = arith.constant 1.000000e+00 : f32
    %173 = vector.broadcast %cst_31 : f32 to vector<8x32xf32>
    %174 = arith.addf %173, %172 : vector<8x32xf32>
    %175 = arith.divf %173, %174 : vector<8x32xf32>
    %176 = vector.extract_strided_slice %164 {offsets = [0, 32], sizes = [8, 32], strides = [1, 1]} : vector<8x96xf32> to vector<8x32xf32>
    %177 = vector.extract_strided_slice %167 {offsets = [0, 32], sizes = [8, 32], strides = [1, 1]} : vector<8x96xf32> to vector<8x32xf32>
    %178 = arith.addf %176, %177 : vector<8x32xf32>
    %179 = arith.negf %178 : vector<8x32xf32>
    %180 = math.exp %179 : vector<8x32xf32>
    %cst_32 = arith.constant 1.000000e+00 : f32
    %181 = vector.broadcast %cst_32 : f32 to vector<8x32xf32>
    %182 = arith.addf %181, %180 : vector<8x32xf32>
    %183 = arith.divf %181, %182 : vector<8x32xf32>
    %184 = vector.extract_strided_slice %164 {offsets = [0, 64], sizes = [8, 32], strides = [1, 1]} : vector<8x96xf32> to vector<8x32xf32>
    %185 = vector.extract_strided_slice %167 {offsets = [0, 64], sizes = [8, 32], strides = [1, 1]} : vector<8x96xf32> to vector<8x32xf32>
    %186 = arith.mulf %175, %185 : vector<8x32xf32>
    %187 = arith.addf %184, %186 : vector<8x32xf32>
    %188 = math.tanh %187 : vector<8x32xf32>
    %cst_33 = arith.constant 1.000000e+00 : f32
    %189 = vector.broadcast %cst_33 : f32 to vector<8x32xf32>
    %190 = arith.subf %189, %183 : vector<8x32xf32>
    %191 = arith.mulf %190, %188 : vector<8x32xf32>
    %192 = arith.mulf %183, %163 : vector<8x32xf32>
    %193 = arith.addf %191, %192 : vector<8x32xf32>
    %194 = vector.extract_strided_slice %10 {offsets = [48, 0], sizes = [8, 96], strides = [1, 1]} : vector<64x96xf32> to vector<8x96xf32>
    %cst_34 = arith.constant dense<0.000000e+00> : vector<8x96xf32>
    %195 = tpu.matmul %193, %11, %cst_34 {dimension_numbers = #tpu.dot_dimension_numbers<[1], [0], [0], [1], [0, 0, 1, 1], [], []>, precision = #tpu.contract_precision<fp32>} : vector<8x32xf32>, vector<32x96xf32>, vector<8x96xf32> -> vector<8x96xf32>
    %196 = vector.broadcast %12 : vector<1x96xf32> to vector<8x96xf32>
    %197 = arith.addf %195, %196 : vector<8x96xf32>
    %198 = vector.extract_strided_slice %194 {offsets = [0, 0], sizes = [8, 32], strides = [1, 1]} : vector<8x96xf32> to vector<8x32xf32>
    %199 = vector.extract_strided_slice %197 {offsets = [0, 0], sizes = [8, 32], strides = [1, 1]} : vector<8x96xf32> to vector<8x32xf32>
    %200 = arith.addf %198, %199 : vector<8x32xf32>
    %201 = arith.negf %200 : vector<8x32xf32>
    %202 = math.exp %201 : vector<8x32xf32>
    %cst_35 = arith.constant 1.000000e+00 : f32
    %203 = vector.broadcast %cst_35 : f32 to vector<8x32xf32>
    %204 = arith.addf %203, %202 : vector<8x32xf32>
    %205 = arith.divf %203, %204 : vector<8x32xf32>
    %206 = vector.extract_strided_slice %194 {offsets = [0, 32], sizes = [8, 32], strides = [1, 1]} : vector<8x96xf32> to vector<8x32xf32>
    %207 = vector.extract_strided_slice %197 {offsets = [0, 32], sizes = [8, 32], strides = [1, 1]} : vector<8x96xf32> to vector<8x32xf32>
    %208 = arith.addf %206, %207 : vector<8x32xf32>
    %209 = arith.negf %208 : vector<8x32xf32>
    %210 = math.exp %209 : vector<8x32xf32>
    %cst_36 = arith.constant 1.000000e+00 : f32
    %211 = vector.broadcast %cst_36 : f32 to vector<8x32xf32>
    %212 = arith.addf %211, %210 : vector<8x32xf32>
    %213 = arith.divf %211, %212 : vector<8x32xf32>
    %214 = vector.extract_strided_slice %194 {offsets = [0, 64], sizes = [8, 32], strides = [1, 1]} : vector<8x96xf32> to vector<8x32xf32>
    %215 = vector.extract_strided_slice %197 {offsets = [0, 64], sizes = [8, 32], strides = [1, 1]} : vector<8x96xf32> to vector<8x32xf32>
    %216 = arith.mulf %205, %215 : vector<8x32xf32>
    %217 = arith.addf %214, %216 : vector<8x32xf32>
    %218 = math.tanh %217 : vector<8x32xf32>
    %cst_37 = arith.constant 1.000000e+00 : f32
    %219 = vector.broadcast %cst_37 : f32 to vector<8x32xf32>
    %220 = arith.subf %219, %213 : vector<8x32xf32>
    %221 = arith.mulf %220, %218 : vector<8x32xf32>
    %222 = arith.mulf %213, %193 : vector<8x32xf32>
    %223 = arith.addf %221, %222 : vector<8x32xf32>
    %224 = vector.extract_strided_slice %10 {offsets = [56, 0], sizes = [8, 96], strides = [1, 1]} : vector<64x96xf32> to vector<8x96xf32>
    %cst_38 = arith.constant dense<0.000000e+00> : vector<8x96xf32>
    %225 = tpu.matmul %223, %11, %cst_38 {dimension_numbers = #tpu.dot_dimension_numbers<[1], [0], [0], [1], [0, 0, 1, 1], [], []>, precision = #tpu.contract_precision<fp32>} : vector<8x32xf32>, vector<32x96xf32>, vector<8x96xf32> -> vector<8x96xf32>
    %226 = vector.broadcast %12 : vector<1x96xf32> to vector<8x96xf32>
    %227 = arith.addf %225, %226 : vector<8x96xf32>
    %228 = vector.extract_strided_slice %224 {offsets = [0, 0], sizes = [8, 32], strides = [1, 1]} : vector<8x96xf32> to vector<8x32xf32>
    %229 = vector.extract_strided_slice %227 {offsets = [0, 0], sizes = [8, 32], strides = [1, 1]} : vector<8x96xf32> to vector<8x32xf32>
    %230 = arith.addf %228, %229 : vector<8x32xf32>
    %231 = arith.negf %230 : vector<8x32xf32>
    %232 = math.exp %231 : vector<8x32xf32>
    %cst_39 = arith.constant 1.000000e+00 : f32
    %233 = vector.broadcast %cst_39 : f32 to vector<8x32xf32>
    %234 = arith.addf %233, %232 : vector<8x32xf32>
    %235 = arith.divf %233, %234 : vector<8x32xf32>
    %236 = vector.extract_strided_slice %224 {offsets = [0, 32], sizes = [8, 32], strides = [1, 1]} : vector<8x96xf32> to vector<8x32xf32>
    %237 = vector.extract_strided_slice %227 {offsets = [0, 32], sizes = [8, 32], strides = [1, 1]} : vector<8x96xf32> to vector<8x32xf32>
    %238 = arith.addf %236, %237 : vector<8x32xf32>
    %239 = arith.negf %238 : vector<8x32xf32>
    %240 = math.exp %239 : vector<8x32xf32>
    %cst_40 = arith.constant 1.000000e+00 : f32
    %241 = vector.broadcast %cst_40 : f32 to vector<8x32xf32>
    %242 = arith.addf %241, %240 : vector<8x32xf32>
    %243 = arith.divf %241, %242 : vector<8x32xf32>
    %244 = vector.extract_strided_slice %224 {offsets = [0, 64], sizes = [8, 32], strides = [1, 1]} : vector<8x96xf32> to vector<8x32xf32>
    %245 = vector.extract_strided_slice %227 {offsets = [0, 64], sizes = [8, 32], strides = [1, 1]} : vector<8x96xf32> to vector<8x32xf32>
    %246 = arith.mulf %235, %245 : vector<8x32xf32>
    %247 = arith.addf %244, %246 : vector<8x32xf32>
    %248 = math.tanh %247 : vector<8x32xf32>
    %cst_41 = arith.constant 1.000000e+00 : f32
    %249 = vector.broadcast %cst_41 : f32 to vector<8x32xf32>
    %250 = arith.subf %249, %243 : vector<8x32xf32>
    %251 = arith.mulf %250, %248 : vector<8x32xf32>
    %252 = arith.mulf %243, %223 : vector<8x32xf32>
    %253 = arith.addf %251, %252 : vector<8x32xf32>
    %c0_42 = arith.constant 0 : index
    %c0_43 = arith.constant 0 : index
    %254 = vector.load %arg5[%c0_42, %c0_43] : memref<32x96xf32, #tpu.memory_space<vmem>>, vector<32x96xf32>
    %cst_44 = arith.constant dense<0.000000e+00> : vector<8x96xf32>
    %255 = tpu.matmul %253, %254, %cst_44 {dimension_numbers = #tpu.dot_dimension_numbers<[1], [0], [0], [1], [0, 0, 1, 1], [], []>, precision = #tpu.contract_precision<fp32>} : vector<8x32xf32>, vector<32x96xf32>, vector<8x96xf32> -> vector<8x96xf32>
    %c0_45 = arith.constant 0 : index
    %c0_46 = arith.constant 0 : index
    %256 = vector.load %arg6[%c0_45, %c0_46] : memref<1x96xf32, #tpu.memory_space<vmem>>, vector<1x96xf32>
    %257 = vector.broadcast %256 : vector<1x96xf32> to vector<8x96xf32>
    %258 = arith.addf %255, %257 : vector<8x96xf32>
    %c0_47 = arith.constant 0 : index
    %c0_48 = arith.constant 0 : index
    %259 = vector.load %arg7[%c0_47, %c0_48] : memref<32x96xf32, #tpu.memory_space<vmem>>, vector<32x96xf32>
    %c0_49 = arith.constant 0 : index
    %c0_50 = arith.constant 0 : index
    %260 = vector.load %arg8[%c0_49, %c0_50] : memref<1x96xf32, #tpu.memory_space<vmem>>, vector<1x96xf32>
    %cst_51 = arith.constant 0.000000e+00 : f32
    %261 = vector.broadcast %cst_51 : f32 to vector<8x32xf32>
    %c0_i32 = arith.constant 0 : i32
    %cst_52 = arith.constant dense<0.000000e+00> : vector<8x96xf32>
    %262 = tpu.matmul %261, %259, %cst_52 {dimension_numbers = #tpu.dot_dimension_numbers<[1], [0], [0], [1], [0, 0, 1, 1], [], []>, precision = #tpu.contract_precision<fp32>} : vector<8x32xf32>, vector<32x96xf32>, vector<8x96xf32> -> vector<8x96xf32>
    %263 = vector.broadcast %260 : vector<1x96xf32> to vector<8x96xf32>
    %264 = arith.addf %262, %263 : vector<8x96xf32>
    %265 = vector.extract_strided_slice %258 {offsets = [0, 0], sizes = [8, 32], strides = [1, 1]} : vector<8x96xf32> to vector<8x32xf32>
    %266 = vector.extract_strided_slice %264 {offsets = [0, 0], sizes = [8, 32], strides = [1, 1]} : vector<8x96xf32> to vector<8x32xf32>
    %267 = arith.addf %265, %266 : vector<8x32xf32>
    %268 = arith.negf %267 : vector<8x32xf32>
    %269 = math.exp %268 : vector<8x32xf32>
    %cst_53 = arith.constant 1.000000e+00 : f32
    %270 = vector.broadcast %cst_53 : f32 to vector<8x32xf32>
    %271 = arith.addf %270, %269 : vector<8x32xf32>
    %272 = arith.divf %270, %271 : vector<8x32xf32>
    %273 = vector.extract_strided_slice %258 {offsets = [0, 32], sizes = [8, 32], strides = [1, 1]} : vector<8x96xf32> to vector<8x32xf32>
    %274 = vector.extract_strided_slice %264 {offsets = [0, 32], sizes = [8, 32], strides = [1, 1]} : vector<8x96xf32> to vector<8x32xf32>
    %275 = arith.addf %273, %274 : vector<8x32xf32>
    %276 = arith.negf %275 : vector<8x32xf32>
    %277 = math.exp %276 : vector<8x32xf32>
    %cst_54 = arith.constant 1.000000e+00 : f32
    %278 = vector.broadcast %cst_54 : f32 to vector<8x32xf32>
    %279 = arith.addf %278, %277 : vector<8x32xf32>
    %280 = arith.divf %278, %279 : vector<8x32xf32>
    %281 = vector.extract_strided_slice %258 {offsets = [0, 64], sizes = [8, 32], strides = [1, 1]} : vector<8x96xf32> to vector<8x32xf32>
    %282 = vector.extract_strided_slice %264 {offsets = [0, 64], sizes = [8, 32], strides = [1, 1]} : vector<8x96xf32> to vector<8x32xf32>
    %283 = arith.mulf %272, %282 : vector<8x32xf32>
    %284 = arith.addf %281, %283 : vector<8x32xf32>
    %285 = math.tanh %284 : vector<8x32xf32>
    %cst_55 = arith.constant 1.000000e+00 : f32
    %286 = vector.broadcast %cst_55 : f32 to vector<8x32xf32>
    %287 = arith.subf %286, %280 : vector<8x32xf32>
    %288 = arith.mulf %287, %285 : vector<8x32xf32>
    %289 = arith.mulf %280, %261 : vector<8x32xf32>
    %290 = arith.addf %288, %289 : vector<8x32xf32>
    %c1_i32 = arith.constant 1 : i32
    %cst_56 = arith.constant dense<0.000000e+00> : vector<8x96xf32>
    %291 = tpu.matmul %290, %259, %cst_56 {dimension_numbers = #tpu.dot_dimension_numbers<[1], [0], [0], [1], [0, 0, 1, 1], [], []>, precision = #tpu.contract_precision<fp32>} : vector<8x32xf32>, vector<32x96xf32>, vector<8x96xf32> -> vector<8x96xf32>
    %292 = vector.broadcast %260 : vector<1x96xf32> to vector<8x96xf32>
    %293 = arith.addf %291, %292 : vector<8x96xf32>
    %294 = vector.extract_strided_slice %258 {offsets = [0, 0], sizes = [8, 32], strides = [1, 1]} : vector<8x96xf32> to vector<8x32xf32>
    %295 = vector.extract_strided_slice %293 {offsets = [0, 0], sizes = [8, 32], strides = [1, 1]} : vector<8x96xf32> to vector<8x32xf32>
    %296 = arith.addf %294, %295 : vector<8x32xf32>
    %297 = arith.negf %296 : vector<8x32xf32>
    %298 = math.exp %297 : vector<8x32xf32>
    %cst_57 = arith.constant 1.000000e+00 : f32
    %299 = vector.broadcast %cst_57 : f32 to vector<8x32xf32>
    %300 = arith.addf %299, %298 : vector<8x32xf32>
    %301 = arith.divf %299, %300 : vector<8x32xf32>
    %302 = vector.extract_strided_slice %258 {offsets = [0, 32], sizes = [8, 32], strides = [1, 1]} : vector<8x96xf32> to vector<8x32xf32>
    %303 = vector.extract_strided_slice %293 {offsets = [0, 32], sizes = [8, 32], strides = [1, 1]} : vector<8x96xf32> to vector<8x32xf32>
    %304 = arith.addf %302, %303 : vector<8x32xf32>
    %305 = arith.negf %304 : vector<8x32xf32>
    %306 = math.exp %305 : vector<8x32xf32>
    %cst_58 = arith.constant 1.000000e+00 : f32
    %307 = vector.broadcast %cst_58 : f32 to vector<8x32xf32>
    %308 = arith.addf %307, %306 : vector<8x32xf32>
    %309 = arith.divf %307, %308 : vector<8x32xf32>
    %310 = vector.extract_strided_slice %258 {offsets = [0, 64], sizes = [8, 32], strides = [1, 1]} : vector<8x96xf32> to vector<8x32xf32>
    %311 = vector.extract_strided_slice %293 {offsets = [0, 64], sizes = [8, 32], strides = [1, 1]} : vector<8x96xf32> to vector<8x32xf32>
    %312 = arith.mulf %301, %311 : vector<8x32xf32>
    %313 = arith.addf %310, %312 : vector<8x32xf32>
    %314 = math.tanh %313 : vector<8x32xf32>
    %cst_59 = arith.constant 1.000000e+00 : f32
    %315 = vector.broadcast %cst_59 : f32 to vector<8x32xf32>
    %316 = arith.subf %315, %309 : vector<8x32xf32>
    %317 = arith.mulf %316, %314 : vector<8x32xf32>
    %318 = arith.mulf %309, %290 : vector<8x32xf32>
    %319 = arith.addf %317, %318 : vector<8x32xf32>
    %c2_i32 = arith.constant 2 : i32
    %cst_60 = arith.constant dense<0.000000e+00> : vector<8x96xf32>
    %320 = tpu.matmul %319, %259, %cst_60 {dimension_numbers = #tpu.dot_dimension_numbers<[1], [0], [0], [1], [0, 0, 1, 1], [], []>, precision = #tpu.contract_precision<fp32>} : vector<8x32xf32>, vector<32x96xf32>, vector<8x96xf32> -> vector<8x96xf32>
    %321 = vector.broadcast %260 : vector<1x96xf32> to vector<8x96xf32>
    %322 = arith.addf %320, %321 : vector<8x96xf32>
    %323 = vector.extract_strided_slice %258 {offsets = [0, 0], sizes = [8, 32], strides = [1, 1]} : vector<8x96xf32> to vector<8x32xf32>
    %324 = vector.extract_strided_slice %322 {offsets = [0, 0], sizes = [8, 32], strides = [1, 1]} : vector<8x96xf32> to vector<8x32xf32>
    %325 = arith.addf %323, %324 : vector<8x32xf32>
    %326 = arith.negf %325 : vector<8x32xf32>
    %327 = math.exp %326 : vector<8x32xf32>
    %cst_61 = arith.constant 1.000000e+00 : f32
    %328 = vector.broadcast %cst_61 : f32 to vector<8x32xf32>
    %329 = arith.addf %328, %327 : vector<8x32xf32>
    %330 = arith.divf %328, %329 : vector<8x32xf32>
    %331 = vector.extract_strided_slice %258 {offsets = [0, 32], sizes = [8, 32], strides = [1, 1]} : vector<8x96xf32> to vector<8x32xf32>
    %332 = vector.extract_strided_slice %322 {offsets = [0, 32], sizes = [8, 32], strides = [1, 1]} : vector<8x96xf32> to vector<8x32xf32>
    %333 = arith.addf %331, %332 : vector<8x32xf32>
    %334 = arith.negf %333 : vector<8x32xf32>
    %335 = math.exp %334 : vector<8x32xf32>
    %cst_62 = arith.constant 1.000000e+00 : f32
    %336 = vector.broadcast %cst_62 : f32 to vector<8x32xf32>
    %337 = arith.addf %336, %335 : vector<8x32xf32>
    %338 = arith.divf %336, %337 : vector<8x32xf32>
    %339 = vector.extract_strided_slice %258 {offsets = [0, 64], sizes = [8, 32], strides = [1, 1]} : vector<8x96xf32> to vector<8x32xf32>
    %340 = vector.extract_strided_slice %322 {offsets = [0, 64], sizes = [8, 32], strides = [1, 1]} : vector<8x96xf32> to vector<8x32xf32>
    %341 = arith.mulf %330, %340 : vector<8x32xf32>
    %342 = arith.addf %339, %341 : vector<8x32xf32>
    %343 = math.tanh %342 : vector<8x32xf32>
    %cst_63 = arith.constant 1.000000e+00 : f32
    %344 = vector.broadcast %cst_63 : f32 to vector<8x32xf32>
    %345 = arith.subf %344, %338 : vector<8x32xf32>
    %346 = arith.mulf %345, %343 : vector<8x32xf32>
    %347 = arith.mulf %338, %319 : vector<8x32xf32>
    %348 = arith.addf %346, %347 : vector<8x32xf32>
    %c3_i32 = arith.constant 3 : i32
    %cst_64 = arith.constant dense<0.000000e+00> : vector<8x96xf32>
    %349 = tpu.matmul %348, %259, %cst_64 {dimension_numbers = #tpu.dot_dimension_numbers<[1], [0], [0], [1], [0, 0, 1, 1], [], []>, precision = #tpu.contract_precision<fp32>} : vector<8x32xf32>, vector<32x96xf32>, vector<8x96xf32> -> vector<8x96xf32>
    %350 = vector.broadcast %260 : vector<1x96xf32> to vector<8x96xf32>
    %351 = arith.addf %349, %350 : vector<8x96xf32>
    %352 = vector.extract_strided_slice %258 {offsets = [0, 0], sizes = [8, 32], strides = [1, 1]} : vector<8x96xf32> to vector<8x32xf32>
    %353 = vector.extract_strided_slice %351 {offsets = [0, 0], sizes = [8, 32], strides = [1, 1]} : vector<8x96xf32> to vector<8x32xf32>
    %354 = arith.addf %352, %353 : vector<8x32xf32>
    %355 = arith.negf %354 : vector<8x32xf32>
    %356 = math.exp %355 : vector<8x32xf32>
    %cst_65 = arith.constant 1.000000e+00 : f32
    %357 = vector.broadcast %cst_65 : f32 to vector<8x32xf32>
    %358 = arith.addf %357, %356 : vector<8x32xf32>
    %359 = arith.divf %357, %358 : vector<8x32xf32>
    %360 = vector.extract_strided_slice %258 {offsets = [0, 32], sizes = [8, 32], strides = [1, 1]} : vector<8x96xf32> to vector<8x32xf32>
    %361 = vector.extract_strided_slice %351 {offsets = [0, 32], sizes = [8, 32], strides = [1, 1]} : vector<8x96xf32> to vector<8x32xf32>
    %362 = arith.addf %360, %361 : vector<8x32xf32>
    %363 = arith.negf %362 : vector<8x32xf32>
    %364 = math.exp %363 : vector<8x32xf32>
    %cst_66 = arith.constant 1.000000e+00 : f32
    %365 = vector.broadcast %cst_66 : f32 to vector<8x32xf32>
    %366 = arith.addf %365, %364 : vector<8x32xf32>
    %367 = arith.divf %365, %366 : vector<8x32xf32>
    %368 = vector.extract_strided_slice %258 {offsets = [0, 64], sizes = [8, 32], strides = [1, 1]} : vector<8x96xf32> to vector<8x32xf32>
    %369 = vector.extract_strided_slice %351 {offsets = [0, 64], sizes = [8, 32], strides = [1, 1]} : vector<8x96xf32> to vector<8x32xf32>
    %370 = arith.mulf %359, %369 : vector<8x32xf32>
    %371 = arith.addf %368, %370 : vector<8x32xf32>
    %372 = math.tanh %371 : vector<8x32xf32>
    %cst_67 = arith.constant 1.000000e+00 : f32
    %373 = vector.broadcast %cst_67 : f32 to vector<8x32xf32>
    %374 = arith.subf %373, %367 : vector<8x32xf32>
    %375 = arith.mulf %374, %372 : vector<8x32xf32>
    %376 = arith.mulf %367, %348 : vector<8x32xf32>
    %377 = arith.addf %375, %376 : vector<8x32xf32>
    %c4_i32 = arith.constant 4 : i32
    %cst_68 = arith.constant dense<0.000000e+00> : vector<8x96xf32>
    %378 = tpu.matmul %377, %259, %cst_68 {dimension_numbers = #tpu.dot_dimension_numbers<[1], [0], [0], [1], [0, 0, 1, 1], [], []>, precision = #tpu.contract_precision<fp32>} : vector<8x32xf32>, vector<32x96xf32>, vector<8x96xf32> -> vector<8x96xf32>
    %379 = vector.broadcast %260 : vector<1x96xf32> to vector<8x96xf32>
    %380 = arith.addf %378, %379 : vector<8x96xf32>
    %381 = vector.extract_strided_slice %258 {offsets = [0, 0], sizes = [8, 32], strides = [1, 1]} : vector<8x96xf32> to vector<8x32xf32>
    %382 = vector.extract_strided_slice %380 {offsets = [0, 0], sizes = [8, 32], strides = [1, 1]} : vector<8x96xf32> to vector<8x32xf32>
    %383 = arith.addf %381, %382 : vector<8x32xf32>
    %384 = arith.negf %383 : vector<8x32xf32>
    %385 = math.exp %384 : vector<8x32xf32>
    %cst_69 = arith.constant 1.000000e+00 : f32
    %386 = vector.broadcast %cst_69 : f32 to vector<8x32xf32>
    %387 = arith.addf %386, %385 : vector<8x32xf32>
    %388 = arith.divf %386, %387 : vector<8x32xf32>
    %389 = vector.extract_strided_slice %258 {offsets = [0, 32], sizes = [8, 32], strides = [1, 1]} : vector<8x96xf32> to vector<8x32xf32>
    %390 = vector.extract_strided_slice %380 {offsets = [0, 32], sizes = [8, 32], strides = [1, 1]} : vector<8x96xf32> to vector<8x32xf32>
    %391 = arith.addf %389, %390 : vector<8x32xf32>
    %392 = arith.negf %391 : vector<8x32xf32>
    %393 = math.exp %392 : vector<8x32xf32>
    %cst_70 = arith.constant 1.000000e+00 : f32
    %394 = vector.broadcast %cst_70 : f32 to vector<8x32xf32>
    %395 = arith.addf %394, %393 : vector<8x32xf32>
    %396 = arith.divf %394, %395 : vector<8x32xf32>
    %397 = vector.extract_strided_slice %258 {offsets = [0, 64], sizes = [8, 32], strides = [1, 1]} : vector<8x96xf32> to vector<8x32xf32>
    %398 = vector.extract_strided_slice %380 {offsets = [0, 64], sizes = [8, 32], strides = [1, 1]} : vector<8x96xf32> to vector<8x32xf32>
    %399 = arith.mulf %388, %398 : vector<8x32xf32>
    %400 = arith.addf %397, %399 : vector<8x32xf32>
    %401 = math.tanh %400 : vector<8x32xf32>
    %cst_71 = arith.constant 1.000000e+00 : f32
    %402 = vector.broadcast %cst_71 : f32 to vector<8x32xf32>
    %403 = arith.subf %402, %396 : vector<8x32xf32>
    %404 = arith.mulf %403, %401 : vector<8x32xf32>
    %405 = arith.mulf %396, %377 : vector<8x32xf32>
    %406 = arith.addf %404, %405 : vector<8x32xf32>
    %c5_i32 = arith.constant 5 : i32
    %cst_72 = arith.constant dense<0.000000e+00> : vector<8x96xf32>
    %407 = tpu.matmul %406, %259, %cst_72 {dimension_numbers = #tpu.dot_dimension_numbers<[1], [0], [0], [1], [0, 0, 1, 1], [], []>, precision = #tpu.contract_precision<fp32>} : vector<8x32xf32>, vector<32x96xf32>, vector<8x96xf32> -> vector<8x96xf32>
    %408 = vector.broadcast %260 : vector<1x96xf32> to vector<8x96xf32>
    %409 = arith.addf %407, %408 : vector<8x96xf32>
    %410 = vector.extract_strided_slice %258 {offsets = [0, 0], sizes = [8, 32], strides = [1, 1]} : vector<8x96xf32> to vector<8x32xf32>
    %411 = vector.extract_strided_slice %409 {offsets = [0, 0], sizes = [8, 32], strides = [1, 1]} : vector<8x96xf32> to vector<8x32xf32>
    %412 = arith.addf %410, %411 : vector<8x32xf32>
    %413 = arith.negf %412 : vector<8x32xf32>
    %414 = math.exp %413 : vector<8x32xf32>
    %cst_73 = arith.constant 1.000000e+00 : f32
    %415 = vector.broadcast %cst_73 : f32 to vector<8x32xf32>
    %416 = arith.addf %415, %414 : vector<8x32xf32>
    %417 = arith.divf %415, %416 : vector<8x32xf32>
    %418 = vector.extract_strided_slice %258 {offsets = [0, 32], sizes = [8, 32], strides = [1, 1]} : vector<8x96xf32> to vector<8x32xf32>
    %419 = vector.extract_strided_slice %409 {offsets = [0, 32], sizes = [8, 32], strides = [1, 1]} : vector<8x96xf32> to vector<8x32xf32>
    %420 = arith.addf %418, %419 : vector<8x32xf32>
    %421 = arith.negf %420 : vector<8x32xf32>
    %422 = math.exp %421 : vector<8x32xf32>
    %cst_74 = arith.constant 1.000000e+00 : f32
    %423 = vector.broadcast %cst_74 : f32 to vector<8x32xf32>
    %424 = arith.addf %423, %422 : vector<8x32xf32>
    %425 = arith.divf %423, %424 : vector<8x32xf32>
    %426 = vector.extract_strided_slice %258 {offsets = [0, 64], sizes = [8, 32], strides = [1, 1]} : vector<8x96xf32> to vector<8x32xf32>
    %427 = vector.extract_strided_slice %409 {offsets = [0, 64], sizes = [8, 32], strides = [1, 1]} : vector<8x96xf32> to vector<8x32xf32>
    %428 = arith.mulf %417, %427 : vector<8x32xf32>
    %429 = arith.addf %426, %428 : vector<8x32xf32>
    %430 = math.tanh %429 : vector<8x32xf32>
    %cst_75 = arith.constant 1.000000e+00 : f32
    %431 = vector.broadcast %cst_75 : f32 to vector<8x32xf32>
    %432 = arith.subf %431, %425 : vector<8x32xf32>
    %433 = arith.mulf %432, %430 : vector<8x32xf32>
    %434 = arith.mulf %425, %406 : vector<8x32xf32>
    %435 = arith.addf %433, %434 : vector<8x32xf32>
    %c6_i32 = arith.constant 6 : i32
    %cst_76 = arith.constant dense<0.000000e+00> : vector<8x96xf32>
    %436 = tpu.matmul %435, %259, %cst_76 {dimension_numbers = #tpu.dot_dimension_numbers<[1], [0], [0], [1], [0, 0, 1, 1], [], []>, precision = #tpu.contract_precision<fp32>} : vector<8x32xf32>, vector<32x96xf32>, vector<8x96xf32> -> vector<8x96xf32>
    %437 = vector.broadcast %260 : vector<1x96xf32> to vector<8x96xf32>
    %438 = arith.addf %436, %437 : vector<8x96xf32>
    %439 = vector.extract_strided_slice %258 {offsets = [0, 0], sizes = [8, 32], strides = [1, 1]} : vector<8x96xf32> to vector<8x32xf32>
    %440 = vector.extract_strided_slice %438 {offsets = [0, 0], sizes = [8, 32], strides = [1, 1]} : vector<8x96xf32> to vector<8x32xf32>
    %441 = arith.addf %439, %440 : vector<8x32xf32>
    %442 = arith.negf %441 : vector<8x32xf32>
    %443 = math.exp %442 : vector<8x32xf32>
    %cst_77 = arith.constant 1.000000e+00 : f32
    %444 = vector.broadcast %cst_77 : f32 to vector<8x32xf32>
    %445 = arith.addf %444, %443 : vector<8x32xf32>
    %446 = arith.divf %444, %445 : vector<8x32xf32>
    %447 = vector.extract_strided_slice %258 {offsets = [0, 32], sizes = [8, 32], strides = [1, 1]} : vector<8x96xf32> to vector<8x32xf32>
    %448 = vector.extract_strided_slice %438 {offsets = [0, 32], sizes = [8, 32], strides = [1, 1]} : vector<8x96xf32> to vector<8x32xf32>
    %449 = arith.addf %447, %448 : vector<8x32xf32>
    %450 = arith.negf %449 : vector<8x32xf32>
    %451 = math.exp %450 : vector<8x32xf32>
    %cst_78 = arith.constant 1.000000e+00 : f32
    %452 = vector.broadcast %cst_78 : f32 to vector<8x32xf32>
    %453 = arith.addf %452, %451 : vector<8x32xf32>
    %454 = arith.divf %452, %453 : vector<8x32xf32>
    %455 = vector.extract_strided_slice %258 {offsets = [0, 64], sizes = [8, 32], strides = [1, 1]} : vector<8x96xf32> to vector<8x32xf32>
    %456 = vector.extract_strided_slice %438 {offsets = [0, 64], sizes = [8, 32], strides = [1, 1]} : vector<8x96xf32> to vector<8x32xf32>
    %457 = arith.mulf %446, %456 : vector<8x32xf32>
    %458 = arith.addf %455, %457 : vector<8x32xf32>
    %459 = math.tanh %458 : vector<8x32xf32>
    %cst_79 = arith.constant 1.000000e+00 : f32
    %460 = vector.broadcast %cst_79 : f32 to vector<8x32xf32>
    %461 = arith.subf %460, %454 : vector<8x32xf32>
    %462 = arith.mulf %461, %459 : vector<8x32xf32>
    %463 = arith.mulf %454, %435 : vector<8x32xf32>
    %464 = arith.addf %462, %463 : vector<8x32xf32>
    %c7_i32 = arith.constant 7 : i32
    %cst_80 = arith.constant dense<0.000000e+00> : vector<8x96xf32>
    %465 = tpu.matmul %464, %259, %cst_80 {dimension_numbers = #tpu.dot_dimension_numbers<[1], [0], [0], [1], [0, 0, 1, 1], [], []>, precision = #tpu.contract_precision<fp32>} : vector<8x32xf32>, vector<32x96xf32>, vector<8x96xf32> -> vector<8x96xf32>
    %466 = vector.broadcast %260 : vector<1x96xf32> to vector<8x96xf32>
    %467 = arith.addf %465, %466 : vector<8x96xf32>
    %468 = vector.extract_strided_slice %258 {offsets = [0, 0], sizes = [8, 32], strides = [1, 1]} : vector<8x96xf32> to vector<8x32xf32>
    %469 = vector.extract_strided_slice %467 {offsets = [0, 0], sizes = [8, 32], strides = [1, 1]} : vector<8x96xf32> to vector<8x32xf32>
    %470 = arith.addf %468, %469 : vector<8x32xf32>
    %471 = arith.negf %470 : vector<8x32xf32>
    %472 = math.exp %471 : vector<8x32xf32>
    %cst_81 = arith.constant 1.000000e+00 : f32
    %473 = vector.broadcast %cst_81 : f32 to vector<8x32xf32>
    %474 = arith.addf %473, %472 : vector<8x32xf32>
    %475 = arith.divf %473, %474 : vector<8x32xf32>
    %476 = vector.extract_strided_slice %258 {offsets = [0, 32], sizes = [8, 32], strides = [1, 1]} : vector<8x96xf32> to vector<8x32xf32>
    %477 = vector.extract_strided_slice %467 {offsets = [0, 32], sizes = [8, 32], strides = [1, 1]} : vector<8x96xf32> to vector<8x32xf32>
    %478 = arith.addf %476, %477 : vector<8x32xf32>
    %479 = arith.negf %478 : vector<8x32xf32>
    %480 = math.exp %479 : vector<8x32xf32>
    %cst_82 = arith.constant 1.000000e+00 : f32
    %481 = vector.broadcast %cst_82 : f32 to vector<8x32xf32>
    %482 = arith.addf %481, %480 : vector<8x32xf32>
    %483 = arith.divf %481, %482 : vector<8x32xf32>
    %484 = vector.extract_strided_slice %258 {offsets = [0, 64], sizes = [8, 32], strides = [1, 1]} : vector<8x96xf32> to vector<8x32xf32>
    %485 = vector.extract_strided_slice %467 {offsets = [0, 64], sizes = [8, 32], strides = [1, 1]} : vector<8x96xf32> to vector<8x32xf32>
    %486 = arith.mulf %475, %485 : vector<8x32xf32>
    %487 = arith.addf %484, %486 : vector<8x32xf32>
    %488 = math.tanh %487 : vector<8x32xf32>
    %cst_83 = arith.constant 1.000000e+00 : f32
    %489 = vector.broadcast %cst_83 : f32 to vector<8x32xf32>
    %490 = arith.subf %489, %483 : vector<8x32xf32>
    %491 = arith.mulf %490, %488 : vector<8x32xf32>
    %492 = arith.mulf %483, %464 : vector<8x32xf32>
    %493 = arith.addf %491, %492 : vector<8x32xf32>
    %c8_i32 = arith.constant 8 : i32
    %cst_84 = arith.constant dense<0.000000e+00> : vector<8x96xf32>
    %494 = tpu.matmul %493, %259, %cst_84 {dimension_numbers = #tpu.dot_dimension_numbers<[1], [0], [0], [1], [0, 0, 1, 1], [], []>, precision = #tpu.contract_precision<fp32>} : vector<8x32xf32>, vector<32x96xf32>, vector<8x96xf32> -> vector<8x96xf32>
    %495 = vector.broadcast %260 : vector<1x96xf32> to vector<8x96xf32>
    %496 = arith.addf %494, %495 : vector<8x96xf32>
    %497 = vector.extract_strided_slice %258 {offsets = [0, 0], sizes = [8, 32], strides = [1, 1]} : vector<8x96xf32> to vector<8x32xf32>
    %498 = vector.extract_strided_slice %496 {offsets = [0, 0], sizes = [8, 32], strides = [1, 1]} : vector<8x96xf32> to vector<8x32xf32>
    %499 = arith.addf %497, %498 : vector<8x32xf32>
    %500 = arith.negf %499 : vector<8x32xf32>
    %501 = math.exp %500 : vector<8x32xf32>
    %cst_85 = arith.constant 1.000000e+00 : f32
    %502 = vector.broadcast %cst_85 : f32 to vector<8x32xf32>
    %503 = arith.addf %502, %501 : vector<8x32xf32>
    %504 = arith.divf %502, %503 : vector<8x32xf32>
    %505 = vector.extract_strided_slice %258 {offsets = [0, 32], sizes = [8, 32], strides = [1, 1]} : vector<8x96xf32> to vector<8x32xf32>
    %506 = vector.extract_strided_slice %496 {offsets = [0, 32], sizes = [8, 32], strides = [1, 1]} : vector<8x96xf32> to vector<8x32xf32>
    %507 = arith.addf %505, %506 : vector<8x32xf32>
    %508 = arith.negf %507 : vector<8x32xf32>
    %509 = math.exp %508 : vector<8x32xf32>
    %cst_86 = arith.constant 1.000000e+00 : f32
    %510 = vector.broadcast %cst_86 : f32 to vector<8x32xf32>
    %511 = arith.addf %510, %509 : vector<8x32xf32>
    %512 = arith.divf %510, %511 : vector<8x32xf32>
    %513 = vector.extract_strided_slice %258 {offsets = [0, 64], sizes = [8, 32], strides = [1, 1]} : vector<8x96xf32> to vector<8x32xf32>
    %514 = vector.extract_strided_slice %496 {offsets = [0, 64], sizes = [8, 32], strides = [1, 1]} : vector<8x96xf32> to vector<8x32xf32>
    %515 = arith.mulf %504, %514 : vector<8x32xf32>
    %516 = arith.addf %513, %515 : vector<8x32xf32>
    %517 = math.tanh %516 : vector<8x32xf32>
    %cst_87 = arith.constant 1.000000e+00 : f32
    %518 = vector.broadcast %cst_87 : f32 to vector<8x32xf32>
    %519 = arith.subf %518, %512 : vector<8x32xf32>
    %520 = arith.mulf %519, %517 : vector<8x32xf32>
    %521 = arith.mulf %512, %493 : vector<8x32xf32>
    %522 = arith.addf %520, %521 : vector<8x32xf32>
    %c9_i32 = arith.constant 9 : i32
    %cst_88 = arith.constant dense<0.000000e+00> : vector<8x96xf32>
    %523 = tpu.matmul %522, %259, %cst_88 {dimension_numbers = #tpu.dot_dimension_numbers<[1], [0], [0], [1], [0, 0, 1, 1], [], []>, precision = #tpu.contract_precision<fp32>} : vector<8x32xf32>, vector<32x96xf32>, vector<8x96xf32> -> vector<8x96xf32>
    %524 = vector.broadcast %260 : vector<1x96xf32> to vector<8x96xf32>
    %525 = arith.addf %523, %524 : vector<8x96xf32>
    %526 = vector.extract_strided_slice %258 {offsets = [0, 0], sizes = [8, 32], strides = [1, 1]} : vector<8x96xf32> to vector<8x32xf32>
    %527 = vector.extract_strided_slice %525 {offsets = [0, 0], sizes = [8, 32], strides = [1, 1]} : vector<8x96xf32> to vector<8x32xf32>
    %528 = arith.addf %526, %527 : vector<8x32xf32>
    %529 = arith.negf %528 : vector<8x32xf32>
    %530 = math.exp %529 : vector<8x32xf32>
    %cst_89 = arith.constant 1.000000e+00 : f32
    %531 = vector.broadcast %cst_89 : f32 to vector<8x32xf32>
    %532 = arith.addf %531, %530 : vector<8x32xf32>
    %533 = arith.divf %531, %532 : vector<8x32xf32>
    %534 = vector.extract_strided_slice %258 {offsets = [0, 32], sizes = [8, 32], strides = [1, 1]} : vector<8x96xf32> to vector<8x32xf32>
    %535 = vector.extract_strided_slice %525 {offsets = [0, 32], sizes = [8, 32], strides = [1, 1]} : vector<8x96xf32> to vector<8x32xf32>
    %536 = arith.addf %534, %535 : vector<8x32xf32>
    %537 = arith.negf %536 : vector<8x32xf32>
    %538 = math.exp %537 : vector<8x32xf32>
    %cst_90 = arith.constant 1.000000e+00 : f32
    %539 = vector.broadcast %cst_90 : f32 to vector<8x32xf32>
    %540 = arith.addf %539, %538 : vector<8x32xf32>
    %541 = arith.divf %539, %540 : vector<8x32xf32>
    %542 = vector.extract_strided_slice %258 {offsets = [0, 64], sizes = [8, 32], strides = [1, 1]} : vector<8x96xf32> to vector<8x32xf32>
    %543 = vector.extract_strided_slice %525 {offsets = [0, 64], sizes = [8, 32], strides = [1, 1]} : vector<8x96xf32> to vector<8x32xf32>
    %544 = arith.mulf %533, %543 : vector<8x32xf32>
    %545 = arith.addf %542, %544 : vector<8x32xf32>
    %546 = math.tanh %545 : vector<8x32xf32>
    %cst_91 = arith.constant 1.000000e+00 : f32
    %547 = vector.broadcast %cst_91 : f32 to vector<8x32xf32>
    %548 = arith.subf %547, %541 : vector<8x32xf32>
    %549 = arith.mulf %548, %546 : vector<8x32xf32>
    %550 = arith.mulf %541, %522 : vector<8x32xf32>
    %551 = arith.addf %549, %550 : vector<8x32xf32>
    %c10_i32 = arith.constant 10 : i32
    %cst_92 = arith.constant dense<0.000000e+00> : vector<8x96xf32>
    %552 = tpu.matmul %551, %259, %cst_92 {dimension_numbers = #tpu.dot_dimension_numbers<[1], [0], [0], [1], [0, 0, 1, 1], [], []>, precision = #tpu.contract_precision<fp32>} : vector<8x32xf32>, vector<32x96xf32>, vector<8x96xf32> -> vector<8x96xf32>
    %553 = vector.broadcast %260 : vector<1x96xf32> to vector<8x96xf32>
    %554 = arith.addf %552, %553 : vector<8x96xf32>
    %555 = vector.extract_strided_slice %258 {offsets = [0, 0], sizes = [8, 32], strides = [1, 1]} : vector<8x96xf32> to vector<8x32xf32>
    %556 = vector.extract_strided_slice %554 {offsets = [0, 0], sizes = [8, 32], strides = [1, 1]} : vector<8x96xf32> to vector<8x32xf32>
    %557 = arith.addf %555, %556 : vector<8x32xf32>
    %558 = arith.negf %557 : vector<8x32xf32>
    %559 = math.exp %558 : vector<8x32xf32>
    %cst_93 = arith.constant 1.000000e+00 : f32
    %560 = vector.broadcast %cst_93 : f32 to vector<8x32xf32>
    %561 = arith.addf %560, %559 : vector<8x32xf32>
    %562 = arith.divf %560, %561 : vector<8x32xf32>
    %563 = vector.extract_strided_slice %258 {offsets = [0, 32], sizes = [8, 32], strides = [1, 1]} : vector<8x96xf32> to vector<8x32xf32>
    %564 = vector.extract_strided_slice %554 {offsets = [0, 32], sizes = [8, 32], strides = [1, 1]} : vector<8x96xf32> to vector<8x32xf32>
    %565 = arith.addf %563, %564 : vector<8x32xf32>
    %566 = arith.negf %565 : vector<8x32xf32>
    %567 = math.exp %566 : vector<8x32xf32>
    %cst_94 = arith.constant 1.000000e+00 : f32
    %568 = vector.broadcast %cst_94 : f32 to vector<8x32xf32>
    %569 = arith.addf %568, %567 : vector<8x32xf32>
    %570 = arith.divf %568, %569 : vector<8x32xf32>
    %571 = vector.extract_strided_slice %258 {offsets = [0, 64], sizes = [8, 32], strides = [1, 1]} : vector<8x96xf32> to vector<8x32xf32>
    %572 = vector.extract_strided_slice %554 {offsets = [0, 64], sizes = [8, 32], strides = [1, 1]} : vector<8x96xf32> to vector<8x32xf32>
    %573 = arith.mulf %562, %572 : vector<8x32xf32>
    %574 = arith.addf %571, %573 : vector<8x32xf32>
    %575 = math.tanh %574 : vector<8x32xf32>
    %cst_95 = arith.constant 1.000000e+00 : f32
    %576 = vector.broadcast %cst_95 : f32 to vector<8x32xf32>
    %577 = arith.subf %576, %570 : vector<8x32xf32>
    %578 = arith.mulf %577, %575 : vector<8x32xf32>
    %579 = arith.mulf %570, %551 : vector<8x32xf32>
    %580 = arith.addf %578, %579 : vector<8x32xf32>
    %c11_i32 = arith.constant 11 : i32
    %cst_96 = arith.constant dense<0.000000e+00> : vector<8x96xf32>
    %581 = tpu.matmul %580, %259, %cst_96 {dimension_numbers = #tpu.dot_dimension_numbers<[1], [0], [0], [1], [0, 0, 1, 1], [], []>, precision = #tpu.contract_precision<fp32>} : vector<8x32xf32>, vector<32x96xf32>, vector<8x96xf32> -> vector<8x96xf32>
    %582 = vector.broadcast %260 : vector<1x96xf32> to vector<8x96xf32>
    %583 = arith.addf %581, %582 : vector<8x96xf32>
    %584 = vector.extract_strided_slice %258 {offsets = [0, 0], sizes = [8, 32], strides = [1, 1]} : vector<8x96xf32> to vector<8x32xf32>
    %585 = vector.extract_strided_slice %583 {offsets = [0, 0], sizes = [8, 32], strides = [1, 1]} : vector<8x96xf32> to vector<8x32xf32>
    %586 = arith.addf %584, %585 : vector<8x32xf32>
    %587 = arith.negf %586 : vector<8x32xf32>
    %588 = math.exp %587 : vector<8x32xf32>
    %cst_97 = arith.constant 1.000000e+00 : f32
    %589 = vector.broadcast %cst_97 : f32 to vector<8x32xf32>
    %590 = arith.addf %589, %588 : vector<8x32xf32>
    %591 = arith.divf %589, %590 : vector<8x32xf32>
    %592 = vector.extract_strided_slice %258 {offsets = [0, 32], sizes = [8, 32], strides = [1, 1]} : vector<8x96xf32> to vector<8x32xf32>
    %593 = vector.extract_strided_slice %583 {offsets = [0, 32], sizes = [8, 32], strides = [1, 1]} : vector<8x96xf32> to vector<8x32xf32>
    %594 = arith.addf %592, %593 : vector<8x32xf32>
    %595 = arith.negf %594 : vector<8x32xf32>
    %596 = math.exp %595 : vector<8x32xf32>
    %cst_98 = arith.constant 1.000000e+00 : f32
    %597 = vector.broadcast %cst_98 : f32 to vector<8x32xf32>
    %598 = arith.addf %597, %596 : vector<8x32xf32>
    %599 = arith.divf %597, %598 : vector<8x32xf32>
    %600 = vector.extract_strided_slice %258 {offsets = [0, 64], sizes = [8, 32], strides = [1, 1]} : vector<8x96xf32> to vector<8x32xf32>
    %601 = vector.extract_strided_slice %583 {offsets = [0, 64], sizes = [8, 32], strides = [1, 1]} : vector<8x96xf32> to vector<8x32xf32>
    %602 = arith.mulf %591, %601 : vector<8x32xf32>
    %603 = arith.addf %600, %602 : vector<8x32xf32>
    %604 = math.tanh %603 : vector<8x32xf32>
    %cst_99 = arith.constant 1.000000e+00 : f32
    %605 = vector.broadcast %cst_99 : f32 to vector<8x32xf32>
    %606 = arith.subf %605, %599 : vector<8x32xf32>
    %607 = arith.mulf %606, %604 : vector<8x32xf32>
    %608 = arith.mulf %599, %580 : vector<8x32xf32>
    %609 = arith.addf %607, %608 : vector<8x32xf32>
    %c12_i32 = arith.constant 12 : i32
    %cst_100 = arith.constant dense<0.000000e+00> : vector<8x96xf32>
    %610 = tpu.matmul %609, %259, %cst_100 {dimension_numbers = #tpu.dot_dimension_numbers<[1], [0], [0], [1], [0, 0, 1, 1], [], []>, precision = #tpu.contract_precision<fp32>} : vector<8x32xf32>, vector<32x96xf32>, vector<8x96xf32> -> vector<8x96xf32>
    %611 = vector.broadcast %260 : vector<1x96xf32> to vector<8x96xf32>
    %612 = arith.addf %610, %611 : vector<8x96xf32>
    %613 = vector.extract_strided_slice %258 {offsets = [0, 0], sizes = [8, 32], strides = [1, 1]} : vector<8x96xf32> to vector<8x32xf32>
    %614 = vector.extract_strided_slice %612 {offsets = [0, 0], sizes = [8, 32], strides = [1, 1]} : vector<8x96xf32> to vector<8x32xf32>
    %615 = arith.addf %613, %614 : vector<8x32xf32>
    %616 = arith.negf %615 : vector<8x32xf32>
    %617 = math.exp %616 : vector<8x32xf32>
    %cst_101 = arith.constant 1.000000e+00 : f32
    %618 = vector.broadcast %cst_101 : f32 to vector<8x32xf32>
    %619 = arith.addf %618, %617 : vector<8x32xf32>
    %620 = arith.divf %618, %619 : vector<8x32xf32>
    %621 = vector.extract_strided_slice %258 {offsets = [0, 32], sizes = [8, 32], strides = [1, 1]} : vector<8x96xf32> to vector<8x32xf32>
    %622 = vector.extract_strided_slice %612 {offsets = [0, 32], sizes = [8, 32], strides = [1, 1]} : vector<8x96xf32> to vector<8x32xf32>
    %623 = arith.addf %621, %622 : vector<8x32xf32>
    %624 = arith.negf %623 : vector<8x32xf32>
    %625 = math.exp %624 : vector<8x32xf32>
    %cst_102 = arith.constant 1.000000e+00 : f32
    %626 = vector.broadcast %cst_102 : f32 to vector<8x32xf32>
    %627 = arith.addf %626, %625 : vector<8x32xf32>
    %628 = arith.divf %626, %627 : vector<8x32xf32>
    %629 = vector.extract_strided_slice %258 {offsets = [0, 64], sizes = [8, 32], strides = [1, 1]} : vector<8x96xf32> to vector<8x32xf32>
    %630 = vector.extract_strided_slice %612 {offsets = [0, 64], sizes = [8, 32], strides = [1, 1]} : vector<8x96xf32> to vector<8x32xf32>
    %631 = arith.mulf %620, %630 : vector<8x32xf32>
    %632 = arith.addf %629, %631 : vector<8x32xf32>
    %633 = math.tanh %632 : vector<8x32xf32>
    %cst_103 = arith.constant 1.000000e+00 : f32
    %634 = vector.broadcast %cst_103 : f32 to vector<8x32xf32>
    %635 = arith.subf %634, %628 : vector<8x32xf32>
    %636 = arith.mulf %635, %633 : vector<8x32xf32>
    %637 = arith.mulf %628, %609 : vector<8x32xf32>
    %638 = arith.addf %636, %637 : vector<8x32xf32>
    %c13_i32 = arith.constant 13 : i32
    %cst_104 = arith.constant dense<0.000000e+00> : vector<8x96xf32>
    %639 = tpu.matmul %638, %259, %cst_104 {dimension_numbers = #tpu.dot_dimension_numbers<[1], [0], [0], [1], [0, 0, 1, 1], [], []>, precision = #tpu.contract_precision<fp32>} : vector<8x32xf32>, vector<32x96xf32>, vector<8x96xf32> -> vector<8x96xf32>
    %640 = vector.broadcast %260 : vector<1x96xf32> to vector<8x96xf32>
    %641 = arith.addf %639, %640 : vector<8x96xf32>
    %642 = vector.extract_strided_slice %258 {offsets = [0, 0], sizes = [8, 32], strides = [1, 1]} : vector<8x96xf32> to vector<8x32xf32>
    %643 = vector.extract_strided_slice %641 {offsets = [0, 0], sizes = [8, 32], strides = [1, 1]} : vector<8x96xf32> to vector<8x32xf32>
    %644 = arith.addf %642, %643 : vector<8x32xf32>
    %645 = arith.negf %644 : vector<8x32xf32>
    %646 = math.exp %645 : vector<8x32xf32>
    %cst_105 = arith.constant 1.000000e+00 : f32
    %647 = vector.broadcast %cst_105 : f32 to vector<8x32xf32>
    %648 = arith.addf %647, %646 : vector<8x32xf32>
    %649 = arith.divf %647, %648 : vector<8x32xf32>
    %650 = vector.extract_strided_slice %258 {offsets = [0, 32], sizes = [8, 32], strides = [1, 1]} : vector<8x96xf32> to vector<8x32xf32>
    %651 = vector.extract_strided_slice %641 {offsets = [0, 32], sizes = [8, 32], strides = [1, 1]} : vector<8x96xf32> to vector<8x32xf32>
    %652 = arith.addf %650, %651 : vector<8x32xf32>
    %653 = arith.negf %652 : vector<8x32xf32>
    %654 = math.exp %653 : vector<8x32xf32>
    %cst_106 = arith.constant 1.000000e+00 : f32
    %655 = vector.broadcast %cst_106 : f32 to vector<8x32xf32>
    %656 = arith.addf %655, %654 : vector<8x32xf32>
    %657 = arith.divf %655, %656 : vector<8x32xf32>
    %658 = vector.extract_strided_slice %258 {offsets = [0, 64], sizes = [8, 32], strides = [1, 1]} : vector<8x96xf32> to vector<8x32xf32>
    %659 = vector.extract_strided_slice %641 {offsets = [0, 64], sizes = [8, 32], strides = [1, 1]} : vector<8x96xf32> to vector<8x32xf32>
    %660 = arith.mulf %649, %659 : vector<8x32xf32>
    %661 = arith.addf %658, %660 : vector<8x32xf32>
    %662 = math.tanh %661 : vector<8x32xf32>
    %cst_107 = arith.constant 1.000000e+00 : f32
    %663 = vector.broadcast %cst_107 : f32 to vector<8x32xf32>
    %664 = arith.subf %663, %657 : vector<8x32xf32>
    %665 = arith.mulf %664, %662 : vector<8x32xf32>
    %666 = arith.mulf %657, %638 : vector<8x32xf32>
    %667 = arith.addf %665, %666 : vector<8x32xf32>
    %c14_i32 = arith.constant 14 : i32
    %cst_108 = arith.constant dense<0.000000e+00> : vector<8x96xf32>
    %668 = tpu.matmul %667, %259, %cst_108 {dimension_numbers = #tpu.dot_dimension_numbers<[1], [0], [0], [1], [0, 0, 1, 1], [], []>, precision = #tpu.contract_precision<fp32>} : vector<8x32xf32>, vector<32x96xf32>, vector<8x96xf32> -> vector<8x96xf32>
    %669 = vector.broadcast %260 : vector<1x96xf32> to vector<8x96xf32>
    %670 = arith.addf %668, %669 : vector<8x96xf32>
    %671 = vector.extract_strided_slice %258 {offsets = [0, 0], sizes = [8, 32], strides = [1, 1]} : vector<8x96xf32> to vector<8x32xf32>
    %672 = vector.extract_strided_slice %670 {offsets = [0, 0], sizes = [8, 32], strides = [1, 1]} : vector<8x96xf32> to vector<8x32xf32>
    %673 = arith.addf %671, %672 : vector<8x32xf32>
    %674 = arith.negf %673 : vector<8x32xf32>
    %675 = math.exp %674 : vector<8x32xf32>
    %cst_109 = arith.constant 1.000000e+00 : f32
    %676 = vector.broadcast %cst_109 : f32 to vector<8x32xf32>
    %677 = arith.addf %676, %675 : vector<8x32xf32>
    %678 = arith.divf %676, %677 : vector<8x32xf32>
    %679 = vector.extract_strided_slice %258 {offsets = [0, 32], sizes = [8, 32], strides = [1, 1]} : vector<8x96xf32> to vector<8x32xf32>
    %680 = vector.extract_strided_slice %670 {offsets = [0, 32], sizes = [8, 32], strides = [1, 1]} : vector<8x96xf32> to vector<8x32xf32>
    %681 = arith.addf %679, %680 : vector<8x32xf32>
    %682 = arith.negf %681 : vector<8x32xf32>
    %683 = math.exp %682 : vector<8x32xf32>
    %cst_110 = arith.constant 1.000000e+00 : f32
    %684 = vector.broadcast %cst_110 : f32 to vector<8x32xf32>
    %685 = arith.addf %684, %683 : vector<8x32xf32>
    %686 = arith.divf %684, %685 : vector<8x32xf32>
    %687 = vector.extract_strided_slice %258 {offsets = [0, 64], sizes = [8, 32], strides = [1, 1]} : vector<8x96xf32> to vector<8x32xf32>
    %688 = vector.extract_strided_slice %670 {offsets = [0, 64], sizes = [8, 32], strides = [1, 1]} : vector<8x96xf32> to vector<8x32xf32>
    %689 = arith.mulf %678, %688 : vector<8x32xf32>
    %690 = arith.addf %687, %689 : vector<8x32xf32>
    %691 = math.tanh %690 : vector<8x32xf32>
    %cst_111 = arith.constant 1.000000e+00 : f32
    %692 = vector.broadcast %cst_111 : f32 to vector<8x32xf32>
    %693 = arith.subf %692, %686 : vector<8x32xf32>
    %694 = arith.mulf %693, %691 : vector<8x32xf32>
    %695 = arith.mulf %686, %667 : vector<8x32xf32>
    %696 = arith.addf %694, %695 : vector<8x32xf32>
    %c15_i32 = arith.constant 15 : i32
    %cst_112 = arith.constant dense<0.000000e+00> : vector<8x96xf32>
    %697 = tpu.matmul %696, %259, %cst_112 {dimension_numbers = #tpu.dot_dimension_numbers<[1], [0], [0], [1], [0, 0, 1, 1], [], []>, precision = #tpu.contract_precision<fp32>} : vector<8x32xf32>, vector<32x96xf32>, vector<8x96xf32> -> vector<8x96xf32>
    %698 = vector.broadcast %260 : vector<1x96xf32> to vector<8x96xf32>
    %699 = arith.addf %697, %698 : vector<8x96xf32>
    %700 = vector.extract_strided_slice %258 {offsets = [0, 0], sizes = [8, 32], strides = [1, 1]} : vector<8x96xf32> to vector<8x32xf32>
    %701 = vector.extract_strided_slice %699 {offsets = [0, 0], sizes = [8, 32], strides = [1, 1]} : vector<8x96xf32> to vector<8x32xf32>
    %702 = arith.addf %700, %701 : vector<8x32xf32>
    %703 = arith.negf %702 : vector<8x32xf32>
    %704 = math.exp %703 : vector<8x32xf32>
    %cst_113 = arith.constant 1.000000e+00 : f32
    %705 = vector.broadcast %cst_113 : f32 to vector<8x32xf32>
    %706 = arith.addf %705, %704 : vector<8x32xf32>
    %707 = arith.divf %705, %706 : vector<8x32xf32>
    %708 = vector.extract_strided_slice %258 {offsets = [0, 32], sizes = [8, 32], strides = [1, 1]} : vector<8x96xf32> to vector<8x32xf32>
    %709 = vector.extract_strided_slice %699 {offsets = [0, 32], sizes = [8, 32], strides = [1, 1]} : vector<8x96xf32> to vector<8x32xf32>
    %710 = arith.addf %708, %709 : vector<8x32xf32>
    %711 = arith.negf %710 : vector<8x32xf32>
    %712 = math.exp %711 : vector<8x32xf32>
    %cst_114 = arith.constant 1.000000e+00 : f32
    %713 = vector.broadcast %cst_114 : f32 to vector<8x32xf32>
    %714 = arith.addf %713, %712 : vector<8x32xf32>
    %715 = arith.divf %713, %714 : vector<8x32xf32>
    %716 = vector.extract_strided_slice %258 {offsets = [0, 64], sizes = [8, 32], strides = [1, 1]} : vector<8x96xf32> to vector<8x32xf32>
    %717 = vector.extract_strided_slice %699 {offsets = [0, 64], sizes = [8, 32], strides = [1, 1]} : vector<8x96xf32> to vector<8x32xf32>
    %718 = arith.mulf %707, %717 : vector<8x32xf32>
    %719 = arith.addf %716, %718 : vector<8x32xf32>
    %720 = math.tanh %719 : vector<8x32xf32>
    %cst_115 = arith.constant 1.000000e+00 : f32
    %721 = vector.broadcast %cst_115 : f32 to vector<8x32xf32>
    %722 = arith.subf %721, %715 : vector<8x32xf32>
    %723 = arith.mulf %722, %720 : vector<8x32xf32>
    %724 = arith.mulf %715, %696 : vector<8x32xf32>
    %725 = arith.addf %723, %724 : vector<8x32xf32>
    %c16_i32 = arith.constant 16 : i32
    %cst_116 = arith.constant dense<0.000000e+00> : vector<8x96xf32>
    %726 = tpu.matmul %725, %259, %cst_116 {dimension_numbers = #tpu.dot_dimension_numbers<[1], [0], [0], [1], [0, 0, 1, 1], [], []>, precision = #tpu.contract_precision<fp32>} : vector<8x32xf32>, vector<32x96xf32>, vector<8x96xf32> -> vector<8x96xf32>
    %727 = vector.broadcast %260 : vector<1x96xf32> to vector<8x96xf32>
    %728 = arith.addf %726, %727 : vector<8x96xf32>
    %729 = vector.extract_strided_slice %258 {offsets = [0, 0], sizes = [8, 32], strides = [1, 1]} : vector<8x96xf32> to vector<8x32xf32>
    %730 = vector.extract_strided_slice %728 {offsets = [0, 0], sizes = [8, 32], strides = [1, 1]} : vector<8x96xf32> to vector<8x32xf32>
    %731 = arith.addf %729, %730 : vector<8x32xf32>
    %732 = arith.negf %731 : vector<8x32xf32>
    %733 = math.exp %732 : vector<8x32xf32>
    %cst_117 = arith.constant 1.000000e+00 : f32
    %734 = vector.broadcast %cst_117 : f32 to vector<8x32xf32>
    %735 = arith.addf %734, %733 : vector<8x32xf32>
    %736 = arith.divf %734, %735 : vector<8x32xf32>
    %737 = vector.extract_strided_slice %258 {offsets = [0, 32], sizes = [8, 32], strides = [1, 1]} : vector<8x96xf32> to vector<8x32xf32>
    %738 = vector.extract_strided_slice %728 {offsets = [0, 32], sizes = [8, 32], strides = [1, 1]} : vector<8x96xf32> to vector<8x32xf32>
    %739 = arith.addf %737, %738 : vector<8x32xf32>
    %740 = arith.negf %739 : vector<8x32xf32>
    %741 = math.exp %740 : vector<8x32xf32>
    %cst_118 = arith.constant 1.000000e+00 : f32
    %742 = vector.broadcast %cst_118 : f32 to vector<8x32xf32>
    %743 = arith.addf %742, %741 : vector<8x32xf32>
    %744 = arith.divf %742, %743 : vector<8x32xf32>
    %745 = vector.extract_strided_slice %258 {offsets = [0, 64], sizes = [8, 32], strides = [1, 1]} : vector<8x96xf32> to vector<8x32xf32>
    %746 = vector.extract_strided_slice %728 {offsets = [0, 64], sizes = [8, 32], strides = [1, 1]} : vector<8x96xf32> to vector<8x32xf32>
    %747 = arith.mulf %736, %746 : vector<8x32xf32>
    %748 = arith.addf %745, %747 : vector<8x32xf32>
    %749 = math.tanh %748 : vector<8x32xf32>
    %cst_119 = arith.constant 1.000000e+00 : f32
    %750 = vector.broadcast %cst_119 : f32 to vector<8x32xf32>
    %751 = arith.subf %750, %744 : vector<8x32xf32>
    %752 = arith.mulf %751, %749 : vector<8x32xf32>
    %753 = arith.mulf %744, %725 : vector<8x32xf32>
    %754 = arith.addf %752, %753 : vector<8x32xf32>
    %c17_i32 = arith.constant 17 : i32
    %cst_120 = arith.constant dense<0.000000e+00> : vector<8x96xf32>
    %755 = tpu.matmul %754, %259, %cst_120 {dimension_numbers = #tpu.dot_dimension_numbers<[1], [0], [0], [1], [0, 0, 1, 1], [], []>, precision = #tpu.contract_precision<fp32>} : vector<8x32xf32>, vector<32x96xf32>, vector<8x96xf32> -> vector<8x96xf32>
    %756 = vector.broadcast %260 : vector<1x96xf32> to vector<8x96xf32>
    %757 = arith.addf %755, %756 : vector<8x96xf32>
    %758 = vector.extract_strided_slice %258 {offsets = [0, 0], sizes = [8, 32], strides = [1, 1]} : vector<8x96xf32> to vector<8x32xf32>
    %759 = vector.extract_strided_slice %757 {offsets = [0, 0], sizes = [8, 32], strides = [1, 1]} : vector<8x96xf32> to vector<8x32xf32>
    %760 = arith.addf %758, %759 : vector<8x32xf32>
    %761 = arith.negf %760 : vector<8x32xf32>
    %762 = math.exp %761 : vector<8x32xf32>
    %cst_121 = arith.constant 1.000000e+00 : f32
    %763 = vector.broadcast %cst_121 : f32 to vector<8x32xf32>
    %764 = arith.addf %763, %762 : vector<8x32xf32>
    %765 = arith.divf %763, %764 : vector<8x32xf32>
    %766 = vector.extract_strided_slice %258 {offsets = [0, 32], sizes = [8, 32], strides = [1, 1]} : vector<8x96xf32> to vector<8x32xf32>
    %767 = vector.extract_strided_slice %757 {offsets = [0, 32], sizes = [8, 32], strides = [1, 1]} : vector<8x96xf32> to vector<8x32xf32>
    %768 = arith.addf %766, %767 : vector<8x32xf32>
    %769 = arith.negf %768 : vector<8x32xf32>
    %770 = math.exp %769 : vector<8x32xf32>
    %cst_122 = arith.constant 1.000000e+00 : f32
    %771 = vector.broadcast %cst_122 : f32 to vector<8x32xf32>
    %772 = arith.addf %771, %770 : vector<8x32xf32>
    %773 = arith.divf %771, %772 : vector<8x32xf32>
    %774 = vector.extract_strided_slice %258 {offsets = [0, 64], sizes = [8, 32], strides = [1, 1]} : vector<8x96xf32> to vector<8x32xf32>
    %775 = vector.extract_strided_slice %757 {offsets = [0, 64], sizes = [8, 32], strides = [1, 1]} : vector<8x96xf32> to vector<8x32xf32>
    %776 = arith.mulf %765, %775 : vector<8x32xf32>
    %777 = arith.addf %774, %776 : vector<8x32xf32>
    %778 = math.tanh %777 : vector<8x32xf32>
    %cst_123 = arith.constant 1.000000e+00 : f32
    %779 = vector.broadcast %cst_123 : f32 to vector<8x32xf32>
    %780 = arith.subf %779, %773 : vector<8x32xf32>
    %781 = arith.mulf %780, %778 : vector<8x32xf32>
    %782 = arith.mulf %773, %754 : vector<8x32xf32>
    %783 = arith.addf %781, %782 : vector<8x32xf32>
    %c18_i32 = arith.constant 18 : i32
    %cst_124 = arith.constant dense<0.000000e+00> : vector<8x96xf32>
    %784 = tpu.matmul %783, %259, %cst_124 {dimension_numbers = #tpu.dot_dimension_numbers<[1], [0], [0], [1], [0, 0, 1, 1], [], []>, precision = #tpu.contract_precision<fp32>} : vector<8x32xf32>, vector<32x96xf32>, vector<8x96xf32> -> vector<8x96xf32>
    %785 = vector.broadcast %260 : vector<1x96xf32> to vector<8x96xf32>
    %786 = arith.addf %784, %785 : vector<8x96xf32>
    %787 = vector.extract_strided_slice %258 {offsets = [0, 0], sizes = [8, 32], strides = [1, 1]} : vector<8x96xf32> to vector<8x32xf32>
    %788 = vector.extract_strided_slice %786 {offsets = [0, 0], sizes = [8, 32], strides = [1, 1]} : vector<8x96xf32> to vector<8x32xf32>
    %789 = arith.addf %787, %788 : vector<8x32xf32>
    %790 = arith.negf %789 : vector<8x32xf32>
    %791 = math.exp %790 : vector<8x32xf32>
    %cst_125 = arith.constant 1.000000e+00 : f32
    %792 = vector.broadcast %cst_125 : f32 to vector<8x32xf32>
    %793 = arith.addf %792, %791 : vector<8x32xf32>
    %794 = arith.divf %792, %793 : vector<8x32xf32>
    %795 = vector.extract_strided_slice %258 {offsets = [0, 32], sizes = [8, 32], strides = [1, 1]} : vector<8x96xf32> to vector<8x32xf32>
    %796 = vector.extract_strided_slice %786 {offsets = [0, 32], sizes = [8, 32], strides = [1, 1]} : vector<8x96xf32> to vector<8x32xf32>
    %797 = arith.addf %795, %796 : vector<8x32xf32>
    %798 = arith.negf %797 : vector<8x32xf32>
    %799 = math.exp %798 : vector<8x32xf32>
    %cst_126 = arith.constant 1.000000e+00 : f32
    %800 = vector.broadcast %cst_126 : f32 to vector<8x32xf32>
    %801 = arith.addf %800, %799 : vector<8x32xf32>
    %802 = arith.divf %800, %801 : vector<8x32xf32>
    %803 = vector.extract_strided_slice %258 {offsets = [0, 64], sizes = [8, 32], strides = [1, 1]} : vector<8x96xf32> to vector<8x32xf32>
    %804 = vector.extract_strided_slice %786 {offsets = [0, 64], sizes = [8, 32], strides = [1, 1]} : vector<8x96xf32> to vector<8x32xf32>
    %805 = arith.mulf %794, %804 : vector<8x32xf32>
    %806 = arith.addf %803, %805 : vector<8x32xf32>
    %807 = math.tanh %806 : vector<8x32xf32>
    %cst_127 = arith.constant 1.000000e+00 : f32
    %808 = vector.broadcast %cst_127 : f32 to vector<8x32xf32>
    %809 = arith.subf %808, %802 : vector<8x32xf32>
    %810 = arith.mulf %809, %807 : vector<8x32xf32>
    %811 = arith.mulf %802, %783 : vector<8x32xf32>
    %812 = arith.addf %810, %811 : vector<8x32xf32>
    %c19_i32 = arith.constant 19 : i32
    %cst_128 = arith.constant dense<0.000000e+00> : vector<8x96xf32>
    %813 = tpu.matmul %812, %259, %cst_128 {dimension_numbers = #tpu.dot_dimension_numbers<[1], [0], [0], [1], [0, 0, 1, 1], [], []>, precision = #tpu.contract_precision<fp32>} : vector<8x32xf32>, vector<32x96xf32>, vector<8x96xf32> -> vector<8x96xf32>
    %814 = vector.broadcast %260 : vector<1x96xf32> to vector<8x96xf32>
    %815 = arith.addf %813, %814 : vector<8x96xf32>
    %816 = vector.extract_strided_slice %258 {offsets = [0, 0], sizes = [8, 32], strides = [1, 1]} : vector<8x96xf32> to vector<8x32xf32>
    %817 = vector.extract_strided_slice %815 {offsets = [0, 0], sizes = [8, 32], strides = [1, 1]} : vector<8x96xf32> to vector<8x32xf32>
    %818 = arith.addf %816, %817 : vector<8x32xf32>
    %819 = arith.negf %818 : vector<8x32xf32>
    %820 = math.exp %819 : vector<8x32xf32>
    %cst_129 = arith.constant 1.000000e+00 : f32
    %821 = vector.broadcast %cst_129 : f32 to vector<8x32xf32>
    %822 = arith.addf %821, %820 : vector<8x32xf32>
    %823 = arith.divf %821, %822 : vector<8x32xf32>
    %824 = vector.extract_strided_slice %258 {offsets = [0, 32], sizes = [8, 32], strides = [1, 1]} : vector<8x96xf32> to vector<8x32xf32>
    %825 = vector.extract_strided_slice %815 {offsets = [0, 32], sizes = [8, 32], strides = [1, 1]} : vector<8x96xf32> to vector<8x32xf32>
    %826 = arith.addf %824, %825 : vector<8x32xf32>
    %827 = arith.negf %826 : vector<8x32xf32>
    %828 = math.exp %827 : vector<8x32xf32>
    %cst_130 = arith.constant 1.000000e+00 : f32
    %829 = vector.broadcast %cst_130 : f32 to vector<8x32xf32>
    %830 = arith.addf %829, %828 : vector<8x32xf32>
    %831 = arith.divf %829, %830 : vector<8x32xf32>
    %832 = vector.extract_strided_slice %258 {offsets = [0, 64], sizes = [8, 32], strides = [1, 1]} : vector<8x96xf32> to vector<8x32xf32>
    %833 = vector.extract_strided_slice %815 {offsets = [0, 64], sizes = [8, 32], strides = [1, 1]} : vector<8x96xf32> to vector<8x32xf32>
    %834 = arith.mulf %823, %833 : vector<8x32xf32>
    %835 = arith.addf %832, %834 : vector<8x32xf32>
    %836 = math.tanh %835 : vector<8x32xf32>
    %cst_131 = arith.constant 1.000000e+00 : f32
    %837 = vector.broadcast %cst_131 : f32 to vector<8x32xf32>
    %838 = arith.subf %837, %831 : vector<8x32xf32>
    %839 = arith.mulf %838, %836 : vector<8x32xf32>
    %840 = arith.mulf %831, %812 : vector<8x32xf32>
    %841 = arith.addf %839, %840 : vector<8x32xf32>
    %c20_i32 = arith.constant 20 : i32
    %cst_132 = arith.constant dense<0.000000e+00> : vector<8x96xf32>
    %842 = tpu.matmul %841, %259, %cst_132 {dimension_numbers = #tpu.dot_dimension_numbers<[1], [0], [0], [1], [0, 0, 1, 1], [], []>, precision = #tpu.contract_precision<fp32>} : vector<8x32xf32>, vector<32x96xf32>, vector<8x96xf32> -> vector<8x96xf32>
    %843 = vector.broadcast %260 : vector<1x96xf32> to vector<8x96xf32>
    %844 = arith.addf %842, %843 : vector<8x96xf32>
    %845 = vector.extract_strided_slice %258 {offsets = [0, 0], sizes = [8, 32], strides = [1, 1]} : vector<8x96xf32> to vector<8x32xf32>
    %846 = vector.extract_strided_slice %844 {offsets = [0, 0], sizes = [8, 32], strides = [1, 1]} : vector<8x96xf32> to vector<8x32xf32>
    %847 = arith.addf %845, %846 : vector<8x32xf32>
    %848 = arith.negf %847 : vector<8x32xf32>
    %849 = math.exp %848 : vector<8x32xf32>
    %cst_133 = arith.constant 1.000000e+00 : f32
    %850 = vector.broadcast %cst_133 : f32 to vector<8x32xf32>
    %851 = arith.addf %850, %849 : vector<8x32xf32>
    %852 = arith.divf %850, %851 : vector<8x32xf32>
    %853 = vector.extract_strided_slice %258 {offsets = [0, 32], sizes = [8, 32], strides = [1, 1]} : vector<8x96xf32> to vector<8x32xf32>
    %854 = vector.extract_strided_slice %844 {offsets = [0, 32], sizes = [8, 32], strides = [1, 1]} : vector<8x96xf32> to vector<8x32xf32>
    %855 = arith.addf %853, %854 : vector<8x32xf32>
    %856 = arith.negf %855 : vector<8x32xf32>
    %857 = math.exp %856 : vector<8x32xf32>
    %cst_134 = arith.constant 1.000000e+00 : f32
    %858 = vector.broadcast %cst_134 : f32 to vector<8x32xf32>
    %859 = arith.addf %858, %857 : vector<8x32xf32>
    %860 = arith.divf %858, %859 : vector<8x32xf32>
    %861 = vector.extract_strided_slice %258 {offsets = [0, 64], sizes = [8, 32], strides = [1, 1]} : vector<8x96xf32> to vector<8x32xf32>
    %862 = vector.extract_strided_slice %844 {offsets = [0, 64], sizes = [8, 32], strides = [1, 1]} : vector<8x96xf32> to vector<8x32xf32>
    %863 = arith.mulf %852, %862 : vector<8x32xf32>
    %864 = arith.addf %861, %863 : vector<8x32xf32>
    %865 = math.tanh %864 : vector<8x32xf32>
    %cst_135 = arith.constant 1.000000e+00 : f32
    %866 = vector.broadcast %cst_135 : f32 to vector<8x32xf32>
    %867 = arith.subf %866, %860 : vector<8x32xf32>
    %868 = arith.mulf %867, %865 : vector<8x32xf32>
    %869 = arith.mulf %860, %841 : vector<8x32xf32>
    %870 = arith.addf %868, %869 : vector<8x32xf32>
    %c21_i32 = arith.constant 21 : i32
    %cst_136 = arith.constant dense<0.000000e+00> : vector<8x96xf32>
    %871 = tpu.matmul %870, %259, %cst_136 {dimension_numbers = #tpu.dot_dimension_numbers<[1], [0], [0], [1], [0, 0, 1, 1], [], []>, precision = #tpu.contract_precision<fp32>} : vector<8x32xf32>, vector<32x96xf32>, vector<8x96xf32> -> vector<8x96xf32>
    %872 = vector.broadcast %260 : vector<1x96xf32> to vector<8x96xf32>
    %873 = arith.addf %871, %872 : vector<8x96xf32>
    %874 = vector.extract_strided_slice %258 {offsets = [0, 0], sizes = [8, 32], strides = [1, 1]} : vector<8x96xf32> to vector<8x32xf32>
    %875 = vector.extract_strided_slice %873 {offsets = [0, 0], sizes = [8, 32], strides = [1, 1]} : vector<8x96xf32> to vector<8x32xf32>
    %876 = arith.addf %874, %875 : vector<8x32xf32>
    %877 = arith.negf %876 : vector<8x32xf32>
    %878 = math.exp %877 : vector<8x32xf32>
    %cst_137 = arith.constant 1.000000e+00 : f32
    %879 = vector.broadcast %cst_137 : f32 to vector<8x32xf32>
    %880 = arith.addf %879, %878 : vector<8x32xf32>
    %881 = arith.divf %879, %880 : vector<8x32xf32>
    %882 = vector.extract_strided_slice %258 {offsets = [0, 32], sizes = [8, 32], strides = [1, 1]} : vector<8x96xf32> to vector<8x32xf32>
    %883 = vector.extract_strided_slice %873 {offsets = [0, 32], sizes = [8, 32], strides = [1, 1]} : vector<8x96xf32> to vector<8x32xf32>
    %884 = arith.addf %882, %883 : vector<8x32xf32>
    %885 = arith.negf %884 : vector<8x32xf32>
    %886 = math.exp %885 : vector<8x32xf32>
    %cst_138 = arith.constant 1.000000e+00 : f32
    %887 = vector.broadcast %cst_138 : f32 to vector<8x32xf32>
    %888 = arith.addf %887, %886 : vector<8x32xf32>
    %889 = arith.divf %887, %888 : vector<8x32xf32>
    %890 = vector.extract_strided_slice %258 {offsets = [0, 64], sizes = [8, 32], strides = [1, 1]} : vector<8x96xf32> to vector<8x32xf32>
    %891 = vector.extract_strided_slice %873 {offsets = [0, 64], sizes = [8, 32], strides = [1, 1]} : vector<8x96xf32> to vector<8x32xf32>
    %892 = arith.mulf %881, %891 : vector<8x32xf32>
    %893 = arith.addf %890, %892 : vector<8x32xf32>
    %894 = math.tanh %893 : vector<8x32xf32>
    %cst_139 = arith.constant 1.000000e+00 : f32
    %895 = vector.broadcast %cst_139 : f32 to vector<8x32xf32>
    %896 = arith.subf %895, %889 : vector<8x32xf32>
    %897 = arith.mulf %896, %894 : vector<8x32xf32>
    %898 = arith.mulf %889, %870 : vector<8x32xf32>
    %899 = arith.addf %897, %898 : vector<8x32xf32>
    %c22_i32 = arith.constant 22 : i32
    %cst_140 = arith.constant dense<0.000000e+00> : vector<8x96xf32>
    %900 = tpu.matmul %899, %259, %cst_140 {dimension_numbers = #tpu.dot_dimension_numbers<[1], [0], [0], [1], [0, 0, 1, 1], [], []>, precision = #tpu.contract_precision<fp32>} : vector<8x32xf32>, vector<32x96xf32>, vector<8x96xf32> -> vector<8x96xf32>
    %901 = vector.broadcast %260 : vector<1x96xf32> to vector<8x96xf32>
    %902 = arith.addf %900, %901 : vector<8x96xf32>
    %903 = vector.extract_strided_slice %258 {offsets = [0, 0], sizes = [8, 32], strides = [1, 1]} : vector<8x96xf32> to vector<8x32xf32>
    %904 = vector.extract_strided_slice %902 {offsets = [0, 0], sizes = [8, 32], strides = [1, 1]} : vector<8x96xf32> to vector<8x32xf32>
    %905 = arith.addf %903, %904 : vector<8x32xf32>
    %906 = arith.negf %905 : vector<8x32xf32>
    %907 = math.exp %906 : vector<8x32xf32>
    %cst_141 = arith.constant 1.000000e+00 : f32
    %908 = vector.broadcast %cst_141 : f32 to vector<8x32xf32>
    %909 = arith.addf %908, %907 : vector<8x32xf32>
    %910 = arith.divf %908, %909 : vector<8x32xf32>
    %911 = vector.extract_strided_slice %258 {offsets = [0, 32], sizes = [8, 32], strides = [1, 1]} : vector<8x96xf32> to vector<8x32xf32>
    %912 = vector.extract_strided_slice %902 {offsets = [0, 32], sizes = [8, 32], strides = [1, 1]} : vector<8x96xf32> to vector<8x32xf32>
    %913 = arith.addf %911, %912 : vector<8x32xf32>
    %914 = arith.negf %913 : vector<8x32xf32>
    %915 = math.exp %914 : vector<8x32xf32>
    %cst_142 = arith.constant 1.000000e+00 : f32
    %916 = vector.broadcast %cst_142 : f32 to vector<8x32xf32>
    %917 = arith.addf %916, %915 : vector<8x32xf32>
    %918 = arith.divf %916, %917 : vector<8x32xf32>
    %919 = vector.extract_strided_slice %258 {offsets = [0, 64], sizes = [8, 32], strides = [1, 1]} : vector<8x96xf32> to vector<8x32xf32>
    %920 = vector.extract_strided_slice %902 {offsets = [0, 64], sizes = [8, 32], strides = [1, 1]} : vector<8x96xf32> to vector<8x32xf32>
    %921 = arith.mulf %910, %920 : vector<8x32xf32>
    %922 = arith.addf %919, %921 : vector<8x32xf32>
    %923 = math.tanh %922 : vector<8x32xf32>
    %cst_143 = arith.constant 1.000000e+00 : f32
    %924 = vector.broadcast %cst_143 : f32 to vector<8x32xf32>
    %925 = arith.subf %924, %918 : vector<8x32xf32>
    %926 = arith.mulf %925, %923 : vector<8x32xf32>
    %927 = arith.mulf %918, %899 : vector<8x32xf32>
    %928 = arith.addf %926, %927 : vector<8x32xf32>
    %c23_i32 = arith.constant 23 : i32
    %cst_144 = arith.constant dense<0.000000e+00> : vector<8x96xf32>
    %929 = tpu.matmul %928, %259, %cst_144 {dimension_numbers = #tpu.dot_dimension_numbers<[1], [0], [0], [1], [0, 0, 1, 1], [], []>, precision = #tpu.contract_precision<fp32>} : vector<8x32xf32>, vector<32x96xf32>, vector<8x96xf32> -> vector<8x96xf32>
    %930 = vector.broadcast %260 : vector<1x96xf32> to vector<8x96xf32>
    %931 = arith.addf %929, %930 : vector<8x96xf32>
    %932 = vector.extract_strided_slice %258 {offsets = [0, 0], sizes = [8, 32], strides = [1, 1]} : vector<8x96xf32> to vector<8x32xf32>
    %933 = vector.extract_strided_slice %931 {offsets = [0, 0], sizes = [8, 32], strides = [1, 1]} : vector<8x96xf32> to vector<8x32xf32>
    %934 = arith.addf %932, %933 : vector<8x32xf32>
    %935 = arith.negf %934 : vector<8x32xf32>
    %936 = math.exp %935 : vector<8x32xf32>
    %cst_145 = arith.constant 1.000000e+00 : f32
    %937 = vector.broadcast %cst_145 : f32 to vector<8x32xf32>
    %938 = arith.addf %937, %936 : vector<8x32xf32>
    %939 = arith.divf %937, %938 : vector<8x32xf32>
    %940 = vector.extract_strided_slice %258 {offsets = [0, 32], sizes = [8, 32], strides = [1, 1]} : vector<8x96xf32> to vector<8x32xf32>
    %941 = vector.extract_strided_slice %931 {offsets = [0, 32], sizes = [8, 32], strides = [1, 1]} : vector<8x96xf32> to vector<8x32xf32>
    %942 = arith.addf %940, %941 : vector<8x32xf32>
    %943 = arith.negf %942 : vector<8x32xf32>
    %944 = math.exp %943 : vector<8x32xf32>
    %cst_146 = arith.constant 1.000000e+00 : f32
    %945 = vector.broadcast %cst_146 : f32 to vector<8x32xf32>
    %946 = arith.addf %945, %944 : vector<8x32xf32>
    %947 = arith.divf %945, %946 : vector<8x32xf32>
    %948 = vector.extract_strided_slice %258 {offsets = [0, 64], sizes = [8, 32], strides = [1, 1]} : vector<8x96xf32> to vector<8x32xf32>
    %949 = vector.extract_strided_slice %931 {offsets = [0, 64], sizes = [8, 32], strides = [1, 1]} : vector<8x96xf32> to vector<8x32xf32>
    %950 = arith.mulf %939, %949 : vector<8x32xf32>
    %951 = arith.addf %948, %950 : vector<8x32xf32>
    %952 = math.tanh %951 : vector<8x32xf32>
    %cst_147 = arith.constant 1.000000e+00 : f32
    %953 = vector.broadcast %cst_147 : f32 to vector<8x32xf32>
    %954 = arith.subf %953, %947 : vector<8x32xf32>
    %955 = arith.mulf %954, %952 : vector<8x32xf32>
    %956 = arith.mulf %947, %928 : vector<8x32xf32>
    %957 = arith.addf %955, %956 : vector<8x32xf32>
    %c24_i32 = arith.constant 24 : i32
    %cst_148 = arith.constant dense<0.000000e+00> : vector<8x96xf32>
    %958 = tpu.matmul %957, %259, %cst_148 {dimension_numbers = #tpu.dot_dimension_numbers<[1], [0], [0], [1], [0, 0, 1, 1], [], []>, precision = #tpu.contract_precision<fp32>} : vector<8x32xf32>, vector<32x96xf32>, vector<8x96xf32> -> vector<8x96xf32>
    %959 = vector.broadcast %260 : vector<1x96xf32> to vector<8x96xf32>
    %960 = arith.addf %958, %959 : vector<8x96xf32>
    %961 = vector.extract_strided_slice %258 {offsets = [0, 0], sizes = [8, 32], strides = [1, 1]} : vector<8x96xf32> to vector<8x32xf32>
    %962 = vector.extract_strided_slice %960 {offsets = [0, 0], sizes = [8, 32], strides = [1, 1]} : vector<8x96xf32> to vector<8x32xf32>
    %963 = arith.addf %961, %962 : vector<8x32xf32>
    %964 = arith.negf %963 : vector<8x32xf32>
    %965 = math.exp %964 : vector<8x32xf32>
    %cst_149 = arith.constant 1.000000e+00 : f32
    %966 = vector.broadcast %cst_149 : f32 to vector<8x32xf32>
    %967 = arith.addf %966, %965 : vector<8x32xf32>
    %968 = arith.divf %966, %967 : vector<8x32xf32>
    %969 = vector.extract_strided_slice %258 {offsets = [0, 32], sizes = [8, 32], strides = [1, 1]} : vector<8x96xf32> to vector<8x32xf32>
    %970 = vector.extract_strided_slice %960 {offsets = [0, 32], sizes = [8, 32], strides = [1, 1]} : vector<8x96xf32> to vector<8x32xf32>
    %971 = arith.addf %969, %970 : vector<8x32xf32>
    %972 = arith.negf %971 : vector<8x32xf32>
    %973 = math.exp %972 : vector<8x32xf32>
    %cst_150 = arith.constant 1.000000e+00 : f32
    %974 = vector.broadcast %cst_150 : f32 to vector<8x32xf32>
    %975 = arith.addf %974, %973 : vector<8x32xf32>
    %976 = arith.divf %974, %975 : vector<8x32xf32>
    %977 = vector.extract_strided_slice %258 {offsets = [0, 64], sizes = [8, 32], strides = [1, 1]} : vector<8x96xf32> to vector<8x32xf32>
    %978 = vector.extract_strided_slice %960 {offsets = [0, 64], sizes = [8, 32], strides = [1, 1]} : vector<8x96xf32> to vector<8x32xf32>
    %979 = arith.mulf %968, %978 : vector<8x32xf32>
    %980 = arith.addf %977, %979 : vector<8x32xf32>
    %981 = math.tanh %980 : vector<8x32xf32>
    %cst_151 = arith.constant 1.000000e+00 : f32
    %982 = vector.broadcast %cst_151 : f32 to vector<8x32xf32>
    %983 = arith.subf %982, %976 : vector<8x32xf32>
    %984 = arith.mulf %983, %981 : vector<8x32xf32>
    %985 = arith.mulf %976, %957 : vector<8x32xf32>
    %986 = arith.addf %984, %985 : vector<8x32xf32>
    %c25_i32 = arith.constant 25 : i32
    %cst_152 = arith.constant dense<0.000000e+00> : vector<8x96xf32>
    %987 = tpu.matmul %986, %259, %cst_152 {dimension_numbers = #tpu.dot_dimension_numbers<[1], [0], [0], [1], [0, 0, 1, 1], [], []>, precision = #tpu.contract_precision<fp32>} : vector<8x32xf32>, vector<32x96xf32>, vector<8x96xf32> -> vector<8x96xf32>
    %988 = vector.broadcast %260 : vector<1x96xf32> to vector<8x96xf32>
    %989 = arith.addf %987, %988 : vector<8x96xf32>
    %990 = vector.extract_strided_slice %258 {offsets = [0, 0], sizes = [8, 32], strides = [1, 1]} : vector<8x96xf32> to vector<8x32xf32>
    %991 = vector.extract_strided_slice %989 {offsets = [0, 0], sizes = [8, 32], strides = [1, 1]} : vector<8x96xf32> to vector<8x32xf32>
    %992 = arith.addf %990, %991 : vector<8x32xf32>
    %993 = arith.negf %992 : vector<8x32xf32>
    %994 = math.exp %993 : vector<8x32xf32>
    %cst_153 = arith.constant 1.000000e+00 : f32
    %995 = vector.broadcast %cst_153 : f32 to vector<8x32xf32>
    %996 = arith.addf %995, %994 : vector<8x32xf32>
    %997 = arith.divf %995, %996 : vector<8x32xf32>
    %998 = vector.extract_strided_slice %258 {offsets = [0, 32], sizes = [8, 32], strides = [1, 1]} : vector<8x96xf32> to vector<8x32xf32>
    %999 = vector.extract_strided_slice %989 {offsets = [0, 32], sizes = [8, 32], strides = [1, 1]} : vector<8x96xf32> to vector<8x32xf32>
    %1000 = arith.addf %998, %999 : vector<8x32xf32>
    %1001 = arith.negf %1000 : vector<8x32xf32>
    %1002 = math.exp %1001 : vector<8x32xf32>
    %cst_154 = arith.constant 1.000000e+00 : f32
    %1003 = vector.broadcast %cst_154 : f32 to vector<8x32xf32>
    %1004 = arith.addf %1003, %1002 : vector<8x32xf32>
    %1005 = arith.divf %1003, %1004 : vector<8x32xf32>
    %1006 = vector.extract_strided_slice %258 {offsets = [0, 64], sizes = [8, 32], strides = [1, 1]} : vector<8x96xf32> to vector<8x32xf32>
    %1007 = vector.extract_strided_slice %989 {offsets = [0, 64], sizes = [8, 32], strides = [1, 1]} : vector<8x96xf32> to vector<8x32xf32>
    %1008 = arith.mulf %997, %1007 : vector<8x32xf32>
    %1009 = arith.addf %1006, %1008 : vector<8x32xf32>
    %1010 = math.tanh %1009 : vector<8x32xf32>
    %cst_155 = arith.constant 1.000000e+00 : f32
    %1011 = vector.broadcast %cst_155 : f32 to vector<8x32xf32>
    %1012 = arith.subf %1011, %1005 : vector<8x32xf32>
    %1013 = arith.mulf %1012, %1010 : vector<8x32xf32>
    %1014 = arith.mulf %1005, %986 : vector<8x32xf32>
    %1015 = arith.addf %1013, %1014 : vector<8x32xf32>
    %c26_i32 = arith.constant 26 : i32
    %cst_156 = arith.constant dense<0.000000e+00> : vector<8x96xf32>
    %1016 = tpu.matmul %1015, %259, %cst_156 {dimension_numbers = #tpu.dot_dimension_numbers<[1], [0], [0], [1], [0, 0, 1, 1], [], []>, precision = #tpu.contract_precision<fp32>} : vector<8x32xf32>, vector<32x96xf32>, vector<8x96xf32> -> vector<8x96xf32>
    %1017 = vector.broadcast %260 : vector<1x96xf32> to vector<8x96xf32>
    %1018 = arith.addf %1016, %1017 : vector<8x96xf32>
    %1019 = vector.extract_strided_slice %258 {offsets = [0, 0], sizes = [8, 32], strides = [1, 1]} : vector<8x96xf32> to vector<8x32xf32>
    %1020 = vector.extract_strided_slice %1018 {offsets = [0, 0], sizes = [8, 32], strides = [1, 1]} : vector<8x96xf32> to vector<8x32xf32>
    %1021 = arith.addf %1019, %1020 : vector<8x32xf32>
    %1022 = arith.negf %1021 : vector<8x32xf32>
    %1023 = math.exp %1022 : vector<8x32xf32>
    %cst_157 = arith.constant 1.000000e+00 : f32
    %1024 = vector.broadcast %cst_157 : f32 to vector<8x32xf32>
    %1025 = arith.addf %1024, %1023 : vector<8x32xf32>
    %1026 = arith.divf %1024, %1025 : vector<8x32xf32>
    %1027 = vector.extract_strided_slice %258 {offsets = [0, 32], sizes = [8, 32], strides = [1, 1]} : vector<8x96xf32> to vector<8x32xf32>
    %1028 = vector.extract_strided_slice %1018 {offsets = [0, 32], sizes = [8, 32], strides = [1, 1]} : vector<8x96xf32> to vector<8x32xf32>
    %1029 = arith.addf %1027, %1028 : vector<8x32xf32>
    %1030 = arith.negf %1029 : vector<8x32xf32>
    %1031 = math.exp %1030 : vector<8x32xf32>
    %cst_158 = arith.constant 1.000000e+00 : f32
    %1032 = vector.broadcast %cst_158 : f32 to vector<8x32xf32>
    %1033 = arith.addf %1032, %1031 : vector<8x32xf32>
    %1034 = arith.divf %1032, %1033 : vector<8x32xf32>
    %1035 = vector.extract_strided_slice %258 {offsets = [0, 64], sizes = [8, 32], strides = [1, 1]} : vector<8x96xf32> to vector<8x32xf32>
    %1036 = vector.extract_strided_slice %1018 {offsets = [0, 64], sizes = [8, 32], strides = [1, 1]} : vector<8x96xf32> to vector<8x32xf32>
    %1037 = arith.mulf %1026, %1036 : vector<8x32xf32>
    %1038 = arith.addf %1035, %1037 : vector<8x32xf32>
    %1039 = math.tanh %1038 : vector<8x32xf32>
    %cst_159 = arith.constant 1.000000e+00 : f32
    %1040 = vector.broadcast %cst_159 : f32 to vector<8x32xf32>
    %1041 = arith.subf %1040, %1034 : vector<8x32xf32>
    %1042 = arith.mulf %1041, %1039 : vector<8x32xf32>
    %1043 = arith.mulf %1034, %1015 : vector<8x32xf32>
    %1044 = arith.addf %1042, %1043 : vector<8x32xf32>
    %c27_i32 = arith.constant 27 : i32
    %cst_160 = arith.constant dense<0.000000e+00> : vector<8x96xf32>
    %1045 = tpu.matmul %1044, %259, %cst_160 {dimension_numbers = #tpu.dot_dimension_numbers<[1], [0], [0], [1], [0, 0, 1, 1], [], []>, precision = #tpu.contract_precision<fp32>} : vector<8x32xf32>, vector<32x96xf32>, vector<8x96xf32> -> vector<8x96xf32>
    %1046 = vector.broadcast %260 : vector<1x96xf32> to vector<8x96xf32>
    %1047 = arith.addf %1045, %1046 : vector<8x96xf32>
    %1048 = vector.extract_strided_slice %258 {offsets = [0, 0], sizes = [8, 32], strides = [1, 1]} : vector<8x96xf32> to vector<8x32xf32>
    %1049 = vector.extract_strided_slice %1047 {offsets = [0, 0], sizes = [8, 32], strides = [1, 1]} : vector<8x96xf32> to vector<8x32xf32>
    %1050 = arith.addf %1048, %1049 : vector<8x32xf32>
    %1051 = arith.negf %1050 : vector<8x32xf32>
    %1052 = math.exp %1051 : vector<8x32xf32>
    %cst_161 = arith.constant 1.000000e+00 : f32
    %1053 = vector.broadcast %cst_161 : f32 to vector<8x32xf32>
    %1054 = arith.addf %1053, %1052 : vector<8x32xf32>
    %1055 = arith.divf %1053, %1054 : vector<8x32xf32>
    %1056 = vector.extract_strided_slice %258 {offsets = [0, 32], sizes = [8, 32], strides = [1, 1]} : vector<8x96xf32> to vector<8x32xf32>
    %1057 = vector.extract_strided_slice %1047 {offsets = [0, 32], sizes = [8, 32], strides = [1, 1]} : vector<8x96xf32> to vector<8x32xf32>
    %1058 = arith.addf %1056, %1057 : vector<8x32xf32>
    %1059 = arith.negf %1058 : vector<8x32xf32>
    %1060 = math.exp %1059 : vector<8x32xf32>
    %cst_162 = arith.constant 1.000000e+00 : f32
    %1061 = vector.broadcast %cst_162 : f32 to vector<8x32xf32>
    %1062 = arith.addf %1061, %1060 : vector<8x32xf32>
    %1063 = arith.divf %1061, %1062 : vector<8x32xf32>
    %1064 = vector.extract_strided_slice %258 {offsets = [0, 64], sizes = [8, 32], strides = [1, 1]} : vector<8x96xf32> to vector<8x32xf32>
    %1065 = vector.extract_strided_slice %1047 {offsets = [0, 64], sizes = [8, 32], strides = [1, 1]} : vector<8x96xf32> to vector<8x32xf32>
    %1066 = arith.mulf %1055, %1065 : vector<8x32xf32>
    %1067 = arith.addf %1064, %1066 : vector<8x32xf32>
    %1068 = math.tanh %1067 : vector<8x32xf32>
    %cst_163 = arith.constant 1.000000e+00 : f32
    %1069 = vector.broadcast %cst_163 : f32 to vector<8x32xf32>
    %1070 = arith.subf %1069, %1063 : vector<8x32xf32>
    %1071 = arith.mulf %1070, %1068 : vector<8x32xf32>
    %1072 = arith.mulf %1063, %1044 : vector<8x32xf32>
    %1073 = arith.addf %1071, %1072 : vector<8x32xf32>
    %c28_i32 = arith.constant 28 : i32
    %cst_164 = arith.constant dense<0.000000e+00> : vector<8x96xf32>
    %1074 = tpu.matmul %1073, %259, %cst_164 {dimension_numbers = #tpu.dot_dimension_numbers<[1], [0], [0], [1], [0, 0, 1, 1], [], []>, precision = #tpu.contract_precision<fp32>} : vector<8x32xf32>, vector<32x96xf32>, vector<8x96xf32> -> vector<8x96xf32>
    %1075 = vector.broadcast %260 : vector<1x96xf32> to vector<8x96xf32>
    %1076 = arith.addf %1074, %1075 : vector<8x96xf32>
    %1077 = vector.extract_strided_slice %258 {offsets = [0, 0], sizes = [8, 32], strides = [1, 1]} : vector<8x96xf32> to vector<8x32xf32>
    %1078 = vector.extract_strided_slice %1076 {offsets = [0, 0], sizes = [8, 32], strides = [1, 1]} : vector<8x96xf32> to vector<8x32xf32>
    %1079 = arith.addf %1077, %1078 : vector<8x32xf32>
    %1080 = arith.negf %1079 : vector<8x32xf32>
    %1081 = math.exp %1080 : vector<8x32xf32>
    %cst_165 = arith.constant 1.000000e+00 : f32
    %1082 = vector.broadcast %cst_165 : f32 to vector<8x32xf32>
    %1083 = arith.addf %1082, %1081 : vector<8x32xf32>
    %1084 = arith.divf %1082, %1083 : vector<8x32xf32>
    %1085 = vector.extract_strided_slice %258 {offsets = [0, 32], sizes = [8, 32], strides = [1, 1]} : vector<8x96xf32> to vector<8x32xf32>
    %1086 = vector.extract_strided_slice %1076 {offsets = [0, 32], sizes = [8, 32], strides = [1, 1]} : vector<8x96xf32> to vector<8x32xf32>
    %1087 = arith.addf %1085, %1086 : vector<8x32xf32>
    %1088 = arith.negf %1087 : vector<8x32xf32>
    %1089 = math.exp %1088 : vector<8x32xf32>
    %cst_166 = arith.constant 1.000000e+00 : f32
    %1090 = vector.broadcast %cst_166 : f32 to vector<8x32xf32>
    %1091 = arith.addf %1090, %1089 : vector<8x32xf32>
    %1092 = arith.divf %1090, %1091 : vector<8x32xf32>
    %1093 = vector.extract_strided_slice %258 {offsets = [0, 64], sizes = [8, 32], strides = [1, 1]} : vector<8x96xf32> to vector<8x32xf32>
    %1094 = vector.extract_strided_slice %1076 {offsets = [0, 64], sizes = [8, 32], strides = [1, 1]} : vector<8x96xf32> to vector<8x32xf32>
    %1095 = arith.mulf %1084, %1094 : vector<8x32xf32>
    %1096 = arith.addf %1093, %1095 : vector<8x32xf32>
    %1097 = math.tanh %1096 : vector<8x32xf32>
    %cst_167 = arith.constant 1.000000e+00 : f32
    %1098 = vector.broadcast %cst_167 : f32 to vector<8x32xf32>
    %1099 = arith.subf %1098, %1092 : vector<8x32xf32>
    %1100 = arith.mulf %1099, %1097 : vector<8x32xf32>
    %1101 = arith.mulf %1092, %1073 : vector<8x32xf32>
    %1102 = arith.addf %1100, %1101 : vector<8x32xf32>
    %c29_i32 = arith.constant 29 : i32
    %cst_168 = arith.constant dense<0.000000e+00> : vector<8x96xf32>
    %1103 = tpu.matmul %1102, %259, %cst_168 {dimension_numbers = #tpu.dot_dimension_numbers<[1], [0], [0], [1], [0, 0, 1, 1], [], []>, precision = #tpu.contract_precision<fp32>} : vector<8x32xf32>, vector<32x96xf32>, vector<8x96xf32> -> vector<8x96xf32>
    %1104 = vector.broadcast %260 : vector<1x96xf32> to vector<8x96xf32>
    %1105 = arith.addf %1103, %1104 : vector<8x96xf32>
    %1106 = vector.extract_strided_slice %258 {offsets = [0, 0], sizes = [8, 32], strides = [1, 1]} : vector<8x96xf32> to vector<8x32xf32>
    %1107 = vector.extract_strided_slice %1105 {offsets = [0, 0], sizes = [8, 32], strides = [1, 1]} : vector<8x96xf32> to vector<8x32xf32>
    %1108 = arith.addf %1106, %1107 : vector<8x32xf32>
    %1109 = arith.negf %1108 : vector<8x32xf32>
    %1110 = math.exp %1109 : vector<8x32xf32>
    %cst_169 = arith.constant 1.000000e+00 : f32
    %1111 = vector.broadcast %cst_169 : f32 to vector<8x32xf32>
    %1112 = arith.addf %1111, %1110 : vector<8x32xf32>
    %1113 = arith.divf %1111, %1112 : vector<8x32xf32>
    %1114 = vector.extract_strided_slice %258 {offsets = [0, 32], sizes = [8, 32], strides = [1, 1]} : vector<8x96xf32> to vector<8x32xf32>
    %1115 = vector.extract_strided_slice %1105 {offsets = [0, 32], sizes = [8, 32], strides = [1, 1]} : vector<8x96xf32> to vector<8x32xf32>
    %1116 = arith.addf %1114, %1115 : vector<8x32xf32>
    %1117 = arith.negf %1116 : vector<8x32xf32>
    %1118 = math.exp %1117 : vector<8x32xf32>
    %cst_170 = arith.constant 1.000000e+00 : f32
    %1119 = vector.broadcast %cst_170 : f32 to vector<8x32xf32>
    %1120 = arith.addf %1119, %1118 : vector<8x32xf32>
    %1121 = arith.divf %1119, %1120 : vector<8x32xf32>
    %1122 = vector.extract_strided_slice %258 {offsets = [0, 64], sizes = [8, 32], strides = [1, 1]} : vector<8x96xf32> to vector<8x32xf32>
    %1123 = vector.extract_strided_slice %1105 {offsets = [0, 64], sizes = [8, 32], strides = [1, 1]} : vector<8x96xf32> to vector<8x32xf32>
    %1124 = arith.mulf %1113, %1123 : vector<8x32xf32>
    %1125 = arith.addf %1122, %1124 : vector<8x32xf32>
    %1126 = math.tanh %1125 : vector<8x32xf32>
    %cst_171 = arith.constant 1.000000e+00 : f32
    %1127 = vector.broadcast %cst_171 : f32 to vector<8x32xf32>
    %1128 = arith.subf %1127, %1121 : vector<8x32xf32>
    %1129 = arith.mulf %1128, %1126 : vector<8x32xf32>
    %1130 = arith.mulf %1121, %1102 : vector<8x32xf32>
    %1131 = arith.addf %1129, %1130 : vector<8x32xf32>
    %c30_i32 = arith.constant 30 : i32
    %cst_172 = arith.constant dense<0.000000e+00> : vector<8x96xf32>
    %1132 = tpu.matmul %1131, %259, %cst_172 {dimension_numbers = #tpu.dot_dimension_numbers<[1], [0], [0], [1], [0, 0, 1, 1], [], []>, precision = #tpu.contract_precision<fp32>} : vector<8x32xf32>, vector<32x96xf32>, vector<8x96xf32> -> vector<8x96xf32>
    %1133 = vector.broadcast %260 : vector<1x96xf32> to vector<8x96xf32>
    %1134 = arith.addf %1132, %1133 : vector<8x96xf32>
    %1135 = vector.extract_strided_slice %258 {offsets = [0, 0], sizes = [8, 32], strides = [1, 1]} : vector<8x96xf32> to vector<8x32xf32>
    %1136 = vector.extract_strided_slice %1134 {offsets = [0, 0], sizes = [8, 32], strides = [1, 1]} : vector<8x96xf32> to vector<8x32xf32>
    %1137 = arith.addf %1135, %1136 : vector<8x32xf32>
    %1138 = arith.negf %1137 : vector<8x32xf32>
    %1139 = math.exp %1138 : vector<8x32xf32>
    %cst_173 = arith.constant 1.000000e+00 : f32
    %1140 = vector.broadcast %cst_173 : f32 to vector<8x32xf32>
    %1141 = arith.addf %1140, %1139 : vector<8x32xf32>
    %1142 = arith.divf %1140, %1141 : vector<8x32xf32>
    %1143 = vector.extract_strided_slice %258 {offsets = [0, 32], sizes = [8, 32], strides = [1, 1]} : vector<8x96xf32> to vector<8x32xf32>
    %1144 = vector.extract_strided_slice %1134 {offsets = [0, 32], sizes = [8, 32], strides = [1, 1]} : vector<8x96xf32> to vector<8x32xf32>
    %1145 = arith.addf %1143, %1144 : vector<8x32xf32>
    %1146 = arith.negf %1145 : vector<8x32xf32>
    %1147 = math.exp %1146 : vector<8x32xf32>
    %cst_174 = arith.constant 1.000000e+00 : f32
    %1148 = vector.broadcast %cst_174 : f32 to vector<8x32xf32>
    %1149 = arith.addf %1148, %1147 : vector<8x32xf32>
    %1150 = arith.divf %1148, %1149 : vector<8x32xf32>
    %1151 = vector.extract_strided_slice %258 {offsets = [0, 64], sizes = [8, 32], strides = [1, 1]} : vector<8x96xf32> to vector<8x32xf32>
    %1152 = vector.extract_strided_slice %1134 {offsets = [0, 64], sizes = [8, 32], strides = [1, 1]} : vector<8x96xf32> to vector<8x32xf32>
    %1153 = arith.mulf %1142, %1152 : vector<8x32xf32>
    %1154 = arith.addf %1151, %1153 : vector<8x32xf32>
    %1155 = math.tanh %1154 : vector<8x32xf32>
    %cst_175 = arith.constant 1.000000e+00 : f32
    %1156 = vector.broadcast %cst_175 : f32 to vector<8x32xf32>
    %1157 = arith.subf %1156, %1150 : vector<8x32xf32>
    %1158 = arith.mulf %1157, %1155 : vector<8x32xf32>
    %1159 = arith.mulf %1150, %1131 : vector<8x32xf32>
    %1160 = arith.addf %1158, %1159 : vector<8x32xf32>
    %c31_i32 = arith.constant 31 : i32
    %cst_176 = arith.constant dense<0.000000e+00> : vector<8x96xf32>
    %1161 = tpu.matmul %1160, %259, %cst_176 {dimension_numbers = #tpu.dot_dimension_numbers<[1], [0], [0], [1], [0, 0, 1, 1], [], []>, precision = #tpu.contract_precision<fp32>} : vector<8x32xf32>, vector<32x96xf32>, vector<8x96xf32> -> vector<8x96xf32>
    %1162 = vector.broadcast %260 : vector<1x96xf32> to vector<8x96xf32>
    %1163 = arith.addf %1161, %1162 : vector<8x96xf32>
    %1164 = vector.extract_strided_slice %258 {offsets = [0, 0], sizes = [8, 32], strides = [1, 1]} : vector<8x96xf32> to vector<8x32xf32>
    %1165 = vector.extract_strided_slice %1163 {offsets = [0, 0], sizes = [8, 32], strides = [1, 1]} : vector<8x96xf32> to vector<8x32xf32>
    %1166 = arith.addf %1164, %1165 : vector<8x32xf32>
    %1167 = arith.negf %1166 : vector<8x32xf32>
    %1168 = math.exp %1167 : vector<8x32xf32>
    %cst_177 = arith.constant 1.000000e+00 : f32
    %1169 = vector.broadcast %cst_177 : f32 to vector<8x32xf32>
    %1170 = arith.addf %1169, %1168 : vector<8x32xf32>
    %1171 = arith.divf %1169, %1170 : vector<8x32xf32>
    %1172 = vector.extract_strided_slice %258 {offsets = [0, 32], sizes = [8, 32], strides = [1, 1]} : vector<8x96xf32> to vector<8x32xf32>
    %1173 = vector.extract_strided_slice %1163 {offsets = [0, 32], sizes = [8, 32], strides = [1, 1]} : vector<8x96xf32> to vector<8x32xf32>
    %1174 = arith.addf %1172, %1173 : vector<8x32xf32>
    %1175 = arith.negf %1174 : vector<8x32xf32>
    %1176 = math.exp %1175 : vector<8x32xf32>
    %cst_178 = arith.constant 1.000000e+00 : f32
    %1177 = vector.broadcast %cst_178 : f32 to vector<8x32xf32>
    %1178 = arith.addf %1177, %1176 : vector<8x32xf32>
    %1179 = arith.divf %1177, %1178 : vector<8x32xf32>
    %1180 = vector.extract_strided_slice %258 {offsets = [0, 64], sizes = [8, 32], strides = [1, 1]} : vector<8x96xf32> to vector<8x32xf32>
    %1181 = vector.extract_strided_slice %1163 {offsets = [0, 64], sizes = [8, 32], strides = [1, 1]} : vector<8x96xf32> to vector<8x32xf32>
    %1182 = arith.mulf %1171, %1181 : vector<8x32xf32>
    %1183 = arith.addf %1180, %1182 : vector<8x32xf32>
    %1184 = math.tanh %1183 : vector<8x32xf32>
    %cst_179 = arith.constant 1.000000e+00 : f32
    %1185 = vector.broadcast %cst_179 : f32 to vector<8x32xf32>
    %1186 = arith.subf %1185, %1179 : vector<8x32xf32>
    %1187 = arith.mulf %1186, %1184 : vector<8x32xf32>
    %1188 = arith.mulf %1179, %1160 : vector<8x32xf32>
    %1189 = arith.addf %1187, %1188 : vector<8x32xf32>
    %c0_180 = arith.constant 0 : index
    %c0_181 = arith.constant 0 : index
    %1190 = vector.load %arg9[%c0_180, %c0_181] : memref<32x64xf32, #tpu.memory_space<vmem>>, vector<32x64xf32>
    %cst_182 = arith.constant dense<0.000000e+00> : vector<8x64xf32>
    %1191 = tpu.matmul %1189, %1190, %cst_182 {dimension_numbers = #tpu.dot_dimension_numbers<[1], [0], [0], [1], [0, 0, 1, 1], [], []>, precision = #tpu.contract_precision<fp32>} : vector<8x32xf32>, vector<32x64xf32>, vector<8x64xf32> -> vector<8x64xf32>
    %c0_183 = arith.constant 0 : index
    %c0_184 = arith.constant 0 : index
    %1192 = vector.load %arg10[%c0_183, %c0_184] : memref<1x64xf32, #tpu.memory_space<vmem>>, vector<1x64xf32>
    %1193 = vector.broadcast %1192 : vector<1x64xf32> to vector<8x64xf32>
    %1194 = arith.addf %1191, %1193 : vector<8x64xf32>
    %c0_185 = arith.constant 0 : index
    %c0_186 = arith.constant 0 : index
    %1195 = vector.load %arg11[%c0_185, %c0_186] : memref<8x64xf32, #tpu.memory_space<vmem>>, vector<8x64xf32>
    tpu.vector_store %arg11[%c0_185, %c0_186], %1194 {strides = array<i32>} : memref<8x64xf32, #tpu.memory_space<vmem>>, vector<8x64xf32>,
    return
  }
}

</mosaic_0001>

<llo_original>
// kernel: autoencoder_forward.1
$region0: #{autoencoder_forward.1}
  #allocation0 [shape = 'u32[]', space=smem, size = 0x4, offset = 0x4, fixed_abs, tag = 'smem constant byte address 0x4 - core index']
  #allocation1 [shape = 'u32[72,128]{1,0:T(1,128)}', space=vmem, size = 0x9000, scoped, tag = 'internal scratch']
  %s0 = inlined_call_operand.vmem [shape: s32[64,1], index: 0, kind: input, shape index: {}]
  %s1 = inlined_call_operand.vmem [shape: f32[64,96], index: 1, kind: input, shape index: {}]
  %s2 = inlined_call_operand.vmem [shape: f32[1,96], index: 2, kind: input, shape index: {}]
  %s3 = inlined_call_operand.vmem [shape: f32[32,96], index: 3, kind: input, shape index: {}]
  %s4 = inlined_call_operand.vmem [shape: f32[1,96], index: 4, kind: input, shape index: {}]
  %s5 = inlined_call_operand.hbm [shape: f32[32,96], index: 5, kind: input, shape index: {}]
  %s6 = inlined_call_operand.vmem [shape: f32[1,96], index: 6, kind: input, shape index: {}]
  %s7 = inlined_call_operand.hbm [shape: f32[32,96], index: 7, kind: input, shape index: {}]
  %s8 = inlined_call_operand.vmem [shape: f32[1,96], index: 8, kind: input, shape index: {}]
  %s9 = inlined_call_operand.hbm [shape: f32[32,64], index: 9, kind: input, shape index: {}]
  %s10 = inlined_call_operand.vmem [shape: f32[1,64], index: 10, kind: input, shape index: {}]
  %s11 = inlined_call_operand.vmem [shape: f32[8,64], index: 11, kind: output, shape index: {}]
  %s12 = sld [smem:[#allocation0]]
  $region66: #{autoencoder_forward.1} parent=0
    _
  %s14 = ssub.s32 1, %s12
  %s15 = scalar_select 0, %s14, %s12
  $region1: #{autoencoder_forward.1} parent=0
    #allocation2 [shape = 'u8[16384]{0}', space=vmem, size = 0x4000, scoped, tag = 'input window, operand 5, single buffered']
    #allocation3 [shape = 's32[1]{0}', space=sflag, size = 0x4, scoped, tag = 'scoped memory for autoencoder_forward.1']
    #allocation4 [shape = 'u8[16384]{0}', space=vmem, size = 0x4000, scoped, tag = 'input window, operand 7, single buffered']
    #allocation5 [shape = 's32[1]{0}', space=sflag, size = 0x4, scoped, tag = 'scoped memory for autoencoder_forward.1']
    #allocation6 [shape = 'u8[16384]{0}', space=vmem, size = 0x4000, scoped, tag = 'input window, operand 9, single buffered']
    %16 = vsyncpa [#allocation3], 0
    %17 = vsyncpa [#allocation5], 0
    // Predicated region
    $region2: #{autoencoder_forward.1} parent=1 // pred_check
      _
    $region3: #{autoencoder_forward.1} parent=1 // pred_check_branch
      %19 = sbr.rel (0) target = $region5
    $region4: #{autoencoder_forward.1} parent=1 // pred_region
      _
    $region5: #{autoencoder_forward.1} parent=1 // pred_fallthru
      _
    // Predicated region
    $region6: #{autoencoder_forward.1} parent=1 // pred_check
      _
    $region7: #{autoencoder_forward.1} parent=1 // pred_check_branch
      %21 = sbr.rel (0) target = $region9
    $region8: #{autoencoder_forward.1} parent=1 // pred_region
      _
    $region9: #{autoencoder_forward.1} parent=1 // pred_fallthru
      _
    // Predicated region
    $region10: #{autoencoder_forward.1} parent=1 // pred_check
      _
    $region11: #{autoencoder_forward.1} parent=1 // pred_check_branch
      %23 = sbr.rel (0) target = $region13
    $region12: #{autoencoder_forward.1} parent=1 // pred_region
      _
    $region13: #{autoencoder_forward.1} parent=1 // pred_fallthru
      _
    // Predicated region
    $region14: #{autoencoder_forward.1} parent=1 // pred_check
      _
    $region15: #{autoencoder_forward.1} parent=1 // pred_check_branch
      %25 = sbr.rel (0) target = $region17
    $region16: #{autoencoder_forward.1} parent=1 // pred_region
      _
    $region17: #{autoencoder_forward.1} parent=1 // pred_fallthru
      _
    // Predicated region
    $region18: #{autoencoder_forward.1} parent=1 // pred_check
      _
    $region19: #{autoencoder_forward.1} parent=1 // pred_check_branch
      %27 = sbr.rel (0) target = $region21
    $region20: #{autoencoder_forward.1} parent=1 // pred_region
      _
    $region21: #{autoencoder_forward.1} parent=1 // pred_fallthru
      _
    // Predicated region
    $region22: #{autoencoder_forward.1} parent=1 // pred_check
      _
    $region23: #{autoencoder_forward.1} parent=1 // pred_check_branch
      %29 = sbr.rel (0) target = $region25
    $region24: #{autoencoder_forward.1} parent=1 // pred_region
      %31 = vsyncadd [#allocation3], 0
      %s32 = sshll.u32 %s5, 4
      %s33 = int_to_ptr.hbm [resolvable:$true] %s32
      %s34 = sshll.u32 [#allocation2], 4
      %s35 = int_to_ptr.vmem [resolvable:$true] %s34
      %40 = dma.hbm_to_vmem [thread:$0]  %s33, 512, %s35, [#allocation3], 128, 128, 8
    $region25: #{autoencoder_forward.1} parent=1 // pred_fallthru
      _
    // Predicated region
    $region26: #{autoencoder_forward.1} parent=1 // pred_check
      _
    $region27: #{autoencoder_forward.1} parent=1 // pred_check_branch
      %42 = sbr.rel (0) target = $region29
    $region28: #{autoencoder_forward.1} parent=1 // pred_region
      _
    $region29: #{autoencoder_forward.1} parent=1 // pred_fallthru
      _
    // Predicated region
    $region30: #{autoencoder_forward.1} parent=1 // pred_check
      _
    $region31: #{autoencoder_forward.1} parent=1 // pred_check_branch
      %44 = sbr.rel (0) target = $region33
    $region32: #{autoencoder_forward.1} parent=1 // pred_region
      %46 = vsyncadd [#allocation5], 0
      %s47 = sshll.u32 %s7, 4
      %s48 = int_to_ptr.hbm [resolvable:$true] %s47
      %s49 = sshll.u32 [#allocation4], 4
      %s50 = int_to_ptr.vmem [resolvable:$true] %s49
      %55 = dma.hbm_to_vmem [thread:$0]  %s48, 512, %s50, [#allocation5], 128, 128, 8
    $region33: #{autoencoder_forward.1} parent=1 // pred_fallthru
      _
    // Predicated region
    $region34: #{autoencoder_forward.1} parent=1 // pred_check
      _
    $region35: #{autoencoder_forward.1} parent=1 // pred_check_branch
      %57 = sbr.rel (0) target = $region37
    $region36: #{autoencoder_forward.1} parent=1 // pred_region
      _
    $region37: #{autoencoder_forward.1} parent=1 // pred_fallthru
      _
    // Predicated region
    $region38: #{autoencoder_forward.1} parent=1 // pred_check
      _
    $region39: #{autoencoder_forward.1} parent=1 // pred_check_branch
      %59 = sbr.rel (0) target = $region41
    $region40: #{autoencoder_forward.1} parent=1 // pred_region
      %61 = vsyncadd [#allocation5], 0
      %s62 = sshll.u32 %s9, 4
      %s63 = int_to_ptr.hbm [resolvable:$true] %s62
      %s64 = sshll.u32 [#allocation6], 4
      %s65 = int_to_ptr.vmem [resolvable:$true] %s64
      %70 = dma.hbm_to_vmem [thread:$0]  %s63, 512, %s65, [#allocation5], 128, 128, 8
    $region41: #{autoencoder_forward.1} parent=1 // pred_fallthru
      _
    // Predicated region
    $region42: #{autoencoder_forward.1} parent=1 // pred_check
      _
    $region43: #{autoencoder_forward.1} parent=1 // pred_check_branch
      %72 = sbr.rel (0) target = $region45
    $region44: #{autoencoder_forward.1} parent=1 // pred_region
      _
    $region45: #{autoencoder_forward.1} parent=1 // pred_fallthru
      _
    // Predicated region
    $region46: #{autoencoder_forward.1} parent=1 // pred_check
      _
    $region47: #{autoencoder_forward.1} parent=1 // pred_check_branch
      %74 = sbr.rel (0) target = $region49
    $region48: #{autoencoder_forward.1} parent=1 // pred_region
      %76 = dma.done [#allocation3], 512
    $region49: #{autoencoder_forward.1} parent=1 // pred_fallthru
      _
    // Predicated region
    $region50: #{autoencoder_forward.1} parent=1 // pred_check
      _
    $region51: #{autoencoder_forward.1} parent=1 // pred_check_branch
      %78 = sbr.rel (0) target = $region53
    $region52: #{autoencoder_forward.1} parent=1 // pred_region
      %80 = dma.done [#allocation5], 512
    $region53: #{autoencoder_forward.1} parent=1 // pred_fallthru
      _
    // Predicated region
    $region54: #{autoencoder_forward.1} parent=1 // pred_check
      _
    $region55: #{autoencoder_forward.1} parent=1 // pred_check_branch
      %82 = sbr.rel (0) target = $region57
    $region56: #{autoencoder_forward.1} parent=1 // pred_region
      %84 = dma.done [#allocation5], 512
    $region57: #{autoencoder_forward.1} parent=1 // pred_fallthru
      _
    %v85 = vld [vmem:[%s0] sm:$0xff]
    %v86 = vld [vmem:[%s0 + $0x8] sm:$0xff]
    %v87 = vld [vmem:[%s0 + $0x10] sm:$0xff]
    %v88 = vld [vmem:[%s0 + $0x18] sm:$0xff]
    %v89 = vld [vmem:[%s0 + $0x20] sm:$0xff]
    %v90 = vld [vmem:[%s0 + $0x28] sm:$0xff]
    %v91 = vld [vmem:[%s0 + $0x30] sm:$0xff]
    %v92 = vld [vmem:[%s0 + $0x38] sm:$0xff]
    %v93 = vlaneseq
    %v94 = vand.u32 %v93, 127
    %95 = vset.pattern.permute.xlu0 0
    %96 = vperm.xlu0 %95, %v85
    %v97 = vpop.permute.xlu0 %96
    %98 = vset.pattern.permute.xlu0 0
    %99 = vperm.xlu0 %98, %v86
    %v100 = vpop.permute.xlu0 %99
    %101 = vset.pattern.permute.xlu0 0
    %102 = vperm.xlu0 %101, %v87
    %v103 = vpop.permute.xlu0 %102
    %104 = vset.pattern.permute.xlu0 0
    %105 = vperm.xlu0 %104, %v88
    %v106 = vpop.permute.xlu0 %105
    %107 = vset.pattern.permute.xlu0 0
    %108 = vperm.xlu0 %107, %v89
    %v109 = vpop.permute.xlu0 %108
    %110 = vset.pattern.permute.xlu0 0
    %111 = vperm.xlu0 %110, %v90
    %v112 = vpop.permute.xlu0 %111
    %113 = vset.pattern.permute.xlu0 0
    %114 = vperm.xlu0 %113, %v91
    %v115 = vpop.permute.xlu0 %114
    %116 = vset.pattern.permute.xlu0 0
    %117 = vperm.xlu0 %116, %v92
    %v118 = vpop.permute.xlu0 %117
    %vm119 = vcmp.eq.s32.totalorder %v97, %v94
    %vm120 = vcmp.eq.s32.totalorder %v100, %v94
    %vm121 = vcmp.eq.s32.totalorder %v103, %v94
    %vm122 = vcmp.eq.s32.totalorder %v106, %v94
    %vm123 = vcmp.eq.s32.totalorder %v109, %v94
    %vm124 = vcmp.eq.s32.totalorder %v112, %v94
    %vm125 = vcmp.eq.s32.totalorder %v115, %v94
    %vm126 = vcmp.eq.s32.totalorder %v118, %v94
    %v127 = vsel %vm119, 1, 0
    %v128 = vsel %vm120, 1, 0
    %v129 = vsel %vm121, 1, 0
    %v130 = vsel %vm122, 1, 0
    %v131 = vsel %vm123, 1, 0
    %v132 = vsel %vm124, 1, 0
    %v133 = vsel %vm125, 1, 0
    %v134 = vsel %vm126, 1, 0
    %v135 = vcvt.s32.f32 %v127
    %v136 = vcvt.s32.f32 %v128
    %v137 = vcvt.s32.f32 %v129
    %v138 = vcvt.s32.f32 %v130
    %v139 = vcvt.s32.f32 %v131
    %v140 = vcvt.s32.f32 %v132
    %v141 = vcvt.s32.f32 %v133
    %v142 = vcvt.s32.f32 %v134
    %v143 = vld [vmem:[%s1] sm:$0xff]
    %v144 = vld [vmem:[%s1 + $0x8] sm:$0xff]
    %v145 = vld [vmem:[%s1 + $0x10] sm:$0xff]
    %v146 = vld [vmem:[%s1 + $0x18] sm:$0xff]
    %v147 = vld [vmem:[%s1 + $0x20] sm:$0xff]
    %v148 = vld [vmem:[%s1 + $0x28] sm:$0xff]
    %v149 = vld [vmem:[%s1 + $0x30] sm:$0xff]
    %v150 = vld [vmem:[%s1 + $0x38] sm:$0xff]
    %v151 = vld [vmem:[%s2] sm:$0x1]
    %v153 = vperm.slane %v151, 0
    %vm155 = vcmask 523264
    %v157 = vsel %vm155, %v135, 0
    %v160 = vsel %vm155, %v136, 0
    %v163 = vsel %vm155, %v137, 0
    %v166 = vsel %vm155, %v138, 0
    %v169 = vsel %vm155, %v139, 0
    %v172 = vsel %vm155, %v140, 0
    %v175 = vsel %vm155, %v141, 0
    %v178 = vsel %vm155, %v142, 0
    %180 = vmatpush.msra.mxu0 0.0
    %181 = vmatpush.msra.mxu0 0.0
    %182 = vmatpush.msra.mxu0 0.0
    %183 = vmatpush.msra.mxu0 0.0
    %184 = vmatpush.msra.mxu0 0.0
    %185 = vmatpush.msra.mxu0 0.0
    %186 = vmatpush.msra.mxu0 0.0
    %187 = vmatpush.msra.mxu0 0.0
    %v188 = vand.u32 %v150, 4294901760
    %189 = vmatpush.msra.mxu0 %v188
    %v190 = vand.u32 %v149, 4294901760
    %191 = vmatpush.msra.mxu0 %v190
    %v192 = vand.u32 %v148, 4294901760
    %193 = vmatpush.msra.mxu0 %v192
    %v194 = vand.u32 %v147, 4294901760
    %195 = vmatpush.msra.mxu0 %v194
    %v196 = vand.u32 %v146, 4294901760
    %197 = vmatpush.msra.mxu0 %v196
    %v198 = vand.u32 %v145, 4294901760
    %199 = vmatpush.msra.mxu0 %v198
    %v200 = vand.u32 %v144, 4294901760
    %201 = vmatpush.msra.mxu0 %v200
    %v202 = vand.u32 %v143, 4294901760
    %203 = vmatpush.msra.mxu0 %v202
    %v204 = vand.u32 %v157, 4294901760
    %v205 = vsub.f32 %v157, %v204
    %v206 = vand.u32 %v205, 4294901760
    %v207 = vsub.f32 %v205, %v206
    %v208 = vand.u32 %v207, 4294901760
    %209 = vmatmul.f32.gmra.mxu0 %v208
    %v210 = vpop.f32.mrf.mxu0
    %v211 = vadd.f32 %v153, %v210
    %v212 = vand.u32 %v160, 4294901760
    %v213 = vsub.f32 %v160, %v212
    %v214 = vand.u32 %v213, 4294901760
    %v215 = vsub.f32 %v213, %v214
    %v216 = vand.u32 %v215, 4294901760
    %217 = vmatmul.f32.gmra.mxu0 %v216
    %v218 = vpop.f32.mrf.mxu0
    %v219 = vadd.f32 %v153, %v218
    %v220 = vand.u32 %v163, 4294901760
    %v221 = vsub.f32 %v163, %v220
    %v222 = vand.u32 %v221, 4294901760
    %v223 = vsub.f32 %v221, %v222
    %v224 = vand.u32 %v223, 4294901760
    %225 = vmatmul.f32.gmra.mxu0 %v224
    %v226 = vpop.f32.mrf.mxu0
    %v227 = vadd.f32 %v153, %v226
    %v228 = vand.u32 %v166, 4294901760
    %v229 = vsub.f32 %v166, %v228
    %v230 = vand.u32 %v229, 4294901760
    %v231 = vsub.f32 %v229, %v230
    %v232 = vand.u32 %v231, 4294901760
    %233 = vmatmul.f32.gmra.mxu0 %v232
    %v234 = vpop.f32.mrf.mxu0
    %v235 = vadd.f32 %v153, %v234
    %v236 = vand.u32 %v169, 4294901760
    %v237 = vsub.f32 %v169, %v236
    %v238 = vand.u32 %v237, 4294901760
    %v239 = vsub.f32 %v237, %v238
    %v240 = vand.u32 %v239, 4294901760
    %241 = vmatmul.f32.gmra.mxu0 %v240
    %v242 = vpop.f32.mrf.mxu0
    %v243 = vadd.f32 %v153, %v242
    %v244 = vand.u32 %v172, 4294901760
    %v245 = vsub.f32 %v172, %v244
    %v246 = vand.u32 %v245, 4294901760
    %v247 = vsub.f32 %v245, %v246
    %v248 = vand.u32 %v247, 4294901760
    %249 = vmatmul.f32.gmra.mxu0 %v248
    %v250 = vpop.f32.mrf.mxu0
    %v251 = vadd.f32 %v153, %v250
    %v252 = vand.u32 %v175, 4294901760
    %v253 = vsub.f32 %v175, %v252
    %v254 = vand.u32 %v253, 4294901760
    %v255 = vsub.f32 %v253, %v254
    %v256 = vand.u32 %v255, 4294901760
    %257 = vmatmul.f32.gmra.mxu0 %v256
    %v258 = vpop.f32.mrf.mxu0
    %v259 = vadd.f32 %v153, %v258
    %v260 = vand.u32 %v178, 4294901760
    %v261 = vsub.f32 %v178, %v260
    %v262 = vand.u32 %v261, 4294901760
    %v263 = vsub.f32 %v261, %v262
    %v264 = vand.u32 %v263, 4294901760
    %265 = vmatmul.f32.gmra.mxu0 %v264
    %v266 = vpop.f32.mrf.mxu0
    %v267 = vadd.f32 %v153, %v266
    %268 = vdwg.mxu0
    %269 = vmatpush.msra.mxu0 0.0
    %270 = vmatpush.msra.mxu0 0.0
    %271 = vmatpush.msra.mxu0 0.0
    %272 = vmatpush.msra.mxu0 0.0
    %273 = vmatpush.msra.mxu0 0.0
    %274 = vmatpush.msra.mxu0 0.0
    %275 = vmatpush.msra.mxu0 0.0
    %276 = vmatpush.msra.mxu0 0.0
    %v277 = vand.u32 %v150, 4294901760
    %v278 = vsub.f32 %v150, %v277
    %v279 = vand.u32 %v278, 4294901760
    %v280 = vsub.f32 %v278, %v279
    %v281 = vand.u32 %v280, 4294901760
    %282 = vmatpush.msra.mxu0 %v281
    %v283 = vand.u32 %v149, 4294901760
    %v284 = vsub.f32 %v149, %v283
    %v285 = vand.u32 %v284, 4294901760
    %v286 = vsub.f32 %v284, %v285
    %v287 = vand.u32 %v286, 4294901760
    %288 = vmatpush.msra.mxu0 %v287
    %v289 = vand.u32 %v148, 4294901760
    %v290 = vsub.f32 %v148, %v289
    %v291 = vand.u32 %v290, 4294901760
    %v292 = vsub.f32 %v290, %v291
    %v293 = vand.u32 %v292, 4294901760
    %294 = vmatpush.msra.mxu0 %v293
    %v295 = vand.u32 %v147, 4294901760
    %v296 = vsub.f32 %v147, %v295
    %v297 = vand.u32 %v296, 4294901760
    %v298 = vsub.f32 %v296, %v297
    %v299 = vand.u32 %v298, 4294901760
    %300 = vmatpush.msra.mxu0 %v299
    %v301 = vand.u32 %v146, 4294901760
    %v302 = vsub.f32 %v146, %v301
    %v303 = vand.u32 %v302, 4294901760
    %v304 = vsub.f32 %v302, %v303
    %v305 = vand.u32 %v304, 4294901760
    %306 = vmatpush.msra.mxu0 %v305
    %v307 = vand.u32 %v145, 4294901760
    %v308 = vsub.f32 %v145, %v307
    %v309 = vand.u32 %v308, 4294901760
    %v310 = vsub.f32 %v308, %v309
    %v311 = vand.u32 %v310, 4294901760
    %312 = vmatpush.msra.mxu0 %v311
    %v313 = vand.u32 %v144, 4294901760
    %v314 = vsub.f32 %v144, %v313
    %v315 = vand.u32 %v314, 4294901760
    %v316 = vsub.f32 %v314, %v315
    %v317 = vand.u32 %v316, 4294901760
    %318 = vmatpush.msra.mxu0 %v317
    %v319 = vand.u32 %v143, 4294901760
    %v320 = vsub.f32 %v143, %v319
    %v321 = vand.u32 %v320, 4294901760
    %v322 = vsub.f32 %v320, %v321
    %v323 = vand.u32 %v322, 4294901760
    %324 = vmatpush.msra.mxu0 %v323
    %v325 = vand.u32 %v157, 4294901760
    %326 = vmatmul.f32.gmra.mxu0 %v325
    %v327 = vpop.f32.mrf.mxu0
    %v328 = vadd.f32 %v211, %v327
    %v329 = vand.u32 %v160, 4294901760
    %330 = vmatmul.f32.gmra.mxu0 %v329
    %v331 = vpop.f32.mrf.mxu0
    %v332 = vadd.f32 %v219, %v331
    %v333 = vand.u32 %v163, 4294901760
    %334 = vmatmul.f32.gmra.mxu0 %v333
    %v335 = vpop.f32.mrf.mxu0
    %v336 = vadd.f32 %v227, %v335
    %v337 = vand.u32 %v166, 4294901760
    %338 = vmatmul.f32.gmra.mxu0 %v337
    %v339 = vpop.f32.mrf.mxu0
    %v340 = vadd.f32 %v235, %v339
    %v341 = vand.u32 %v169, 4294901760
    %342 = vmatmul.f32.gmra.mxu0 %v341
    %v343 = vpop.f32.mrf.mxu0
    %v344 = vadd.f32 %v243, %v343
    %v345 = vand.u32 %v172, 4294901760
    %346 = vmatmul.f32.gmra.mxu0 %v345
    %v347 = vpop.f32.mrf.mxu0
    %v348 = vadd.f32 %v251, %v347
    %v349 = vand.u32 %v175, 4294901760
    %350 = vmatmul.f32.gmra.mxu0 %v349
    %v351 = vpop.f32.mrf.mxu0
    %v352 = vadd.f32 %v259, %v351
    %v353 = vand.u32 %v178, 4294901760
    %354 = vmatmul.f32.gmra.mxu0 %v353
    %v355 = vpop.f32.mrf.mxu0
    %v356 = vadd.f32 %v267, %v355
    %357 = vdwg.mxu0
    %358 = vmatpush.msra.mxu0 0.0
    %359 = vmatpush.msra.mxu0 0.0
    %360 = vmatpush.msra.mxu0 0.0
    %361 = vmatpush.msra.mxu0 0.0
    %362 = vmatpush.msra.mxu0 0.0
    %363 = vmatpush.msra.mxu0 0.0
    %364 = vmatpush.msra.mxu0 0.0
    %365 = vmatpush.msra.mxu0 0.0
    %v366 = vand.u32 %v150, 4294901760
    %v367 = vsub.f32 %v150, %v366
    %368 = vmatpush.msra.mxu0 %v367
    %v369 = vand.u32 %v149, 4294901760
    %v370 = vsub.f32 %v149, %v369
    %371 = vmatpush.msra.mxu0 %v370
    %v372 = vand.u32 %v148, 4294901760
    %v373 = vsub.f32 %v148, %v372
    %374 = vmatpush.msra.mxu0 %v373
    %v375 = vand.u32 %v147, 4294901760
    %v376 = vsub.f32 %v147, %v375
    %377 = vmatpush.msra.mxu0 %v376
    %v378 = vand.u32 %v146, 4294901760
    %v379 = vsub.f32 %v146, %v378
    %380 = vmatpush.msra.mxu0 %v379
    %v381 = vand.u32 %v145, 4294901760
    %v382 = vsub.f32 %v145, %v381
    %383 = vmatpush.msra.mxu0 %v382
    %v384 = vand.u32 %v144, 4294901760
    %v385 = vsub.f32 %v144, %v384
    %386 = vmatpush.msra.mxu0 %v385
    %v387 = vand.u32 %v143, 4294901760
    %v388 = vsub.f32 %v143, %v387
    %389 = vmatpush.msra.mxu0 %v388
    %v390 = vand.u32 %v157, 4294901760
    %v391 = vsub.f32 %v157, %v390
    %392 = vmatmul.f32.gmra.mxu0 %v391
    %v393 = vpop.f32.mrf.mxu0
    %v394 = vadd.f32 %v328, %v393
    %v395 = vand.u32 %v160, 4294901760
    %v396 = vsub.f32 %v160, %v395
    %397 = vmatmul.f32.gmra.mxu0 %v396
    %v398 = vpop.f32.mrf.mxu0
    %v399 = vadd.f32 %v332, %v398
    %v400 = vand.u32 %v163, 4294901760
    %v401 = vsub.f32 %v163, %v400
    %402 = vmatmul.f32.gmra.mxu0 %v401
    %v403 = vpop.f32.mrf.mxu0
    %v404 = vadd.f32 %v336, %v403
    %v405 = vand.u32 %v166, 4294901760
    %v406 = vsub.f32 %v166, %v405
    %407 = vmatmul.f32.gmra.mxu0 %v406
    %v408 = vpop.f32.mrf.mxu0
    %v409 = vadd.f32 %v340, %v408
    %v410 = vand.u32 %v169, 4294901760
    %v411 = vsub.f32 %v169, %v410
    %412 = vmatmul.f32.gmra.mxu0 %v411
    %v413 = vpop.f32.mrf.mxu0
    %v414 = vadd.f32 %v344, %v413
    %v415 = vand.u32 %v172, 4294901760
    %v416 = vsub.f32 %v172, %v415
    %417 = vmatmul.f32.gmra.mxu0 %v416
    %v418 = vpop.f32.mrf.mxu0
    %v419 = vadd.f32 %v348, %v418
    %v420 = vand.u32 %v175, 4294901760
    %v421 = vsub.f32 %v175, %v420
    %422 = vmatmul.f32.gmra.mxu0 %v421
    %v423 = vpop.f32.mrf.mxu0
    %v424 = vadd.f32 %v352, %v423
    %v425 = vand.u32 %v178, 4294901760
    %v426 = vsub.f32 %v178, %v425
    %427 = vmatmul.f32.gmra.mxu0 %v426
    %v428 = vpop.f32.mrf.mxu0
    %v429 = vadd.f32 %v356, %v428
    %430 = vdwg.mxu0
    %431 = vmatpush.msra.mxu0 0.0
    %432 = vmatpush.msra.mxu0 0.0
    %433 = vmatpush.msra.mxu0 0.0
    %434 = vmatpush.msra.mxu0 0.0
    %435 = vmatpush.msra.mxu0 0.0
    %436 = vmatpush.msra.mxu0 0.0
    %437 = vmatpush.msra.mxu0 0.0
    %438 = vmatpush.msra.mxu0 0.0
    %v439 = vand.u32 %v150, 4294901760
    %440 = vmatpush.msra.mxu0 %v439
    %v441 = vand.u32 %v149, 4294901760
    %442 = vmatpush.msra.mxu0 %v441
    %v443 = vand.u32 %v148, 4294901760
    %444 = vmatpush.msra.mxu0 %v443
    %v445 = vand.u32 %v147, 4294901760
    %446 = vmatpush.msra.mxu0 %v445
    %v447 = vand.u32 %v146, 4294901760
    %448 = vmatpush.msra.mxu0 %v447
    %v449 = vand.u32 %v145, 4294901760
    %450 = vmatpush.msra.mxu0 %v449
    %v451 = vand.u32 %v144, 4294901760
    %452 = vmatpush.msra.mxu0 %v451
    %v453 = vand.u32 %v143, 4294901760
    %454 = vmatpush.msra.mxu0 %v453
    %v455 = vand.u32 %v157, 4294901760
    %v456 = vsub.f32 %v157, %v455
    %v457 = vand.u32 %v456, 4294901760
    %458 = vmatmul.f32.gmra.mxu0 %v457
    %v459 = vpop.f32.mrf.mxu0
    %v460 = vadd.f32 %v394, %v459
    %v461 = vand.u32 %v160, 4294901760
    %v462 = vsub.f32 %v160, %v461
    %v463 = vand.u32 %v462, 4294901760
    %464 = vmatmul.f32.gmra.mxu0 %v463
    %v465 = vpop.f32.mrf.mxu0
    %v466 = vadd.f32 %v399, %v465
    %v467 = vand.u32 %v163, 4294901760
    %v468 = vsub.f32 %v163, %v467
    %v469 = vand.u32 %v468, 4294901760
    %470 = vmatmul.f32.gmra.mxu0 %v469
    %v471 = vpop.f32.mrf.mxu0
    %v472 = vadd.f32 %v404, %v471
    %v473 = vand.u32 %v166, 4294901760
    %v474 = vsub.f32 %v166, %v473
    %v475 = vand.u32 %v474, 4294901760
    %476 = vmatmul.f32.gmra.mxu0 %v475
    %v477 = vpop.f32.mrf.mxu0
    %v478 = vadd.f32 %v409, %v477
    %v479 = vand.u32 %v169, 4294901760
    %v480 = vsub.f32 %v169, %v479
    %v481 = vand.u32 %v480, 4294901760
    %482 = vmatmul.f32.gmra.mxu0 %v481
    %v483 = vpop.f32.mrf.mxu0
    %v484 = vadd.f32 %v414, %v483
    %v485 = vand.u32 %v172, 4294901760
    %v486 = vsub.f32 %v172, %v485
    %v487 = vand.u32 %v486, 4294901760
    %488 = vmatmul.f32.gmra.mxu0 %v487
    %v489 = vpop.f32.mrf.mxu0
    %v490 = vadd.f32 %v419, %v489
    %v491 = vand.u32 %v175, 4294901760
    %v492 = vsub.f32 %v175, %v491
    %v493 = vand.u32 %v492, 4294901760
    %494 = vmatmul.f32.gmra.mxu0 %v493
    %v495 = vpop.f32.mrf.mxu0
    %v496 = vadd.f32 %v424, %v495
    %v497 = vand.u32 %v178, 4294901760
    %v498 = vsub.f32 %v178, %v497
    %v499 = vand.u32 %v498, 4294901760
    %500 = vmatmul.f32.gmra.mxu0 %v499
    %v501 = vpop.f32.mrf.mxu0
    %v502 = vadd.f32 %v429, %v501
    %503 = vdwg.mxu0
    %504 = vmatpush.msra.mxu0 0.0
    %505 = vmatpush.msra.mxu0 0.0
    %506 = vmatpush.msra.mxu0 0.0
    %507 = vmatpush.msra.mxu0 0.0
    %508 = vmatpush.msra.mxu0 0.0
    %509 = vmatpush.msra.mxu0 0.0
    %510 = vmatpush.msra.mxu0 0.0
    %511 = vmatpush.msra.mxu0 0.0
    %v512 = vand.u32 %v150, 4294901760
    %v513 = vsub.f32 %v150, %v512
    %v514 = vand.u32 %v513, 4294901760
    %515 = vmatpush.msra.mxu0 %v514
    %v516 = vand.u32 %v149, 4294901760
    %v517 = vsub.f32 %v149, %v516
    %v518 = vand.u32 %v517, 4294901760
    %519 = vmatpush.msra.mxu0 %v518
    %v520 = vand.u32 %v148, 4294901760
    %v521 = vsub.f32 %v148, %v520
    %v522 = vand.u32 %v521, 4294901760
    %523 = vmatpush.msra.mxu0 %v522
    %v524 = vand.u32 %v147, 4294901760
    %v525 = vsub.f32 %v147, %v524
    %v526 = vand.u32 %v525, 4294901760
    %527 = vmatpush.msra.mxu0 %v526
    %v528 = vand.u32 %v146, 4294901760
    %v529 = vsub.f32 %v146, %v528
    %v530 = vand.u32 %v529, 4294901760
    %531 = vmatpush.msra.mxu0 %v530
    %v532 = vand.u32 %v145, 4294901760
    %v533 = vsub.f32 %v145, %v532
    %v534 = vand.u32 %v533, 4294901760
    %535 = vmatpush.msra.mxu0 %v534
    %v536 = vand.u32 %v144, 4294901760
    %v537 = vsub.f32 %v144, %v536
    %v538 = vand.u32 %v537, 4294901760
    %539 = vmatpush.msra.mxu0 %v538
    %v540 = vand.u32 %v143, 4294901760
    %v541 = vsub.f32 %v143, %v540
    %v542 = vand.u32 %v541, 4294901760
    %543 = vmatpush.msra.mxu0 %v542
    %v544 = vand.u32 %v157, 4294901760
    %545 = vmatmul.f32.gmra.mxu0 %v544
    %v546 = vpop.f32.mrf.mxu0
    %v547 = vadd.f32 %v460, %v546
    %v548 = vand.u32 %v160, 4294901760
    %549 = vmatmul.f32.gmra.mxu0 %v548
    %v550 = vpop.f32.mrf.mxu0
    %v551 = vadd.f32 %v466, %v550
    %v552 = vand.u32 %v163, 4294901760
    %553 = vmatmul.f32.gmra.mxu0 %v552
    %v554 = vpop.f32.mrf.mxu0
    %v555 = vadd.f32 %v472, %v554
    %v556 = vand.u32 %v166, 4294901760
    %557 = vmatmul.f32.gmra.mxu0 %v556
    %v558 = vpop.f32.mrf.mxu0
    %v559 = vadd.f32 %v478, %v558
    %v560 = vand.u32 %v169, 4294901760
    %561 = vmatmul.f32.gmra.mxu0 %v560
    %v562 = vpop.f32.mrf.mxu0
    %v563 = vadd.f32 %v484, %v562
    %v564 = vand.u32 %v172, 4294901760
    %565 = vmatmul.f32.gmra.mxu0 %v564
    %v566 = vpop.f32.mrf.mxu0
    %v567 = vadd.f32 %v490, %v566
    %v568 = vand.u32 %v175, 4294901760
    %569 = vmatmul.f32.gmra.mxu0 %v568
    %v570 = vpop.f32.mrf.mxu0
    %v571 = vadd.f32 %v496, %v570
    %v572 = vand.u32 %v178, 4294901760
    %573 = vmatmul.f32.gmra.mxu0 %v572
    %v574 = vpop.f32.mrf.mxu0
    %v575 = vadd.f32 %v502, %v574
    %576 = vdwg.mxu0
    %577 = vmatpush.msra.mxu0 0.0
    %578 = vmatpush.msra.mxu0 0.0
    %579 = vmatpush.msra.mxu0 0.0
    %580 = vmatpush.msra.mxu0 0.0
    %581 = vmatpush.msra.mxu0 0.0
    %582 = vmatpush.msra.mxu0 0.0
    %583 = vmatpush.msra.mxu0 0.0
    %584 = vmatpush.msra.mxu0 0.0
    %v585 = vand.u32 %v150, 4294901760
    %586 = vmatpush.msra.mxu0 %v585
    %v587 = vand.u32 %v149, 4294901760
    %588 = vmatpush.msra.mxu0 %v587
    %v589 = vand.u32 %v148, 4294901760
    %590 = vmatpush.msra.mxu0 %v589
    %v591 = vand.u32 %v147, 4294901760
    %592 = vmatpush.msra.mxu0 %v591
    %v593 = vand.u32 %v146, 4294901760
    %594 = vmatpush.msra.mxu0 %v593
    %v595 = vand.u32 %v145, 4294901760
    %596 = vmatpush.msra.mxu0 %v595
    %v597 = vand.u32 %v144, 4294901760
    %598 = vmatpush.msra.mxu0 %v597
    %v599 = vand.u32 %v143, 4294901760
    %600 = vmatpush.msra.mxu0 %v599
    %v601 = vand.u32 %v157, 4294901760
    %602 = vmatmul.f32.gmra.mxu0 %v601
    %v603 = vpop.f32.mrf.mxu0
    %v604 = vadd.f32 %v547, %v603
    %v605 = vand.u32 %v160, 4294901760
    %606 = vmatmul.f32.gmra.mxu0 %v605
    %v607 = vpop.f32.mrf.mxu0
    %v608 = vadd.f32 %v551, %v607
    %v609 = vand.u32 %v163, 4294901760
    %610 = vmatmul.f32.gmra.mxu0 %v609
    %v611 = vpop.f32.mrf.mxu0
    %v612 = vadd.f32 %v555, %v611
    %v613 = vand.u32 %v166, 4294901760
    %614 = vmatmul.f32.gmra.mxu0 %v613
    %v615 = vpop.f32.mrf.mxu0
    %v616 = vadd.f32 %v559, %v615
    %v617 = vand.u32 %v169, 4294901760
    %618 = vmatmul.f32.gmra.mxu0 %v617
    %v619 = vpop.f32.mrf.mxu0
    %v620 = vadd.f32 %v563, %v619
    %v621 = vand.u32 %v172, 4294901760
    %622 = vmatmul.f32.gmra.mxu0 %v621
    %v623 = vpop.f32.mrf.mxu0
    %v624 = vadd.f32 %v567, %v623
    %v625 = vand.u32 %v175, 4294901760
    %626 = vmatmul.f32.gmra.mxu0 %v625
    %v627 = vpop.f32.mrf.mxu0
    %v628 = vadd.f32 %v571, %v627
    %v629 = vand.u32 %v178, 4294901760
    %630 = vmatmul.f32.gmra.mxu0 %v629
    %v631 = vpop.f32.mrf.mxu0
    %v632 = vadd.f32 %v575, %v631
    %633 = vdwg.mxu0
    %v634 = vld [vmem:[%s3] sm:$0xff]
    %v635 = vld [vmem:[%s3 + $0x8] sm:$0xff]
    %v636 = vld [vmem:[%s3 + $0x10] sm:$0xff]
    %v637 = vld [vmem:[%s3 + $0x18] sm:$0xff]
    %v638 = vld [vmem:[%s4] sm:$0x1]
    %v640 = vperm.slane %v638, 0
    %vm642 = vcmask 261120
    %v644 = vsel %vm642, 0.0, 0
    %646 = vmatpush.msra.mxu0 0.0
    %647 = vmatpush.msra.mxu0 0.0
    %648 = vmatpush.msra.mxu0 0.0
    %649 = vmatpush.msra.mxu0 0.0
    %650 = vmatpush.msra.mxu0 0.0
    %651 = vmatpush.msra.mxu0 0.0
    %652 = vmatpush.msra.mxu0 0.0
    %653 = vmatpush.msra.mxu0 0.0
    %654 = vmatpush.msra.mxu0 0.0
    %655 = vmatpush.msra.mxu0 0.0
    %656 = vmatpush.msra.mxu0 0.0
    %657 = vmatpush.msra.mxu0 0.0
    %v658 = vand.u32 %v637, 4294901760
    %659 = vmatpush.msra.mxu0 %v658
    %v660 = vand.u32 %v636, 4294901760
    %661 = vmatpush.msra.mxu0 %v660
    %v662 = vand.u32 %v635, 4294901760
    %663 = vmatpush.msra.mxu0 %v662
    %v664 = vand.u32 %v634, 4294901760
    %665 = vmatpush.msra.mxu0 %v664
    %v666 = vand.u32 %v644, 4294901760
    %v667 = vsub.f32 %v644, %v666
    %v668 = vand.u32 %v667, 4294901760
    %v669 = vsub.f32 %v667, %v668
    %v670 = vand.u32 %v669, 4294901760
    %671 = vmatmul.f32.gmra.mxu0 %v670
    %v672 = vpop.f32.mrf.mxu0
    %v673 = vadd.f32 %v640, %v672
    %674 = vdwg.mxu0
    %675 = vmatpush.msra.mxu0 0.0
    %676 = vmatpush.msra.mxu0 0.0
    %677 = vmatpush.msra.mxu0 0.0
    %678 = vmatpush.msra.mxu0 0.0
    %679 = vmatpush.msra.mxu0 0.0
    %680 = vmatpush.msra.mxu0 0.0
    %681 = vmatpush.msra.mxu0 0.0
    %682 = vmatpush.msra.mxu0 0.0
    %683 = vmatpush.msra.mxu0 0.0
    %684 = vmatpush.msra.mxu0 0.0
    %685 = vmatpush.msra.mxu0 0.0
    %686 = vmatpush.msra.mxu0 0.0
    %v687 = vand.u32 %v637, 4294901760
    %v688 = vsub.f32 %v637, %v687
    %v689 = vand.u32 %v688, 4294901760
    %v690 = vsub.f32 %v688, %v689
    %v691 = vand.u32 %v690, 4294901760
    %692 = vmatpush.msra.mxu0 %v691
    %v693 = vand.u32 %v636, 4294901760
    %v694 = vsub.f32 %v636, %v693
    %v695 = vand.u32 %v694, 4294901760
    %v696 = vsub.f32 %v694, %v695
    %v697 = vand.u32 %v696, 4294901760
    %698 = vmatpush.msra.mxu0 %v697
    %v699 = vand.u32 %v635, 4294901760
    %v700 = vsub.f32 %v635, %v699
    %v701 = vand.u32 %v700, 4294901760
    %v702 = vsub.f32 %v700, %v701
    %v703 = vand.u32 %v702, 4294901760
    %704 = vmatpush.msra.mxu0 %v703
    %v705 = vand.u32 %v634, 4294901760
    %v706 = vsub.f32 %v634, %v705
    %v707 = vand.u32 %v706, 4294901760
    %v708 = vsub.f32 %v706, %v707
    %v709 = vand.u32 %v708, 4294901760
    %710 = vmatpush.msra.mxu0 %v709
    %v711 = vand.u32 %v644, 4294901760
    %712 = vmatmul.f32.gmra.mxu0 %v711
    %v713 = vpop.f32.mrf.mxu0
    %v714 = vadd.f32 %v673, %v713
    %715 = vdwg.mxu0
    %716 = vmatpush.msra.mxu0 0.0
    %717 = vmatpush.msra.mxu0 0.0
    %718 = vmatpush.msra.mxu0 0.0
    %719 = vmatpush.msra.mxu0 0.0
    %720 = vmatpush.msra.mxu0 0.0
    %721 = vmatpush.msra.mxu0 0.0
    %722 = vmatpush.msra.mxu0 0.0
    %723 = vmatpush.msra.mxu0 0.0
    %724 = vmatpush.msra.mxu0 0.0
    %725 = vmatpush.msra.mxu0 0.0
    %726 = vmatpush.msra.mxu0 0.0
    %727 = vmatpush.msra.mxu0 0.0
    %v728 = vand.u32 %v637, 4294901760
    %v729 = vsub.f32 %v637, %v728
    %730 = vmatpush.msra.mxu0 %v729
    %v731 = vand.u32 %v636, 4294901760
    %v732 = vsub.f32 %v636, %v731
    %733 = vmatpush.msra.mxu0 %v732
    %v734 = vand.u32 %v635, 4294901760
    %v735 = vsub.f32 %v635, %v734
    %736 = vmatpush.msra.mxu0 %v735
    %v737 = vand.u32 %v634, 4294901760
    %v738 = vsub.f32 %v634, %v737
    %739 = vmatpush.msra.mxu0 %v738
    %v740 = vand.u32 %v644, 4294901760
    %v741 = vsub.f32 %v644, %v740
    %742 = vmatmul.f32.gmra.mxu0 %v741
    %v743 = vpop.f32.mrf.mxu0
    %v744 = vadd.f32 %v714, %v743
    %745 = vdwg.mxu0
    %746 = vmatpush.msra.mxu0 0.0
    %747 = vmatpush.msra.mxu0 0.0
    %748 = vmatpush.msra.mxu0 0.0
    %749 = vmatpush.msra.mxu0 0.0
    %750 = vmatpush.msra.mxu0 0.0
    %751 = vmatpush.msra.mxu0 0.0
    %752 = vmatpush.msra.mxu0 0.0
    %753 = vmatpush.msra.mxu0 0.0
    %754 = vmatpush.msra.mxu0 0.0
    %755 = vmatpush.msra.mxu0 0.0
    %756 = vmatpush.msra.mxu0 0.0
    %757 = vmatpush.msra.mxu0 0.0
    %v758 = vand.u32 %v637, 4294901760
    %759 = vmatpush.msra.mxu0 %v758
    %v760 = vand.u32 %v636, 4294901760
    %761 = vmatpush.msra.mxu0 %v760
    %v762 = vand.u32 %v635, 4294901760
    %763 = vmatpush.msra.mxu0 %v762
    %v764 = vand.u32 %v634, 4294901760
    %765 = vmatpush.msra.mxu0 %v764
    %v766 = vand.u32 %v644, 4294901760
    %v767 = vsub.f32 %v644, %v766
    %v768 = vand.u32 %v767, 4294901760
    %769 = vmatmul.f32.gmra.mxu0 %v768
    %v770 = vpop.f32.mrf.mxu0
    %v771 = vadd.f32 %v744, %v770
    %772 = vdwg.mxu0
    %773 = vmatpush.msra.mxu0 0.0
    %774 = vmatpush.msra.mxu0 0.0
    %775 = vmatpush.msra.mxu0 0.0
    %776 = vmatpush.msra.mxu0 0.0
    %777 = vmatpush.msra.mxu0 0.0
    %778 = vmatpush.msra.mxu0 0.0
    %779 = vmatpush.msra.mxu0 0.0
    %780 = vmatpush.msra.mxu0 0.0
    %781 = vmatpush.msra.mxu0 0.0
    %782 = vmatpush.msra.mxu0 0.0
    %783 = vmatpush.msra.mxu0 0.0
    %784 = vmatpush.msra.mxu0 0.0
    %v785 = vand.u32 %v637, 4294901760
    %v786 = vsub.f32 %v637, %v785
    %v787 = vand.u32 %v786, 4294901760
    %788 = vmatpush.msra.mxu0 %v787
    %v789 = vand.u32 %v636, 4294901760
    %v790 = vsub.f32 %v636, %v789
    %v791 = vand.u32 %v790, 4294901760
    %792 = vmatpush.msra.mxu0 %v791
    %v793 = vand.u32 %v635, 4294901760
    %v794 = vsub.f32 %v635, %v793
    %v795 = vand.u32 %v794, 4294901760
    %796 = vmatpush.msra.mxu0 %v795
    %v797 = vand.u32 %v634, 4294901760
    %v798 = vsub.f32 %v634, %v797
    %v799 = vand.u32 %v798, 4294901760
    %800 = vmatpush.msra.mxu0 %v799
    %v801 = vand.u32 %v644, 4294901760
    %802 = vmatmul.f32.gmra.mxu0 %v801
    %v803 = vpop.f32.mrf.mxu0
    %v804 = vadd.f32 %v771, %v803
    %805 = vdwg.mxu0
    %806 = vmatpush.msra.mxu0 0.0
    %807 = vmatpush.msra.mxu0 0.0
    %808 = vmatpush.msra.mxu0 0.0
    %809 = vmatpush.msra.mxu0 0.0
    %810 = vmatpush.msra.mxu0 0.0
    %811 = vmatpush.msra.mxu0 0.0
    %812 = vmatpush.msra.mxu0 0.0
    %813 = vmatpush.msra.mxu0 0.0
    %814 = vmatpush.msra.mxu0 0.0
    %815 = vmatpush.msra.mxu0 0.0
    %816 = vmatpush.msra.mxu0 0.0
    %817 = vmatpush.msra.mxu0 0.0
    %v818 = vand.u32 %v637, 4294901760
    %819 = vmatpush.msra.mxu0 %v818
    %v820 = vand.u32 %v636, 4294901760
    %821 = vmatpush.msra.mxu0 %v820
    %v822 = vand.u32 %v635, 4294901760
    %823 = vmatpush.msra.mxu0 %v822
    %v824 = vand.u32 %v634, 4294901760
    %825 = vmatpush.msra.mxu0 %v824
    %v826 = vand.u32 %v644, 4294901760
    %827 = vmatmul.f32.gmra.mxu0 %v826
    %v828 = vpop.f32.mrf.mxu0
    %v829 = vadd.f32 %v804, %v828
    %830 = vdwg.mxu0
    %v831 = vadd.f32 %v604, %v829
    %v832 = vxor.u32 %v831, 2147483648
    %v833 = vmul.f32 %v832, 1.442695
    %v834 = vpow.pop %v833
    %v835 = vadd.f32 %v834, 1.0
    %v836 = vrcp.pop %v835
    %v837 = vmul.f32 %v835, %v836
    %v838 = vsub.f32 1.0, %v837
    %v839 = vmul.f32 %v836, %v838
    %v840 = vadd.f32 %v836, %v839
    %vm841 = vweird.f32 %v835
    %vm842 = vweird.f32 %v836
    %vm843 = vmor %vm841, %vm842
    %v844 = vsel %vm843, %v836, %v840
    %v845 = vand.u32 2147483647, %v835
    %vm846 = vcmp.eq.f32.partialorder %v845, 8.507059e+37
    %v847 = vand.u32 %v835, 2147483648
    %v848 = vor.u32 1.1754944e-38, %v847
    %v849 = vsel %vm846, %v848, %v844
    %v850 = vmul.f32 1.0, %v849
    %852 = vrot.lane.b32.xlu0 %v829, 64
    %v853 = vpop.permute.xlu0 %852
    %v855 = vmul.f32 %v850, %v853
    %857 = vrot.lane.b32.xlu0 %v855, 64
    %v858 = vpop.permute.xlu0 %857
    %v860 = vadd.f32 %v604, %v858
    %v861 = vtanh.pop %v860
    %v862 = vsub.f32 1.0, %v850
    %864 = vrot.lane.b32.xlu0 %v861, 96
    %v865 = vpop.permute.xlu0 %864
    %v867 = vmul.f32 %v862, %v865
    %v868 = vmul.f32 %v850, 0.0
    %v869 = vadd.f32 %v867, %v868
    %871 = vrot.lane.b32.xlu0 %v869, 96
    %v872 = vpop.permute.xlu0 %871
    %v873 = vsel %vm642, %v872, 0
    %875 = vmatpush.msra.mxu0 0.0
    %876 = vmatpush.msra.mxu0 0.0
    %877 = vmatpush.msra.mxu0 0.0
    %878 = vmatpush.msra.mxu0 0.0
    %879 = vmatpush.msra.mxu0 0.0
    %880 = vmatpush.msra.mxu0 0.0
    %881 = vmatpush.msra.mxu0 0.0
    %882 = vmatpush.msra.mxu0 0.0
    %883 = vmatpush.msra.mxu0 0.0
    %884 = vmatpush.msra.mxu0 0.0
    %885 = vmatpush.msra.mxu0 0.0
    %886 = vmatpush.msra.mxu0 0.0
    %v887 = vand.u32 %v637, 4294901760
    %888 = vmatpush.msra.mxu0 %v887
    %v889 = vand.u32 %v636, 4294901760
    %890 = vmatpush.msra.mxu0 %v889
    %v891 = vand.u32 %v635, 4294901760
    %892 = vmatpush.msra.mxu0 %v891
    %v893 = vand.u32 %v634, 4294901760
    %894 = vmatpush.msra.mxu0 %v893
    %v895 = vand.u32 %v873, 4294901760
    %v896 = vsub.f32 %v873, %v895
    %v897 = vand.u32 %v896, 4294901760
    %v898 = vsub.f32 %v896, %v897
    %v899 = vand.u32 %v898, 4294901760
    %900 = vmatmul.f32.gmra.mxu0 %v899
    %v901 = vpop.f32.mrf.mxu0
    %v902 = vadd.f32 %v640, %v901
    %903 = vdwg.mxu0
    %904 = vmatpush.msra.mxu0 0.0
    %905 = vmatpush.msra.mxu0 0.0
    %906 = vmatpush.msra.mxu0 0.0
    %907 = vmatpush.msra.mxu0 0.0
    %908 = vmatpush.msra.mxu0 0.0
    %909 = vmatpush.msra.mxu0 0.0
    %910 = vmatpush.msra.mxu0 0.0
    %911 = vmatpush.msra.mxu0 0.0
    %912 = vmatpush.msra.mxu0 0.0
    %913 = vmatpush.msra.mxu0 0.0
    %914 = vmatpush.msra.mxu0 0.0
    %915 = vmatpush.msra.mxu0 0.0
    %v916 = vand.u32 %v637, 4294901760
    %v917 = vsub.f32 %v637, %v916
    %v918 = vand.u32 %v917, 4294901760
    %v919 = vsub.f32 %v917, %v918
    %v920 = vand.u32 %v919, 4294901760
    %921 = vmatpush.msra.mxu0 %v920
    %v922 = vand.u32 %v636, 4294901760
    %v923 = vsub.f32 %v636, %v922
    %v924 = vand.u32 %v923, 4294901760
    %v925 = vsub.f32 %v923, %v924
    %v926 = vand.u32 %v925, 4294901760
    %927 = vmatpush.msra.mxu0 %v926
    %v928 = vand.u32 %v635, 4294901760
    %v929 = vsub.f32 %v635, %v928
    %v930 = vand.u32 %v929, 4294901760
    %v931 = vsub.f32 %v929, %v930
    %v932 = vand.u32 %v931, 4294901760
    %933 = vmatpush.msra.mxu0 %v932
    %v934 = vand.u32 %v634, 4294901760
    %v935 = vsub.f32 %v634, %v934
    %v936 = vand.u32 %v935, 4294901760
    %v937 = vsub.f32 %v935, %v936
    %v938 = vand.u32 %v937, 4294901760
    %939 = vmatpush.msra.mxu0 %v938
    %v940 = vand.u32 %v873, 4294901760
    %941 = vmatmul.f32.gmra.mxu0 %v940
    %v942 = vpop.f32.mrf.mxu0
    %v943 = vadd.f32 %v902, %v942
    %944 = vdwg.mxu0
    %945 = vmatpush.msra.mxu0 0.0
    %946 = vmatpush.msra.mxu0 0.0
    %947 = vmatpush.msra.mxu0 0.0
    %948 = vmatpush.msra.mxu0 0.0
    %949 = vmatpush.msra.mxu0 0.0
    %950 = vmatpush.msra.mxu0 0.0
    %951 = vmatpush.msra.mxu0 0.0
    %952 = vmatpush.msra.mxu0 0.0
    %953 = vmatpush.msra.mxu0 0.0
    %954 = vmatpush.msra.mxu0 0.0
    %955 = vmatpush.msra.mxu0 0.0
    %956 = vmatpush.msra.mxu0 0.0
    %v957 = vand.u32 %v637, 4294901760
    %v958 = vsub.f32 %v637, %v957
    %959 = vmatpush.msra.mxu0 %v958
    %v960 = vand.u32 %v636, 4294901760
    %v961 = vsub.f32 %v636, %v960
    %962 = vmatpush.msra.mxu0 %v961
    %v963 = vand.u32 %v635, 4294901760
    %v964 = vsub.f32 %v635, %v963
    %965 = vmatpush.msra.mxu0 %v964
    %v966 = vand.u32 %v634, 4294901760
    %v967 = vsub.f32 %v634, %v966
    %968 = vmatpush.msra.mxu0 %v967
    %v969 = vand.u32 %v873, 4294901760
    %v970 = vsub.f32 %v873, %v969
    %971 = vmatmul.f32.gmra.mxu0 %v970
    %v972 = vpop.f32.mrf.mxu0
    %v973 = vadd.f32 %v943, %v972
    %974 = vdwg.mxu0
    %975 = vmatpush.msra.mxu0 0.0
    %976 = vmatpush.msra.mxu0 0.0
    %977 = vmatpush.msra.mxu0 0.0
    %978 = vmatpush.msra.mxu0 0.0
    %979 = vmatpush.msra.mxu0 0.0
    %980 = vmatpush.msra.mxu0 0.0
    %981 = vmatpush.msra.mxu0 0.0
    %982 = vmatpush.msra.mxu0 0.0
    %983 = vmatpush.msra.mxu0 0.0
    %984 = vmatpush.msra.mxu0 0.0
    %985 = vmatpush.msra.mxu0 0.0
    %986 = vmatpush.msra.mxu0 0.0
    %v987 = vand.u32 %v637, 4294901760
    %988 = vmatpush.msra.mxu0 %v987
    %v989 = vand.u32 %v636, 4294901760
    %990 = vmatpush.msra.mxu0 %v989
    %v991 = vand.u32 %v635, 4294901760
    %992 = vmatpush.msra.mxu0 %v991
    %v993 = vand.u32 %v634, 4294901760
    %994 = vmatpush.msra.mxu0 %v993
    %v995 = vand.u32 %v873, 4294901760
    %v996 = vsub.f32 %v873, %v995
    %v997 = vand.u32 %v996, 4294901760
    %998 = vmatmul.f32.gmra.mxu0 %v997
    %v999 = vpop.f32.mrf.mxu0
    %v1000 = vadd.f32 %v973, %v999
    %1001 = vdwg.mxu0
    %1002 = vmatpush.msra.mxu0 0.0
    %1003 = vmatpush.msra.mxu0 0.0
    %1004 = vmatpush.msra.mxu0 0.0
    %1005 = vmatpush.msra.mxu0 0.0
    %1006 = vmatpush.msra.mxu0 0.0
    %1007 = vmatpush.msra.mxu0 0.0
    %1008 = vmatpush.msra.mxu0 0.0
    %1009 = vmatpush.msra.mxu0 0.0
    %1010 = vmatpush.msra.mxu0 0.0
    %1011 = vmatpush.msra.mxu0 0.0
    %1012 = vmatpush.msra.mxu0 0.0
    %1013 = vmatpush.msra.mxu0 0.0
    %v1014 = vand.u32 %v637, 4294901760
    %v1015 = vsub.f32 %v637, %v1014
    %v1016 = vand.u32 %v1015, 4294901760
    %1017 = vmatpush.msra.mxu0 %v1016
    %v1018 = vand.u32 %v636, 4294901760
    %v1019 = vsub.f32 %v636, %v1018
    %v1020 = vand.u32 %v1019, 4294901760
    %1021 = vmatpush.msra.mxu0 %v1020
    %v1022 = vand.u32 %v635, 4294901760
    %v1023 = vsub.f32 %v635, %v1022
    %v1024 = vand.u32 %v1023, 4294901760
    %1025 = vmatpush.msra.mxu0 %v1024
    %v1026 = vand.u32 %v634, 4294901760
    %v1027 = vsub.f32 %v634, %v1026
    %v1028 = vand.u32 %v1027, 4294901760
    %1029 = vmatpush.msra.mxu0 %v1028
    %v1030 = vand.u32 %v873, 4294901760
    %1031 = vmatmul.f32.gmra.mxu0 %v1030
    %v1032 = vpop.f32.mrf.mxu0
    %v1033 = vadd.f32 %v1000, %v1032
    %1034 = vdwg.mxu0
    %1035 = vmatpush.msra.mxu0 0.0
    %1036 = vmatpush.msra.mxu0 0.0
    %1037 = vmatpush.msra.mxu0 0.0
    %1038 = vmatpush.msra.mxu0 0.0
    %1039 = vmatpush.msra.mxu0 0.0
    %1040 = vmatpush.msra.mxu0 0.0
    %1041 = vmatpush.msra.mxu0 0.0
    %1042 = vmatpush.msra.mxu0 0.0
    %1043 = vmatpush.msra.mxu0 0.0
    %1044 = vmatpush.msra.mxu0 0.0
    %1045 = vmatpush.msra.mxu0 0.0
    %1046 = vmatpush.msra.mxu0 0.0
    %v1047 = vand.u32 %v637, 4294901760
    %1048 = vmatpush.msra.mxu0 %v1047
    %v1049 = vand.u32 %v636, 4294901760
    %1050 = vmatpush.msra.mxu0 %v1049
    %v1051 = vand.u32 %v635, 4294901760
    %1052 = vmatpush.msra.mxu0 %v1051
    %v1053 = vand.u32 %v634, 4294901760
    %1054 = vmatpush.msra.mxu0 %v1053
    %v1055 = vand.u32 %v873, 4294901760
    %1056 = vmatmul.f32.gmra.mxu0 %v1055
    %v1057 = vpop.f32.mrf.mxu0
    %v1058 = vadd.f32 %v1033, %v1057
    %1059 = vdwg.mxu0
    %v1060 = vadd.f32 %v608, %v1058
    %v1061 = vxor.u32 %v1060, 2147483648
    %v1062 = vmul.f32 %v1061, 1.442695
    %v1063 = vpow.pop %v1062
    %v1064 = vadd.f32 %v1063, 1.0
    %v1065 = vrcp.pop %v1064
    %v1066 = vmul.f32 %v1064, %v1065
    %v1067 = vsub.f32 1.0, %v1066
    %v1068 = vmul.f32 %v1065, %v1067
    %v1069 = vadd.f32 %v1065, %v1068
    %vm1070 = vweird.f32 %v1064
    %vm1071 = vweird.f32 %v1065
    %vm1072 = vmor %vm1070, %vm1071
    %v1073 = vsel %vm1072, %v1065, %v1069
    %v1074 = vand.u32 2147483647, %v1064
    %vm1075 = vcmp.eq.f32.partialorder %v1074, 8.507059e+37
    %v1076 = vand.u32 %v1064, 2147483648
    %v1077 = vor.u32 1.1754944e-38, %v1076
    %v1078 = vsel %vm1075, %v1077, %v1073
    %v1079 = vmul.f32 1.0, %v1078
    %1081 = vrot.lane.b32.xlu0 %v1058, 64
    %v1082 = vpop.permute.xlu0 %1081
    %v1084 = vmul.f32 %v1079, %v1082
    %1086 = vrot.lane.b32.xlu0 %v1084, 64
    %v1087 = vpop.permute.xlu0 %1086
    %v1089 = vadd.f32 %v608, %v1087
    %v1090 = vtanh.pop %v1089
    %v1091 = vsub.f32 1.0, %v1079
    %1093 = vrot.lane.b32.xlu0 %v1090, 96
    %v1094 = vpop.permute.xlu0 %1093
    %v1096 = vmul.f32 %v1091, %v1094
    %v1097 = vmul.f32 %v1079, %v869
    %v1098 = vadd.f32 %v1096, %v1097
    %1100 = vrot.lane.b32.xlu0 %v1098, 96
    %v1101 = vpop.permute.xlu0 %1100
    %v1102 = vsel %vm642, %v1101, 0
    %1104 = vmatpush.msra.mxu0 0.0
    %1105 = vmatpush.msra.mxu0 0.0
    %1106 = vmatpush.msra.mxu0 0.0
    %1107 = vmatpush.msra.mxu0 0.0
    %1108 = vmatpush.msra.mxu0 0.0
    %1109 = vmatpush.msra.mxu0 0.0
    %1110 = vmatpush.msra.mxu0 0.0
    %1111 = vmatpush.msra.mxu0 0.0
    %1112 = vmatpush.msra.mxu0 0.0
    %1113 = vmatpush.msra.mxu0 0.0
    %1114 = vmatpush.msra.mxu0 0.0
    %1115 = vmatpush.msra.mxu0 0.0
    %v1116 = vand.u32 %v637, 4294901760
    %1117 = vmatpush.msra.mxu0 %v1116
    %v1118 = vand.u32 %v636, 4294901760
    %1119 = vmatpush.msra.mxu0 %v1118
    %v1120 = vand.u32 %v635, 4294901760
    %1121 = vmatpush.msra.mxu0 %v1120
    %v1122 = vand.u32 %v634, 4294901760
    %1123 = vmatpush.msra.mxu0 %v1122
    %v1124 = vand.u32 %v1102, 4294901760
    %v1125 = vsub.f32 %v1102, %v1124
    %v1126 = vand.u32 %v1125, 4294901760
    %v1127 = vsub.f32 %v1125, %v1126
    %v1128 = vand.u32 %v1127, 4294901760
    %1129 = vmatmul.f32.gmra.mxu0 %v1128
    %v1130 = vpop.f32.mrf.mxu0
    %v1131 = vadd.f32 %v640, %v1130
    %1132 = vdwg.mxu0
    %1133 = vmatpush.msra.mxu0 0.0
    %1134 = vmatpush.msra.mxu0 0.0
    %1135 = vmatpush.msra.mxu0 0.0
    %1136 = vmatpush.msra.mxu0 0.0
    %1137 = vmatpush.msra.mxu0 0.0
    %1138 = vmatpush.msra.mxu0 0.0
    %1139 = vmatpush.msra.mxu0 0.0
    %1140 = vmatpush.msra.mxu0 0.0
    %1141 = vmatpush.msra.mxu0 0.0
    %1142 = vmatpush.msra.mxu0 0.0
    %1143 = vmatpush.msra.mxu0 0.0
    %1144 = vmatpush.msra.mxu0 0.0
    %v1145 = vand.u32 %v637, 4294901760
    %v1146 = vsub.f32 %v637, %v1145
    %v1147 = vand.u32 %v1146, 4294901760
    %v1148 = vsub.f32 %v1146, %v1147
    %v1149 = vand.u32 %v1148, 4294901760
    %1150 = vmatpush.msra.mxu0 %v1149
    %v1151 = vand.u32 %v636, 4294901760
    %v1152 = vsub.f32 %v636, %v1151
    %v1153 = vand.u32 %v1152, 4294901760
    %v1154 = vsub.f32 %v1152, %v1153
    %v1155 = vand.u32 %v1154, 4294901760
    %1156 = vmatpush.msra.mxu0 %v1155
    %v1157 = vand.u32 %v635, 4294901760
    %v1158 = vsub.f32 %v635, %v1157
    %v1159 = vand.u32 %v1158, 4294901760
    %v1160 = vsub.f32 %v1158, %v1159
    %v1161 = vand.u32 %v1160, 4294901760
    %1162 = vmatpush.msra.mxu0 %v1161
    %v1163 = vand.u32 %v634, 4294901760
    %v1164 = vsub.f32 %v634, %v1163
    %v1165 = vand.u32 %v1164, 4294901760
    %v1166 = vsub.f32 %v1164, %v1165
    %v1167 = vand.u32 %v1166, 4294901760
    %1168 = vmatpush.msra.mxu0 %v1167
    %v1169 = vand.u32 %v1102, 4294901760
    %1170 = vmatmul.f32.gmra.mxu0 %v1169
    %v1171 = vpop.f32.mrf.mxu0
    %v1172 = vadd.f32 %v1131, %v1171
    %1173 = vdwg.mxu0
    %1174 = vmatpush.msra.mxu0 0.0
    %1175 = vmatpush.msra.mxu0 0.0
    %1176 = vmatpush.msra.mxu0 0.0
    %1177 = vmatpush.msra.mxu0 0.0
    %1178 = vmatpush.msra.mxu0 0.0
    %1179 = vmatpush.msra.mxu0 0.0
    %1180 = vmatpush.msra.mxu0 0.0
    %1181 = vmatpush.msra.mxu0 0.0
    %1182 = vmatpush.msra.mxu0 0.0
    %1183 = vmatpush.msra.mxu0 0.0
    %1184 = vmatpush.msra.mxu0 0.0
    %1185 = vmatpush.msra.mxu0 0.0
    %v1186 = vand.u32 %v637, 4294901760
    %v1187 = vsub.f32 %v637, %v1186
    %1188 = vmatpush.msra.mxu0 %v1187
    %v1189 = vand.u32 %v636, 4294901760
    %v1190 = vsub.f32 %v636, %v1189
    %1191 = vmatpush.msra.mxu0 %v1190
    %v1192 = vand.u32 %v635, 4294901760
    %v1193 = vsub.f32 %v635, %v1192
    %1194 = vmatpush.msra.mxu0 %v1193
    %v1195 = vand.u32 %v634, 4294901760
    %v1196 = vsub.f32 %v634, %v1195
    %1197 = vmatpush.msra.mxu0 %v1196
    %v1198 = vand.u32 %v1102, 4294901760
    %v1199 = vsub.f32 %v1102, %v1198
    %1200 = vmatmul.f32.gmra.mxu0 %v1199
    %v1201 = vpop.f32.mrf.mxu0
    %v1202 = vadd.f32 %v1172, %v1201
    %1203 = vdwg.mxu0
    %1204 = vmatpush.msra.mxu0 0.0
    %1205 = vmatpush.msra.mxu0 0.0
    %1206 = vmatpush.msra.mxu0 0.0
    %1207 = vmatpush.msra.mxu0 0.0
    %1208 = vmatpush.msra.mxu0 0.0
    %1209 = vmatpush.msra.mxu0 0.0
    %1210 = vmatpush.msra.mxu0 0.0
    %1211 = vmatpush.msra.mxu0 0.0
    %1212 = vmatpush.msra.mxu0 0.0
    %1213 = vmatpush.msra.mxu0 0.0
    %1214 = vmatpush.msra.mxu0 0.0
    %1215 = vmatpush.msra.mxu0 0.0
    %v1216 = vand.u32 %v637, 4294901760
    %1217 = vmatpush.msra.mxu0 %v1216
    %v1218 = vand.u32 %v636, 4294901760
    %1219 = vmatpush.msra.mxu0 %v1218
    %v1220 = vand.u32 %v635, 4294901760
    %1221 = vmatpush.msra.mxu0 %v1220
    %v1222 = vand.u32 %v634, 4294901760
    %1223 = vmatpush.msra.mxu0 %v1222
    %v1224 = vand.u32 %v1102, 4294901760
    %v1225 = vsub.f32 %v1102, %v1224
    %v1226 = vand.u32 %v1225, 4294901760
    %1227 = vmatmul.f32.gmra.mxu0 %v1226
    %v1228 = vpop.f32.mrf.mxu0
    %v1229 = vadd.f32 %v1202, %v1228
    %1230 = vdwg.mxu0
    %1231 = vmatpush.msra.mxu0 0.0
    %1232 = vmatpush.msra.mxu0 0.0
    %1233 = vmatpush.msra.mxu0 0.0
    %1234 = vmatpush.msra.mxu0 0.0
    %1235 = vmatpush.msra.mxu0 0.0
    %1236 = vmatpush.msra.mxu0 0.0
    %1237 = vmatpush.msra.mxu0 0.0
    %1238 = vmatpush.msra.mxu0 0.0
    %1239 = vmatpush.msra.mxu0 0.0
    %1240 = vmatpush.msra.mxu0 0.0
    %1241 = vmatpush.msra.mxu0 0.0
    %1242 = vmatpush.msra.mxu0 0.0
    %v1243 = vand.u32 %v637, 4294901760
    %v1244 = vsub.f32 %v637, %v1243
    %v1245 = vand.u32 %v1244, 4294901760
    %1246 = vmatpush.msra.mxu0 %v1245
    %v1247 = vand.u32 %v636, 4294901760
    %v1248 = vsub.f32 %v636, %v1247
    %v1249 = vand.u32 %v1248, 4294901760
    %1250 = vmatpush.msra.mxu0 %v1249
    %v1251 = vand.u32 %v635, 4294901760
    %v1252 = vsub.f32 %v635, %v1251
    %v1253 = vand.u32 %v1252, 4294901760
    %1254 = vmatpush.msra.mxu0 %v1253
    %v1255 = vand.u32 %v634, 4294901760
    %v1256 = vsub.f32 %v634, %v1255
    %v1257 = vand.u32 %v1256, 4294901760
    %1258 = vmatpush.msra.mxu0 %v1257
    %v1259 = vand.u32 %v1102, 4294901760
    %1260 = vmatmul.f32.gmra.mxu0 %v1259
    %v1261 = vpop.f32.mrf.mxu0
    %v1262 = vadd.f32 %v1229, %v1261
    %1263 = vdwg.mxu0
    %1264 = vmatpush.msra.mxu0 0.0
    %1265 = vmatpush.msra.mxu0 0.0
    %1266 = vmatpush.msra.mxu0 0.0
    %1267 = vmatpush.msra.mxu0 0.0
    %1268 = vmatpush.msra.mxu0 0.0
    %1269 = vmatpush.msra.mxu0 0.0
    %1270 = vmatpush.msra.mxu0 0.0
    %1271 = vmatpush.msra.mxu0 0.0
    %1272 = vmatpush.msra.mxu0 0.0
    %1273 = vmatpush.msra.mxu0 0.0
    %1274 = vmatpush.msra.mxu0 0.0
    %1275 = vmatpush.msra.mxu0 0.0
    %v1276 = vand.u32 %v637, 4294901760
    %1277 = vmatpush.msra.mxu0 %v1276
    %v1278 = vand.u32 %v636, 4294901760
    %1279 = vmatpush.msra.mxu0 %v1278
    %v1280 = vand.u32 %v635, 4294901760
    %1281 = vmatpush.msra.mxu0 %v1280
    %v1282 = vand.u32 %v634, 4294901760
    %1283 = vmatpush.msra.mxu0 %v1282
    %v1284 = vand.u32 %v1102, 4294901760
    %1285 = vmatmul.f32.gmra.mxu0 %v1284
    %v1286 = vpop.f32.mrf.mxu0
    %v1287 = vadd.f32 %v1262, %v1286
    %1288 = vdwg.mxu0
    %v1289 = vadd.f32 %v612, %v1287
    %v1290 = vxor.u32 %v1289, 2147483648
    %v1291 = vmul.f32 %v1290, 1.442695
    %v1292 = vpow.pop %v1291
    %v1293 = vadd.f32 %v1292, 1.0
    %v1294 = vrcp.pop %v1293
    %v1295 = vmul.f32 %v1293, %v1294
    %v1296 = vsub.f32 1.0, %v1295
    %v1297 = vmul.f32 %v1294, %v1296
    %v1298 = vadd.f32 %v1294, %v1297
    %vm1299 = vweird.f32 %v1293
    %vm1300 = vweird.f32 %v1294
    %vm1301 = vmor %vm1299, %vm1300
    %v1302 = vsel %vm1301, %v1294, %v1298
    %v1303 = vand.u32 2147483647, %v1293
    %vm1304 = vcmp.eq.f32.partialorder %v1303, 8.507059e+37
    %v1305 = vand.u32 %v1293, 2147483648
    %v1306 = vor.u32 1.1754944e-38, %v1305
    %v1307 = vsel %vm1304, %v1306, %v1302
    %v1308 = vmul.f32 1.0, %v1307
    %1310 = vrot.lane.b32.xlu0 %v1287, 64
    %v1311 = vpop.permute.xlu0 %1310
    %v1313 = vmul.f32 %v1308, %v1311
    %1315 = vrot.lane.b32.xlu0 %v1313, 64
    %v1316 = vpop.permute.xlu0 %1315
    %v1318 = vadd.f32 %v612, %v1316
    %v1319 = vtanh.pop %v1318
    %v1320 = vsub.f32 1.0, %v1308
    %1322 = vrot.lane.b32.xlu0 %v1319, 96
    %v1323 = vpop.permute.xlu0 %1322
    %v1325 = vmul.f32 %v1320, %v1323
    %v1326 = vmul.f32 %v1308, %v1098
    %v1327 = vadd.f32 %v1325, %v1326
    %1329 = vrot.lane.b32.xlu0 %v1327, 96
    %v1330 = vpop.permute.xlu0 %1329
    %v1331 = vsel %vm642, %v1330, 0
    %1333 = vmatpush.msra.mxu0 0.0
    %1334 = vmatpush.msra.mxu0 0.0
    %1335 = vmatpush.msra.mxu0 0.0
    %1336 = vmatpush.msra.mxu0 0.0
    %1337 = vmatpush.msra.mxu0 0.0
    %1338 = vmatpush.msra.mxu0 0.0
    %1339 = vmatpush.msra.mxu0 0.0
    %1340 = vmatpush.msra.mxu0 0.0
    %1341 = vmatpush.msra.mxu0 0.0
    %1342 = vmatpush.msra.mxu0 0.0
    %1343 = vmatpush.msra.mxu0 0.0
    %1344 = vmatpush.msra.mxu0 0.0
    %v1345 = vand.u32 %v637, 4294901760
    %1346 = vmatpush.msra.mxu0 %v1345
    %v1347 = vand.u32 %v636, 4294901760
    %1348 = vmatpush.msra.mxu0 %v1347
    %v1349 = vand.u32 %v635, 4294901760
    %1350 = vmatpush.msra.mxu0 %v1349
    %v1351 = vand.u32 %v634, 4294901760
    %1352 = vmatpush.msra.mxu0 %v1351
    %v1353 = vand.u32 %v1331, 4294901760
    %v1354 = vsub.f32 %v1331, %v1353
    %v1355 = vand.u32 %v1354, 4294901760
    %v1356 = vsub.f32 %v1354, %v1355
    %v1357 = vand.u32 %v1356, 4294901760
    %1358 = vmatmul.f32.gmra.mxu0 %v1357
    %v1359 = vpop.f32.mrf.mxu0
    %v1360 = vadd.f32 %v640, %v1359
    %1361 = vdwg.mxu0
    %1362 = vmatpush.msra.mxu0 0.0
    %1363 = vmatpush.msra.mxu0 0.0
    %1364 = vmatpush.msra.mxu0 0.0
    %1365 = vmatpush.msra.mxu0 0.0
    %1366 = vmatpush.msra.mxu0 0.0
    %1367 = vmatpush.msra.mxu0 0.0
    %1368 = vmatpush.msra.mxu0 0.0
    %1369 = vmatpush.msra.mxu0 0.0
    %1370 = vmatpush.msra.mxu0 0.0
    %1371 = vmatpush.msra.mxu0 0.0
    %1372 = vmatpush.msra.mxu0 0.0
    %1373 = vmatpush.msra.mxu0 0.0
    %v1374 = vand.u32 %v637, 4294901760
    %v1375 = vsub.f32 %v637, %v1374
    %v1376 = vand.u32 %v1375, 4294901760
    %v1377 = vsub.f32 %v1375, %v1376
    %v1378 = vand.u32 %v1377, 4294901760
    %1379 = vmatpush.msra.mxu0 %v1378
    %v1380 = vand.u32 %v636, 4294901760
    %v1381 = vsub.f32 %v636, %v1380
    %v1382 = vand.u32 %v1381, 4294901760
    %v1383 = vsub.f32 %v1381, %v1382
    %v1384 = vand.u32 %v1383, 4294901760
    %1385 = vmatpush.msra.mxu0 %v1384
    %v1386 = vand.u32 %v635, 4294901760
    %v1387 = vsub.f32 %v635, %v1386
    %v1388 = vand.u32 %v1387, 4294901760
    %v1389 = vsub.f32 %v1387, %v1388
    %v1390 = vand.u32 %v1389, 4294901760
    %1391 = vmatpush.msra.mxu0 %v1390
    %v1392 = vand.u32 %v634, 4294901760
    %v1393 = vsub.f32 %v634, %v1392
    %v1394 = vand.u32 %v1393, 4294901760
    %v1395 = vsub.f32 %v1393, %v1394
    %v1396 = vand.u32 %v1395, 4294901760
    %1397 = vmatpush.msra.mxu0 %v1396
    %v1398 = vand.u32 %v1331, 4294901760
    %1399 = vmatmul.f32.gmra.mxu0 %v1398
    %v1400 = vpop.f32.mrf.mxu0
    %v1401 = vadd.f32 %v1360, %v1400
    %1402 = vdwg.mxu0
    %1403 = vmatpush.msra.mxu0 0.0
    %1404 = vmatpush.msra.mxu0 0.0
    %1405 = vmatpush.msra.mxu0 0.0
    %1406 = vmatpush.msra.mxu0 0.0
    %1407 = vmatpush.msra.mxu0 0.0
    %1408 = vmatpush.msra.mxu0 0.0
    %1409 = vmatpush.msra.mxu0 0.0
    %1410 = vmatpush.msra.mxu0 0.0
    %1411 = vmatpush.msra.mxu0 0.0
    %1412 = vmatpush.msra.mxu0 0.0
    %1413 = vmatpush.msra.mxu0 0.0
    %1414 = vmatpush.msra.mxu0 0.0
    %v1415 = vand.u32 %v637, 4294901760
    %v1416 = vsub.f32 %v637, %v1415
    %1417 = vmatpush.msra.mxu0 %v1416
    %v1418 = vand.u32 %v636, 4294901760
    %v1419 = vsub.f32 %v636, %v1418
    %1420 = vmatpush.msra.mxu0 %v1419
    %v1421 = vand.u32 %v635, 4294901760
    %v1422 = vsub.f32 %v635, %v1421
    %1423 = vmatpush.msra.mxu0 %v1422
    %v1424 = vand.u32 %v634, 4294901760
    %v1425 = vsub.f32 %v634, %v1424
    %1426 = vmatpush.msra.mxu0 %v1425
    %v1427 = vand.u32 %v1331, 4294901760
    %v1428 = vsub.f32 %v1331, %v1427
    %1429 = vmatmul.f32.gmra.mxu0 %v1428
    %v1430 = vpop.f32.mrf.mxu0
    %v1431 = vadd.f32 %v1401, %v1430
    %1432 = vdwg.mxu0
    %1433 = vmatpush.msra.mxu0 0.0
    %1434 = vmatpush.msra.mxu0 0.0
    %1435 = vmatpush.msra.mxu0 0.0
    %1436 = vmatpush.msra.mxu0 0.0
    %1437 = vmatpush.msra.mxu0 0.0
    %1438 = vmatpush.msra.mxu0 0.0
    %1439 = vmatpush.msra.mxu0 0.0
    %1440 = vmatpush.msra.mxu0 0.0
    %1441 = vmatpush.msra.mxu0 0.0
    %1442 = vmatpush.msra.mxu0 0.0
    %1443 = vmatpush.msra.mxu0 0.0
    %1444 = vmatpush.msra.mxu0 0.0
    %v1445 = vand.u32 %v637, 4294901760
    %1446 = vmatpush.msra.mxu0 %v1445
    %v1447 = vand.u32 %v636, 4294901760
    %1448 = vmatpush.msra.mxu0 %v1447
    %v1449 = vand.u32 %v635, 4294901760
    %1450 = vmatpush.msra.mxu0 %v1449
    %v1451 = vand.u32 %v634, 4294901760
    %1452 = vmatpush.msra.mxu0 %v1451
    %v1453 = vand.u32 %v1331, 4294901760
    %v1454 = vsub.f32 %v1331, %v1453
    %v1455 = vand.u32 %v1454, 4294901760
    %1456 = vmatmul.f32.gmra.mxu0 %v1455
    %v1457 = vpop.f32.mrf.mxu0
    %v1458 = vadd.f32 %v1431, %v1457
    %1459 = vdwg.mxu0
    %1460 = vmatpush.msra.mxu0 0.0
    %1461 = vmatpush.msra.mxu0 0.0
    %1462 = vmatpush.msra.mxu0 0.0
    %1463 = vmatpush.msra.mxu0 0.0
    %1464 = vmatpush.msra.mxu0 0.0
    %1465 = vmatpush.msra.mxu0 0.0
    %1466 = vmatpush.msra.mxu0 0.0
    %1467 = vmatpush.msra.mxu0 0.0
    %1468 = vmatpush.msra.mxu0 0.0
    %1469 = vmatpush.msra.mxu0 0.0
    %1470 = vmatpush.msra.mxu0 0.0
    %1471 = vmatpush.msra.mxu0 0.0
    %v1472 = vand.u32 %v637, 4294901760
    %v1473 = vsub.f32 %v637, %v1472
    %v1474 = vand.u32 %v1473, 4294901760
    %1475 = vmatpush.msra.mxu0 %v1474
    %v1476 = vand.u32 %v636, 4294901760
    %v1477 = vsub.f32 %v636, %v1476
    %v1478 = vand.u32 %v1477, 4294901760
    %1479 = vmatpush.msra.mxu0 %v1478
    %v1480 = vand.u32 %v635, 4294901760
    %v1481 = vsub.f32 %v635, %v1480
    %v1482 = vand.u32 %v1481, 4294901760
    %1483 = vmatpush.msra.mxu0 %v1482
    %v1484 = vand.u32 %v634, 4294901760
    %v1485 = vsub.f32 %v634, %v1484
    %v1486 = vand.u32 %v1485, 4294901760
    %1487 = vmatpush.msra.mxu0 %v1486
    %v1488 = vand.u32 %v1331, 4294901760
    %1489 = vmatmul.f32.gmra.mxu0 %v1488
    %v1490 = vpop.f32.mrf.mxu0
    %v1491 = vadd.f32 %v1458, %v1490
    %1492 = vdwg.mxu0
    %1493 = vmatpush.msra.mxu0 0.0
    %1494 = vmatpush.msra.mxu0 0.0
    %1495 = vmatpush.msra.mxu0 0.0
    %1496 = vmatpush.msra.mxu0 0.0
    %1497 = vmatpush.msra.mxu0 0.0
    %1498 = vmatpush.msra.mxu0 0.0
    %1499 = vmatpush.msra.mxu0 0.0
    %1500 = vmatpush.msra.mxu0 0.0
    %1501 = vmatpush.msra.mxu0 0.0
    %1502 = vmatpush.msra.mxu0 0.0
    %1503 = vmatpush.msra.mxu0 0.0
    %1504 = vmatpush.msra.mxu0 0.0
    %v1505 = vand.u32 %v637, 4294901760
    %1506 = vmatpush.msra.mxu0 %v1505
    %v1507 = vand.u32 %v636, 4294901760
    %1508 = vmatpush.msra.mxu0 %v1507
    %v1509 = vand.u32 %v635, 4294901760
    %1510 = vmatpush.msra.mxu0 %v1509
    %v1511 = vand.u32 %v634, 4294901760
    %1512 = vmatpush.msra.mxu0 %v1511
    %v1513 = vand.u32 %v1331, 4294901760
    %1514 = vmatmul.f32.gmra.mxu0 %v1513
    %v1515 = vpop.f32.mrf.mxu0
    %v1516 = vadd.f32 %v1491, %v1515
    %1517 = vdwg.mxu0
    %v1518 = vadd.f32 %v616, %v1516
    %v1519 = vxor.u32 %v1518, 2147483648
    %v1520 = vmul.f32 %v1519, 1.442695
    %v1521 = vpow.pop %v1520
    %v1522 = vadd.f32 %v1521, 1.0
    %v1523 = vrcp.pop %v1522
    %v1524 = vmul.f32 %v1522, %v1523
    %v1525 = vsub.f32 1.0, %v1524
    %v1526 = vmul.f32 %v1523, %v1525
    %v1527 = vadd.f32 %v1523, %v1526
    %vm1528 = vweird.f32 %v1522
    %vm1529 = vweird.f32 %v1523
    %vm1530 = vmor %vm1528, %vm1529
    %v1531 = vsel %vm1530, %v1523, %v1527
    %v1532 = vand.u32 2147483647, %v1522
    %vm1533 = vcmp.eq.f32.partialorder %v1532, 8.507059e+37
    %v1534 = vand.u32 %v1522, 2147483648
    %v1535 = vor.u32 1.1754944e-38, %v1534
    %v1536 = vsel %vm1533, %v1535, %v1531
    %v1537 = vmul.f32 1.0, %v1536
    %1539 = vrot.lane.b32.xlu0 %v1516, 64
    %v1540 = vpop.permute.xlu0 %1539
    %v1542 = vmul.f32 %v1537, %v1540
    %1544 = vrot.lane.b32.xlu0 %v1542, 64
    %v1545 = vpop.permute.xlu0 %1544
    %v1547 = vadd.f32 %v616, %v1545
    %v1548 = vtanh.pop %v1547
    %v1549 = vsub.f32 1.0, %v1537
    %1551 = vrot.lane.b32.xlu0 %v1548, 96
    %v1552 = vpop.permute.xlu0 %1551
    %v1554 = vmul.f32 %v1549, %v1552
    %v1555 = vmul.f32 %v1537, %v1327
    %v1556 = vadd.f32 %v1554, %v1555
    %1558 = vrot.lane.b32.xlu0 %v1556, 96
    %v1559 = vpop.permute.xlu0 %1558
    %v1560 = vsel %vm642, %v1559, 0
    %1562 = vmatpush.msra.mxu0 0.0
    %1563 = vmatpush.msra.mxu0 0.0
    %1564 = vmatpush.msra.mxu0 0.0
    %1565 = vmatpush.msra.mxu0 0.0
    %1566 = vmatpush.msra.mxu0 0.0
    %1567 = vmatpush.msra.mxu0 0.0
    %1568 = vmatpush.msra.mxu0 0.0
    %1569 = vmatpush.msra.mxu0 0.0
    %1570 = vmatpush.msra.mxu0 0.0
    %1571 = vmatpush.msra.mxu0 0.0
    %1572 = vmatpush.msra.mxu0 0.0
    %1573 = vmatpush.msra.mxu0 0.0
    %v1574 = vand.u32 %v637, 4294901760
    %1575 = vmatpush.msra.mxu0 %v1574
    %v1576 = vand.u32 %v636, 4294901760
    %1577 = vmatpush.msra.mxu0 %v1576
    %v1578 = vand.u32 %v635, 4294901760
    %1579 = vmatpush.msra.mxu0 %v1578
    %v1580 = vand.u32 %v634, 4294901760
    %1581 = vmatpush.msra.mxu0 %v1580
    %v1582 = vand.u32 %v1560, 4294901760
    %v1583 = vsub.f32 %v1560, %v1582
    %v1584 = vand.u32 %v1583, 4294901760
    %v1585 = vsub.f32 %v1583, %v1584
    %v1586 = vand.u32 %v1585, 4294901760
    %1587 = vmatmul.f32.gmra.mxu0 %v1586
    %v1588 = vpop.f32.mrf.mxu0
    %v1589 = vadd.f32 %v640, %v1588
    %1590 = vdwg.mxu0
    %1591 = vmatpush.msra.mxu0 0.0
    %1592 = vmatpush.msra.mxu0 0.0
    %1593 = vmatpush.msra.mxu0 0.0
    %1594 = vmatpush.msra.mxu0 0.0
    %1595 = vmatpush.msra.mxu0 0.0
    %1596 = vmatpush.msra.mxu0 0.0
    %1597 = vmatpush.msra.mxu0 0.0
    %1598 = vmatpush.msra.mxu0 0.0
    %1599 = vmatpush.msra.mxu0 0.0
    %1600 = vmatpush.msra.mxu0 0.0
    %1601 = vmatpush.msra.mxu0 0.0
    %1602 = vmatpush.msra.mxu0 0.0
    %v1603 = vand.u32 %v637, 4294901760
    %v1604 = vsub.f32 %v637, %v1603
    %v1605 = vand.u32 %v1604, 4294901760
    %v1606 = vsub.f32 %v1604, %v1605
    %v1607 = vand.u32 %v1606, 4294901760
    %1608 = vmatpush.msra.mxu0 %v1607
    %v1609 = vand.u32 %v636, 4294901760
    %v1610 = vsub.f32 %v636, %v1609
    %v1611 = vand.u32 %v1610, 4294901760
    %v1612 = vsub.f32 %v1610, %v1611
    %v1613 = vand.u32 %v1612, 4294901760
    %1614 = vmatpush.msra.mxu0 %v1613
    %v1615 = vand.u32 %v635, 4294901760
    %v1616 = vsub.f32 %v635, %v1615
    %v1617 = vand.u32 %v1616, 4294901760
    %v1618 = vsub.f32 %v1616, %v1617
    %v1619 = vand.u32 %v1618, 4294901760
    %1620 = vmatpush.msra.mxu0 %v1619
    %v1621 = vand.u32 %v634, 4294901760
    %v1622 = vsub.f32 %v634, %v1621
    %v1623 = vand.u32 %v1622, 4294901760
    %v1624 = vsub.f32 %v1622, %v1623
    %v1625 = vand.u32 %v1624, 4294901760
    %1626 = vmatpush.msra.mxu0 %v1625
    %v1627 = vand.u32 %v1560, 4294901760
    %1628 = vmatmul.f32.gmra.mxu0 %v1627
    %v1629 = vpop.f32.mrf.mxu0
    %v1630 = vadd.f32 %v1589, %v1629
    %1631 = vdwg.mxu0
    %1632 = vmatpush.msra.mxu0 0.0
    %1633 = vmatpush.msra.mxu0 0.0
    %1634 = vmatpush.msra.mxu0 0.0
    %1635 = vmatpush.msra.mxu0 0.0
    %1636 = vmatpush.msra.mxu0 0.0
    %1637 = vmatpush.msra.mxu0 0.0
    %1638 = vmatpush.msra.mxu0 0.0
    %1639 = vmatpush.msra.mxu0 0.0
    %1640 = vmatpush.msra.mxu0 0.0
    %1641 = vmatpush.msra.mxu0 0.0
    %1642 = vmatpush.msra.mxu0 0.0
    %1643 = vmatpush.msra.mxu0 0.0
    %v1644 = vand.u32 %v637, 4294901760
    %v1645 = vsub.f32 %v637, %v1644
    %1646 = vmatpush.msra.mxu0 %v1645
    %v1647 = vand.u32 %v636, 4294901760
    %v1648 = vsub.f32 %v636, %v1647
    %1649 = vmatpush.msra.mxu0 %v1648
    %v1650 = vand.u32 %v635, 4294901760
    %v1651 = vsub.f32 %v635, %v1650
    %1652 = vmatpush.msra.mxu0 %v1651
    %v1653 = vand.u32 %v634, 4294901760
    %v1654 = vsub.f32 %v634, %v1653
    %1655 = vmatpush.msra.mxu0 %v1654
    %v1656 = vand.u32 %v1560, 4294901760
    %v1657 = vsub.f32 %v1560, %v1656
    %1658 = vmatmul.f32.gmra.mxu0 %v1657
    %v1659 = vpop.f32.mrf.mxu0
    %v1660 = vadd.f32 %v1630, %v1659
    %1661 = vdwg.mxu0
    %1662 = vmatpush.msra.mxu0 0.0
    %1663 = vmatpush.msra.mxu0 0.0
    %1664 = vmatpush.msra.mxu0 0.0
    %1665 = vmatpush.msra.mxu0 0.0
    %1666 = vmatpush.msra.mxu0 0.0
    %1667 = vmatpush.msra.mxu0 0.0
    %1668 = vmatpush.msra.mxu0 0.0
    %1669 = vmatpush.msra.mxu0 0.0
    %1670 = vmatpush.msra.mxu0 0.0
    %1671 = vmatpush.msra.mxu0 0.0
    %1672 = vmatpush.msra.mxu0 0.0
    %1673 = vmatpush.msra.mxu0 0.0
    %v1674 = vand.u32 %v637, 4294901760
    %1675 = vmatpush.msra.mxu0 %v1674
    %v1676 = vand.u32 %v636, 4294901760
    %1677 = vmatpush.msra.mxu0 %v1676
    %v1678 = vand.u32 %v635, 4294901760
    %1679 = vmatpush.msra.mxu0 %v1678
    %v1680 = vand.u32 %v634, 4294901760
    %1681 = vmatpush.msra.mxu0 %v1680
    %v1682 = vand.u32 %v1560, 4294901760
    %v1683 = vsub.f32 %v1560, %v1682
    %v1684 = vand.u32 %v1683, 4294901760
    %1685 = vmatmul.f32.gmra.mxu0 %v1684
    %v1686 = vpop.f32.mrf.mxu0
    %v1687 = vadd.f32 %v1660, %v1686
    %1688 = vdwg.mxu0
    %1689 = vmatpush.msra.mxu0 0.0
    %1690 = vmatpush.msra.mxu0 0.0
    %1691 = vmatpush.msra.mxu0 0.0
    %1692 = vmatpush.msra.mxu0 0.0
    %1693 = vmatpush.msra.mxu0 0.0
    %1694 = vmatpush.msra.mxu0 0.0
    %1695 = vmatpush.msra.mxu0 0.0
    %1696 = vmatpush.msra.mxu0 0.0
    %1697 = vmatpush.msra.mxu0 0.0
    %1698 = vmatpush.msra.mxu0 0.0
    %1699 = vmatpush.msra.mxu0 0.0
    %1700 = vmatpush.msra.mxu0 0.0
    %v1701 = vand.u32 %v637, 4294901760
    %v1702 = vsub.f32 %v637, %v1701
    %v1703 = vand.u32 %v1702, 4294901760
    %1704 = vmatpush.msra.mxu0 %v1703
    %v1705 = vand.u32 %v636, 4294901760
    %v1706 = vsub.f32 %v636, %v1705
    %v1707 = vand.u32 %v1706, 4294901760
    %1708 = vmatpush.msra.mxu0 %v1707
    %v1709 = vand.u32 %v635, 4294901760
    %v1710 = vsub.f32 %v635, %v1709
    %v1711 = vand.u32 %v1710, 4294901760
    %1712 = vmatpush.msra.mxu0 %v1711
    %v1713 = vand.u32 %v634, 4294901760
    %v1714 = vsub.f32 %v634, %v1713
    %v1715 = vand.u32 %v1714, 4294901760
    %1716 = vmatpush.msra.mxu0 %v1715
    %v1717 = vand.u32 %v1560, 4294901760
    %1718 = vmatmul.f32.gmra.mxu0 %v1717
    %v1719 = vpop.f32.mrf.mxu0
    %v1720 = vadd.f32 %v1687, %v1719
    %1721 = vdwg.mxu0
    %1722 = vmatpush.msra.mxu0 0.0
    %1723 = vmatpush.msra.mxu0 0.0
    %1724 = vmatpush.msra.mxu0 0.0
    %1725 = vmatpush.msra.mxu0 0.0
    %1726 = vmatpush.msra.mxu0 0.0
    %1727 = vmatpush.msra.mxu0 0.0
    %1728 = vmatpush.msra.mxu0 0.0
    %1729 = vmatpush.msra.mxu0 0.0
    %1730 = vmatpush.msra.mxu0 0.0
    %1731 = vmatpush.msra.mxu0 0.0
    %1732 = vmatpush.msra.mxu0 0.0
    %1733 = vmatpush.msra.mxu0 0.0
    %v1734 = vand.u32 %v637, 4294901760
    %1735 = vmatpush.msra.mxu0 %v1734
    %v1736 = vand.u32 %v636, 4294901760
    %1737 = vmatpush.msra.mxu0 %v1736
    %v1738 = vand.u32 %v635, 4294901760
    %1739 = vmatpush.msra.mxu0 %v1738
    %v1740 = vand.u32 %v634, 4294901760
    %1741 = vmatpush.msra.mxu0 %v1740
    %v1742 = vand.u32 %v1560, 4294901760
    %1743 = vmatmul.f32.gmra.mxu0 %v1742
    %v1744 = vpop.f32.mrf.mxu0
    %v1745 = vadd.f32 %v1720, %v1744
    %1746 = vdwg.mxu0
    %v1747 = vadd.f32 %v620, %v1745
    %v1748 = vxor.u32 %v1747, 2147483648
    %v1749 = vmul.f32 %v1748, 1.442695
    %v1750 = vpow.pop %v1749
    %v1751 = vadd.f32 %v1750, 1.0
    %v1752 = vrcp.pop %v1751
    %v1753 = vmul.f32 %v1751, %v1752
    %v1754 = vsub.f32 1.0, %v1753
    %v1755 = vmul.f32 %v1752, %v1754
    %v1756 = vadd.f32 %v1752, %v1755
    %vm1757 = vweird.f32 %v1751
    %vm1758 = vweird.f32 %v1752
    %vm1759 = vmor %vm1757, %vm1758
    %v1760 = vsel %vm1759, %v1752, %v1756
    %v1761 = vand.u32 2147483647, %v1751
    %vm1762 = vcmp.eq.f32.partialorder %v1761, 8.507059e+37
    %v1763 = vand.u32 %v1751, 2147483648
    %v1764 = vor.u32 1.1754944e-38, %v1763
    %v1765 = vsel %vm1762, %v1764, %v1760
    %v1766 = vmul.f32 1.0, %v1765
    %1768 = vrot.lane.b32.xlu0 %v1745, 64
    %v1769 = vpop.permute.xlu0 %1768
    %v1771 = vmul.f32 %v1766, %v1769
    %1773 = vrot.lane.b32.xlu0 %v1771, 64
    %v1774 = vpop.permute.xlu0 %1773
    %v1776 = vadd.f32 %v620, %v1774
    %v1777 = vtanh.pop %v1776
    %v1778 = vsub.f32 1.0, %v1766
    %1780 = vrot.lane.b32.xlu0 %v1777, 96
    %v1781 = vpop.permute.xlu0 %1780
    %v1783 = vmul.f32 %v1778, %v1781
    %v1784 = vmul.f32 %v1766, %v1556
    %v1785 = vadd.f32 %v1783, %v1784
    %1787 = vrot.lane.b32.xlu0 %v1785, 96
    %v1788 = vpop.permute.xlu0 %1787
    %v1789 = vsel %vm642, %v1788, 0
    %1791 = vmatpush.msra.mxu0 0.0
    %1792 = vmatpush.msra.mxu0 0.0
    %1793 = vmatpush.msra.mxu0 0.0
    %1794 = vmatpush.msra.mxu0 0.0
    %1795 = vmatpush.msra.mxu0 0.0
    %1796 = vmatpush.msra.mxu0 0.0
    %1797 = vmatpush.msra.mxu0 0.0
    %1798 = vmatpush.msra.mxu0 0.0
    %1799 = vmatpush.msra.mxu0 0.0
    %1800 = vmatpush.msra.mxu0 0.0
    %1801 = vmatpush.msra.mxu0 0.0
    %1802 = vmatpush.msra.mxu0 0.0
    %v1803 = vand.u32 %v637, 4294901760
    %1804 = vmatpush.msra.mxu0 %v1803
    %v1805 = vand.u32 %v636, 4294901760
    %1806 = vmatpush.msra.mxu0 %v1805
    %v1807 = vand.u32 %v635, 4294901760
    %1808 = vmatpush.msra.mxu0 %v1807
    %v1809 = vand.u32 %v634, 4294901760
    %1810 = vmatpush.msra.mxu0 %v1809
    %v1811 = vand.u32 %v1789, 4294901760
    %v1812 = vsub.f32 %v1789, %v1811
    %v1813 = vand.u32 %v1812, 4294901760
    %v1814 = vsub.f32 %v1812, %v1813
    %v1815 = vand.u32 %v1814, 4294901760
    %1816 = vmatmul.f32.gmra.mxu0 %v1815
    %v1817 = vpop.f32.mrf.mxu0
    %v1818 = vadd.f32 %v640, %v1817
    %1819 = vdwg.mxu0
    %1820 = vmatpush.msra.mxu0 0.0
    %1821 = vmatpush.msra.mxu0 0.0
    %1822 = vmatpush.msra.mxu0 0.0
    %1823 = vmatpush.msra.mxu0 0.0
    %1824 = vmatpush.msra.mxu0 0.0
    %1825 = vmatpush.msra.mxu0 0.0
    %1826 = vmatpush.msra.mxu0 0.0
    %1827 = vmatpush.msra.mxu0 0.0
    %1828 = vmatpush.msra.mxu0 0.0
    %1829 = vmatpush.msra.mxu0 0.0
    %1830 = vmatpush.msra.mxu0 0.0
    %1831 = vmatpush.msra.mxu0 0.0
    %v1832 = vand.u32 %v637, 4294901760
    %v1833 = vsub.f32 %v637, %v1832
    %v1834 = vand.u32 %v1833, 4294901760
    %v1835 = vsub.f32 %v1833, %v1834
    %v1836 = vand.u32 %v1835, 4294901760
    %1837 = vmatpush.msra.mxu0 %v1836
    %v1838 = vand.u32 %v636, 4294901760
    %v1839 = vsub.f32 %v636, %v1838
    %v1840 = vand.u32 %v1839, 4294901760
    %v1841 = vsub.f32 %v1839, %v1840
    %v1842 = vand.u32 %v1841, 4294901760
    %1843 = vmatpush.msra.mxu0 %v1842
    %v1844 = vand.u32 %v635, 4294901760
    %v1845 = vsub.f32 %v635, %v1844
    %v1846 = vand.u32 %v1845, 4294901760
    %v1847 = vsub.f32 %v1845, %v1846
    %v1848 = vand.u32 %v1847, 4294901760
    %1849 = vmatpush.msra.mxu0 %v1848
    %v1850 = vand.u32 %v634, 4294901760
    %v1851 = vsub.f32 %v634, %v1850
    %v1852 = vand.u32 %v1851, 4294901760
    %v1853 = vsub.f32 %v1851, %v1852
    %v1854 = vand.u32 %v1853, 4294901760
    %1855 = vmatpush.msra.mxu0 %v1854
    %v1856 = vand.u32 %v1789, 4294901760
    %1857 = vmatmul.f32.gmra.mxu0 %v1856
    %v1858 = vpop.f32.mrf.mxu0
    %v1859 = vadd.f32 %v1818, %v1858
    %1860 = vdwg.mxu0
    %1861 = vmatpush.msra.mxu0 0.0
    %1862 = vmatpush.msra.mxu0 0.0
    %1863 = vmatpush.msra.mxu0 0.0
    %1864 = vmatpush.msra.mxu0 0.0
    %1865 = vmatpush.msra.mxu0 0.0
    %1866 = vmatpush.msra.mxu0 0.0
    %1867 = vmatpush.msra.mxu0 0.0
    %1868 = vmatpush.msra.mxu0 0.0
    %1869 = vmatpush.msra.mxu0 0.0
    %1870 = vmatpush.msra.mxu0 0.0
    %1871 = vmatpush.msra.mxu0 0.0
    %1872 = vmatpush.msra.mxu0 0.0
    %v1873 = vand.u32 %v637, 4294901760
    %v1874 = vsub.f32 %v637, %v1873
    %1875 = vmatpush.msra.mxu0 %v1874
    %v1876 = vand.u32 %v636, 4294901760
    %v1877 = vsub.f32 %v636, %v1876
    %1878 = vmatpush.msra.mxu0 %v1877
    %v1879 = vand.u32 %v635, 4294901760
    %v1880 = vsub.f32 %v635, %v1879
    %1881 = vmatpush.msra.mxu0 %v1880
    %v1882 = vand.u32 %v634, 4294901760
    %v1883 = vsub.f32 %v634, %v1882
    %1884 = vmatpush.msra.mxu0 %v1883
    %v1885 = vand.u32 %v1789, 4294901760
    %v1886 = vsub.f32 %v1789, %v1885
    %1887 = vmatmul.f32.gmra.mxu0 %v1886
    %v1888 = vpop.f32.mrf.mxu0
    %v1889 = vadd.f32 %v1859, %v1888
    %1890 = vdwg.mxu0
    %1891 = vmatpush.msra.mxu0 0.0
    %1892 = vmatpush.msra.mxu0 0.0
    %1893 = vmatpush.msra.mxu0 0.0
    %1894 = vmatpush.msra.mxu0 0.0
    %1895 = vmatpush.msra.mxu0 0.0
    %1896 = vmatpush.msra.mxu0 0.0
    %1897 = vmatpush.msra.mxu0 0.0
    %1898 = vmatpush.msra.mxu0 0.0
    %1899 = vmatpush.msra.mxu0 0.0
    %1900 = vmatpush.msra.mxu0 0.0
    %1901 = vmatpush.msra.mxu0 0.0
    %1902 = vmatpush.msra.mxu0 0.0
    %v1903 = vand.u32 %v637, 4294901760
    %1904 = vmatpush.msra.mxu0 %v1903
    %v1905 = vand.u32 %v636, 4294901760
    %1906 = vmatpush.msra.mxu0 %v1905
    %v1907 = vand.u32 %v635, 4294901760
    %1908 = vmatpush.msra.mxu0 %v1907
    %v1909 = vand.u32 %v634, 4294901760
    %1910 = vmatpush.msra.mxu0 %v1909
    %v1911 = vand.u32 %v1789, 4294901760
    %v1912 = vsub.f32 %v1789, %v1911
    %v1913 = vand.u32 %v1912, 4294901760
    %1914 = vmatmul.f32.gmra.mxu0 %v1913
    %v1915 = vpop.f32.mrf.mxu0
    %v1916 = vadd.f32 %v1889, %v1915
    %1917 = vdwg.mxu0
    %1918 = vmatpush.msra.mxu0 0.0
    %1919 = vmatpush.msra.mxu0 0.0
    %1920 = vmatpush.msra.mxu0 0.0
    %1921 = vmatpush.msra.mxu0 0.0
    %1922 = vmatpush.msra.mxu0 0.0
    %1923 = vmatpush.msra.mxu0 0.0
    %1924 = vmatpush.msra.mxu0 0.0
    %1925 = vmatpush.msra.mxu0 0.0
    %1926 = vmatpush.msra.mxu0 0.0
    %1927 = vmatpush.msra.mxu0 0.0
    %1928 = vmatpush.msra.mxu0 0.0
    %1929 = vmatpush.msra.mxu0 0.0
    %v1930 = vand.u32 %v637, 4294901760
    %v1931 = vsub.f32 %v637, %v1930
    %v1932 = vand.u32 %v1931, 4294901760
    %1933 = vmatpush.msra.mxu0 %v1932
    %v1934 = vand.u32 %v636, 4294901760
    %v1935 = vsub.f32 %v636, %v1934
    %v1936 = vand.u32 %v1935, 4294901760
    %1937 = vmatpush.msra.mxu0 %v1936
    %v1938 = vand.u32 %v635, 4294901760
    %v1939 = vsub.f32 %v635, %v1938
    %v1940 = vand.u32 %v1939, 4294901760
    %1941 = vmatpush.msra.mxu0 %v1940
    %v1942 = vand.u32 %v634, 4294901760
    %v1943 = vsub.f32 %v634, %v1942
    %v1944 = vand.u32 %v1943, 4294901760
    %1945 = vmatpush.msra.mxu0 %v1944
    %v1946 = vand.u32 %v1789, 4294901760
    %1947 = vmatmul.f32.gmra.mxu0 %v1946
    %v1948 = vpop.f32.mrf.mxu0
    %v1949 = vadd.f32 %v1916, %v1948
    %1950 = vdwg.mxu0
    %1951 = vmatpush.msra.mxu0 0.0
    %1952 = vmatpush.msra.mxu0 0.0
    %1953 = vmatpush.msra.mxu0 0.0
    %1954 = vmatpush.msra.mxu0 0.0
    %1955 = vmatpush.msra.mxu0 0.0
    %1956 = vmatpush.msra.mxu0 0.0
    %1957 = vmatpush.msra.mxu0 0.0
    %1958 = vmatpush.msra.mxu0 0.0
    %1959 = vmatpush.msra.mxu0 0.0
    %1960 = vmatpush.msra.mxu0 0.0
    %1961 = vmatpush.msra.mxu0 0.0
    %1962 = vmatpush.msra.mxu0 0.0
    %v1963 = vand.u32 %v637, 4294901760
    %1964 = vmatpush.msra.mxu0 %v1963
    %v1965 = vand.u32 %v636, 4294901760
    %1966 = vmatpush.msra.mxu0 %v1965
    %v1967 = vand.u32 %v635, 4294901760
    %1968 = vmatpush.msra.mxu0 %v1967
    %v1969 = vand.u32 %v634, 4294901760
    %1970 = vmatpush.msra.mxu0 %v1969
    %v1971 = vand.u32 %v1789, 4294901760
    %1972 = vmatmul.f32.gmra.mxu0 %v1971
    %v1973 = vpop.f32.mrf.mxu0
    %v1974 = vadd.f32 %v1949, %v1973
    %1975 = vdwg.mxu0
    %v1976 = vadd.f32 %v624, %v1974
    %v1977 = vxor.u32 %v1976, 2147483648
    %v1978 = vmul.f32 %v1977, 1.442695
    %v1979 = vpow.pop %v1978
    %v1980 = vadd.f32 %v1979, 1.0
    %v1981 = vrcp.pop %v1980
    %v1982 = vmul.f32 %v1980, %v1981
    %v1983 = vsub.f32 1.0, %v1982
    %v1984 = vmul.f32 %v1981, %v1983
    %v1985 = vadd.f32 %v1981, %v1984
    %vm1986 = vweird.f32 %v1980
    %vm1987 = vweird.f32 %v1981
    %vm1988 = vmor %vm1986, %vm1987
    %v1989 = vsel %vm1988, %v1981, %v1985
    %v1990 = vand.u32 2147483647, %v1980
    %vm1991 = vcmp.eq.f32.partialorder %v1990, 8.507059e+37
    %v1992 = vand.u32 %v1980, 2147483648
    %v1993 = vor.u32 1.1754944e-38, %v1992
    %v1994 = vsel %vm1991, %v1993, %v1989
    %v1995 = vmul.f32 1.0, %v1994
    %1997 = vrot.lane.b32.xlu0 %v1974, 64
    %v1998 = vpop.permute.xlu0 %1997
    %v2000 = vmul.f32 %v1995, %v1998
    %2002 = vrot.lane.b32.xlu0 %v2000, 64
    %v2003 = vpop.permute.xlu0 %2002
    %v2005 = vadd.f32 %v624, %v2003
    %v2006 = vtanh.pop %v2005
    %v2007 = vsub.f32 1.0, %v1995
    %2009 = vrot.lane.b32.xlu0 %v2006, 96
    %v2010 = vpop.permute.xlu0 %2009
    %v2012 = vmul.f32 %v2007, %v2010
    %v2013 = vmul.f32 %v1995, %v1785
    %v2014 = vadd.f32 %v2012, %v2013
    %2016 = vrot.lane.b32.xlu0 %v2014, 96
    %v2017 = vpop.permute.xlu0 %2016
    %v2018 = vsel %vm642, %v2017, 0
    %2020 = vmatpush.msra.mxu0 0.0
    %2021 = vmatpush.msra.mxu0 0.0
    %2022 = vmatpush.msra.mxu0 0.0
    %2023 = vmatpush.msra.mxu0 0.0
    %2024 = vmatpush.msra.mxu0 0.0
    %2025 = vmatpush.msra.mxu0 0.0
    %2026 = vmatpush.msra.mxu0 0.0
    %2027 = vmatpush.msra.mxu0 0.0
    %2028 = vmatpush.msra.mxu0 0.0
    %2029 = vmatpush.msra.mxu0 0.0
    %2030 = vmatpush.msra.mxu0 0.0
    %2031 = vmatpush.msra.mxu0 0.0
    %v2032 = vand.u32 %v637, 4294901760
    %2033 = vmatpush.msra.mxu0 %v2032
    %v2034 = vand.u32 %v636, 4294901760
    %2035 = vmatpush.msra.mxu0 %v2034
    %v2036 = vand.u32 %v635, 4294901760
    %2037 = vmatpush.msra.mxu0 %v2036
    %v2038 = vand.u32 %v634, 4294901760
    %2039 = vmatpush.msra.mxu0 %v2038
    %v2040 = vand.u32 %v2018, 4294901760
    %v2041 = vsub.f32 %v2018, %v2040
    %v2042 = vand.u32 %v2041, 4294901760
    %v2043 = vsub.f32 %v2041, %v2042
    %v2044 = vand.u32 %v2043, 4294901760
    %2045 = vmatmul.f32.gmra.mxu0 %v2044
    %v2046 = vpop.f32.mrf.mxu0
    %v2047 = vadd.f32 %v640, %v2046
    %2048 = vdwg.mxu0
    %2049 = vmatpush.msra.mxu0 0.0
    %2050 = vmatpush.msra.mxu0 0.0
    %2051 = vmatpush.msra.mxu0 0.0
    %2052 = vmatpush.msra.mxu0 0.0
    %2053 = vmatpush.msra.mxu0 0.0
    %2054 = vmatpush.msra.mxu0 0.0
    %2055 = vmatpush.msra.mxu0 0.0
    %2056 = vmatpush.msra.mxu0 0.0
    %2057 = vmatpush.msra.mxu0 0.0
    %2058 = vmatpush.msra.mxu0 0.0
    %2059 = vmatpush.msra.mxu0 0.0
    %2060 = vmatpush.msra.mxu0 0.0
    %v2061 = vand.u32 %v637, 4294901760
    %v2062 = vsub.f32 %v637, %v2061
    %v2063 = vand.u32 %v2062, 4294901760
    %v2064 = vsub.f32 %v2062, %v2063
    %v2065 = vand.u32 %v2064, 4294901760
    %2066 = vmatpush.msra.mxu0 %v2065
    %v2067 = vand.u32 %v636, 4294901760
    %v2068 = vsub.f32 %v636, %v2067
    %v2069 = vand.u32 %v2068, 4294901760
    %v2070 = vsub.f32 %v2068, %v2069
    %v2071 = vand.u32 %v2070, 4294901760
    %2072 = vmatpush.msra.mxu0 %v2071
    %v2073 = vand.u32 %v635, 4294901760
    %v2074 = vsub.f32 %v635, %v2073
    %v2075 = vand.u32 %v2074, 4294901760
    %v2076 = vsub.f32 %v2074, %v2075
    %v2077 = vand.u32 %v2076, 4294901760
    %2078 = vmatpush.msra.mxu0 %v2077
    %v2079 = vand.u32 %v634, 4294901760
    %v2080 = vsub.f32 %v634, %v2079
    %v2081 = vand.u32 %v2080, 4294901760
    %v2082 = vsub.f32 %v2080, %v2081
    %v2083 = vand.u32 %v2082, 4294901760
    %2084 = vmatpush.msra.mxu0 %v2083
    %v2085 = vand.u32 %v2018, 4294901760
    %2086 = vmatmul.f32.gmra.mxu0 %v2085
    %v2087 = vpop.f32.mrf.mxu0
    %v2088 = vadd.f32 %v2047, %v2087
    %2089 = vdwg.mxu0
    %2090 = vmatpush.msra.mxu0 0.0
    %2091 = vmatpush.msra.mxu0 0.0
    %2092 = vmatpush.msra.mxu0 0.0
    %2093 = vmatpush.msra.mxu0 0.0
    %2094 = vmatpush.msra.mxu0 0.0
    %2095 = vmatpush.msra.mxu0 0.0
    %2096 = vmatpush.msra.mxu0 0.0
    %2097 = vmatpush.msra.mxu0 0.0
    %2098 = vmatpush.msra.mxu0 0.0
    %2099 = vmatpush.msra.mxu0 0.0
    %2100 = vmatpush.msra.mxu0 0.0
    %2101 = vmatpush.msra.mxu0 0.0
    %v2102 = vand.u32 %v637, 4294901760
    %v2103 = vsub.f32 %v637, %v2102
    %2104 = vmatpush.msra.mxu0 %v2103
    %v2105 = vand.u32 %v636, 4294901760
    %v2106 = vsub.f32 %v636, %v2105
    %2107 = vmatpush.msra.mxu0 %v2106
    %v2108 = vand.u32 %v635, 4294901760
    %v2109 = vsub.f32 %v635, %v2108
    %2110 = vmatpush.msra.mxu0 %v2109
    %v2111 = vand.u32 %v634, 4294901760
    %v2112 = vsub.f32 %v634, %v2111
    %2113 = vmatpush.msra.mxu0 %v2112
    %v2114 = vand.u32 %v2018, 4294901760
    %v2115 = vsub.f32 %v2018, %v2114
    %2116 = vmatmul.f32.gmra.mxu0 %v2115
    %v2117 = vpop.f32.mrf.mxu0
    %v2118 = vadd.f32 %v2088, %v2117
    %2119 = vdwg.mxu0
    %2120 = vmatpush.msra.mxu0 0.0
    %2121 = vmatpush.msra.mxu0 0.0
    %2122 = vmatpush.msra.mxu0 0.0
    %2123 = vmatpush.msra.mxu0 0.0
    %2124 = vmatpush.msra.mxu0 0.0
    %2125 = vmatpush.msra.mxu0 0.0
    %2126 = vmatpush.msra.mxu0 0.0
    %2127 = vmatpush.msra.mxu0 0.0
    %2128 = vmatpush.msra.mxu0 0.0
    %2129 = vmatpush.msra.mxu0 0.0
    %2130 = vmatpush.msra.mxu0 0.0
    %2131 = vmatpush.msra.mxu0 0.0
    %v2132 = vand.u32 %v637, 4294901760
    %2133 = vmatpush.msra.mxu0 %v2132
    %v2134 = vand.u32 %v636, 4294901760
    %2135 = vmatpush.msra.mxu0 %v2134
    %v2136 = vand.u32 %v635, 4294901760
    %2137 = vmatpush.msra.mxu0 %v2136
    %v2138 = vand.u32 %v634, 4294901760
    %2139 = vmatpush.msra.mxu0 %v2138
    %v2140 = vand.u32 %v2018, 4294901760
    %v2141 = vsub.f32 %v2018, %v2140
    %v2142 = vand.u32 %v2141, 4294901760
    %2143 = vmatmul.f32.gmra.mxu0 %v2142
    %v2144 = vpop.f32.mrf.mxu0
    %v2145 = vadd.f32 %v2118, %v2144
    %2146 = vdwg.mxu0
    %2147 = vmatpush.msra.mxu0 0.0
    %2148 = vmatpush.msra.mxu0 0.0
    %2149 = vmatpush.msra.mxu0 0.0
    %2150 = vmatpush.msra.mxu0 0.0
    %2151 = vmatpush.msra.mxu0 0.0
    %2152 = vmatpush.msra.mxu0 0.0
    %2153 = vmatpush.msra.mxu0 0.0
    %2154 = vmatpush.msra.mxu0 0.0
    %2155 = vmatpush.msra.mxu0 0.0
    %2156 = vmatpush.msra.mxu0 0.0
    %2157 = vmatpush.msra.mxu0 0.0
    %2158 = vmatpush.msra.mxu0 0.0
    %v2159 = vand.u32 %v637, 4294901760
    %v2160 = vsub.f32 %v637, %v2159
    %v2161 = vand.u32 %v2160, 4294901760
    %2162 = vmatpush.msra.mxu0 %v2161
    %v2163 = vand.u32 %v636, 4294901760
    %v2164 = vsub.f32 %v636, %v2163
    %v2165 = vand.u32 %v2164, 4294901760
    %2166 = vmatpush.msra.mxu0 %v2165
    %v2167 = vand.u32 %v635, 4294901760
    %v2168 = vsub.f32 %v635, %v2167
    %v2169 = vand.u32 %v2168, 4294901760
    %2170 = vmatpush.msra.mxu0 %v2169
    %v2171 = vand.u32 %v634, 4294901760
    %v2172 = vsub.f32 %v634, %v2171
    %v2173 = vand.u32 %v2172, 4294901760
    %2174 = vmatpush.msra.mxu0 %v2173
    %v2175 = vand.u32 %v2018, 4294901760
    %2176 = vmatmul.f32.gmra.mxu0 %v2175
    %v2177 = vpop.f32.mrf.mxu0
    %v2178 = vadd.f32 %v2145, %v2177
    %2179 = vdwg.mxu0
    %2180 = vmatpush.msra.mxu0 0.0
    %2181 = vmatpush.msra.mxu0 0.0
    %2182 = vmatpush.msra.mxu0 0.0
    %2183 = vmatpush.msra.mxu0 0.0
    %2184 = vmatpush.msra.mxu0 0.0
    %2185 = vmatpush.msra.mxu0 0.0
    %2186 = vmatpush.msra.mxu0 0.0
    %2187 = vmatpush.msra.mxu0 0.0
    %2188 = vmatpush.msra.mxu0 0.0
    %2189 = vmatpush.msra.mxu0 0.0
    %2190 = vmatpush.msra.mxu0 0.0
    %2191 = vmatpush.msra.mxu0 0.0
    %v2192 = vand.u32 %v637, 4294901760
    %2193 = vmatpush.msra.mxu0 %v2192
    %v2194 = vand.u32 %v636, 4294901760
    %2195 = vmatpush.msra.mxu0 %v2194
    %v2196 = vand.u32 %v635, 4294901760
    %2197 = vmatpush.msra.mxu0 %v2196
    %v2198 = vand.u32 %v634, 4294901760
    %2199 = vmatpush.msra.mxu0 %v2198
    %v2200 = vand.u32 %v2018, 4294901760
    %2201 = vmatmul.f32.gmra.mxu0 %v2200
    %v2202 = vpop.f32.mrf.mxu0
    %v2203 = vadd.f32 %v2178, %v2202
    %2204 = vdwg.mxu0
    %v2205 = vadd.f32 %v628, %v2203
    %v2206 = vxor.u32 %v2205, 2147483648
    %v2207 = vmul.f32 %v2206, 1.442695
    %v2208 = vpow.pop %v2207
    %v2209 = vadd.f32 %v2208, 1.0
    %v2210 = vrcp.pop %v2209
    %v2211 = vmul.f32 %v2209, %v2210
    %v2212 = vsub.f32 1.0, %v2211
    %v2213 = vmul.f32 %v2210, %v2212
    %v2214 = vadd.f32 %v2210, %v2213
    %vm2215 = vweird.f32 %v2209
    %vm2216 = vweird.f32 %v2210
    %vm2217 = vmor %vm2215, %vm2216
    %v2218 = vsel %vm2217, %v2210, %v2214
    %v2219 = vand.u32 2147483647, %v2209
    %vm2220 = vcmp.eq.f32.partialorder %v2219, 8.507059e+37
    %v2221 = vand.u32 %v2209, 2147483648
    %v2222 = vor.u32 1.1754944e-38, %v2221
    %v2223 = vsel %vm2220, %v2222, %v2218
    %v2224 = vmul.f32 1.0, %v2223
    %2226 = vrot.lane.b32.xlu0 %v2203, 64
    %v2227 = vpop.permute.xlu0 %2226
    %v2229 = vmul.f32 %v2224, %v2227
    %2231 = vrot.lane.b32.xlu0 %v2229, 64
    %v2232 = vpop.permute.xlu0 %2231
    %v2234 = vadd.f32 %v628, %v2232
    %v2235 = vtanh.pop %v2234
    %v2236 = vsub.f32 1.0, %v2224
    %2238 = vrot.lane.b32.xlu0 %v2235, 96
    %v2239 = vpop.permute.xlu0 %2238
    %v2241 = vmul.f32 %v2236, %v2239
    %v2242 = vmul.f32 %v2224, %v2014
    %v2243 = vadd.f32 %v2241, %v2242
    %2245 = vrot.lane.b32.xlu0 %v2243, 96
    %v2246 = vpop.permute.xlu0 %2245
    %v2247 = vsel %vm642, %v2246, 0
    %2249 = vmatpush.msra.mxu0 0.0
    %2250 = vmatpush.msra.mxu0 0.0
    %2251 = vmatpush.msra.mxu0 0.0
    %2252 = vmatpush.msra.mxu0 0.0
    %2253 = vmatpush.msra.mxu0 0.0
    %2254 = vmatpush.msra.mxu0 0.0
    %2255 = vmatpush.msra.mxu0 0.0
    %2256 = vmatpush.msra.mxu0 0.0
    %2257 = vmatpush.msra.mxu0 0.0
    %2258 = vmatpush.msra.mxu0 0.0
    %2259 = vmatpush.msra.mxu0 0.0
    %2260 = vmatpush.msra.mxu0 0.0
    %v2261 = vand.u32 %v637, 4294901760
    %2262 = vmatpush.msra.mxu0 %v2261
    %v2263 = vand.u32 %v636, 4294901760
    %2264 = vmatpush.msra.mxu0 %v2263
    %v2265 = vand.u32 %v635, 4294901760
    %2266 = vmatpush.msra.mxu0 %v2265
    %v2267 = vand.u32 %v634, 4294901760
    %2268 = vmatpush.msra.mxu0 %v2267
    %v2269 = vand.u32 %v2247, 4294901760
    %v2270 = vsub.f32 %v2247, %v2269
    %v2271 = vand.u32 %v2270, 4294901760
    %v2272 = vsub.f32 %v2270, %v2271
    %v2273 = vand.u32 %v2272, 4294901760
    %2274 = vmatmul.f32.gmra.mxu0 %v2273
    %v2275 = vpop.f32.mrf.mxu0
    %v2276 = vadd.f32 %v640, %v2275
    %2277 = vdwg.mxu0
    %2278 = vmatpush.msra.mxu0 0.0
    %2279 = vmatpush.msra.mxu0 0.0
    %2280 = vmatpush.msra.mxu0 0.0
    %2281 = vmatpush.msra.mxu0 0.0
    %2282 = vmatpush.msra.mxu0 0.0
    %2283 = vmatpush.msra.mxu0 0.0
    %2284 = vmatpush.msra.mxu0 0.0
    %2285 = vmatpush.msra.mxu0 0.0
    %2286 = vmatpush.msra.mxu0 0.0
    %2287 = vmatpush.msra.mxu0 0.0
    %2288 = vmatpush.msra.mxu0 0.0
    %2289 = vmatpush.msra.mxu0 0.0
    %v2290 = vand.u32 %v637, 4294901760
    %v2291 = vsub.f32 %v637, %v2290
    %v2292 = vand.u32 %v2291, 4294901760
    %v2293 = vsub.f32 %v2291, %v2292
    %v2294 = vand.u32 %v2293, 4294901760
    %2295 = vmatpush.msra.mxu0 %v2294
    %v2296 = vand.u32 %v636, 4294901760
    %v2297 = vsub.f32 %v636, %v2296
    %v2298 = vand.u32 %v2297, 4294901760
    %v2299 = vsub.f32 %v2297, %v2298
    %v2300 = vand.u32 %v2299, 4294901760
    %2301 = vmatpush.msra.mxu0 %v2300
    %v2302 = vand.u32 %v635, 4294901760
    %v2303 = vsub.f32 %v635, %v2302
    %v2304 = vand.u32 %v2303, 4294901760
    %v2305 = vsub.f32 %v2303, %v2304
    %v2306 = vand.u32 %v2305, 4294901760
    %2307 = vmatpush.msra.mxu0 %v2306
    %v2308 = vand.u32 %v634, 4294901760
    %v2309 = vsub.f32 %v634, %v2308
    %v2310 = vand.u32 %v2309, 4294901760
    %v2311 = vsub.f32 %v2309, %v2310
    %v2312 = vand.u32 %v2311, 4294901760
    %2313 = vmatpush.msra.mxu0 %v2312
    %v2314 = vand.u32 %v2247, 4294901760
    %2315 = vmatmul.f32.gmra.mxu0 %v2314
    %v2316 = vpop.f32.mrf.mxu0
    %v2317 = vadd.f32 %v2276, %v2316
    %2318 = vdwg.mxu0
    %2319 = vmatpush.msra.mxu0 0.0
    %2320 = vmatpush.msra.mxu0 0.0
    %2321 = vmatpush.msra.mxu0 0.0
    %2322 = vmatpush.msra.mxu0 0.0
    %2323 = vmatpush.msra.mxu0 0.0
    %2324 = vmatpush.msra.mxu0 0.0
    %2325 = vmatpush.msra.mxu0 0.0
    %2326 = vmatpush.msra.mxu0 0.0
    %2327 = vmatpush.msra.mxu0 0.0
    %2328 = vmatpush.msra.mxu0 0.0
    %2329 = vmatpush.msra.mxu0 0.0
    %2330 = vmatpush.msra.mxu0 0.0
    %v2331 = vand.u32 %v637, 4294901760
    %v2332 = vsub.f32 %v637, %v2331
    %2333 = vmatpush.msra.mxu0 %v2332
    %v2334 = vand.u32 %v636, 4294901760
    %v2335 = vsub.f32 %v636, %v2334
    %2336 = vmatpush.msra.mxu0 %v2335
    %v2337 = vand.u32 %v635, 4294901760
    %v2338 = vsub.f32 %v635, %v2337
    %2339 = vmatpush.msra.mxu0 %v2338
    %v2340 = vand.u32 %v634, 4294901760
    %v2341 = vsub.f32 %v634, %v2340
    %2342 = vmatpush.msra.mxu0 %v2341
    %v2343 = vand.u32 %v2247, 4294901760
    %v2344 = vsub.f32 %v2247, %v2343
    %2345 = vmatmul.f32.gmra.mxu0 %v2344
    %v2346 = vpop.f32.mrf.mxu0
    %v2347 = vadd.f32 %v2317, %v2346
    %2348 = vdwg.mxu0
    %2349 = vmatpush.msra.mxu0 0.0
    %2350 = vmatpush.msra.mxu0 0.0
    %2351 = vmatpush.msra.mxu0 0.0
    %2352 = vmatpush.msra.mxu0 0.0
    %2353 = vmatpush.msra.mxu0 0.0
    %2354 = vmatpush.msra.mxu0 0.0
    %2355 = vmatpush.msra.mxu0 0.0
    %2356 = vmatpush.msra.mxu0 0.0
    %2357 = vmatpush.msra.mxu0 0.0
    %2358 = vmatpush.msra.mxu0 0.0
    %2359 = vmatpush.msra.mxu0 0.0
    %2360 = vmatpush.msra.mxu0 0.0
    %v2361 = vand.u32 %v637, 4294901760
    %2362 = vmatpush.msra.mxu0 %v2361
    %v2363 = vand.u32 %v636, 4294901760
    %2364 = vmatpush.msra.mxu0 %v2363
    %v2365 = vand.u32 %v635, 4294901760
    %2366 = vmatpush.msra.mxu0 %v2365
    %v2367 = vand.u32 %v634, 4294901760
    %2368 = vmatpush.msra.mxu0 %v2367
    %v2369 = vand.u32 %v2247, 4294901760
    %v2370 = vsub.f32 %v2247, %v2369
    %v2371 = vand.u32 %v2370, 4294901760
    %2372 = vmatmul.f32.gmra.mxu0 %v2371
    %v2373 = vpop.f32.mrf.mxu0
    %v2374 = vadd.f32 %v2347, %v2373
    %2375 = vdwg.mxu0
    %2376 = vmatpush.msra.mxu0 0.0
    %2377 = vmatpush.msra.mxu0 0.0
    %2378 = vmatpush.msra.mxu0 0.0
    %2379 = vmatpush.msra.mxu0 0.0
    %2380 = vmatpush.msra.mxu0 0.0
    %2381 = vmatpush.msra.mxu0 0.0
    %2382 = vmatpush.msra.mxu0 0.0
    %2383 = vmatpush.msra.mxu0 0.0
    %2384 = vmatpush.msra.mxu0 0.0
    %2385 = vmatpush.msra.mxu0 0.0
    %2386 = vmatpush.msra.mxu0 0.0
    %2387 = vmatpush.msra.mxu0 0.0
    %v2388 = vand.u32 %v637, 4294901760
    %v2389 = vsub.f32 %v637, %v2388
    %v2390 = vand.u32 %v2389, 4294901760
    %2391 = vmatpush.msra.mxu0 %v2390
    %v2392 = vand.u32 %v636, 4294901760
    %v2393 = vsub.f32 %v636, %v2392
    %v2394 = vand.u32 %v2393, 4294901760
    %2395 = vmatpush.msra.mxu0 %v2394
    %v2396 = vand.u32 %v635, 4294901760
    %v2397 = vsub.f32 %v635, %v2396
    %v2398 = vand.u32 %v2397, 4294901760
    %2399 = vmatpush.msra.mxu0 %v2398
    %v2400 = vand.u32 %v634, 4294901760
    %v2401 = vsub.f32 %v634, %v2400
    %v2402 = vand.u32 %v2401, 4294901760
    %2403 = vmatpush.msra.mxu0 %v2402
    %v2404 = vand.u32 %v2247, 4294901760
    %2405 = vmatmul.f32.gmra.mxu0 %v2404
    %v2406 = vpop.f32.mrf.mxu0
    %v2407 = vadd.f32 %v2374, %v2406
    %2408 = vdwg.mxu0
    %2409 = vmatpush.msra.mxu0 0.0
    %2410 = vmatpush.msra.mxu0 0.0
    %2411 = vmatpush.msra.mxu0 0.0
    %2412 = vmatpush.msra.mxu0 0.0
    %2413 = vmatpush.msra.mxu0 0.0
    %2414 = vmatpush.msra.mxu0 0.0
    %2415 = vmatpush.msra.mxu0 0.0
    %2416 = vmatpush.msra.mxu0 0.0
    %2417 = vmatpush.msra.mxu0 0.0
    %2418 = vmatpush.msra.mxu0 0.0
    %2419 = vmatpush.msra.mxu0 0.0
    %2420 = vmatpush.msra.mxu0 0.0
    %v2421 = vand.u32 %v637, 4294901760
    %2422 = vmatpush.msra.mxu0 %v2421
    %v2423 = vand.u32 %v636, 4294901760
    %2424 = vmatpush.msra.mxu0 %v2423
    %v2425 = vand.u32 %v635, 4294901760
    %2426 = vmatpush.msra.mxu0 %v2425
    %v2427 = vand.u32 %v634, 4294901760
    %2428 = vmatpush.msra.mxu0 %v2427
    %v2429 = vand.u32 %v2247, 4294901760
    %2430 = vmatmul.f32.gmra.mxu0 %v2429
    %v2431 = vpop.f32.mrf.mxu0
    %v2432 = vadd.f32 %v2407, %v2431
    %2433 = vdwg.mxu0
    %v2434 = vadd.f32 %v632, %v2432
    %v2435 = vxor.u32 %v2434, 2147483648
    %v2436 = vmul.f32 %v2435, 1.442695
    %v2437 = vpow.pop %v2436
    %v2438 = vadd.f32 %v2437, 1.0
    %v2439 = vrcp.pop %v2438
    %v2440 = vmul.f32 %v2438, %v2439
    %v2441 = vsub.f32 1.0, %v2440
    %v2442 = vmul.f32 %v2439, %v2441
    %v2443 = vadd.f32 %v2439, %v2442
    %vm2444 = vweird.f32 %v2438
    %vm2445 = vweird.f32 %v2439
    %vm2446 = vmor %vm2444, %vm2445
    %v2447 = vsel %vm2446, %v2439, %v2443
    %v2448 = vand.u32 2147483647, %v2438
    %vm2449 = vcmp.eq.f32.partialorder %v2448, 8.507059e+37
    %v2450 = vand.u32 %v2438, 2147483648
    %v2451 = vor.u32 1.1754944e-38, %v2450
    %v2452 = vsel %vm2449, %v2451, %v2447
    %v2453 = vmul.f32 1.0, %v2452
    %2455 = vrot.lane.b32.xlu0 %v2432, 64
    %v2456 = vpop.permute.xlu0 %2455
    %v2458 = vmul.f32 %v2453, %v2456
    %2460 = vrot.lane.b32.xlu0 %v2458, 64
    %v2461 = vpop.permute.xlu0 %2460
    %v2463 = vadd.f32 %v632, %v2461
    %v2464 = vtanh.pop %v2463
    %v2465 = vsub.f32 1.0, %v2453
    %2467 = vrot.lane.b32.xlu0 %v2464, 96
    %v2468 = vpop.permute.xlu0 %2467
    %v2470 = vmul.f32 %v2465, %v2468
    %v2471 = vmul.f32 %v2453, %v2243
    %v2472 = vadd.f32 %v2470, %v2471
    %v2473 = vld [vmem:[#allocation2] sm:$0xff]
    %v2474 = vld [vmem:[#allocation2 + $0x8] sm:$0xff]
    %v2475 = vld [vmem:[#allocation2 + $0x10] sm:$0xff]
    %v2476 = vld [vmem:[#allocation2 + $0x18] sm:$0xff]
    %v2477 = vld [vmem:[%s6] sm:$0x1]
    %v2479 = vperm.slane %v2477, 0
    %2482 = vrot.lane.b32.xlu0 %v2472, 96
    %v2483 = vpop.permute.xlu0 %2482
    %v2484 = vsel %vm642, %v2483, 0
    %2486 = vmatpush.msra.mxu0 0.0
    %2487 = vmatpush.msra.mxu0 0.0
    %2488 = vmatpush.msra.mxu0 0.0
    %2489 = vmatpush.msra.mxu0 0.0
    %2490 = vmatpush.msra.mxu0 0.0
    %2491 = vmatpush.msra.mxu0 0.0
    %2492 = vmatpush.msra.mxu0 0.0
    %2493 = vmatpush.msra.mxu0 0.0
    %2494 = vmatpush.msra.mxu0 0.0
    %2495 = vmatpush.msra.mxu0 0.0
    %2496 = vmatpush.msra.mxu0 0.0
    %2497 = vmatpush.msra.mxu0 0.0
    %v2498 = vand.u32 %v2476, 4294901760
    %2499 = vmatpush.msra.mxu0 %v2498
    %v2500 = vand.u32 %v2475, 4294901760
    %2501 = vmatpush.msra.mxu0 %v2500
    %v2502 = vand.u32 %v2474, 4294901760
    %2503 = vmatpush.msra.mxu0 %v2502
    %v2504 = vand.u32 %v2473, 4294901760
    %2505 = vmatpush.msra.mxu0 %v2504
    %v2506 = vand.u32 %v2484, 4294901760
    %v2507 = vsub.f32 %v2484, %v2506
    %v2508 = vand.u32 %v2507, 4294901760
    %v2509 = vsub.f32 %v2507, %v2508
    %v2510 = vand.u32 %v2509, 4294901760
    %2511 = vmatmul.f32.gmra.mxu0 %v2510
    %v2512 = vpop.f32.mrf.mxu0
    %v2513 = vadd.f32 %v2479, %v2512
    %2514 = vdwg.mxu0
    %2515 = vmatpush.msra.mxu0 0.0
    %2516 = vmatpush.msra.mxu0 0.0
    %2517 = vmatpush.msra.mxu0 0.0
    %2518 = vmatpush.msra.mxu0 0.0
    %2519 = vmatpush.msra.mxu0 0.0
    %2520 = vmatpush.msra.mxu0 0.0
    %2521 = vmatpush.msra.mxu0 0.0
    %2522 = vmatpush.msra.mxu0 0.0
    %2523 = vmatpush.msra.mxu0 0.0
    %2524 = vmatpush.msra.mxu0 0.0
    %2525 = vmatpush.msra.mxu0 0.0
    %2526 = vmatpush.msra.mxu0 0.0
    %v2527 = vand.u32 %v2476, 4294901760
    %v2528 = vsub.f32 %v2476, %v2527
    %v2529 = vand.u32 %v2528, 4294901760
    %v2530 = vsub.f32 %v2528, %v2529
    %v2531 = vand.u32 %v2530, 4294901760
    %2532 = vmatpush.msra.mxu0 %v2531
    %v2533 = vand.u32 %v2475, 4294901760
    %v2534 = vsub.f32 %v2475, %v2533
    %v2535 = vand.u32 %v2534, 4294901760
    %v2536 = vsub.f32 %v2534, %v2535
    %v2537 = vand.u32 %v2536, 4294901760
    %2538 = vmatpush.msra.mxu0 %v2537
    %v2539 = vand.u32 %v2474, 4294901760
    %v2540 = vsub.f32 %v2474, %v2539
    %v2541 = vand.u32 %v2540, 4294901760
    %v2542 = vsub.f32 %v2540, %v2541
    %v2543 = vand.u32 %v2542, 4294901760
    %2544 = vmatpush.msra.mxu0 %v2543
    %v2545 = vand.u32 %v2473, 4294901760
    %v2546 = vsub.f32 %v2473, %v2545
    %v2547 = vand.u32 %v2546, 4294901760
    %v2548 = vsub.f32 %v2546, %v2547
    %v2549 = vand.u32 %v2548, 4294901760
    %2550 = vmatpush.msra.mxu0 %v2549
    %v2551 = vand.u32 %v2484, 4294901760
    %2552 = vmatmul.f32.gmra.mxu0 %v2551
    %v2553 = vpop.f32.mrf.mxu0
    %v2554 = vadd.f32 %v2513, %v2553
    %2555 = vdwg.mxu0
    %2556 = vmatpush.msra.mxu0 0.0
    %2557 = vmatpush.msra.mxu0 0.0
    %2558 = vmatpush.msra.mxu0 0.0
    %2559 = vmatpush.msra.mxu0 0.0
    %2560 = vmatpush.msra.mxu0 0.0
    %2561 = vmatpush.msra.mxu0 0.0
    %2562 = vmatpush.msra.mxu0 0.0
    %2563 = vmatpush.msra.mxu0 0.0
    %2564 = vmatpush.msra.mxu0 0.0
    %2565 = vmatpush.msra.mxu0 0.0
    %2566 = vmatpush.msra.mxu0 0.0
    %2567 = vmatpush.msra.mxu0 0.0
    %v2568 = vand.u32 %v2476, 4294901760
    %v2569 = vsub.f32 %v2476, %v2568
    %2570 = vmatpush.msra.mxu0 %v2569
    %v2571 = vand.u32 %v2475, 4294901760
    %v2572 = vsub.f32 %v2475, %v2571
    %2573 = vmatpush.msra.mxu0 %v2572
    %v2574 = vand.u32 %v2474, 4294901760
    %v2575 = vsub.f32 %v2474, %v2574
    %2576 = vmatpush.msra.mxu0 %v2575
    %v2577 = vand.u32 %v2473, 4294901760
    %v2578 = vsub.f32 %v2473, %v2577
    %2579 = vmatpush.msra.mxu0 %v2578
    %v2580 = vand.u32 %v2484, 4294901760
    %v2581 = vsub.f32 %v2484, %v2580
    %2582 = vmatmul.f32.gmra.mxu0 %v2581
    %v2583 = vpop.f32.mrf.mxu0
    %v2584 = vadd.f32 %v2554, %v2583
    %2585 = vdwg.mxu0
    %2586 = vmatpush.msra.mxu0 0.0
    %2587 = vmatpush.msra.mxu0 0.0
    %2588 = vmatpush.msra.mxu0 0.0
    %2589 = vmatpush.msra.mxu0 0.0
    %2590 = vmatpush.msra.mxu0 0.0
    %2591 = vmatpush.msra.mxu0 0.0
    %2592 = vmatpush.msra.mxu0 0.0
    %2593 = vmatpush.msra.mxu0 0.0
    %2594 = vmatpush.msra.mxu0 0.0
    %2595 = vmatpush.msra.mxu0 0.0
    %2596 = vmatpush.msra.mxu0 0.0
    %2597 = vmatpush.msra.mxu0 0.0
    %v2598 = vand.u32 %v2476, 4294901760
    %2599 = vmatpush.msra.mxu0 %v2598
    %v2600 = vand.u32 %v2475, 4294901760
    %2601 = vmatpush.msra.mxu0 %v2600
    %v2602 = vand.u32 %v2474, 4294901760
    %2603 = vmatpush.msra.mxu0 %v2602
    %v2604 = vand.u32 %v2473, 4294901760
    %2605 = vmatpush.msra.mxu0 %v2604
    %v2606 = vand.u32 %v2484, 4294901760
    %v2607 = vsub.f32 %v2484, %v2606
    %v2608 = vand.u32 %v2607, 4294901760
    %2609 = vmatmul.f32.gmra.mxu0 %v2608
    %v2610 = vpop.f32.mrf.mxu0
    %v2611 = vadd.f32 %v2584, %v2610
    %2612 = vdwg.mxu0
    %2613 = vmatpush.msra.mxu0 0.0
    %2614 = vmatpush.msra.mxu0 0.0
    %2615 = vmatpush.msra.mxu0 0.0
    %2616 = vmatpush.msra.mxu0 0.0
    %2617 = vmatpush.msra.mxu0 0.0
    %2618 = vmatpush.msra.mxu0 0.0
    %2619 = vmatpush.msra.mxu0 0.0
    %2620 = vmatpush.msra.mxu0 0.0
    %2621 = vmatpush.msra.mxu0 0.0
    %2622 = vmatpush.msra.mxu0 0.0
    %2623 = vmatpush.msra.mxu0 0.0
    %2624 = vmatpush.msra.mxu0 0.0
    %v2625 = vand.u32 %v2476, 4294901760
    %v2626 = vsub.f32 %v2476, %v2625
    %v2627 = vand.u32 %v2626, 4294901760
    %2628 = vmatpush.msra.mxu0 %v2627
    %v2629 = vand.u32 %v2475, 4294901760
    %v2630 = vsub.f32 %v2475, %v2629
    %v2631 = vand.u32 %v2630, 4294901760
    %2632 = vmatpush.msra.mxu0 %v2631
    %v2633 = vand.u32 %v2474, 4294901760
    %v2634 = vsub.f32 %v2474, %v2633
    %v2635 = vand.u32 %v2634, 4294901760
    %2636 = vmatpush.msra.mxu0 %v2635
    %v2637 = vand.u32 %v2473, 4294901760
    %v2638 = vsub.f32 %v2473, %v2637
    %v2639 = vand.u32 %v2638, 4294901760
    %2640 = vmatpush.msra.mxu0 %v2639
    %v2641 = vand.u32 %v2484, 4294901760
    %2642 = vmatmul.f32.gmra.mxu0 %v2641
    %v2643 = vpop.f32.mrf.mxu0
    %v2644 = vadd.f32 %v2611, %v2643
    %2645 = vdwg.mxu0
    %2646 = vmatpush.msra.mxu0 0.0
    %2647 = vmatpush.msra.mxu0 0.0
    %2648 = vmatpush.msra.mxu0 0.0
    %2649 = vmatpush.msra.mxu0 0.0
    %2650 = vmatpush.msra.mxu0 0.0
    %2651 = vmatpush.msra.mxu0 0.0
    %2652 = vmatpush.msra.mxu0 0.0
    %2653 = vmatpush.msra.mxu0 0.0
    %2654 = vmatpush.msra.mxu0 0.0
    %2655 = vmatpush.msra.mxu0 0.0
    %2656 = vmatpush.msra.mxu0 0.0
    %2657 = vmatpush.msra.mxu0 0.0
    %v2658 = vand.u32 %v2476, 4294901760
    %2659 = vmatpush.msra.mxu0 %v2658
    %v2660 = vand.u32 %v2475, 4294901760
    %2661 = vmatpush.msra.mxu0 %v2660
    %v2662 = vand.u32 %v2474, 4294901760
    %2663 = vmatpush.msra.mxu0 %v2662
    %v2664 = vand.u32 %v2473, 4294901760
    %2665 = vmatpush.msra.mxu0 %v2664
    %v2666 = vand.u32 %v2484, 4294901760
    %2667 = vmatmul.f32.gmra.mxu0 %v2666
    %v2668 = vpop.f32.mrf.mxu0
    %v2669 = vadd.f32 %v2644, %v2668
    %2670 = vdwg.mxu0
    %v2671 = vld [vmem:[#allocation4] sm:$0xff]
    %v2672 = vld [vmem:[#allocation4 + $0x8] sm:$0xff]
    %v2673 = vld [vmem:[#allocation4 + $0x10] sm:$0xff]
    %v2674 = vld [vmem:[#allocation4 + $0x18] sm:$0xff]
    %v2675 = vld [vmem:[%s8] sm:$0x1]
    %v2677 = vperm.slane %v2675, 0
    %2679 = vmatpush.msra.mxu0 0.0
    %2680 = vmatpush.msra.mxu0 0.0
    %2681 = vmatpush.msra.mxu0 0.0
    %2682 = vmatpush.msra.mxu0 0.0
    %2683 = vmatpush.msra.mxu0 0.0
    %2684 = vmatpush.msra.mxu0 0.0
    %2685 = vmatpush.msra.mxu0 0.0
    %2686 = vmatpush.msra.mxu0 0.0
    %2687 = vmatpush.msra.mxu0 0.0
    %2688 = vmatpush.msra.mxu0 0.0
    %2689 = vmatpush.msra.mxu0 0.0
    %2690 = vmatpush.msra.mxu0 0.0
    %v2691 = vand.u32 %v2674, 4294901760
    %2692 = vmatpush.msra.mxu0 %v2691
    %v2693 = vand.u32 %v2673, 4294901760
    %2694 = vmatpush.msra.mxu0 %v2693
    %v2695 = vand.u32 %v2672, 4294901760
    %2696 = vmatpush.msra.mxu0 %v2695
    %v2697 = vand.u32 %v2671, 4294901760
    %2698 = vmatpush.msra.mxu0 %v2697
    %v2699 = vand.u32 %v644, 4294901760
    %v2700 = vsub.f32 %v644, %v2699
    %v2701 = vand.u32 %v2700, 4294901760
    %v2702 = vsub.f32 %v2700, %v2701
    %v2703 = vand.u32 %v2702, 4294901760
    %2704 = vmatmul.f32.gmra.mxu0 %v2703
    %v2705 = vpop.f32.mrf.mxu0
    %v2706 = vadd.f32 %v2677, %v2705
    %2707 = vdwg.mxu0
    %2708 = vmatpush.msra.mxu0 0.0
    %2709 = vmatpush.msra.mxu0 0.0
    %2710 = vmatpush.msra.mxu0 0.0
    %2711 = vmatpush.msra.mxu0 0.0
    %2712 = vmatpush.msra.mxu0 0.0
    %2713 = vmatpush.msra.mxu0 0.0
    %2714 = vmatpush.msra.mxu0 0.0
    %2715 = vmatpush.msra.mxu0 0.0
    %2716 = vmatpush.msra.mxu0 0.0
    %2717 = vmatpush.msra.mxu0 0.0
    %2718 = vmatpush.msra.mxu0 0.0
    %2719 = vmatpush.msra.mxu0 0.0
    %v2720 = vand.u32 %v2674, 4294901760
    %v2721 = vsub.f32 %v2674, %v2720
    %v2722 = vand.u32 %v2721, 4294901760
    %v2723 = vsub.f32 %v2721, %v2722
    %v2724 = vand.u32 %v2723, 4294901760
    %2725 = vmatpush.msra.mxu0 %v2724
    %v2726 = vand.u32 %v2673, 4294901760
    %v2727 = vsub.f32 %v2673, %v2726
    %v2728 = vand.u32 %v2727, 4294901760
    %v2729 = vsub.f32 %v2727, %v2728
    %v2730 = vand.u32 %v2729, 4294901760
    %2731 = vmatpush.msra.mxu0 %v2730
    %v2732 = vand.u32 %v2672, 4294901760
    %v2733 = vsub.f32 %v2672, %v2732
    %v2734 = vand.u32 %v2733, 4294901760
    %v2735 = vsub.f32 %v2733, %v2734
    %v2736 = vand.u32 %v2735, 4294901760
    %2737 = vmatpush.msra.mxu0 %v2736
    %v2738 = vand.u32 %v2671, 4294901760
    %v2739 = vsub.f32 %v2671, %v2738
    %v2740 = vand.u32 %v2739, 4294901760
    %v2741 = vsub.f32 %v2739, %v2740
    %v2742 = vand.u32 %v2741, 4294901760
    %2743 = vmatpush.msra.mxu0 %v2742
    %v2744 = vand.u32 %v644, 4294901760
    %2745 = vmatmul.f32.gmra.mxu0 %v2744
    %v2746 = vpop.f32.mrf.mxu0
    %v2747 = vadd.f32 %v2706, %v2746
    %2748 = vdwg.mxu0
    %2749 = vmatpush.msra.mxu0 0.0
    %2750 = vmatpush.msra.mxu0 0.0
    %2751 = vmatpush.msra.mxu0 0.0
    %2752 = vmatpush.msra.mxu0 0.0
    %2753 = vmatpush.msra.mxu0 0.0
    %2754 = vmatpush.msra.mxu0 0.0
    %2755 = vmatpush.msra.mxu0 0.0
    %2756 = vmatpush.msra.mxu0 0.0
    %2757 = vmatpush.msra.mxu0 0.0
    %2758 = vmatpush.msra.mxu0 0.0
    %2759 = vmatpush.msra.mxu0 0.0
    %2760 = vmatpush.msra.mxu0 0.0
    %v2761 = vand.u32 %v2674, 4294901760
    %v2762 = vsub.f32 %v2674, %v2761
    %2763 = vmatpush.msra.mxu0 %v2762
    %v2764 = vand.u32 %v2673, 4294901760
    %v2765 = vsub.f32 %v2673, %v2764
    %2766 = vmatpush.msra.mxu0 %v2765
    %v2767 = vand.u32 %v2672, 4294901760
    %v2768 = vsub.f32 %v2672, %v2767
    %2769 = vmatpush.msra.mxu0 %v2768
    %v2770 = vand.u32 %v2671, 4294901760
    %v2771 = vsub.f32 %v2671, %v2770
    %2772 = vmatpush.msra.mxu0 %v2771
    %v2773 = vand.u32 %v644, 4294901760
    %v2774 = vsub.f32 %v644, %v2773
    %2775 = vmatmul.f32.gmra.mxu0 %v2774
    %v2776 = vpop.f32.mrf.mxu0
    %v2777 = vadd.f32 %v2747, %v2776
    %2778 = vdwg.mxu0
    %2779 = vmatpush.msra.mxu0 0.0
    %2780 = vmatpush.msra.mxu0 0.0
    %2781 = vmatpush.msra.mxu0 0.0
    %2782 = vmatpush.msra.mxu0 0.0
    %2783 = vmatpush.msra.mxu0 0.0
    %2784 = vmatpush.msra.mxu0 0.0
    %2785 = vmatpush.msra.mxu0 0.0
    %2786 = vmatpush.msra.mxu0 0.0
    %2787 = vmatpush.msra.mxu0 0.0
    %2788 = vmatpush.msra.mxu0 0.0
    %2789 = vmatpush.msra.mxu0 0.0
    %2790 = vmatpush.msra.mxu0 0.0
    %v2791 = vand.u32 %v2674, 4294901760
    %2792 = vmatpush.msra.mxu0 %v2791
    %v2793 = vand.u32 %v2673, 4294901760
    %2794 = vmatpush.msra.mxu0 %v2793
    %v2795 = vand.u32 %v2672, 4294901760
    %2796 = vmatpush.msra.mxu0 %v2795
    %v2797 = vand.u32 %v2671, 4294901760
    %2798 = vmatpush.msra.mxu0 %v2797
    %v2799 = vand.u32 %v644, 4294901760
    %v2800 = vsub.f32 %v644, %v2799
    %v2801 = vand.u32 %v2800, 4294901760
    %2802 = vmatmul.f32.gmra.mxu0 %v2801
    %v2803 = vpop.f32.mrf.mxu0
    %v2804 = vadd.f32 %v2777, %v2803
    %2805 = vdwg.mxu0
    %2806 = vmatpush.msra.mxu0 0.0
    %2807 = vmatpush.msra.mxu0 0.0
    %2808 = vmatpush.msra.mxu0 0.0
    %2809 = vmatpush.msra.mxu0 0.0
    %2810 = vmatpush.msra.mxu0 0.0
    %2811 = vmatpush.msra.mxu0 0.0
    %2812 = vmatpush.msra.mxu0 0.0
    %2813 = vmatpush.msra.mxu0 0.0
    %2814 = vmatpush.msra.mxu0 0.0
    %2815 = vmatpush.msra.mxu0 0.0
    %2816 = vmatpush.msra.mxu0 0.0
    %2817 = vmatpush.msra.mxu0 0.0
    %v2818 = vand.u32 %v2674, 4294901760
    %v2819 = vsub.f32 %v2674, %v2818
    %v2820 = vand.u32 %v2819, 4294901760
    %2821 = vmatpush.msra.mxu0 %v2820
    %v2822 = vand.u32 %v2673, 4294901760
    %v2823 = vsub.f32 %v2673, %v2822
    %v2824 = vand.u32 %v2823, 4294901760
    %2825 = vmatpush.msra.mxu0 %v2824
    %v2826 = vand.u32 %v2672, 4294901760
    %v2827 = vsub.f32 %v2672, %v2826
    %v2828 = vand.u32 %v2827, 4294901760
    %2829 = vmatpush.msra.mxu0 %v2828
    %v2830 = vand.u32 %v2671, 4294901760
    %v2831 = vsub.f32 %v2671, %v2830
    %v2832 = vand.u32 %v2831, 4294901760
    %2833 = vmatpush.msra.mxu0 %v2832
    %v2834 = vand.u32 %v644, 4294901760
    %2835 = vmatmul.f32.gmra.mxu0 %v2834
    %v2836 = vpop.f32.mrf.mxu0
    %v2837 = vadd.f32 %v2804, %v2836
    %2838 = vdwg.mxu0
    %2839 = vmatpush.msra.mxu0 0.0
    %2840 = vmatpush.msra.mxu0 0.0
    %2841 = vmatpush.msra.mxu0 0.0
    %2842 = vmatpush.msra.mxu0 0.0
    %2843 = vmatpush.msra.mxu0 0.0
    %2844 = vmatpush.msra.mxu0 0.0
    %2845 = vmatpush.msra.mxu0 0.0
    %2846 = vmatpush.msra.mxu0 0.0
    %2847 = vmatpush.msra.mxu0 0.0
    %2848 = vmatpush.msra.mxu0 0.0
    %2849 = vmatpush.msra.mxu0 0.0
    %2850 = vmatpush.msra.mxu0 0.0
    %v2851 = vand.u32 %v2674, 4294901760
    %2852 = vmatpush.msra.mxu0 %v2851
    %v2853 = vand.u32 %v2673, 4294901760
    %2854 = vmatpush.msra.mxu0 %v2853
    %v2855 = vand.u32 %v2672, 4294901760
    %2856 = vmatpush.msra.mxu0 %v2855
    %v2857 = vand.u32 %v2671, 4294901760
    %2858 = vmatpush.msra.mxu0 %v2857
    %v2859 = vand.u32 %v644, 4294901760
    %2860 = vmatmul.f32.gmra.mxu0 %v2859
    %v2861 = vpop.f32.mrf.mxu0
    %v2862 = vadd.f32 %v2837, %v2861
    %2863 = vdwg.mxu0
    %v2864 = vadd.f32 %v2669, %v2862
    %v2865 = vxor.u32 %v2864, 2147483648
    %v2866 = vmul.f32 %v2865, 1.442695
    %v2867 = vpow.pop %v2866
    %v2868 = vadd.f32 %v2867, 1.0
    %v2869 = vrcp.pop %v2868
    %v2870 = vmul.f32 %v2868, %v2869
    %v2871 = vsub.f32 1.0, %v2870
    %v2872 = vmul.f32 %v2869, %v2871
    %v2873 = vadd.f32 %v2869, %v2872
    %vm2874 = vweird.f32 %v2868
    %vm2875 = vweird.f32 %v2869
    %vm2876 = vmor %vm2874, %vm2875
    %v2877 = vsel %vm2876, %v2869, %v2873
    %v2878 = vand.u32 2147483647, %v2868
    %vm2879 = vcmp.eq.f32.partialorder %v2878, 8.507059e+37
    %v2880 = vand.u32 %v2868, 2147483648
    %v2881 = vor.u32 1.1754944e-38, %v2880
    %v2882 = vsel %vm2879, %v2881, %v2877
    %v2883 = vmul.f32 1.0, %v2882
    %2885 = vrot.lane.b32.xlu0 %v2862, 64
    %v2886 = vpop.permute.xlu0 %2885
    %v2888 = vmul.f32 %v2883, %v2886
    %2890 = vrot.lane.b32.xlu0 %v2888, 64
    %v2891 = vpop.permute.xlu0 %2890
    %v2893 = vadd.f32 %v2669, %v2891
    %v2894 = vtanh.pop %v2893
    %v2895 = vsub.f32 1.0, %v2883
    %2897 = vrot.lane.b32.xlu0 %v2894, 96
    %v2898 = vpop.permute.xlu0 %2897
    %v2900 = vmul.f32 %v2895, %v2898
    %v2901 = vmul.f32 %v2883, 0.0
    %v2902 = vadd.f32 %v2900, %v2901
    %2904 = vrot.lane.b32.xlu0 %v2902, 96
    %v2905 = vpop.permute.xlu0 %2904
    %v2906 = vsel %vm642, %v2905, 0
    %2908 = vmatpush.msra.mxu0 0.0
    %2909 = vmatpush.msra.mxu0 0.0
    %2910 = vmatpush.msra.mxu0 0.0
    %2911 = vmatpush.msra.mxu0 0.0
    %2912 = vmatpush.msra.mxu0 0.0
    %2913 = vmatpush.msra.mxu0 0.0
    %2914 = vmatpush.msra.mxu0 0.0
    %2915 = vmatpush.msra.mxu0 0.0
    %2916 = vmatpush.msra.mxu0 0.0
    %2917 = vmatpush.msra.mxu0 0.0
    %2918 = vmatpush.msra.mxu0 0.0
    %2919 = vmatpush.msra.mxu0 0.0
    %v2920 = vand.u32 %v2674, 4294901760
    %2921 = vmatpush.msra.mxu0 %v2920
    %v2922 = vand.u32 %v2673, 4294901760
    %2923 = vmatpush.msra.mxu0 %v2922
    %v2924 = vand.u32 %v2672, 4294901760
    %2925 = vmatpush.msra.mxu0 %v2924
    %v2926 = vand.u32 %v2671, 4294901760
    %2927 = vmatpush.msra.mxu0 %v2926
    %v2928 = vand.u32 %v2906, 4294901760
    %v2929 = vsub.f32 %v2906, %v2928
    %v2930 = vand.u32 %v2929, 4294901760
    %v2931 = vsub.f32 %v2929, %v2930
    %v2932 = vand.u32 %v2931, 4294901760
    %2933 = vmatmul.f32.gmra.mxu0 %v2932
    %v2934 = vpop.f32.mrf.mxu0
    %v2935 = vadd.f32 %v2677, %v2934
    %2936 = vdwg.mxu0
    %2937 = vmatpush.msra.mxu0 0.0
    %2938 = vmatpush.msra.mxu0 0.0
    %2939 = vmatpush.msra.mxu0 0.0
    %2940 = vmatpush.msra.mxu0 0.0
    %2941 = vmatpush.msra.mxu0 0.0
    %2942 = vmatpush.msra.mxu0 0.0
    %2943 = vmatpush.msra.mxu0 0.0
    %2944 = vmatpush.msra.mxu0 0.0
    %2945 = vmatpush.msra.mxu0 0.0
    %2946 = vmatpush.msra.mxu0 0.0
    %2947 = vmatpush.msra.mxu0 0.0
    %2948 = vmatpush.msra.mxu0 0.0
    %v2949 = vand.u32 %v2674, 4294901760
    %v2950 = vsub.f32 %v2674, %v2949
    %v2951 = vand.u32 %v2950, 4294901760
    %v2952 = vsub.f32 %v2950, %v2951
    %v2953 = vand.u32 %v2952, 4294901760
    %2954 = vmatpush.msra.mxu0 %v2953
    %v2955 = vand.u32 %v2673, 4294901760
    %v2956 = vsub.f32 %v2673, %v2955
    %v2957 = vand.u32 %v2956, 4294901760
    %v2958 = vsub.f32 %v2956, %v2957
    %v2959 = vand.u32 %v2958, 4294901760
    %2960 = vmatpush.msra.mxu0 %v2959
    %v2961 = vand.u32 %v2672, 4294901760
    %v2962 = vsub.f32 %v2672, %v2961
    %v2963 = vand.u32 %v2962, 4294901760
    %v2964 = vsub.f32 %v2962, %v2963
    %v2965 = vand.u32 %v2964, 4294901760
    %2966 = vmatpush.msra.mxu0 %v2965
    %v2967 = vand.u32 %v2671, 4294901760
    %v2968 = vsub.f32 %v2671, %v2967
    %v2969 = vand.u32 %v2968, 4294901760
    %v2970 = vsub.f32 %v2968, %v2969
    %v2971 = vand.u32 %v2970, 4294901760
    %2972 = vmatpush.msra.mxu0 %v2971
    %v2973 = vand.u32 %v2906, 4294901760
    %2974 = vmatmul.f32.gmra.mxu0 %v2973
    %v2975 = vpop.f32.mrf.mxu0
    %v2976 = vadd.f32 %v2935, %v2975
    %2977 = vdwg.mxu0
    %2978 = vmatpush.msra.mxu0 0.0
    %2979 = vmatpush.msra.mxu0 0.0
    %2980 = vmatpush.msra.mxu0 0.0
    %2981 = vmatpush.msra.mxu0 0.0
    %2982 = vmatpush.msra.mxu0 0.0
    %2983 = vmatpush.msra.mxu0 0.0
    %2984 = vmatpush.msra.mxu0 0.0
    %2985 = vmatpush.msra.mxu0 0.0
    %2986 = vmatpush.msra.mxu0 0.0
    %2987 = vmatpush.msra.mxu0 0.0
    %2988 = vmatpush.msra.mxu0 0.0
    %2989 = vmatpush.msra.mxu0 0.0
    %v2990 = vand.u32 %v2674, 4294901760
    %v2991 = vsub.f32 %v2674, %v2990
    %2992 = vmatpush.msra.mxu0 %v2991
    %v2993 = vand.u32 %v2673, 4294901760
    %v2994 = vsub.f32 %v2673, %v2993
    %2995 = vmatpush.msra.mxu0 %v2994
    %v2996 = vand.u32 %v2672, 4294901760
    %v2997 = vsub.f32 %v2672, %v2996
    %2998 = vmatpush.msra.mxu0 %v2997
    %v2999 = vand.u32 %v2671, 4294901760
    %v3000 = vsub.f32 %v2671, %v2999
    %3001 = vmatpush.msra.mxu0 %v3000
    %v3002 = vand.u32 %v2906, 4294901760
    %v3003 = vsub.f32 %v2906, %v3002
    %3004 = vmatmul.f32.gmra.mxu0 %v3003
    %v3005 = vpop.f32.mrf.mxu0
    %v3006 = vadd.f32 %v2976, %v3005
    %3007 = vdwg.mxu0
    %3008 = vmatpush.msra.mxu0 0.0
    %3009 = vmatpush.msra.mxu0 0.0
    %3010 = vmatpush.msra.mxu0 0.0
    %3011 = vmatpush.msra.mxu0 0.0
    %3012 = vmatpush.msra.mxu0 0.0
    %3013 = vmatpush.msra.mxu0 0.0
    %3014 = vmatpush.msra.mxu0 0.0
    %3015 = vmatpush.msra.mxu0 0.0
    %3016 = vmatpush.msra.mxu0 0.0
    %3017 = vmatpush.msra.mxu0 0.0
    %3018 = vmatpush.msra.mxu0 0.0
    %3019 = vmatpush.msra.mxu0 0.0
    %v3020 = vand.u32 %v2674, 4294901760
    %3021 = vmatpush.msra.mxu0 %v3020
    %v3022 = vand.u32 %v2673, 4294901760
    %3023 = vmatpush.msra.mxu0 %v3022
    %v3024 = vand.u32 %v2672, 4294901760
    %3025 = vmatpush.msra.mxu0 %v3024
    %v3026 = vand.u32 %v2671, 4294901760
    %3027 = vmatpush.msra.mxu0 %v3026
    %v3028 = vand.u32 %v2906, 4294901760
    %v3029 = vsub.f32 %v2906, %v3028
    %v3030 = vand.u32 %v3029, 4294901760
    %3031 = vmatmul.f32.gmra.mxu0 %v3030
    %v3032 = vpop.f32.mrf.mxu0
    %v3033 = vadd.f32 %v3006, %v3032
    %3034 = vdwg.mxu0
    %3035 = vmatpush.msra.mxu0 0.0
    %3036 = vmatpush.msra.mxu0 0.0
    %3037 = vmatpush.msra.mxu0 0.0
    %3038 = vmatpush.msra.mxu0 0.0
    %3039 = vmatpush.msra.mxu0 0.0
    %3040 = vmatpush.msra.mxu0 0.0
    %3041 = vmatpush.msra.mxu0 0.0
    %3042 = vmatpush.msra.mxu0 0.0
    %3043 = vmatpush.msra.mxu0 0.0
    %3044 = vmatpush.msra.mxu0 0.0
    %3045 = vmatpush.msra.mxu0 0.0
    %3046 = vmatpush.msra.mxu0 0.0
    %v3047 = vand.u32 %v2674, 4294901760
    %v3048 = vsub.f32 %v2674, %v3047
    %v3049 = vand.u32 %v3048, 4294901760
    %3050 = vmatpush.msra.mxu0 %v3049
    %v3051 = vand.u32 %v2673, 4294901760
    %v3052 = vsub.f32 %v2673, %v3051
    %v3053 = vand.u32 %v3052, 4294901760
    %3054 = vmatpush.msra.mxu0 %v3053
    %v3055 = vand.u32 %v2672, 4294901760
    %v3056 = vsub.f32 %v2672, %v3055
    %v3057 = vand.u32 %v3056, 4294901760
    %3058 = vmatpush.msra.mxu0 %v3057
    %v3059 = vand.u32 %v2671, 4294901760
    %v3060 = vsub.f32 %v2671, %v3059
    %v3061 = vand.u32 %v3060, 4294901760
    %3062 = vmatpush.msra.mxu0 %v3061
    %v3063 = vand.u32 %v2906, 4294901760
    %3064 = vmatmul.f32.gmra.mxu0 %v3063
    %v3065 = vpop.f32.mrf.mxu0
    %v3066 = vadd.f32 %v3033, %v3065
    %3067 = vdwg.mxu0
    %3068 = vmatpush.msra.mxu0 0.0
    %3069 = vmatpush.msra.mxu0 0.0
    %3070 = vmatpush.msra.mxu0 0.0
    %3071 = vmatpush.msra.mxu0 0.0
    %3072 = vmatpush.msra.mxu0 0.0
    %3073 = vmatpush.msra.mxu0 0.0
    %3074 = vmatpush.msra.mxu0 0.0
    %3075 = vmatpush.msra.mxu0 0.0
    %3076 = vmatpush.msra.mxu0 0.0
    %3077 = vmatpush.msra.mxu0 0.0
    %3078 = vmatpush.msra.mxu0 0.0
    %3079 = vmatpush.msra.mxu0 0.0
    %v3080 = vand.u32 %v2674, 4294901760
    %3081 = vmatpush.msra.mxu0 %v3080
    %v3082 = vand.u32 %v2673, 4294901760
    %3083 = vmatpush.msra.mxu0 %v3082
    %v3084 = vand.u32 %v2672, 4294901760
    %3085 = vmatpush.msra.mxu0 %v3084
    %v3086 = vand.u32 %v2671, 4294901760
    %3087 = vmatpush.msra.mxu0 %v3086
    %v3088 = vand.u32 %v2906, 4294901760
    %3089 = vmatmul.f32.gmra.mxu0 %v3088
    %v3090 = vpop.f32.mrf.mxu0
    %v3091 = vadd.f32 %v3066, %v3090
    %3092 = vdwg.mxu0
    %v3093 = vadd.f32 %v2669, %v3091
    %v3094 = vxor.u32 %v3093, 2147483648
    %v3095 = vmul.f32 %v3094, 1.442695
    %v3096 = vpow.pop %v3095
    %v3097 = vadd.f32 %v3096, 1.0
    %v3098 = vrcp.pop %v3097
    %v3099 = vmul.f32 %v3097, %v3098
    %v3100 = vsub.f32 1.0, %v3099
    %v3101 = vmul.f32 %v3098, %v3100
    %v3102 = vadd.f32 %v3098, %v3101
    %vm3103 = vweird.f32 %v3097
    %vm3104 = vweird.f32 %v3098
    %vm3105 = vmor %vm3103, %vm3104
    %v3106 = vsel %vm3105, %v3098, %v3102
    %v3107 = vand.u32 2147483647, %v3097
    %vm3108 = vcmp.eq.f32.partialorder %v3107, 8.507059e+37
    %v3109 = vand.u32 %v3097, 2147483648
    %v3110 = vor.u32 1.1754944e-38, %v3109
    %v3111 = vsel %vm3108, %v3110, %v3106
    %v3112 = vmul.f32 1.0, %v3111
    %3114 = vrot.lane.b32.xlu0 %v3091, 64
    %v3115 = vpop.permute.xlu0 %3114
    %v3117 = vmul.f32 %v3112, %v3115
    %3119 = vrot.lane.b32.xlu0 %v3117, 64
    %v3120 = vpop.permute.xlu0 %3119
    %v3122 = vadd.f32 %v2669, %v3120
    %v3123 = vtanh.pop %v3122
    %v3124 = vsub.f32 1.0, %v3112
    %3126 = vrot.lane.b32.xlu0 %v3123, 96
    %v3127 = vpop.permute.xlu0 %3126
    %v3129 = vmul.f32 %v3124, %v3127
    %v3130 = vmul.f32 %v3112, %v2902
    %v3131 = vadd.f32 %v3129, %v3130
    %3133 = vrot.lane.b32.xlu0 %v3131, 96
    %v3134 = vpop.permute.xlu0 %3133
    %v3135 = vsel %vm642, %v3134, 0
    %3137 = vmatpush.msra.mxu0 0.0
    %3138 = vmatpush.msra.mxu0 0.0
    %3139 = vmatpush.msra.mxu0 0.0
    %3140 = vmatpush.msra.mxu0 0.0
    %3141 = vmatpush.msra.mxu0 0.0
    %3142 = vmatpush.msra.mxu0 0.0
    %3143 = vmatpush.msra.mxu0 0.0
    %3144 = vmatpush.msra.mxu0 0.0
    %3145 = vmatpush.msra.mxu0 0.0
    %3146 = vmatpush.msra.mxu0 0.0
    %3147 = vmatpush.msra.mxu0 0.0
    %3148 = vmatpush.msra.mxu0 0.0
    %v3149 = vand.u32 %v2674, 4294901760
    %3150 = vmatpush.msra.mxu0 %v3149
    %v3151 = vand.u32 %v2673, 4294901760
    %3152 = vmatpush.msra.mxu0 %v3151
    %v3153 = vand.u32 %v2672, 4294901760
    %3154 = vmatpush.msra.mxu0 %v3153
    %v3155 = vand.u32 %v2671, 4294901760
    %3156 = vmatpush.msra.mxu0 %v3155
    %v3157 = vand.u32 %v3135, 4294901760
    %v3158 = vsub.f32 %v3135, %v3157
    %v3159 = vand.u32 %v3158, 4294901760
    %v3160 = vsub.f32 %v3158, %v3159
    %v3161 = vand.u32 %v3160, 4294901760
    %3162 = vmatmul.f32.gmra.mxu0 %v3161
    %v3163 = vpop.f32.mrf.mxu0
    %v3164 = vadd.f32 %v2677, %v3163
    %3165 = vdwg.mxu0
    %3166 = vmatpush.msra.mxu0 0.0
    %3167 = vmatpush.msra.mxu0 0.0
    %3168 = vmatpush.msra.mxu0 0.0
    %3169 = vmatpush.msra.mxu0 0.0
    %3170 = vmatpush.msra.mxu0 0.0
    %3171 = vmatpush.msra.mxu0 0.0
    %3172 = vmatpush.msra.mxu0 0.0
    %3173 = vmatpush.msra.mxu0 0.0
    %3174 = vmatpush.msra.mxu0 0.0
    %3175 = vmatpush.msra.mxu0 0.0
    %3176 = vmatpush.msra.mxu0 0.0
    %3177 = vmatpush.msra.mxu0 0.0
    %v3178 = vand.u32 %v2674, 4294901760
    %v3179 = vsub.f32 %v2674, %v3178
    %v3180 = vand.u32 %v3179, 4294901760
    %v3181 = vsub.f32 %v3179, %v3180
    %v3182 = vand.u32 %v3181, 4294901760
    %3183 = vmatpush.msra.mxu0 %v3182
    %v3184 = vand.u32 %v2673, 4294901760
    %v3185 = vsub.f32 %v2673, %v3184
    %v3186 = vand.u32 %v3185, 4294901760
    %v3187 = vsub.f32 %v3185, %v3186
    %v3188 = vand.u32 %v3187, 4294901760
    %3189 = vmatpush.msra.mxu0 %v3188
    %v3190 = vand.u32 %v2672, 4294901760
    %v3191 = vsub.f32 %v2672, %v3190
    %v3192 = vand.u32 %v3191, 4294901760
    %v3193 = vsub.f32 %v3191, %v3192
    %v3194 = vand.u32 %v3193, 4294901760
    %3195 = vmatpush.msra.mxu0 %v3194
    %v3196 = vand.u32 %v2671, 4294901760
    %v3197 = vsub.f32 %v2671, %v3196
    %v3198 = vand.u32 %v3197, 4294901760
    %v3199 = vsub.f32 %v3197, %v3198
    %v3200 = vand.u32 %v3199, 4294901760
    %3201 = vmatpush.msra.mxu0 %v3200
    %v3202 = vand.u32 %v3135, 4294901760
    %3203 = vmatmul.f32.gmra.mxu0 %v3202
    %v3204 = vpop.f32.mrf.mxu0
    %v3205 = vadd.f32 %v3164, %v3204
    %3206 = vdwg.mxu0
    %3207 = vmatpush.msra.mxu0 0.0
    %3208 = vmatpush.msra.mxu0 0.0
    %3209 = vmatpush.msra.mxu0 0.0
    %3210 = vmatpush.msra.mxu0 0.0
    %3211 = vmatpush.msra.mxu0 0.0
    %3212 = vmatpush.msra.mxu0 0.0
    %3213 = vmatpush.msra.mxu0 0.0
    %3214 = vmatpush.msra.mxu0 0.0
    %3215 = vmatpush.msra.mxu0 0.0
    %3216 = vmatpush.msra.mxu0 0.0
    %3217 = vmatpush.msra.mxu0 0.0
    %3218 = vmatpush.msra.mxu0 0.0
    %v3219 = vand.u32 %v2674, 4294901760
    %v3220 = vsub.f32 %v2674, %v3219
    %3221 = vmatpush.msra.mxu0 %v3220
    %v3222 = vand.u32 %v2673, 4294901760
    %v3223 = vsub.f32 %v2673, %v3222
    %3224 = vmatpush.msra.mxu0 %v3223
    %v3225 = vand.u32 %v2672, 4294901760
    %v3226 = vsub.f32 %v2672, %v3225
    %3227 = vmatpush.msra.mxu0 %v3226
    %v3228 = vand.u32 %v2671, 4294901760
    %v3229 = vsub.f32 %v2671, %v3228
    %3230 = vmatpush.msra.mxu0 %v3229
    %v3231 = vand.u32 %v3135, 4294901760
    %v3232 = vsub.f32 %v3135, %v3231
    %3233 = vmatmul.f32.gmra.mxu0 %v3232
    %v3234 = vpop.f32.mrf.mxu0
    %v3235 = vadd.f32 %v3205, %v3234
    %3236 = vdwg.mxu0
    %3237 = vmatpush.msra.mxu0 0.0
    %3238 = vmatpush.msra.mxu0 0.0
    %3239 = vmatpush.msra.mxu0 0.0
    %3240 = vmatpush.msra.mxu0 0.0
    %3241 = vmatpush.msra.mxu0 0.0
    %3242 = vmatpush.msra.mxu0 0.0
    %3243 = vmatpush.msra.mxu0 0.0
    %3244 = vmatpush.msra.mxu0 0.0
    %3245 = vmatpush.msra.mxu0 0.0
    %3246 = vmatpush.msra.mxu0 0.0
    %3247 = vmatpush.msra.mxu0 0.0
    %3248 = vmatpush.msra.mxu0 0.0
    %v3249 = vand.u32 %v2674, 4294901760
    %3250 = vmatpush.msra.mxu0 %v3249
    %v3251 = vand.u32 %v2673, 4294901760
    %3252 = vmatpush.msra.mxu0 %v3251
    %v3253 = vand.u32 %v2672, 4294901760
    %3254 = vmatpush.msra.mxu0 %v3253
    %v3255 = vand.u32 %v2671, 4294901760
    %3256 = vmatpush.msra.mxu0 %v3255
    %v3257 = vand.u32 %v3135, 4294901760
    %v3258 = vsub.f32 %v3135, %v3257
    %v3259 = vand.u32 %v3258, 4294901760
    %3260 = vmatmul.f32.gmra.mxu0 %v3259
    %v3261 = vpop.f32.mrf.mxu0
    %v3262 = vadd.f32 %v3235, %v3261
    %3263 = vdwg.mxu0
    %3264 = vmatpush.msra.mxu0 0.0
    %3265 = vmatpush.msra.mxu0 0.0
    %3266 = vmatpush.msra.mxu0 0.0
    %3267 = vmatpush.msra.mxu0 0.0
    %3268 = vmatpush.msra.mxu0 0.0
    %3269 = vmatpush.msra.mxu0 0.0
    %3270 = vmatpush.msra.mxu0 0.0
    %3271 = vmatpush.msra.mxu0 0.0
    %3272 = vmatpush.msra.mxu0 0.0
    %3273 = vmatpush.msra.mxu0 0.0
    %3274 = vmatpush.msra.mxu0 0.0
    %3275 = vmatpush.msra.mxu0 0.0
    %v3276 = vand.u32 %v2674, 4294901760
    %v3277 = vsub.f32 %v2674, %v3276
    %v3278 = vand.u32 %v3277, 4294901760
    %3279 = vmatpush.msra.mxu0 %v3278
    %v3280 = vand.u32 %v2673, 4294901760
    %v3281 = vsub.f32 %v2673, %v3280
    %v3282 = vand.u32 %v3281, 4294901760
    %3283 = vmatpush.msra.mxu0 %v3282
    %v3284 = vand.u32 %v2672, 4294901760
    %v3285 = vsub.f32 %v2672, %v3284
    %v3286 = vand.u32 %v3285, 4294901760
    %3287 = vmatpush.msra.mxu0 %v3286
    %v3288 = vand.u32 %v2671, 4294901760
    %v3289 = vsub.f32 %v2671, %v3288
    %v3290 = vand.u32 %v3289, 4294901760
    %3291 = vmatpush.msra.mxu0 %v3290
    %v3292 = vand.u32 %v3135, 4294901760
    %3293 = vmatmul.f32.gmra.mxu0 %v3292
    %v3294 = vpop.f32.mrf.mxu0
    %v3295 = vadd.f32 %v3262, %v3294
    %3296 = vdwg.mxu0
    %3297 = vmatpush.msra.mxu0 0.0
    %3298 = vmatpush.msra.mxu0 0.0
    %3299 = vmatpush.msra.mxu0 0.0
    %3300 = vmatpush.msra.mxu0 0.0
    %3301 = vmatpush.msra.mxu0 0.0
    %3302 = vmatpush.msra.mxu0 0.0
    %3303 = vmatpush.msra.mxu0 0.0
    %3304 = vmatpush.msra.mxu0 0.0
    %3305 = vmatpush.msra.mxu0 0.0
    %3306 = vmatpush.msra.mxu0 0.0
    %3307 = vmatpush.msra.mxu0 0.0
    %3308 = vmatpush.msra.mxu0 0.0
    %v3309 = vand.u32 %v2674, 4294901760
    %3310 = vmatpush.msra.mxu0 %v3309
    %v3311 = vand.u32 %v2673, 4294901760
    %3312 = vmatpush.msra.mxu0 %v3311
    %v3313 = vand.u32 %v2672, 4294901760
    %3314 = vmatpush.msra.mxu0 %v3313
    %v3315 = vand.u32 %v2671, 4294901760
    %3316 = vmatpush.msra.mxu0 %v3315
    %v3317 = vand.u32 %v3135, 4294901760
    %3318 = vmatmul.f32.gmra.mxu0 %v3317
    %v3319 = vpop.f32.mrf.mxu0
    %v3320 = vadd.f32 %v3295, %v3319
    %3321 = vdwg.mxu0
    %v3322 = vadd.f32 %v2669, %v3320
    %v3323 = vxor.u32 %v3322, 2147483648
    %v3324 = vmul.f32 %v3323, 1.442695
    %v3325 = vpow.pop %v3324
    %v3326 = vadd.f32 %v3325, 1.0
    %v3327 = vrcp.pop %v3326
    %v3328 = vmul.f32 %v3326, %v3327
    %v3329 = vsub.f32 1.0, %v3328
    %v3330 = vmul.f32 %v3327, %v3329
    %v3331 = vadd.f32 %v3327, %v3330
    %vm3332 = vweird.f32 %v3326
    %vm3333 = vweird.f32 %v3327
    %vm3334 = vmor %vm3332, %vm3333
    %v3335 = vsel %vm3334, %v3327, %v3331
    %v3336 = vand.u32 2147483647, %v3326
    %vm3337 = vcmp.eq.f32.partialorder %v3336, 8.507059e+37
    %v3338 = vand.u32 %v3326, 2147483648
    %v3339 = vor.u32 1.1754944e-38, %v3338
    %v3340 = vsel %vm3337, %v3339, %v3335
    %v3341 = vmul.f32 1.0, %v3340
    %3343 = vrot.lane.b32.xlu0 %v3320, 64
    %v3344 = vpop.permute.xlu0 %3343
    %v3346 = vmul.f32 %v3341, %v3344
    %3348 = vrot.lane.b32.xlu0 %v3346, 64
    %v3349 = vpop.permute.xlu0 %3348
    %v3351 = vadd.f32 %v2669, %v3349
    %v3352 = vtanh.pop %v3351
    %v3353 = vsub.f32 1.0, %v3341
    %3355 = vrot.lane.b32.xlu0 %v3352, 96
    %v3356 = vpop.permute.xlu0 %3355
    %v3358 = vmul.f32 %v3353, %v3356
    %v3359 = vmul.f32 %v3341, %v3131
    %v3360 = vadd.f32 %v3358, %v3359
    %3362 = vrot.lane.b32.xlu0 %v3360, 96
    %v3363 = vpop.permute.xlu0 %3362
    %v3364 = vsel %vm642, %v3363, 0
    %3366 = vmatpush.msra.mxu0 0.0
    %3367 = vmatpush.msra.mxu0 0.0
    %3368 = vmatpush.msra.mxu0 0.0
    %3369 = vmatpush.msra.mxu0 0.0
    %3370 = vmatpush.msra.mxu0 0.0
    %3371 = vmatpush.msra.mxu0 0.0
    %3372 = vmatpush.msra.mxu0 0.0
    %3373 = vmatpush.msra.mxu0 0.0
    %3374 = vmatpush.msra.mxu0 0.0
    %3375 = vmatpush.msra.mxu0 0.0
    %3376 = vmatpush.msra.mxu0 0.0
    %3377 = vmatpush.msra.mxu0 0.0
    %v3378 = vand.u32 %v2674, 4294901760
    %3379 = vmatpush.msra.mxu0 %v3378
    %v3380 = vand.u32 %v2673, 4294901760
    %3381 = vmatpush.msra.mxu0 %v3380
    %v3382 = vand.u32 %v2672, 4294901760
    %3383 = vmatpush.msra.mxu0 %v3382
    %v3384 = vand.u32 %v2671, 4294901760
    %3385 = vmatpush.msra.mxu0 %v3384
    %v3386 = vand.u32 %v3364, 4294901760
    %v3387 = vsub.f32 %v3364, %v3386
    %v3388 = vand.u32 %v3387, 4294901760
    %v3389 = vsub.f32 %v3387, %v3388
    %v3390 = vand.u32 %v3389, 4294901760
    %3391 = vmatmul.f32.gmra.mxu0 %v3390
    %v3392 = vpop.f32.mrf.mxu0
    %v3393 = vadd.f32 %v2677, %v3392
    %3394 = vdwg.mxu0
    %3395 = vmatpush.msra.mxu0 0.0
    %3396 = vmatpush.msra.mxu0 0.0
    %3397 = vmatpush.msra.mxu0 0.0
    %3398 = vmatpush.msra.mxu0 0.0
    %3399 = vmatpush.msra.mxu0 0.0
    %3400 = vmatpush.msra.mxu0 0.0
    %3401 = vmatpush.msra.mxu0 0.0
    %3402 = vmatpush.msra.mxu0 0.0
    %3403 = vmatpush.msra.mxu0 0.0
    %3404 = vmatpush.msra.mxu0 0.0
    %3405 = vmatpush.msra.mxu0 0.0
    %3406 = vmatpush.msra.mxu0 0.0
    %v3407 = vand.u32 %v2674, 4294901760
    %v3408 = vsub.f32 %v2674, %v3407
    %v3409 = vand.u32 %v3408, 4294901760
    %v3410 = vsub.f32 %v3408, %v3409
    %v3411 = vand.u32 %v3410, 4294901760
    %3412 = vmatpush.msra.mxu0 %v3411
    %v3413 = vand.u32 %v2673, 4294901760
    %v3414 = vsub.f32 %v2673, %v3413
    %v3415 = vand.u32 %v3414, 4294901760
    %v3416 = vsub.f32 %v3414, %v3415
    %v3417 = vand.u32 %v3416, 4294901760
    %3418 = vmatpush.msra.mxu0 %v3417
    %v3419 = vand.u32 %v2672, 4294901760
    %v3420 = vsub.f32 %v2672, %v3419
    %v3421 = vand.u32 %v3420, 4294901760
    %v3422 = vsub.f32 %v3420, %v3421
    %v3423 = vand.u32 %v3422, 4294901760
    %3424 = vmatpush.msra.mxu0 %v3423
    %v3425 = vand.u32 %v2671, 4294901760
    %v3426 = vsub.f32 %v2671, %v3425
    %v3427 = vand.u32 %v3426, 4294901760
    %v3428 = vsub.f32 %v3426, %v3427
    %v3429 = vand.u32 %v3428, 4294901760
    %3430 = vmatpush.msra.mxu0 %v3429
    %v3431 = vand.u32 %v3364, 4294901760
    %3432 = vmatmul.f32.gmra.mxu0 %v3431
    %v3433 = vpop.f32.mrf.mxu0
    %v3434 = vadd.f32 %v3393, %v3433
    %3435 = vdwg.mxu0
    %3436 = vmatpush.msra.mxu0 0.0
    %3437 = vmatpush.msra.mxu0 0.0
    %3438 = vmatpush.msra.mxu0 0.0
    %3439 = vmatpush.msra.mxu0 0.0
    %3440 = vmatpush.msra.mxu0 0.0
    %3441 = vmatpush.msra.mxu0 0.0
    %3442 = vmatpush.msra.mxu0 0.0
    %3443 = vmatpush.msra.mxu0 0.0
    %3444 = vmatpush.msra.mxu0 0.0
    %3445 = vmatpush.msra.mxu0 0.0
    %3446 = vmatpush.msra.mxu0 0.0
    %3447 = vmatpush.msra.mxu0 0.0
    %v3448 = vand.u32 %v2674, 4294901760
    %v3449 = vsub.f32 %v2674, %v3448
    %3450 = vmatpush.msra.mxu0 %v3449
    %v3451 = vand.u32 %v2673, 4294901760
    %v3452 = vsub.f32 %v2673, %v3451
    %3453 = vmatpush.msra.mxu0 %v3452
    %v3454 = vand.u32 %v2672, 4294901760
    %v3455 = vsub.f32 %v2672, %v3454
    %3456 = vmatpush.msra.mxu0 %v3455
    %v3457 = vand.u32 %v2671, 4294901760
    %v3458 = vsub.f32 %v2671, %v3457
    %3459 = vmatpush.msra.mxu0 %v3458
    %v3460 = vand.u32 %v3364, 4294901760
    %v3461 = vsub.f32 %v3364, %v3460
    %3462 = vmatmul.f32.gmra.mxu0 %v3461
    %v3463 = vpop.f32.mrf.mxu0
    %v3464 = vadd.f32 %v3434, %v3463
    %3465 = vdwg.mxu0
    %3466 = vmatpush.msra.mxu0 0.0
    %3467 = vmatpush.msra.mxu0 0.0
    %3468 = vmatpush.msra.mxu0 0.0
    %3469 = vmatpush.msra.mxu0 0.0
    %3470 = vmatpush.msra.mxu0 0.0
    %3471 = vmatpush.msra.mxu0 0.0
    %3472 = vmatpush.msra.mxu0 0.0
    %3473 = vmatpush.msra.mxu0 0.0
    %3474 = vmatpush.msra.mxu0 0.0
    %3475 = vmatpush.msra.mxu0 0.0
    %3476 = vmatpush.msra.mxu0 0.0
    %3477 = vmatpush.msra.mxu0 0.0
    %v3478 = vand.u32 %v2674, 4294901760
    %3479 = vmatpush.msra.mxu0 %v3478
    %v3480 = vand.u32 %v2673, 4294901760
    %3481 = vmatpush.msra.mxu0 %v3480
    %v3482 = vand.u32 %v2672, 4294901760
    %3483 = vmatpush.msra.mxu0 %v3482
    %v3484 = vand.u32 %v2671, 4294901760
    %3485 = vmatpush.msra.mxu0 %v3484
    %v3486 = vand.u32 %v3364, 4294901760
    %v3487 = vsub.f32 %v3364, %v3486
    %v3488 = vand.u32 %v3487, 4294901760
    %3489 = vmatmul.f32.gmra.mxu0 %v3488
    %v3490 = vpop.f32.mrf.mxu0
    %v3491 = vadd.f32 %v3464, %v3490
    %3492 = vdwg.mxu0
    %3493 = vmatpush.msra.mxu0 0.0
    %3494 = vmatpush.msra.mxu0 0.0
    %3495 = vmatpush.msra.mxu0 0.0
    %3496 = vmatpush.msra.mxu0 0.0
    %3497 = vmatpush.msra.mxu0 0.0
    %3498 = vmatpush.msra.mxu0 0.0
    %3499 = vmatpush.msra.mxu0 0.0
    %3500 = vmatpush.msra.mxu0 0.0
    %3501 = vmatpush.msra.mxu0 0.0
    %3502 = vmatpush.msra.mxu0 0.0
    %3503 = vmatpush.msra.mxu0 0.0
    %3504 = vmatpush.msra.mxu0 0.0
    %v3505 = vand.u32 %v2674, 4294901760
    %v3506 = vsub.f32 %v2674, %v3505
    %v3507 = vand.u32 %v3506, 4294901760
    %3508 = vmatpush.msra.mxu0 %v3507
    %v3509 = vand.u32 %v2673, 4294901760
    %v3510 = vsub.f32 %v2673, %v3509
    %v3511 = vand.u32 %v3510, 4294901760
    %3512 = vmatpush.msra.mxu0 %v3511
    %v3513 = vand.u32 %v2672, 4294901760
    %v3514 = vsub.f32 %v2672, %v3513
    %v3515 = vand.u32 %v3514, 4294901760
    %3516 = vmatpush.msra.mxu0 %v3515
    %v3517 = vand.u32 %v2671, 4294901760
    %v3518 = vsub.f32 %v2671, %v3517
    %v3519 = vand.u32 %v3518, 4294901760
    %3520 = vmatpush.msra.mxu0 %v3519
    %v3521 = vand.u32 %v3364, 4294901760
    %3522 = vmatmul.f32.gmra.mxu0 %v3521
    %v3523 = vpop.f32.mrf.mxu0
    %v3524 = vadd.f32 %v3491, %v3523
    %3525 = vdwg.mxu0
    %3526 = vmatpush.msra.mxu0 0.0
    %3527 = vmatpush.msra.mxu0 0.0
    %3528 = vmatpush.msra.mxu0 0.0
    %3529 = vmatpush.msra.mxu0 0.0
    %3530 = vmatpush.msra.mxu0 0.0
    %3531 = vmatpush.msra.mxu0 0.0
    %3532 = vmatpush.msra.mxu0 0.0
    %3533 = vmatpush.msra.mxu0 0.0
    %3534 = vmatpush.msra.mxu0 0.0
    %3535 = vmatpush.msra.mxu0 0.0
    %3536 = vmatpush.msra.mxu0 0.0
    %3537 = vmatpush.msra.mxu0 0.0
    %v3538 = vand.u32 %v2674, 4294901760
    %3539 = vmatpush.msra.mxu0 %v3538
    %v3540 = vand.u32 %v2673, 4294901760
    %3541 = vmatpush.msra.mxu0 %v3540
    %v3542 = vand.u32 %v2672, 4294901760
    %3543 = vmatpush.msra.mxu0 %v3542
    %v3544 = vand.u32 %v2671, 4294901760
    %3545 = vmatpush.msra.mxu0 %v3544
    %v3546 = vand.u32 %v3364, 4294901760
    %3547 = vmatmul.f32.gmra.mxu0 %v3546
    %v3548 = vpop.f32.mrf.mxu0
    %v3549 = vadd.f32 %v3524, %v3548
    %3550 = vdwg.mxu0
    %v3551 = vadd.f32 %v2669, %v3549
    %v3552 = vxor.u32 %v3551, 2147483648
    %v3553 = vmul.f32 %v3552, 1.442695
    %v3554 = vpow.pop %v3553
    %v3555 = vadd.f32 %v3554, 1.0
    %v3556 = vrcp.pop %v3555
    %v3557 = vmul.f32 %v3555, %v3556
    %v3558 = vsub.f32 1.0, %v3557
    %v3559 = vmul.f32 %v3556, %v3558
    %v3560 = vadd.f32 %v3556, %v3559
    %vm3561 = vweird.f32 %v3555
    %vm3562 = vweird.f32 %v3556
    %vm3563 = vmor %vm3561, %vm3562
    %v3564 = vsel %vm3563, %v3556, %v3560
    %v3565 = vand.u32 2147483647, %v3555
    %vm3566 = vcmp.eq.f32.partialorder %v3565, 8.507059e+37
    %v3567 = vand.u32 %v3555, 2147483648
    %v3568 = vor.u32 1.1754944e-38, %v3567
    %v3569 = vsel %vm3566, %v3568, %v3564
    %v3570 = vmul.f32 1.0, %v3569
    %3572 = vrot.lane.b32.xlu0 %v3549, 64
    %v3573 = vpop.permute.xlu0 %3572
    %v3575 = vmul.f32 %v3570, %v3573
    %3577 = vrot.lane.b32.xlu0 %v3575, 64
    %v3578 = vpop.permute.xlu0 %3577
    %v3580 = vadd.f32 %v2669, %v3578
    %v3581 = vtanh.pop %v3580
    %v3582 = vsub.f32 1.0, %v3570
    %3584 = vrot.lane.b32.xlu0 %v3581, 96
    %v3585 = vpop.permute.xlu0 %3584
    %v3587 = vmul.f32 %v3582, %v3585
    %v3588 = vmul.f32 %v3570, %v3360
    %v3589 = vadd.f32 %v3587, %v3588
    %3591 = vrot.lane.b32.xlu0 %v3589, 96
    %v3592 = vpop.permute.xlu0 %3591
    %v3593 = vsel %vm642, %v3592, 0
    %3595 = vmatpush.msra.mxu0 0.0
    %3596 = vmatpush.msra.mxu0 0.0
    %3597 = vmatpush.msra.mxu0 0.0
    %3598 = vmatpush.msra.mxu0 0.0
    %3599 = vmatpush.msra.mxu0 0.0
    %3600 = vmatpush.msra.mxu0 0.0
    %3601 = vmatpush.msra.mxu0 0.0
    %3602 = vmatpush.msra.mxu0 0.0
    %3603 = vmatpush.msra.mxu0 0.0
    %3604 = vmatpush.msra.mxu0 0.0
    %3605 = vmatpush.msra.mxu0 0.0
    %3606 = vmatpush.msra.mxu0 0.0
    %v3607 = vand.u32 %v2674, 4294901760
    %3608 = vmatpush.msra.mxu0 %v3607
    %v3609 = vand.u32 %v2673, 4294901760
    %3610 = vmatpush.msra.mxu0 %v3609
    %v3611 = vand.u32 %v2672, 4294901760
    %3612 = vmatpush.msra.mxu0 %v3611
    %v3613 = vand.u32 %v2671, 4294901760
    %3614 = vmatpush.msra.mxu0 %v3613
    %v3615 = vand.u32 %v3593, 4294901760
    %v3616 = vsub.f32 %v3593, %v3615
    %v3617 = vand.u32 %v3616, 4294901760
    %v3618 = vsub.f32 %v3616, %v3617
    %v3619 = vand.u32 %v3618, 4294901760
    %3620 = vmatmul.f32.gmra.mxu0 %v3619
    %v3621 = vpop.f32.mrf.mxu0
    %v3622 = vadd.f32 %v2677, %v3621
    %3623 = vdwg.mxu0
    %3624 = vmatpush.msra.mxu0 0.0
    %3625 = vmatpush.msra.mxu0 0.0
    %3626 = vmatpush.msra.mxu0 0.0
    %3627 = vmatpush.msra.mxu0 0.0
    %3628 = vmatpush.msra.mxu0 0.0
    %3629 = vmatpush.msra.mxu0 0.0
    %3630 = vmatpush.msra.mxu0 0.0
    %3631 = vmatpush.msra.mxu0 0.0
    %3632 = vmatpush.msra.mxu0 0.0
    %3633 = vmatpush.msra.mxu0 0.0
    %3634 = vmatpush.msra.mxu0 0.0
    %3635 = vmatpush.msra.mxu0 0.0
    %v3636 = vand.u32 %v2674, 4294901760
    %v3637 = vsub.f32 %v2674, %v3636
    %v3638 = vand.u32 %v3637, 4294901760
    %v3639 = vsub.f32 %v3637, %v3638
    %v3640 = vand.u32 %v3639, 4294901760
    %3641 = vmatpush.msra.mxu0 %v3640
    %v3642 = vand.u32 %v2673, 4294901760
    %v3643 = vsub.f32 %v2673, %v3642
    %v3644 = vand.u32 %v3643, 4294901760
    %v3645 = vsub.f32 %v3643, %v3644
    %v3646 = vand.u32 %v3645, 4294901760
    %3647 = vmatpush.msra.mxu0 %v3646
    %v3648 = vand.u32 %v2672, 4294901760
    %v3649 = vsub.f32 %v2672, %v3648
    %v3650 = vand.u32 %v3649, 4294901760
    %v3651 = vsub.f32 %v3649, %v3650
    %v3652 = vand.u32 %v3651, 4294901760
    %3653 = vmatpush.msra.mxu0 %v3652
    %v3654 = vand.u32 %v2671, 4294901760
    %v3655 = vsub.f32 %v2671, %v3654
    %v3656 = vand.u32 %v3655, 4294901760
    %v3657 = vsub.f32 %v3655, %v3656
    %v3658 = vand.u32 %v3657, 4294901760
    %3659 = vmatpush.msra.mxu0 %v3658
    %v3660 = vand.u32 %v3593, 4294901760
    %3661 = vmatmul.f32.gmra.mxu0 %v3660
    %v3662 = vpop.f32.mrf.mxu0
    %v3663 = vadd.f32 %v3622, %v3662
    %3664 = vdwg.mxu0
    %3665 = vmatpush.msra.mxu0 0.0
    %3666 = vmatpush.msra.mxu0 0.0
    %3667 = vmatpush.msra.mxu0 0.0
    %3668 = vmatpush.msra.mxu0 0.0
    %3669 = vmatpush.msra.mxu0 0.0
    %3670 = vmatpush.msra.mxu0 0.0
    %3671 = vmatpush.msra.mxu0 0.0
    %3672 = vmatpush.msra.mxu0 0.0
    %3673 = vmatpush.msra.mxu0 0.0
    %3674 = vmatpush.msra.mxu0 0.0
    %3675 = vmatpush.msra.mxu0 0.0
    %3676 = vmatpush.msra.mxu0 0.0
    %v3677 = vand.u32 %v2674, 4294901760
    %v3678 = vsub.f32 %v2674, %v3677
    %3679 = vmatpush.msra.mxu0 %v3678
    %v3680 = vand.u32 %v2673, 4294901760
    %v3681 = vsub.f32 %v2673, %v3680
    %3682 = vmatpush.msra.mxu0 %v3681
    %v3683 = vand.u32 %v2672, 4294901760
    %v3684 = vsub.f32 %v2672, %v3683
    %3685 = vmatpush.msra.mxu0 %v3684
    %v3686 = vand.u32 %v2671, 4294901760
    %v3687 = vsub.f32 %v2671, %v3686
    %3688 = vmatpush.msra.mxu0 %v3687
    %v3689 = vand.u32 %v3593, 4294901760
    %v3690 = vsub.f32 %v3593, %v3689
    %3691 = vmatmul.f32.gmra.mxu0 %v3690
    %v3692 = vpop.f32.mrf.mxu0
    %v3693 = vadd.f32 %v3663, %v3692
    %3694 = vdwg.mxu0
    %3695 = vmatpush.msra.mxu0 0.0
    %3696 = vmatpush.msra.mxu0 0.0
    %3697 = vmatpush.msra.mxu0 0.0
    %3698 = vmatpush.msra.mxu0 0.0
    %3699 = vmatpush.msra.mxu0 0.0
    %3700 = vmatpush.msra.mxu0 0.0
    %3701 = vmatpush.msra.mxu0 0.0
    %3702 = vmatpush.msra.mxu0 0.0
    %3703 = vmatpush.msra.mxu0 0.0
    %3704 = vmatpush.msra.mxu0 0.0
    %3705 = vmatpush.msra.mxu0 0.0
    %3706 = vmatpush.msra.mxu0 0.0
    %v3707 = vand.u32 %v2674, 4294901760
    %3708 = vmatpush.msra.mxu0 %v3707
    %v3709 = vand.u32 %v2673, 4294901760
    %3710 = vmatpush.msra.mxu0 %v3709
    %v3711 = vand.u32 %v2672, 4294901760
    %3712 = vmatpush.msra.mxu0 %v3711
    %v3713 = vand.u32 %v2671, 4294901760
    %3714 = vmatpush.msra.mxu0 %v3713
    %v3715 = vand.u32 %v3593, 4294901760
    %v3716 = vsub.f32 %v3593, %v3715
    %v3717 = vand.u32 %v3716, 4294901760
    %3718 = vmatmul.f32.gmra.mxu0 %v3717
    %v3719 = vpop.f32.mrf.mxu0
    %v3720 = vadd.f32 %v3693, %v3719
    %3721 = vdwg.mxu0
    %3722 = vmatpush.msra.mxu0 0.0
    %3723 = vmatpush.msra.mxu0 0.0
    %3724 = vmatpush.msra.mxu0 0.0
    %3725 = vmatpush.msra.mxu0 0.0
    %3726 = vmatpush.msra.mxu0 0.0
    %3727 = vmatpush.msra.mxu0 0.0
    %3728 = vmatpush.msra.mxu0 0.0
    %3729 = vmatpush.msra.mxu0 0.0
    %3730 = vmatpush.msra.mxu0 0.0
    %3731 = vmatpush.msra.mxu0 0.0
    %3732 = vmatpush.msra.mxu0 0.0
    %3733 = vmatpush.msra.mxu0 0.0
    %v3734 = vand.u32 %v2674, 4294901760
    %v3735 = vsub.f32 %v2674, %v3734
    %v3736 = vand.u32 %v3735, 4294901760
    %3737 = vmatpush.msra.mxu0 %v3736
    %v3738 = vand.u32 %v2673, 4294901760
    %v3739 = vsub.f32 %v2673, %v3738
    %v3740 = vand.u32 %v3739, 4294901760
    %3741 = vmatpush.msra.mxu0 %v3740
    %v3742 = vand.u32 %v2672, 4294901760
    %v3743 = vsub.f32 %v2672, %v3742
    %v3744 = vand.u32 %v3743, 4294901760
    %3745 = vmatpush.msra.mxu0 %v3744
    %v3746 = vand.u32 %v2671, 4294901760
    %v3747 = vsub.f32 %v2671, %v3746
    %v3748 = vand.u32 %v3747, 4294901760
    %3749 = vmatpush.msra.mxu0 %v3748
    %v3750 = vand.u32 %v3593, 4294901760
    %3751 = vmatmul.f32.gmra.mxu0 %v3750
    %v3752 = vpop.f32.mrf.mxu0
    %v3753 = vadd.f32 %v3720, %v3752
    %3754 = vdwg.mxu0
    %3755 = vmatpush.msra.mxu0 0.0
    %3756 = vmatpush.msra.mxu0 0.0
    %3757 = vmatpush.msra.mxu0 0.0
    %3758 = vmatpush.msra.mxu0 0.0
    %3759 = vmatpush.msra.mxu0 0.0
    %3760 = vmatpush.msra.mxu0 0.0
    %3761 = vmatpush.msra.mxu0 0.0
    %3762 = vmatpush.msra.mxu0 0.0
    %3763 = vmatpush.msra.mxu0 0.0
    %3764 = vmatpush.msra.mxu0 0.0
    %3765 = vmatpush.msra.mxu0 0.0
    %3766 = vmatpush.msra.mxu0 0.0
    %v3767 = vand.u32 %v2674, 4294901760
    %3768 = vmatpush.msra.mxu0 %v3767
    %v3769 = vand.u32 %v2673, 4294901760
    %3770 = vmatpush.msra.mxu0 %v3769
    %v3771 = vand.u32 %v2672, 4294901760
    %3772 = vmatpush.msra.mxu0 %v3771
    %v3773 = vand.u32 %v2671, 4294901760
    %3774 = vmatpush.msra.mxu0 %v3773
    %v3775 = vand.u32 %v3593, 4294901760
    %3776 = vmatmul.f32.gmra.mxu0 %v3775
    %v3777 = vpop.f32.mrf.mxu0
    %v3778 = vadd.f32 %v3753, %v3777
    %3779 = vdwg.mxu0
    %v3780 = vadd.f32 %v2669, %v3778
    %v3781 = vxor.u32 %v3780, 2147483648
    %v3782 = vmul.f32 %v3781, 1.442695
    %v3783 = vpow.pop %v3782
    %v3784 = vadd.f32 %v3783, 1.0
    %v3785 = vrcp.pop %v3784
    %v3786 = vmul.f32 %v3784, %v3785
    %v3787 = vsub.f32 1.0, %v3786
    %v3788 = vmul.f32 %v3785, %v3787
    %v3789 = vadd.f32 %v3785, %v3788
    %vm3790 = vweird.f32 %v3784
    %vm3791 = vweird.f32 %v3785
    %vm3792 = vmor %vm3790, %vm3791
    %v3793 = vsel %vm3792, %v3785, %v3789
    %v3794 = vand.u32 2147483647, %v3784
    %vm3795 = vcmp.eq.f32.partialorder %v3794, 8.507059e+37
    %v3796 = vand.u32 %v3784, 2147483648
    %v3797 = vor.u32 1.1754944e-38, %v3796
    %v3798 = vsel %vm3795, %v3797, %v3793
    %v3799 = vmul.f32 1.0, %v3798
    %3801 = vrot.lane.b32.xlu0 %v3778, 64
    %v3802 = vpop.permute.xlu0 %3801
    %v3804 = vmul.f32 %v3799, %v3802
    %3806 = vrot.lane.b32.xlu0 %v3804, 64
    %v3807 = vpop.permute.xlu0 %3806
    %v3809 = vadd.f32 %v2669, %v3807
    %v3810 = vtanh.pop %v3809
    %v3811 = vsub.f32 1.0, %v3799
    %3813 = vrot.lane.b32.xlu0 %v3810, 96
    %v3814 = vpop.permute.xlu0 %3813
    %v3816 = vmul.f32 %v3811, %v3814
    %v3817 = vmul.f32 %v3799, %v3589
    %v3818 = vadd.f32 %v3816, %v3817
    %3820 = vrot.lane.b32.xlu0 %v3818, 96
    %v3821 = vpop.permute.xlu0 %3820
    %v3822 = vsel %vm642, %v3821, 0
    %3824 = vmatpush.msra.mxu0 0.0
    %3825 = vmatpush.msra.mxu0 0.0
    %3826 = vmatpush.msra.mxu0 0.0
    %3827 = vmatpush.msra.mxu0 0.0
    %3828 = vmatpush.msra.mxu0 0.0
    %3829 = vmatpush.msra.mxu0 0.0
    %3830 = vmatpush.msra.mxu0 0.0
    %3831 = vmatpush.msra.mxu0 0.0
    %3832 = vmatpush.msra.mxu0 0.0
    %3833 = vmatpush.msra.mxu0 0.0
    %3834 = vmatpush.msra.mxu0 0.0
    %3835 = vmatpush.msra.mxu0 0.0
    %v3836 = vand.u32 %v2674, 4294901760
    %3837 = vmatpush.msra.mxu0 %v3836
    %v3838 = vand.u32 %v2673, 4294901760
    %3839 = vmatpush.msra.mxu0 %v3838
    %v3840 = vand.u32 %v2672, 4294901760
    %3841 = vmatpush.msra.mxu0 %v3840
    %v3842 = vand.u32 %v2671, 4294901760
    %3843 = vmatpush.msra.mxu0 %v3842
    %v3844 = vand.u32 %v3822, 4294901760
    %v3845 = vsub.f32 %v3822, %v3844
    %v3846 = vand.u32 %v3845, 4294901760
    %v3847 = vsub.f32 %v3845, %v3846
    %v3848 = vand.u32 %v3847, 4294901760
    %3849 = vmatmul.f32.gmra.mxu0 %v3848
    %v3850 = vpop.f32.mrf.mxu0
    %v3851 = vadd.f32 %v2677, %v3850
    %3852 = vdwg.mxu0
    %3853 = vmatpush.msra.mxu0 0.0
    %3854 = vmatpush.msra.mxu0 0.0
    %3855 = vmatpush.msra.mxu0 0.0
    %3856 = vmatpush.msra.mxu0 0.0
    %3857 = vmatpush.msra.mxu0 0.0
    %3858 = vmatpush.msra.mxu0 0.0
    %3859 = vmatpush.msra.mxu0 0.0
    %3860 = vmatpush.msra.mxu0 0.0
    %3861 = vmatpush.msra.mxu0 0.0
    %3862 = vmatpush.msra.mxu0 0.0
    %3863 = vmatpush.msra.mxu0 0.0
    %3864 = vmatpush.msra.mxu0 0.0
    %v3865 = vand.u32 %v2674, 4294901760
    %v3866 = vsub.f32 %v2674, %v3865
    %v3867 = vand.u32 %v3866, 4294901760
    %v3868 = vsub.f32 %v3866, %v3867
    %v3869 = vand.u32 %v3868, 4294901760
    %3870 = vmatpush.msra.mxu0 %v3869
    %v3871 = vand.u32 %v2673, 4294901760
    %v3872 = vsub.f32 %v2673, %v3871
    %v3873 = vand.u32 %v3872, 4294901760
    %v3874 = vsub.f32 %v3872, %v3873
    %v3875 = vand.u32 %v3874, 4294901760
    %3876 = vmatpush.msra.mxu0 %v3875
    %v3877 = vand.u32 %v2672, 4294901760
    %v3878 = vsub.f32 %v2672, %v3877
    %v3879 = vand.u32 %v3878, 4294901760
    %v3880 = vsub.f32 %v3878, %v3879
    %v3881 = vand.u32 %v3880, 4294901760
    %3882 = vmatpush.msra.mxu0 %v3881
    %v3883 = vand.u32 %v2671, 4294901760
    %v3884 = vsub.f32 %v2671, %v3883
    %v3885 = vand.u32 %v3884, 4294901760
    %v3886 = vsub.f32 %v3884, %v3885
    %v3887 = vand.u32 %v3886, 4294901760
    %3888 = vmatpush.msra.mxu0 %v3887
    %v3889 = vand.u32 %v3822, 4294901760
    %3890 = vmatmul.f32.gmra.mxu0 %v3889
    %v3891 = vpop.f32.mrf.mxu0
    %v3892 = vadd.f32 %v3851, %v3891
    %3893 = vdwg.mxu0
    %3894 = vmatpush.msra.mxu0 0.0
    %3895 = vmatpush.msra.mxu0 0.0
    %3896 = vmatpush.msra.mxu0 0.0
    %3897 = vmatpush.msra.mxu0 0.0
    %3898 = vmatpush.msra.mxu0 0.0
    %3899 = vmatpush.msra.mxu0 0.0
    %3900 = vmatpush.msra.mxu0 0.0
    %3901 = vmatpush.msra.mxu0 0.0
    %3902 = vmatpush.msra.mxu0 0.0
    %3903 = vmatpush.msra.mxu0 0.0
    %3904 = vmatpush.msra.mxu0 0.0
    %3905 = vmatpush.msra.mxu0 0.0
    %v3906 = vand.u32 %v2674, 4294901760
    %v3907 = vsub.f32 %v2674, %v3906
    %3908 = vmatpush.msra.mxu0 %v3907
    %v3909 = vand.u32 %v2673, 4294901760
    %v3910 = vsub.f32 %v2673, %v3909
    %3911 = vmatpush.msra.mxu0 %v3910
    %v3912 = vand.u32 %v2672, 4294901760
    %v3913 = vsub.f32 %v2672, %v3912
    %3914 = vmatpush.msra.mxu0 %v3913
    %v3915 = vand.u32 %v2671, 4294901760
    %v3916 = vsub.f32 %v2671, %v3915
    %3917 = vmatpush.msra.mxu0 %v3916
    %v3918 = vand.u32 %v3822, 4294901760
    %v3919 = vsub.f32 %v3822, %v3918
    %3920 = vmatmul.f32.gmra.mxu0 %v3919
    %v3921 = vpop.f32.mrf.mxu0
    %v3922 = vadd.f32 %v3892, %v3921
    %3923 = vdwg.mxu0
    %3924 = vmatpush.msra.mxu0 0.0
    %3925 = vmatpush.msra.mxu0 0.0
    %3926 = vmatpush.msra.mxu0 0.0
    %3927 = vmatpush.msra.mxu0 0.0
    %3928 = vmatpush.msra.mxu0 0.0
    %3929 = vmatpush.msra.mxu0 0.0
    %3930 = vmatpush.msra.mxu0 0.0
    %3931 = vmatpush.msra.mxu0 0.0
    %3932 = vmatpush.msra.mxu0 0.0
    %3933 = vmatpush.msra.mxu0 0.0
    %3934 = vmatpush.msra.mxu0 0.0
    %3935 = vmatpush.msra.mxu0 0.0
    %v3936 = vand.u32 %v2674, 4294901760
    %3937 = vmatpush.msra.mxu0 %v3936
    %v3938 = vand.u32 %v2673, 4294901760
    %3939 = vmatpush.msra.mxu0 %v3938
    %v3940 = vand.u32 %v2672, 4294901760
    %3941 = vmatpush.msra.mxu0 %v3940
    %v3942 = vand.u32 %v2671, 4294901760
    %3943 = vmatpush.msra.mxu0 %v3942
    %v3944 = vand.u32 %v3822, 4294901760
    %v3945 = vsub.f32 %v3822, %v3944
    %v3946 = vand.u32 %v3945, 4294901760
    %3947 = vmatmul.f32.gmra.mxu0 %v3946
    %v3948 = vpop.f32.mrf.mxu0
    %v3949 = vadd.f32 %v3922, %v3948
    %3950 = vdwg.mxu0
    %3951 = vmatpush.msra.mxu0 0.0
    %3952 = vmatpush.msra.mxu0 0.0
    %3953 = vmatpush.msra.mxu0 0.0
    %3954 = vmatpush.msra.mxu0 0.0
    %3955 = vmatpush.msra.mxu0 0.0
    %3956 = vmatpush.msra.mxu0 0.0
    %3957 = vmatpush.msra.mxu0 0.0
    %3958 = vmatpush.msra.mxu0 0.0
    %3959 = vmatpush.msra.mxu0 0.0
    %3960 = vmatpush.msra.mxu0 0.0
    %3961 = vmatpush.msra.mxu0 0.0
    %3962 = vmatpush.msra.mxu0 0.0
    %v3963 = vand.u32 %v2674, 4294901760
    %v3964 = vsub.f32 %v2674, %v3963
    %v3965 = vand.u32 %v3964, 4294901760
    %3966 = vmatpush.msra.mxu0 %v3965
    %v3967 = vand.u32 %v2673, 4294901760
    %v3968 = vsub.f32 %v2673, %v3967
    %v3969 = vand.u32 %v3968, 4294901760
    %3970 = vmatpush.msra.mxu0 %v3969
    %v3971 = vand.u32 %v2672, 4294901760
    %v3972 = vsub.f32 %v2672, %v3971
    %v3973 = vand.u32 %v3972, 4294901760
    %3974 = vmatpush.msra.mxu0 %v3973
    %v3975 = vand.u32 %v2671, 4294901760
    %v3976 = vsub.f32 %v2671, %v3975
    %v3977 = vand.u32 %v3976, 4294901760
    %3978 = vmatpush.msra.mxu0 %v3977
    %v3979 = vand.u32 %v3822, 4294901760
    %3980 = vmatmul.f32.gmra.mxu0 %v3979
    %v3981 = vpop.f32.mrf.mxu0
    %v3982 = vadd.f32 %v3949, %v3981
    %3983 = vdwg.mxu0
    %3984 = vmatpush.msra.mxu0 0.0
    %3985 = vmatpush.msra.mxu0 0.0
    %3986 = vmatpush.msra.mxu0 0.0
    %3987 = vmatpush.msra.mxu0 0.0
    %3988 = vmatpush.msra.mxu0 0.0
    %3989 = vmatpush.msra.mxu0 0.0
    %3990 = vmatpush.msra.mxu0 0.0
    %3991 = vmatpush.msra.mxu0 0.0
    %3992 = vmatpush.msra.mxu0 0.0
    %3993 = vmatpush.msra.mxu0 0.0
    %3994 = vmatpush.msra.mxu0 0.0
    %3995 = vmatpush.msra.mxu0 0.0
    %v3996 = vand.u32 %v2674, 4294901760
    %3997 = vmatpush.msra.mxu0 %v3996
    %v3998 = vand.u32 %v2673, 4294901760
    %3999 = vmatpush.msra.mxu0 %v3998
    %v4000 = vand.u32 %v2672, 4294901760
    %4001 = vmatpush.msra.mxu0 %v4000
    %v4002 = vand.u32 %v2671, 4294901760
    %4003 = vmatpush.msra.mxu0 %v4002
    %v4004 = vand.u32 %v3822, 4294901760
    %4005 = vmatmul.f32.gmra.mxu0 %v4004
    %v4006 = vpop.f32.mrf.mxu0
    %v4007 = vadd.f32 %v3982, %v4006
    %4008 = vdwg.mxu0
    %v4009 = vadd.f32 %v2669, %v4007
    %v4010 = vxor.u32 %v4009, 2147483648
    %v4011 = vmul.f32 %v4010, 1.442695
    %v4012 = vpow.pop %v4011
    %v4013 = vadd.f32 %v4012, 1.0
    %v4014 = vrcp.pop %v4013
    %v4015 = vmul.f32 %v4013, %v4014
    %v4016 = vsub.f32 1.0, %v4015
    %v4017 = vmul.f32 %v4014, %v4016
    %v4018 = vadd.f32 %v4014, %v4017
    %vm4019 = vweird.f32 %v4013
    %vm4020 = vweird.f32 %v4014
    %vm4021 = vmor %vm4019, %vm4020
    %v4022 = vsel %vm4021, %v4014, %v4018
    %v4023 = vand.u32 2147483647, %v4013
    %vm4024 = vcmp.eq.f32.partialorder %v4023, 8.507059e+37
    %v4025 = vand.u32 %v4013, 2147483648
    %v4026 = vor.u32 1.1754944e-38, %v4025
    %v4027 = vsel %vm4024, %v4026, %v4022
    %v4028 = vmul.f32 1.0, %v4027
    %4030 = vrot.lane.b32.xlu0 %v4007, 64
    %v4031 = vpop.permute.xlu0 %4030
    %v4033 = vmul.f32 %v4028, %v4031
    %4035 = vrot.lane.b32.xlu0 %v4033, 64
    %v4036 = vpop.permute.xlu0 %4035
    %v4038 = vadd.f32 %v2669, %v4036
    %v4039 = vtanh.pop %v4038
    %v4040 = vsub.f32 1.0, %v4028
    %4042 = vrot.lane.b32.xlu0 %v4039, 96
    %v4043 = vpop.permute.xlu0 %4042
    %v4045 = vmul.f32 %v4040, %v4043
    %v4046 = vmul.f32 %v4028, %v3818
    %v4047 = vadd.f32 %v4045, %v4046
    %4049 = vrot.lane.b32.xlu0 %v4047, 96
    %v4050 = vpop.permute.xlu0 %4049
    %v4051 = vsel %vm642, %v4050, 0
    %4053 = vmatpush.msra.mxu0 0.0
    %4054 = vmatpush.msra.mxu0 0.0
    %4055 = vmatpush.msra.mxu0 0.0
    %4056 = vmatpush.msra.mxu0 0.0
    %4057 = vmatpush.msra.mxu0 0.0
    %4058 = vmatpush.msra.mxu0 0.0
    %4059 = vmatpush.msra.mxu0 0.0
    %4060 = vmatpush.msra.mxu0 0.0
    %4061 = vmatpush.msra.mxu0 0.0
    %4062 = vmatpush.msra.mxu0 0.0
    %4063 = vmatpush.msra.mxu0 0.0
    %4064 = vmatpush.msra.mxu0 0.0
    %v4065 = vand.u32 %v2674, 4294901760
    %4066 = vmatpush.msra.mxu0 %v4065
    %v4067 = vand.u32 %v2673, 4294901760
    %4068 = vmatpush.msra.mxu0 %v4067
    %v4069 = vand.u32 %v2672, 4294901760
    %4070 = vmatpush.msra.mxu0 %v4069
    %v4071 = vand.u32 %v2671, 4294901760
    %4072 = vmatpush.msra.mxu0 %v4071
    %v4073 = vand.u32 %v4051, 4294901760
    %v4074 = vsub.f32 %v4051, %v4073
    %v4075 = vand.u32 %v4074, 4294901760
    %v4076 = vsub.f32 %v4074, %v4075
    %v4077 = vand.u32 %v4076, 4294901760
    %4078 = vmatmul.f32.gmra.mxu0 %v4077
    %v4079 = vpop.f32.mrf.mxu0
    %v4080 = vadd.f32 %v2677, %v4079
    %4081 = vdwg.mxu0
    %4082 = vmatpush.msra.mxu0 0.0
    %4083 = vmatpush.msra.mxu0 0.0
    %4084 = vmatpush.msra.mxu0 0.0
    %4085 = vmatpush.msra.mxu0 0.0
    %4086 = vmatpush.msra.mxu0 0.0
    %4087 = vmatpush.msra.mxu0 0.0
    %4088 = vmatpush.msra.mxu0 0.0
    %4089 = vmatpush.msra.mxu0 0.0
    %4090 = vmatpush.msra.mxu0 0.0
    %4091 = vmatpush.msra.mxu0 0.0
    %4092 = vmatpush.msra.mxu0 0.0
    %4093 = vmatpush.msra.mxu0 0.0
    %v4094 = vand.u32 %v2674, 4294901760
    %v4095 = vsub.f32 %v2674, %v4094
    %v4096 = vand.u32 %v4095, 4294901760
    %v4097 = vsub.f32 %v4095, %v4096
    %v4098 = vand.u32 %v4097, 4294901760
    %4099 = vmatpush.msra.mxu0 %v4098
    %v4100 = vand.u32 %v2673, 4294901760
    %v4101 = vsub.f32 %v2673, %v4100
    %v4102 = vand.u32 %v4101, 4294901760
    %v4103 = vsub.f32 %v4101, %v4102
    %v4104 = vand.u32 %v4103, 4294901760
    %4105 = vmatpush.msra.mxu0 %v4104
    %v4106 = vand.u32 %v2672, 4294901760
    %v4107 = vsub.f32 %v2672, %v4106
    %v4108 = vand.u32 %v4107, 4294901760
    %v4109 = vsub.f32 %v4107, %v4108
    %v4110 = vand.u32 %v4109, 4294901760
    %4111 = vmatpush.msra.mxu0 %v4110
    %v4112 = vand.u32 %v2671, 4294901760
    %v4113 = vsub.f32 %v2671, %v4112
    %v4114 = vand.u32 %v4113, 4294901760
    %v4115 = vsub.f32 %v4113, %v4114
    %v4116 = vand.u32 %v4115, 4294901760
    %4117 = vmatpush.msra.mxu0 %v4116
    %v4118 = vand.u32 %v4051, 4294901760
    %4119 = vmatmul.f32.gmra.mxu0 %v4118
    %v4120 = vpop.f32.mrf.mxu0
    %v4121 = vadd.f32 %v4080, %v4120
    %4122 = vdwg.mxu0
    %4123 = vmatpush.msra.mxu0 0.0
    %4124 = vmatpush.msra.mxu0 0.0
    %4125 = vmatpush.msra.mxu0 0.0
    %4126 = vmatpush.msra.mxu0 0.0
    %4127 = vmatpush.msra.mxu0 0.0
    %4128 = vmatpush.msra.mxu0 0.0
    %4129 = vmatpush.msra.mxu0 0.0
    %4130 = vmatpush.msra.mxu0 0.0
    %4131 = vmatpush.msra.mxu0 0.0
    %4132 = vmatpush.msra.mxu0 0.0
    %4133 = vmatpush.msra.mxu0 0.0
    %4134 = vmatpush.msra.mxu0 0.0
    %v4135 = vand.u32 %v2674, 4294901760
    %v4136 = vsub.f32 %v2674, %v4135
    %4137 = vmatpush.msra.mxu0 %v4136
    %v4138 = vand.u32 %v2673, 4294901760
    %v4139 = vsub.f32 %v2673, %v4138
    %4140 = vmatpush.msra.mxu0 %v4139
    %v4141 = vand.u32 %v2672, 4294901760
    %v4142 = vsub.f32 %v2672, %v4141
    %4143 = vmatpush.msra.mxu0 %v4142
    %v4144 = vand.u32 %v2671, 4294901760
    %v4145 = vsub.f32 %v2671, %v4144
    %4146 = vmatpush.msra.mxu0 %v4145
    %v4147 = vand.u32 %v4051, 4294901760
    %v4148 = vsub.f32 %v4051, %v4147
    %4149 = vmatmul.f32.gmra.mxu0 %v4148
    %v4150 = vpop.f32.mrf.mxu0
    %v4151 = vadd.f32 %v4121, %v4150
    %4152 = vdwg.mxu0
    %4153 = vmatpush.msra.mxu0 0.0
    %4154 = vmatpush.msra.mxu0 0.0
    %4155 = vmatpush.msra.mxu0 0.0
    %4156 = vmatpush.msra.mxu0 0.0
    %4157 = vmatpush.msra.mxu0 0.0
    %4158 = vmatpush.msra.mxu0 0.0
    %4159 = vmatpush.msra.mxu0 0.0
    %4160 = vmatpush.msra.mxu0 0.0
    %4161 = vmatpush.msra.mxu0 0.0
    %4162 = vmatpush.msra.mxu0 0.0
    %4163 = vmatpush.msra.mxu0 0.0
    %4164 = vmatpush.msra.mxu0 0.0
    %v4165 = vand.u32 %v2674, 4294901760
    %4166 = vmatpush.msra.mxu0 %v4165
    %v4167 = vand.u32 %v2673, 4294901760
    %4168 = vmatpush.msra.mxu0 %v4167
    %v4169 = vand.u32 %v2672, 4294901760
    %4170 = vmatpush.msra.mxu0 %v4169
    %v4171 = vand.u32 %v2671, 4294901760
    %4172 = vmatpush.msra.mxu0 %v4171
    %v4173 = vand.u32 %v4051, 4294901760
    %v4174 = vsub.f32 %v4051, %v4173
    %v4175 = vand.u32 %v4174, 4294901760
    %4176 = vmatmul.f32.gmra.mxu0 %v4175
    %v4177 = vpop.f32.mrf.mxu0
    %v4178 = vadd.f32 %v4151, %v4177
    %4179 = vdwg.mxu0
    %4180 = vmatpush.msra.mxu0 0.0
    %4181 = vmatpush.msra.mxu0 0.0
    %4182 = vmatpush.msra.mxu0 0.0
    %4183 = vmatpush.msra.mxu0 0.0
    %4184 = vmatpush.msra.mxu0 0.0
    %4185 = vmatpush.msra.mxu0 0.0
    %4186 = vmatpush.msra.mxu0 0.0
    %4187 = vmatpush.msra.mxu0 0.0
    %4188 = vmatpush.msra.mxu0 0.0
    %4189 = vmatpush.msra.mxu0 0.0
    %4190 = vmatpush.msra.mxu0 0.0
    %4191 = vmatpush.msra.mxu0 0.0
    %v4192 = vand.u32 %v2674, 4294901760
    %v4193 = vsub.f32 %v2674, %v4192
    %v4194 = vand.u32 %v4193, 4294901760
    %4195 = vmatpush.msra.mxu0 %v4194
    %v4196 = vand.u32 %v2673, 4294901760
    %v4197 = vsub.f32 %v2673, %v4196
    %v4198 = vand.u32 %v4197, 4294901760
    %4199 = vmatpush.msra.mxu0 %v4198
    %v4200 = vand.u32 %v2672, 4294901760
    %v4201 = vsub.f32 %v2672, %v4200
    %v4202 = vand.u32 %v4201, 4294901760
    %4203 = vmatpush.msra.mxu0 %v4202
    %v4204 = vand.u32 %v2671, 4294901760
    %v4205 = vsub.f32 %v2671, %v4204
    %v4206 = vand.u32 %v4205, 4294901760
    %4207 = vmatpush.msra.mxu0 %v4206
    %v4208 = vand.u32 %v4051, 4294901760
    %4209 = vmatmul.f32.gmra.mxu0 %v4208
    %v4210 = vpop.f32.mrf.mxu0
    %v4211 = vadd.f32 %v4178, %v4210
    %4212 = vdwg.mxu0
    %4213 = vmatpush.msra.mxu0 0.0
    %4214 = vmatpush.msra.mxu0 0.0
    %4215 = vmatpush.msra.mxu0 0.0
    %4216 = vmatpush.msra.mxu0 0.0
    %4217 = vmatpush.msra.mxu0 0.0
    %4218 = vmatpush.msra.mxu0 0.0
    %4219 = vmatpush.msra.mxu0 0.0
    %4220 = vmatpush.msra.mxu0 0.0
    %4221 = vmatpush.msra.mxu0 0.0
    %4222 = vmatpush.msra.mxu0 0.0
    %4223 = vmatpush.msra.mxu0 0.0
    %4224 = vmatpush.msra.mxu0 0.0
    %v4225 = vand.u32 %v2674, 4294901760
    %4226 = vmatpush.msra.mxu0 %v4225
    %v4227 = vand.u32 %v2673, 4294901760
    %4228 = vmatpush.msra.mxu0 %v4227
    %v4229 = vand.u32 %v2672, 4294901760
    %4230 = vmatpush.msra.mxu0 %v4229
    %v4231 = vand.u32 %v2671, 4294901760
    %4232 = vmatpush.msra.mxu0 %v4231
    %v4233 = vand.u32 %v4051, 4294901760
    %4234 = vmatmul.f32.gmra.mxu0 %v4233
    %v4235 = vpop.f32.mrf.mxu0
    %v4236 = vadd.f32 %v4211, %v4235
    %4237 = vdwg.mxu0
    %v4238 = vadd.f32 %v2669, %v4236
    %v4239 = vxor.u32 %v4238, 2147483648
    %v4240 = vmul.f32 %v4239, 1.442695
    %v4241 = vpow.pop %v4240
    %v4242 = vadd.f32 %v4241, 1.0
    %v4243 = vrcp.pop %v4242
    %v4244 = vmul.f32 %v4242, %v4243
    %v4245 = vsub.f32 1.0, %v4244
    %v4246 = vmul.f32 %v4243, %v4245
    %v4247 = vadd.f32 %v4243, %v4246
    %vm4248 = vweird.f32 %v4242
    %vm4249 = vweird.f32 %v4243
    %vm4250 = vmor %vm4248, %vm4249
    %v4251 = vsel %vm4250, %v4243, %v4247
    %v4252 = vand.u32 2147483647, %v4242
    %vm4253 = vcmp.eq.f32.partialorder %v4252, 8.507059e+37
    %v4254 = vand.u32 %v4242, 2147483648
    %v4255 = vor.u32 1.1754944e-38, %v4254
    %v4256 = vsel %vm4253, %v4255, %v4251
    %v4257 = vmul.f32 1.0, %v4256
    %4259 = vrot.lane.b32.xlu0 %v4236, 64
    %v4260 = vpop.permute.xlu0 %4259
    %v4262 = vmul.f32 %v4257, %v4260
    %4264 = vrot.lane.b32.xlu0 %v4262, 64
    %v4265 = vpop.permute.xlu0 %4264
    %v4267 = vadd.f32 %v2669, %v4265
    %v4268 = vtanh.pop %v4267
    %v4269 = vsub.f32 1.0, %v4257
    %4271 = vrot.lane.b32.xlu0 %v4268, 96
    %v4272 = vpop.permute.xlu0 %4271
    %v4274 = vmul.f32 %v4269, %v4272
    %v4275 = vmul.f32 %v4257, %v4047
    %v4276 = vadd.f32 %v4274, %v4275
    %4278 = vrot.lane.b32.xlu0 %v4276, 96
    %v4279 = vpop.permute.xlu0 %4278
    %v4280 = vsel %vm642, %v4279, 0
    %4282 = vmatpush.msra.mxu0 0.0
    %4283 = vmatpush.msra.mxu0 0.0
    %4284 = vmatpush.msra.mxu0 0.0
    %4285 = vmatpush.msra.mxu0 0.0
    %4286 = vmatpush.msra.mxu0 0.0
    %4287 = vmatpush.msra.mxu0 0.0
    %4288 = vmatpush.msra.mxu0 0.0
    %4289 = vmatpush.msra.mxu0 0.0
    %4290 = vmatpush.msra.mxu0 0.0
    %4291 = vmatpush.msra.mxu0 0.0
    %4292 = vmatpush.msra.mxu0 0.0
    %4293 = vmatpush.msra.mxu0 0.0
    %v4294 = vand.u32 %v2674, 4294901760
    %4295 = vmatpush.msra.mxu0 %v4294
    %v4296 = vand.u32 %v2673, 4294901760
    %4297 = vmatpush.msra.mxu0 %v4296
    %v4298 = vand.u32 %v2672, 4294901760
    %4299 = vmatpush.msra.mxu0 %v4298
    %v4300 = vand.u32 %v2671, 4294901760
    %4301 = vmatpush.msra.mxu0 %v4300
    %v4302 = vand.u32 %v4280, 4294901760
    %v4303 = vsub.f32 %v4280, %v4302
    %v4304 = vand.u32 %v4303, 4294901760
    %v4305 = vsub.f32 %v4303, %v4304
    %v4306 = vand.u32 %v4305, 4294901760
    %4307 = vmatmul.f32.gmra.mxu0 %v4306
    %v4308 = vpop.f32.mrf.mxu0
    %v4309 = vadd.f32 %v2677, %v4308
    %4310 = vdwg.mxu0
    %4311 = vmatpush.msra.mxu0 0.0
    %4312 = vmatpush.msra.mxu0 0.0
    %4313 = vmatpush.msra.mxu0 0.0
    %4314 = vmatpush.msra.mxu0 0.0
    %4315 = vmatpush.msra.mxu0 0.0
    %4316 = vmatpush.msra.mxu0 0.0
    %4317 = vmatpush.msra.mxu0 0.0
    %4318 = vmatpush.msra.mxu0 0.0
    %4319 = vmatpush.msra.mxu0 0.0
    %4320 = vmatpush.msra.mxu0 0.0
    %4321 = vmatpush.msra.mxu0 0.0
    %4322 = vmatpush.msra.mxu0 0.0
    %v4323 = vand.u32 %v2674, 4294901760
    %v4324 = vsub.f32 %v2674, %v4323
    %v4325 = vand.u32 %v4324, 4294901760
    %v4326 = vsub.f32 %v4324, %v4325
    %v4327 = vand.u32 %v4326, 4294901760
    %4328 = vmatpush.msra.mxu0 %v4327
    %v4329 = vand.u32 %v2673, 4294901760
    %v4330 = vsub.f32 %v2673, %v4329
    %v4331 = vand.u32 %v4330, 4294901760
    %v4332 = vsub.f32 %v4330, %v4331
    %v4333 = vand.u32 %v4332, 4294901760
    %4334 = vmatpush.msra.mxu0 %v4333
    %v4335 = vand.u32 %v2672, 4294901760
    %v4336 = vsub.f32 %v2672, %v4335
    %v4337 = vand.u32 %v4336, 4294901760
    %v4338 = vsub.f32 %v4336, %v4337
    %v4339 = vand.u32 %v4338, 4294901760
    %4340 = vmatpush.msra.mxu0 %v4339
    %v4341 = vand.u32 %v2671, 4294901760
    %v4342 = vsub.f32 %v2671, %v4341
    %v4343 = vand.u32 %v4342, 4294901760
    %v4344 = vsub.f32 %v4342, %v4343
    %v4345 = vand.u32 %v4344, 4294901760
    %4346 = vmatpush.msra.mxu0 %v4345
    %v4347 = vand.u32 %v4280, 4294901760
    %4348 = vmatmul.f32.gmra.mxu0 %v4347
    %v4349 = vpop.f32.mrf.mxu0
    %v4350 = vadd.f32 %v4309, %v4349
    %4351 = vdwg.mxu0
    %4352 = vmatpush.msra.mxu0 0.0
    %4353 = vmatpush.msra.mxu0 0.0
    %4354 = vmatpush.msra.mxu0 0.0
    %4355 = vmatpush.msra.mxu0 0.0
    %4356 = vmatpush.msra.mxu0 0.0
    %4357 = vmatpush.msra.mxu0 0.0
    %4358 = vmatpush.msra.mxu0 0.0
    %4359 = vmatpush.msra.mxu0 0.0
    %4360 = vmatpush.msra.mxu0 0.0
    %4361 = vmatpush.msra.mxu0 0.0
    %4362 = vmatpush.msra.mxu0 0.0
    %4363 = vmatpush.msra.mxu0 0.0
    %v4364 = vand.u32 %v2674, 4294901760
    %v4365 = vsub.f32 %v2674, %v4364
    %4366 = vmatpush.msra.mxu0 %v4365
    %v4367 = vand.u32 %v2673, 4294901760
    %v4368 = vsub.f32 %v2673, %v4367
    %4369 = vmatpush.msra.mxu0 %v4368
    %v4370 = vand.u32 %v2672, 4294901760
    %v4371 = vsub.f32 %v2672, %v4370
    %4372 = vmatpush.msra.mxu0 %v4371
    %v4373 = vand.u32 %v2671, 4294901760
    %v4374 = vsub.f32 %v2671, %v4373
    %4375 = vmatpush.msra.mxu0 %v4374
    %v4376 = vand.u32 %v4280, 4294901760
    %v4377 = vsub.f32 %v4280, %v4376
    %4378 = vmatmul.f32.gmra.mxu0 %v4377
    %v4379 = vpop.f32.mrf.mxu0
    %v4380 = vadd.f32 %v4350, %v4379
    %4381 = vdwg.mxu0
    %4382 = vmatpush.msra.mxu0 0.0
    %4383 = vmatpush.msra.mxu0 0.0
    %4384 = vmatpush.msra.mxu0 0.0
    %4385 = vmatpush.msra.mxu0 0.0
    %4386 = vmatpush.msra.mxu0 0.0
    %4387 = vmatpush.msra.mxu0 0.0
    %4388 = vmatpush.msra.mxu0 0.0
    %4389 = vmatpush.msra.mxu0 0.0
    %4390 = vmatpush.msra.mxu0 0.0
    %4391 = vmatpush.msra.mxu0 0.0
    %4392 = vmatpush.msra.mxu0 0.0
    %4393 = vmatpush.msra.mxu0 0.0
    %v4394 = vand.u32 %v2674, 4294901760
    %4395 = vmatpush.msra.mxu0 %v4394
    %v4396 = vand.u32 %v2673, 4294901760
    %4397 = vmatpush.msra.mxu0 %v4396
    %v4398 = vand.u32 %v2672, 4294901760
    %4399 = vmatpush.msra.mxu0 %v4398
    %v4400 = vand.u32 %v2671, 4294901760
    %4401 = vmatpush.msra.mxu0 %v4400
    %v4402 = vand.u32 %v4280, 4294901760
    %v4403 = vsub.f32 %v4280, %v4402
    %v4404 = vand.u32 %v4403, 4294901760
    %4405 = vmatmul.f32.gmra.mxu0 %v4404
    %v4406 = vpop.f32.mrf.mxu0
    %v4407 = vadd.f32 %v4380, %v4406
    %4408 = vdwg.mxu0
    %4409 = vmatpush.msra.mxu0 0.0
    %4410 = vmatpush.msra.mxu0 0.0
    %4411 = vmatpush.msra.mxu0 0.0
    %4412 = vmatpush.msra.mxu0 0.0
    %4413 = vmatpush.msra.mxu0 0.0
    %4414 = vmatpush.msra.mxu0 0.0
    %4415 = vmatpush.msra.mxu0 0.0
    %4416 = vmatpush.msra.mxu0 0.0
    %4417 = vmatpush.msra.mxu0 0.0
    %4418 = vmatpush.msra.mxu0 0.0
    %4419 = vmatpush.msra.mxu0 0.0
    %4420 = vmatpush.msra.mxu0 0.0
    %v4421 = vand.u32 %v2674, 4294901760
    %v4422 = vsub.f32 %v2674, %v4421
    %v4423 = vand.u32 %v4422, 4294901760
    %4424 = vmatpush.msra.mxu0 %v4423
    %v4425 = vand.u32 %v2673, 4294901760
    %v4426 = vsub.f32 %v2673, %v4425
    %v4427 = vand.u32 %v4426, 4294901760
    %4428 = vmatpush.msra.mxu0 %v4427
    %v4429 = vand.u32 %v2672, 4294901760
    %v4430 = vsub.f32 %v2672, %v4429
    %v4431 = vand.u32 %v4430, 4294901760
    %4432 = vmatpush.msra.mxu0 %v4431
    %v4433 = vand.u32 %v2671, 4294901760
    %v4434 = vsub.f32 %v2671, %v4433
    %v4435 = vand.u32 %v4434, 4294901760
    %4436 = vmatpush.msra.mxu0 %v4435
    %v4437 = vand.u32 %v4280, 4294901760
    %4438 = vmatmul.f32.gmra.mxu0 %v4437
    %v4439 = vpop.f32.mrf.mxu0
    %v4440 = vadd.f32 %v4407, %v4439
    %4441 = vdwg.mxu0
    %4442 = vmatpush.msra.mxu0 0.0
    %4443 = vmatpush.msra.mxu0 0.0
    %4444 = vmatpush.msra.mxu0 0.0
    %4445 = vmatpush.msra.mxu0 0.0
    %4446 = vmatpush.msra.mxu0 0.0
    %4447 = vmatpush.msra.mxu0 0.0
    %4448 = vmatpush.msra.mxu0 0.0
    %4449 = vmatpush.msra.mxu0 0.0
    %4450 = vmatpush.msra.mxu0 0.0
    %4451 = vmatpush.msra.mxu0 0.0
    %4452 = vmatpush.msra.mxu0 0.0
    %4453 = vmatpush.msra.mxu0 0.0
    %v4454 = vand.u32 %v2674, 4294901760
    %4455 = vmatpush.msra.mxu0 %v4454
    %v4456 = vand.u32 %v2673, 4294901760
    %4457 = vmatpush.msra.mxu0 %v4456
    %v4458 = vand.u32 %v2672, 4294901760
    %4459 = vmatpush.msra.mxu0 %v4458
    %v4460 = vand.u32 %v2671, 4294901760
    %4461 = vmatpush.msra.mxu0 %v4460
    %v4462 = vand.u32 %v4280, 4294901760
    %4463 = vmatmul.f32.gmra.mxu0 %v4462
    %v4464 = vpop.f32.mrf.mxu0
    %v4465 = vadd.f32 %v4440, %v4464
    %4466 = vdwg.mxu0
    %v4467 = vadd.f32 %v2669, %v4465
    %v4468 = vxor.u32 %v4467, 2147483648
    %v4469 = vmul.f32 %v4468, 1.442695
    %v4470 = vpow.pop %v4469
    %v4471 = vadd.f32 %v4470, 1.0
    %v4472 = vrcp.pop %v4471
    %v4473 = vmul.f32 %v4471, %v4472
    %v4474 = vsub.f32 1.0, %v4473
    %v4475 = vmul.f32 %v4472, %v4474
    %v4476 = vadd.f32 %v4472, %v4475
    %vm4477 = vweird.f32 %v4471
    %vm4478 = vweird.f32 %v4472
    %vm4479 = vmor %vm4477, %vm4478
    %v4480 = vsel %vm4479, %v4472, %v4476
    %v4481 = vand.u32 2147483647, %v4471
    %vm4482 = vcmp.eq.f32.partialorder %v4481, 8.507059e+37
    %v4483 = vand.u32 %v4471, 2147483648
    %v4484 = vor.u32 1.1754944e-38, %v4483
    %v4485 = vsel %vm4482, %v4484, %v4480
    %v4486 = vmul.f32 1.0, %v4485
    %4488 = vrot.lane.b32.xlu0 %v4465, 64
    %v4489 = vpop.permute.xlu0 %4488
    %v4491 = vmul.f32 %v4486, %v4489
    %4493 = vrot.lane.b32.xlu0 %v4491, 64
    %v4494 = vpop.permute.xlu0 %4493
    %v4496 = vadd.f32 %v2669, %v4494
    %v4497 = vtanh.pop %v4496
    %v4498 = vsub.f32 1.0, %v4486
    %4500 = vrot.lane.b32.xlu0 %v4497, 96
    %v4501 = vpop.permute.xlu0 %4500
    %v4503 = vmul.f32 %v4498, %v4501
    %v4504 = vmul.f32 %v4486, %v4276
    %v4505 = vadd.f32 %v4503, %v4504
    %4507 = vrot.lane.b32.xlu0 %v4505, 96
    %v4508 = vpop.permute.xlu0 %4507
    %v4509 = vsel %vm642, %v4508, 0
    %4511 = vmatpush.msra.mxu0 0.0
    %4512 = vmatpush.msra.mxu0 0.0
    %4513 = vmatpush.msra.mxu0 0.0
    %4514 = vmatpush.msra.mxu0 0.0
    %4515 = vmatpush.msra.mxu0 0.0
    %4516 = vmatpush.msra.mxu0 0.0
    %4517 = vmatpush.msra.mxu0 0.0
    %4518 = vmatpush.msra.mxu0 0.0
    %4519 = vmatpush.msra.mxu0 0.0
    %4520 = vmatpush.msra.mxu0 0.0
    %4521 = vmatpush.msra.mxu0 0.0
    %4522 = vmatpush.msra.mxu0 0.0
    %v4523 = vand.u32 %v2674, 4294901760
    %4524 = vmatpush.msra.mxu0 %v4523
    %v4525 = vand.u32 %v2673, 4294901760
    %4526 = vmatpush.msra.mxu0 %v4525
    %v4527 = vand.u32 %v2672, 4294901760
    %4528 = vmatpush.msra.mxu0 %v4527
    %v4529 = vand.u32 %v2671, 4294901760
    %4530 = vmatpush.msra.mxu0 %v4529
    %v4531 = vand.u32 %v4509, 4294901760
    %v4532 = vsub.f32 %v4509, %v4531
    %v4533 = vand.u32 %v4532, 4294901760
    %v4534 = vsub.f32 %v4532, %v4533
    %v4535 = vand.u32 %v4534, 4294901760
    %4536 = vmatmul.f32.gmra.mxu0 %v4535
    %v4537 = vpop.f32.mrf.mxu0
    %v4538 = vadd.f32 %v2677, %v4537
    %4539 = vdwg.mxu0
    %4540 = vmatpush.msra.mxu0 0.0
    %4541 = vmatpush.msra.mxu0 0.0
    %4542 = vmatpush.msra.mxu0 0.0
    %4543 = vmatpush.msra.mxu0 0.0
    %4544 = vmatpush.msra.mxu0 0.0
    %4545 = vmatpush.msra.mxu0 0.0
    %4546 = vmatpush.msra.mxu0 0.0
    %4547 = vmatpush.msra.mxu0 0.0
    %4548 = vmatpush.msra.mxu0 0.0
    %4549 = vmatpush.msra.mxu0 0.0
    %4550 = vmatpush.msra.mxu0 0.0
    %4551 = vmatpush.msra.mxu0 0.0
    %v4552 = vand.u32 %v2674, 4294901760
    %v4553 = vsub.f32 %v2674, %v4552
    %v4554 = vand.u32 %v4553, 4294901760
    %v4555 = vsub.f32 %v4553, %v4554
    %v4556 = vand.u32 %v4555, 4294901760
    %4557 = vmatpush.msra.mxu0 %v4556
    %v4558 = vand.u32 %v2673, 4294901760
    %v4559 = vsub.f32 %v2673, %v4558
    %v4560 = vand.u32 %v4559, 4294901760
    %v4561 = vsub.f32 %v4559, %v4560
    %v4562 = vand.u32 %v4561, 4294901760
    %4563 = vmatpush.msra.mxu0 %v4562
    %v4564 = vand.u32 %v2672, 4294901760
    %v4565 = vsub.f32 %v2672, %v4564
    %v4566 = vand.u32 %v4565, 4294901760
    %v4567 = vsub.f32 %v4565, %v4566
    %v4568 = vand.u32 %v4567, 4294901760
    %4569 = vmatpush.msra.mxu0 %v4568
    %v4570 = vand.u32 %v2671, 4294901760
    %v4571 = vsub.f32 %v2671, %v4570
    %v4572 = vand.u32 %v4571, 4294901760
    %v4573 = vsub.f32 %v4571, %v4572
    %v4574 = vand.u32 %v4573, 4294901760
    %4575 = vmatpush.msra.mxu0 %v4574
    %v4576 = vand.u32 %v4509, 4294901760
    %4577 = vmatmul.f32.gmra.mxu0 %v4576
    %v4578 = vpop.f32.mrf.mxu0
    %v4579 = vadd.f32 %v4538, %v4578
    %4580 = vdwg.mxu0
    %4581 = vmatpush.msra.mxu0 0.0
    %4582 = vmatpush.msra.mxu0 0.0
    %4583 = vmatpush.msra.mxu0 0.0
    %4584 = vmatpush.msra.mxu0 0.0
    %4585 = vmatpush.msra.mxu0 0.0
    %4586 = vmatpush.msra.mxu0 0.0
    %4587 = vmatpush.msra.mxu0 0.0
    %4588 = vmatpush.msra.mxu0 0.0
    %4589 = vmatpush.msra.mxu0 0.0
    %4590 = vmatpush.msra.mxu0 0.0
    %4591 = vmatpush.msra.mxu0 0.0
    %4592 = vmatpush.msra.mxu0 0.0
    %v4593 = vand.u32 %v2674, 4294901760
    %v4594 = vsub.f32 %v2674, %v4593
    %4595 = vmatpush.msra.mxu0 %v4594
    %v4596 = vand.u32 %v2673, 4294901760
    %v4597 = vsub.f32 %v2673, %v4596
    %4598 = vmatpush.msra.mxu0 %v4597
    %v4599 = vand.u32 %v2672, 4294901760
    %v4600 = vsub.f32 %v2672, %v4599
    %4601 = vmatpush.msra.mxu0 %v4600
    %v4602 = vand.u32 %v2671, 4294901760
    %v4603 = vsub.f32 %v2671, %v4602
    %4604 = vmatpush.msra.mxu0 %v4603
    %v4605 = vand.u32 %v4509, 4294901760
    %v4606 = vsub.f32 %v4509, %v4605
    %4607 = vmatmul.f32.gmra.mxu0 %v4606
    %v4608 = vpop.f32.mrf.mxu0
    %v4609 = vadd.f32 %v4579, %v4608
    %4610 = vdwg.mxu0
    %4611 = vmatpush.msra.mxu0 0.0
    %4612 = vmatpush.msra.mxu0 0.0
    %4613 = vmatpush.msra.mxu0 0.0
    %4614 = vmatpush.msra.mxu0 0.0
    %4615 = vmatpush.msra.mxu0 0.0
    %4616 = vmatpush.msra.mxu0 0.0
    %4617 = vmatpush.msra.mxu0 0.0
    %4618 = vmatpush.msra.mxu0 0.0
    %4619 = vmatpush.msra.mxu0 0.0
    %4620 = vmatpush.msra.mxu0 0.0
    %4621 = vmatpush.msra.mxu0 0.0
    %4622 = vmatpush.msra.mxu0 0.0
    %v4623 = vand.u32 %v2674, 4294901760
    %4624 = vmatpush.msra.mxu0 %v4623
    %v4625 = vand.u32 %v2673, 4294901760
    %4626 = vmatpush.msra.mxu0 %v4625
    %v4627 = vand.u32 %v2672, 4294901760
    %4628 = vmatpush.msra.mxu0 %v4627
    %v4629 = vand.u32 %v2671, 4294901760
    %4630 = vmatpush.msra.mxu0 %v4629
    %v4631 = vand.u32 %v4509, 4294901760
    %v4632 = vsub.f32 %v4509, %v4631
    %v4633 = vand.u32 %v4632, 4294901760
    %4634 = vmatmul.f32.gmra.mxu0 %v4633
    %v4635 = vpop.f32.mrf.mxu0
    %v4636 = vadd.f32 %v4609, %v4635
    %4637 = vdwg.mxu0
    %4638 = vmatpush.msra.mxu0 0.0
    %4639 = vmatpush.msra.mxu0 0.0
    %4640 = vmatpush.msra.mxu0 0.0
    %4641 = vmatpush.msra.mxu0 0.0
    %4642 = vmatpush.msra.mxu0 0.0
    %4643 = vmatpush.msra.mxu0 0.0
    %4644 = vmatpush.msra.mxu0 0.0
    %4645 = vmatpush.msra.mxu0 0.0
    %4646 = vmatpush.msra.mxu0 0.0
    %4647 = vmatpush.msra.mxu0 0.0
    %4648 = vmatpush.msra.mxu0 0.0
    %4649 = vmatpush.msra.mxu0 0.0
    %v4650 = vand.u32 %v2674, 4294901760
    %v4651 = vsub.f32 %v2674, %v4650
    %v4652 = vand.u32 %v4651, 4294901760
    %4653 = vmatpush.msra.mxu0 %v4652
    %v4654 = vand.u32 %v2673, 4294901760
    %v4655 = vsub.f32 %v2673, %v4654
    %v4656 = vand.u32 %v4655, 4294901760
    %4657 = vmatpush.msra.mxu0 %v4656
    %v4658 = vand.u32 %v2672, 4294901760
    %v4659 = vsub.f32 %v2672, %v4658
    %v4660 = vand.u32 %v4659, 4294901760
    %4661 = vmatpush.msra.mxu0 %v4660
    %v4662 = vand.u32 %v2671, 4294901760
    %v4663 = vsub.f32 %v2671, %v4662
    %v4664 = vand.u32 %v4663, 4294901760
    %4665 = vmatpush.msra.mxu0 %v4664
    %v4666 = vand.u32 %v4509, 4294901760
    %4667 = vmatmul.f32.gmra.mxu0 %v4666
    %v4668 = vpop.f32.mrf.mxu0
    %v4669 = vadd.f32 %v4636, %v4668
    %4670 = vdwg.mxu0
    %4671 = vmatpush.msra.mxu0 0.0
    %4672 = vmatpush.msra.mxu0 0.0
    %4673 = vmatpush.msra.mxu0 0.0
    %4674 = vmatpush.msra.mxu0 0.0
    %4675 = vmatpush.msra.mxu0 0.0
    %4676 = vmatpush.msra.mxu0 0.0
    %4677 = vmatpush.msra.mxu0 0.0
    %4678 = vmatpush.msra.mxu0 0.0
    %4679 = vmatpush.msra.mxu0 0.0
    %4680 = vmatpush.msra.mxu0 0.0
    %4681 = vmatpush.msra.mxu0 0.0
    %4682 = vmatpush.msra.mxu0 0.0
    %v4683 = vand.u32 %v2674, 4294901760
    %4684 = vmatpush.msra.mxu0 %v4683
    %v4685 = vand.u32 %v2673, 4294901760
    %4686 = vmatpush.msra.mxu0 %v4685
    %v4687 = vand.u32 %v2672, 4294901760
    %4688 = vmatpush.msra.mxu0 %v4687
    %v4689 = vand.u32 %v2671, 4294901760
    %4690 = vmatpush.msra.mxu0 %v4689
    %v4691 = vand.u32 %v4509, 4294901760
    %4692 = vmatmul.f32.gmra.mxu0 %v4691
    %v4693 = vpop.f32.mrf.mxu0
    %v4694 = vadd.f32 %v4669, %v4693
    %4695 = vdwg.mxu0
    %v4696 = vadd.f32 %v2669, %v4694
    %v4697 = vxor.u32 %v4696, 2147483648
    %v4698 = vmul.f32 %v4697, 1.442695
    %v4699 = vpow.pop %v4698
    %v4700 = vadd.f32 %v4699, 1.0
    %v4701 = vrcp.pop %v4700
    %v4702 = vmul.f32 %v4700, %v4701
    %v4703 = vsub.f32 1.0, %v4702
    %v4704 = vmul.f32 %v4701, %v4703
    %v4705 = vadd.f32 %v4701, %v4704
    %vm4706 = vweird.f32 %v4700
    %vm4707 = vweird.f32 %v4701
    %vm4708 = vmor %vm4706, %vm4707
    %v4709 = vsel %vm4708, %v4701, %v4705
    %v4710 = vand.u32 2147483647, %v4700
    %vm4711 = vcmp.eq.f32.partialorder %v4710, 8.507059e+37
    %v4712 = vand.u32 %v4700, 2147483648
    %v4713 = vor.u32 1.1754944e-38, %v4712
    %v4714 = vsel %vm4711, %v4713, %v4709
    %v4715 = vmul.f32 1.0, %v4714
    %4717 = vrot.lane.b32.xlu0 %v4694, 64
    %v4718 = vpop.permute.xlu0 %4717
    %v4720 = vmul.f32 %v4715, %v4718
    %4722 = vrot.lane.b32.xlu0 %v4720, 64
    %v4723 = vpop.permute.xlu0 %4722
    %v4725 = vadd.f32 %v2669, %v4723
    %v4726 = vtanh.pop %v4725
    %v4727 = vsub.f32 1.0, %v4715
    %4729 = vrot.lane.b32.xlu0 %v4726, 96
    %v4730 = vpop.permute.xlu0 %4729
    %v4732 = vmul.f32 %v4727, %v4730
    %v4733 = vmul.f32 %v4715, %v4505
    %v4734 = vadd.f32 %v4732, %v4733
    %4736 = vrot.lane.b32.xlu0 %v4734, 96
    %v4737 = vpop.permute.xlu0 %4736
    %v4738 = vsel %vm642, %v4737, 0
    %4740 = vmatpush.msra.mxu0 0.0
    %4741 = vmatpush.msra.mxu0 0.0
    %4742 = vmatpush.msra.mxu0 0.0
    %4743 = vmatpush.msra.mxu0 0.0
    %4744 = vmatpush.msra.mxu0 0.0
    %4745 = vmatpush.msra.mxu0 0.0
    %4746 = vmatpush.msra.mxu0 0.0
    %4747 = vmatpush.msra.mxu0 0.0
    %4748 = vmatpush.msra.mxu0 0.0
    %4749 = vmatpush.msra.mxu0 0.0
    %4750 = vmatpush.msra.mxu0 0.0
    %4751 = vmatpush.msra.mxu0 0.0
    %v4752 = vand.u32 %v2674, 4294901760
    %4753 = vmatpush.msra.mxu0 %v4752
    %v4754 = vand.u32 %v2673, 4294901760
    %4755 = vmatpush.msra.mxu0 %v4754
    %v4756 = vand.u32 %v2672, 4294901760
    %4757 = vmatpush.msra.mxu0 %v4756
    %v4758 = vand.u32 %v2671, 4294901760
    %4759 = vmatpush.msra.mxu0 %v4758
    %v4760 = vand.u32 %v4738, 4294901760
    %v4761 = vsub.f32 %v4738, %v4760
    %v4762 = vand.u32 %v4761, 4294901760
    %v4763 = vsub.f32 %v4761, %v4762
    %v4764 = vand.u32 %v4763, 4294901760
    %4765 = vmatmul.f32.gmra.mxu0 %v4764
    %v4766 = vpop.f32.mrf.mxu0
    %v4767 = vadd.f32 %v2677, %v4766
    %4768 = vdwg.mxu0
    %4769 = vmatpush.msra.mxu0 0.0
    %4770 = vmatpush.msra.mxu0 0.0
    %4771 = vmatpush.msra.mxu0 0.0
    %4772 = vmatpush.msra.mxu0 0.0
    %4773 = vmatpush.msra.mxu0 0.0
    %4774 = vmatpush.msra.mxu0 0.0
    %4775 = vmatpush.msra.mxu0 0.0
    %4776 = vmatpush.msra.mxu0 0.0
    %4777 = vmatpush.msra.mxu0 0.0
    %4778 = vmatpush.msra.mxu0 0.0
    %4779 = vmatpush.msra.mxu0 0.0
    %4780 = vmatpush.msra.mxu0 0.0
    %v4781 = vand.u32 %v2674, 4294901760
    %v4782 = vsub.f32 %v2674, %v4781
    %v4783 = vand.u32 %v4782, 4294901760
    %v4784 = vsub.f32 %v4782, %v4783
    %v4785 = vand.u32 %v4784, 4294901760
    %4786 = vmatpush.msra.mxu0 %v4785
    %v4787 = vand.u32 %v2673, 4294901760
    %v4788 = vsub.f32 %v2673, %v4787
    %v4789 = vand.u32 %v4788, 4294901760
    %v4790 = vsub.f32 %v4788, %v4789
    %v4791 = vand.u32 %v4790, 4294901760
    %4792 = vmatpush.msra.mxu0 %v4791
    %v4793 = vand.u32 %v2672, 4294901760
    %v4794 = vsub.f32 %v2672, %v4793
    %v4795 = vand.u32 %v4794, 4294901760
    %v4796 = vsub.f32 %v4794, %v4795
    %v4797 = vand.u32 %v4796, 4294901760
    %4798 = vmatpush.msra.mxu0 %v4797
    %v4799 = vand.u32 %v2671, 4294901760
    %v4800 = vsub.f32 %v2671, %v4799
    %v4801 = vand.u32 %v4800, 4294901760
    %v4802 = vsub.f32 %v4800, %v4801
    %v4803 = vand.u32 %v4802, 4294901760
    %4804 = vmatpush.msra.mxu0 %v4803
    %v4805 = vand.u32 %v4738, 4294901760
    %4806 = vmatmul.f32.gmra.mxu0 %v4805
    %v4807 = vpop.f32.mrf.mxu0
    %v4808 = vadd.f32 %v4767, %v4807
    %4809 = vdwg.mxu0
    %4810 = vmatpush.msra.mxu0 0.0
    %4811 = vmatpush.msra.mxu0 0.0
    %4812 = vmatpush.msra.mxu0 0.0
    %4813 = vmatpush.msra.mxu0 0.0
    %4814 = vmatpush.msra.mxu0 0.0
    %4815 = vmatpush.msra.mxu0 0.0
    %4816 = vmatpush.msra.mxu0 0.0
    %4817 = vmatpush.msra.mxu0 0.0
    %4818 = vmatpush.msra.mxu0 0.0
    %4819 = vmatpush.msra.mxu0 0.0
    %4820 = vmatpush.msra.mxu0 0.0
    %4821 = vmatpush.msra.mxu0 0.0
    %v4822 = vand.u32 %v2674, 4294901760
    %v4823 = vsub.f32 %v2674, %v4822
    %4824 = vmatpush.msra.mxu0 %v4823
    %v4825 = vand.u32 %v2673, 4294901760
    %v4826 = vsub.f32 %v2673, %v4825
    %4827 = vmatpush.msra.mxu0 %v4826
    %v4828 = vand.u32 %v2672, 4294901760
    %v4829 = vsub.f32 %v2672, %v4828
    %4830 = vmatpush.msra.mxu0 %v4829
    %v4831 = vand.u32 %v2671, 4294901760
    %v4832 = vsub.f32 %v2671, %v4831
    %4833 = vmatpush.msra.mxu0 %v4832
    %v4834 = vand.u32 %v4738, 4294901760
    %v4835 = vsub.f32 %v4738, %v4834
    %4836 = vmatmul.f32.gmra.mxu0 %v4835
    %v4837 = vpop.f32.mrf.mxu0
    %v4838 = vadd.f32 %v4808, %v4837
    %4839 = vdwg.mxu0
    %4840 = vmatpush.msra.mxu0 0.0
    %4841 = vmatpush.msra.mxu0 0.0
    %4842 = vmatpush.msra.mxu0 0.0
    %4843 = vmatpush.msra.mxu0 0.0
    %4844 = vmatpush.msra.mxu0 0.0
    %4845 = vmatpush.msra.mxu0 0.0
    %4846 = vmatpush.msra.mxu0 0.0
    %4847 = vmatpush.msra.mxu0 0.0
    %4848 = vmatpush.msra.mxu0 0.0
    %4849 = vmatpush.msra.mxu0 0.0
    %4850 = vmatpush.msra.mxu0 0.0
    %4851 = vmatpush.msra.mxu0 0.0
    %v4852 = vand.u32 %v2674, 4294901760
    %4853 = vmatpush.msra.mxu0 %v4852
    %v4854 = vand.u32 %v2673, 4294901760
    %4855 = vmatpush.msra.mxu0 %v4854
    %v4856 = vand.u32 %v2672, 4294901760
    %4857 = vmatpush.msra.mxu0 %v4856
    %v4858 = vand.u32 %v2671, 4294901760
    %4859 = vmatpush.msra.mxu0 %v4858
    %v4860 = vand.u32 %v4738, 4294901760
    %v4861 = vsub.f32 %v4738, %v4860
    %v4862 = vand.u32 %v4861, 4294901760
    %4863 = vmatmul.f32.gmra.mxu0 %v4862
    %v4864 = vpop.f32.mrf.mxu0
    %v4865 = vadd.f32 %v4838, %v4864
    %4866 = vdwg.mxu0
    %4867 = vmatpush.msra.mxu0 0.0
    %4868 = vmatpush.msra.mxu0 0.0
    %4869 = vmatpush.msra.mxu0 0.0
    %4870 = vmatpush.msra.mxu0 0.0
    %4871 = vmatpush.msra.mxu0 0.0
    %4872 = vmatpush.msra.mxu0 0.0
    %4873 = vmatpush.msra.mxu0 0.0
    %4874 = vmatpush.msra.mxu0 0.0
    %4875 = vmatpush.msra.mxu0 0.0
    %4876 = vmatpush.msra.mxu0 0.0
    %4877 = vmatpush.msra.mxu0 0.0
    %4878 = vmatpush.msra.mxu0 0.0
    %v4879 = vand.u32 %v2674, 4294901760
    %v4880 = vsub.f32 %v2674, %v4879
    %v4881 = vand.u32 %v4880, 4294901760
    %4882 = vmatpush.msra.mxu0 %v4881
    %v4883 = vand.u32 %v2673, 4294901760
    %v4884 = vsub.f32 %v2673, %v4883
    %v4885 = vand.u32 %v4884, 4294901760
    %4886 = vmatpush.msra.mxu0 %v4885
    %v4887 = vand.u32 %v2672, 4294901760
    %v4888 = vsub.f32 %v2672, %v4887
    %v4889 = vand.u32 %v4888, 4294901760
    %4890 = vmatpush.msra.mxu0 %v4889
    %v4891 = vand.u32 %v2671, 4294901760
    %v4892 = vsub.f32 %v2671, %v4891
    %v4893 = vand.u32 %v4892, 4294901760
    %4894 = vmatpush.msra.mxu0 %v4893
    %v4895 = vand.u32 %v4738, 4294901760
    %4896 = vmatmul.f32.gmra.mxu0 %v4895
    %v4897 = vpop.f32.mrf.mxu0
    %v4898 = vadd.f32 %v4865, %v4897
    %4899 = vdwg.mxu0
    %4900 = vmatpush.msra.mxu0 0.0
    %4901 = vmatpush.msra.mxu0 0.0
    %4902 = vmatpush.msra.mxu0 0.0
    %4903 = vmatpush.msra.mxu0 0.0
    %4904 = vmatpush.msra.mxu0 0.0
    %4905 = vmatpush.msra.mxu0 0.0
    %4906 = vmatpush.msra.mxu0 0.0
    %4907 = vmatpush.msra.mxu0 0.0
    %4908 = vmatpush.msra.mxu0 0.0
    %4909 = vmatpush.msra.mxu0 0.0
    %4910 = vmatpush.msra.mxu0 0.0
    %4911 = vmatpush.msra.mxu0 0.0
    %v4912 = vand.u32 %v2674, 4294901760
    %4913 = vmatpush.msra.mxu0 %v4912
    %v4914 = vand.u32 %v2673, 4294901760
    %4915 = vmatpush.msra.mxu0 %v4914
    %v4916 = vand.u32 %v2672, 4294901760
    %4917 = vmatpush.msra.mxu0 %v4916
    %v4918 = vand.u32 %v2671, 4294901760
    %4919 = vmatpush.msra.mxu0 %v4918
    %v4920 = vand.u32 %v4738, 4294901760
    %4921 = vmatmul.f32.gmra.mxu0 %v4920
    %v4922 = vpop.f32.mrf.mxu0
    %v4923 = vadd.f32 %v4898, %v4922
    %4924 = vdwg.mxu0
    %v4925 = vadd.f32 %v2669, %v4923
    %v4926 = vxor.u32 %v4925, 2147483648
    %v4927 = vmul.f32 %v4926, 1.442695
    %v4928 = vpow.pop %v4927
    %v4929 = vadd.f32 %v4928, 1.0
    %v4930 = vrcp.pop %v4929
    %v4931 = vmul.f32 %v4929, %v4930
    %v4932 = vsub.f32 1.0, %v4931
    %v4933 = vmul.f32 %v4930, %v4932
    %v4934 = vadd.f32 %v4930, %v4933
    %vm4935 = vweird.f32 %v4929
    %vm4936 = vweird.f32 %v4930
    %vm4937 = vmor %vm4935, %vm4936
    %v4938 = vsel %vm4937, %v4930, %v4934
    %v4939 = vand.u32 2147483647, %v4929
    %vm4940 = vcmp.eq.f32.partialorder %v4939, 8.507059e+37
    %v4941 = vand.u32 %v4929, 2147483648
    %v4942 = vor.u32 1.1754944e-38, %v4941
    %v4943 = vsel %vm4940, %v4942, %v4938
    %v4944 = vmul.f32 1.0, %v4943
    %4946 = vrot.lane.b32.xlu0 %v4923, 64
    %v4947 = vpop.permute.xlu0 %4946
    %v4949 = vmul.f32 %v4944, %v4947
    %4951 = vrot.lane.b32.xlu0 %v4949, 64
    %v4952 = vpop.permute.xlu0 %4951
    %v4954 = vadd.f32 %v2669, %v4952
    %v4955 = vtanh.pop %v4954
    %v4956 = vsub.f32 1.0, %v4944
    %4958 = vrot.lane.b32.xlu0 %v4955, 96
    %v4959 = vpop.permute.xlu0 %4958
    %v4961 = vmul.f32 %v4956, %v4959
    %v4962 = vmul.f32 %v4944, %v4734
    %v4963 = vadd.f32 %v4961, %v4962
    %4965 = vrot.lane.b32.xlu0 %v4963, 96
    %v4966 = vpop.permute.xlu0 %4965
    %v4967 = vsel %vm642, %v4966, 0
    %4969 = vmatpush.msra.mxu0 0.0
    %4970 = vmatpush.msra.mxu0 0.0
    %4971 = vmatpush.msra.mxu0 0.0
    %4972 = vmatpush.msra.mxu0 0.0
    %4973 = vmatpush.msra.mxu0 0.0
    %4974 = vmatpush.msra.mxu0 0.0
    %4975 = vmatpush.msra.mxu0 0.0
    %4976 = vmatpush.msra.mxu0 0.0
    %4977 = vmatpush.msra.mxu0 0.0
    %4978 = vmatpush.msra.mxu0 0.0
    %4979 = vmatpush.msra.mxu0 0.0
    %4980 = vmatpush.msra.mxu0 0.0
    %v4981 = vand.u32 %v2674, 4294901760
    %4982 = vmatpush.msra.mxu0 %v4981
    %v4983 = vand.u32 %v2673, 4294901760
    %4984 = vmatpush.msra.mxu0 %v4983
    %v4985 = vand.u32 %v2672, 4294901760
    %4986 = vmatpush.msra.mxu0 %v4985
    %v4987 = vand.u32 %v2671, 4294901760
    %4988 = vmatpush.msra.mxu0 %v4987
    %v4989 = vand.u32 %v4967, 4294901760
    %v4990 = vsub.f32 %v4967, %v4989
    %v4991 = vand.u32 %v4990, 4294901760
    %v4992 = vsub.f32 %v4990, %v4991
    %v4993 = vand.u32 %v4992, 4294901760
    %4994 = vmatmul.f32.gmra.mxu0 %v4993
    %v4995 = vpop.f32.mrf.mxu0
    %v4996 = vadd.f32 %v2677, %v4995
    %4997 = vdwg.mxu0
    %4998 = vmatpush.msra.mxu0 0.0
    %4999 = vmatpush.msra.mxu0 0.0
    %5000 = vmatpush.msra.mxu0 0.0
    %5001 = vmatpush.msra.mxu0 0.0
    %5002 = vmatpush.msra.mxu0 0.0
    %5003 = vmatpush.msra.mxu0 0.0
    %5004 = vmatpush.msra.mxu0 0.0
    %5005 = vmatpush.msra.mxu0 0.0
    %5006 = vmatpush.msra.mxu0 0.0
    %5007 = vmatpush.msra.mxu0 0.0
    %5008 = vmatpush.msra.mxu0 0.0
    %5009 = vmatpush.msra.mxu0 0.0
    %v5010 = vand.u32 %v2674, 4294901760
    %v5011 = vsub.f32 %v2674, %v5010
    %v5012 = vand.u32 %v5011, 4294901760
    %v5013 = vsub.f32 %v5011, %v5012
    %v5014 = vand.u32 %v5013, 4294901760
    %5015 = vmatpush.msra.mxu0 %v5014
    %v5016 = vand.u32 %v2673, 4294901760
    %v5017 = vsub.f32 %v2673, %v5016
    %v5018 = vand.u32 %v5017, 4294901760
    %v5019 = vsub.f32 %v5017, %v5018
    %v5020 = vand.u32 %v5019, 4294901760
    %5021 = vmatpush.msra.mxu0 %v5020
    %v5022 = vand.u32 %v2672, 4294901760
    %v5023 = vsub.f32 %v2672, %v5022
    %v5024 = vand.u32 %v5023, 4294901760
    %v5025 = vsub.f32 %v5023, %v5024
    %v5026 = vand.u32 %v5025, 4294901760
    %5027 = vmatpush.msra.mxu0 %v5026
    %v5028 = vand.u32 %v2671, 4294901760
    %v5029 = vsub.f32 %v2671, %v5028
    %v5030 = vand.u32 %v5029, 4294901760
    %v5031 = vsub.f32 %v5029, %v5030
    %v5032 = vand.u32 %v5031, 4294901760
    %5033 = vmatpush.msra.mxu0 %v5032
    %v5034 = vand.u32 %v4967, 4294901760
    %5035 = vmatmul.f32.gmra.mxu0 %v5034
    %v5036 = vpop.f32.mrf.mxu0
    %v5037 = vadd.f32 %v4996, %v5036
    %5038 = vdwg.mxu0
    %5039 = vmatpush.msra.mxu0 0.0
    %5040 = vmatpush.msra.mxu0 0.0
    %5041 = vmatpush.msra.mxu0 0.0
    %5042 = vmatpush.msra.mxu0 0.0
    %5043 = vmatpush.msra.mxu0 0.0
    %5044 = vmatpush.msra.mxu0 0.0
    %5045 = vmatpush.msra.mxu0 0.0
    %5046 = vmatpush.msra.mxu0 0.0
    %5047 = vmatpush.msra.mxu0 0.0
    %5048 = vmatpush.msra.mxu0 0.0
    %5049 = vmatpush.msra.mxu0 0.0
    %5050 = vmatpush.msra.mxu0 0.0
    %v5051 = vand.u32 %v2674, 4294901760
    %v5052 = vsub.f32 %v2674, %v5051
    %5053 = vmatpush.msra.mxu0 %v5052
    %v5054 = vand.u32 %v2673, 4294901760
    %v5055 = vsub.f32 %v2673, %v5054
    %5056 = vmatpush.msra.mxu0 %v5055
    %v5057 = vand.u32 %v2672, 4294901760
    %v5058 = vsub.f32 %v2672, %v5057
    %5059 = vmatpush.msra.mxu0 %v5058
    %v5060 = vand.u32 %v2671, 4294901760
    %v5061 = vsub.f32 %v2671, %v5060
    %5062 = vmatpush.msra.mxu0 %v5061
    %v5063 = vand.u32 %v4967, 4294901760
    %v5064 = vsub.f32 %v4967, %v5063
    %5065 = vmatmul.f32.gmra.mxu0 %v5064
    %v5066 = vpop.f32.mrf.mxu0
    %v5067 = vadd.f32 %v5037, %v5066
    %5068 = vdwg.mxu0
    %5069 = vmatpush.msra.mxu0 0.0
    %5070 = vmatpush.msra.mxu0 0.0
    %5071 = vmatpush.msra.mxu0 0.0
    %5072 = vmatpush.msra.mxu0 0.0
    %5073 = vmatpush.msra.mxu0 0.0
    %5074 = vmatpush.msra.mxu0 0.0
    %5075 = vmatpush.msra.mxu0 0.0
    %5076 = vmatpush.msra.mxu0 0.0
    %5077 = vmatpush.msra.mxu0 0.0
    %5078 = vmatpush.msra.mxu0 0.0
    %5079 = vmatpush.msra.mxu0 0.0
    %5080 = vmatpush.msra.mxu0 0.0
    %v5081 = vand.u32 %v2674, 4294901760
    %5082 = vmatpush.msra.mxu0 %v5081
    %v5083 = vand.u32 %v2673, 4294901760
    %5084 = vmatpush.msra.mxu0 %v5083
    %v5085 = vand.u32 %v2672, 4294901760
    %5086 = vmatpush.msra.mxu0 %v5085
    %v5087 = vand.u32 %v2671, 4294901760
    %5088 = vmatpush.msra.mxu0 %v5087
    %v5089 = vand.u32 %v4967, 4294901760
    %v5090 = vsub.f32 %v4967, %v5089
    %v5091 = vand.u32 %v5090, 4294901760
    %5092 = vmatmul.f32.gmra.mxu0 %v5091
    %v5093 = vpop.f32.mrf.mxu0
    %v5094 = vadd.f32 %v5067, %v5093
    %5095 = vdwg.mxu0
    %5096 = vmatpush.msra.mxu0 0.0
    %5097 = vmatpush.msra.mxu0 0.0
    %5098 = vmatpush.msra.mxu0 0.0
    %5099 = vmatpush.msra.mxu0 0.0
    %5100 = vmatpush.msra.mxu0 0.0
    %5101 = vmatpush.msra.mxu0 0.0
    %5102 = vmatpush.msra.mxu0 0.0
    %5103 = vmatpush.msra.mxu0 0.0
    %5104 = vmatpush.msra.mxu0 0.0
    %5105 = vmatpush.msra.mxu0 0.0
    %5106 = vmatpush.msra.mxu0 0.0
    %5107 = vmatpush.msra.mxu0 0.0
    %v5108 = vand.u32 %v2674, 4294901760
    %v5109 = vsub.f32 %v2674, %v5108
    %v5110 = vand.u32 %v5109, 4294901760
    %5111 = vmatpush.msra.mxu0 %v5110
    %v5112 = vand.u32 %v2673, 4294901760
    %v5113 = vsub.f32 %v2673, %v5112
    %v5114 = vand.u32 %v5113, 4294901760
    %5115 = vmatpush.msra.mxu0 %v5114
    %v5116 = vand.u32 %v2672, 4294901760
    %v5117 = vsub.f32 %v2672, %v5116
    %v5118 = vand.u32 %v5117, 4294901760
    %5119 = vmatpush.msra.mxu0 %v5118
    %v5120 = vand.u32 %v2671, 4294901760
    %v5121 = vsub.f32 %v2671, %v5120
    %v5122 = vand.u32 %v5121, 4294901760
    %5123 = vmatpush.msra.mxu0 %v5122
    %v5124 = vand.u32 %v4967, 4294901760
    %5125 = vmatmul.f32.gmra.mxu0 %v5124
    %v5126 = vpop.f32.mrf.mxu0
    %v5127 = vadd.f32 %v5094, %v5126
    %5128 = vdwg.mxu0
    %5129 = vmatpush.msra.mxu0 0.0
    %5130 = vmatpush.msra.mxu0 0.0
    %5131 = vmatpush.msra.mxu0 0.0
    %5132 = vmatpush.msra.mxu0 0.0
    %5133 = vmatpush.msra.mxu0 0.0
    %5134 = vmatpush.msra.mxu0 0.0
    %5135 = vmatpush.msra.mxu0 0.0
    %5136 = vmatpush.msra.mxu0 0.0
    %5137 = vmatpush.msra.mxu0 0.0
    %5138 = vmatpush.msra.mxu0 0.0
    %5139 = vmatpush.msra.mxu0 0.0
    %5140 = vmatpush.msra.mxu0 0.0
    %v5141 = vand.u32 %v2674, 4294901760
    %5142 = vmatpush.msra.mxu0 %v5141
    %v5143 = vand.u32 %v2673, 4294901760
    %5144 = vmatpush.msra.mxu0 %v5143
    %v5145 = vand.u32 %v2672, 4294901760
    %5146 = vmatpush.msra.mxu0 %v5145
    %v5147 = vand.u32 %v2671, 4294901760
    %5148 = vmatpush.msra.mxu0 %v5147
    %v5149 = vand.u32 %v4967, 4294901760
    %5150 = vmatmul.f32.gmra.mxu0 %v5149
    %v5151 = vpop.f32.mrf.mxu0
    %v5152 = vadd.f32 %v5127, %v5151
    %5153 = vdwg.mxu0
    %v5154 = vadd.f32 %v2669, %v5152
    %v5155 = vxor.u32 %v5154, 2147483648
    %v5156 = vmul.f32 %v5155, 1.442695
    %v5157 = vpow.pop %v5156
    %v5158 = vadd.f32 %v5157, 1.0
    %v5159 = vrcp.pop %v5158
    %v5160 = vmul.f32 %v5158, %v5159
    %v5161 = vsub.f32 1.0, %v5160
    %v5162 = vmul.f32 %v5159, %v5161
    %v5163 = vadd.f32 %v5159, %v5162
    %vm5164 = vweird.f32 %v5158
    %vm5165 = vweird.f32 %v5159
    %vm5166 = vmor %vm5164, %vm5165
    %v5167 = vsel %vm5166, %v5159, %v5163
    %v5168 = vand.u32 2147483647, %v5158
    %vm5169 = vcmp.eq.f32.partialorder %v5168, 8.507059e+37
    %v5170 = vand.u32 %v5158, 2147483648
    %v5171 = vor.u32 1.1754944e-38, %v5170
    %v5172 = vsel %vm5169, %v5171, %v5167
    %v5173 = vmul.f32 1.0, %v5172
    %5175 = vrot.lane.b32.xlu0 %v5152, 64
    %v5176 = vpop.permute.xlu0 %5175
    %v5178 = vmul.f32 %v5173, %v5176
    %5180 = vrot.lane.b32.xlu0 %v5178, 64
    %v5181 = vpop.permute.xlu0 %5180
    %v5183 = vadd.f32 %v2669, %v5181
    %v5184 = vtanh.pop %v5183
    %v5185 = vsub.f32 1.0, %v5173
    %5187 = vrot.lane.b32.xlu0 %v5184, 96
    %v5188 = vpop.permute.xlu0 %5187
    %v5190 = vmul.f32 %v5185, %v5188
    %v5191 = vmul.f32 %v5173, %v4963
    %v5192 = vadd.f32 %v5190, %v5191
    %5194 = vrot.lane.b32.xlu0 %v5192, 96
    %v5195 = vpop.permute.xlu0 %5194
    %v5196 = vsel %vm642, %v5195, 0
    %5198 = vmatpush.msra.mxu0 0.0
    %5199 = vmatpush.msra.mxu0 0.0
    %5200 = vmatpush.msra.mxu0 0.0
    %5201 = vmatpush.msra.mxu0 0.0
    %5202 = vmatpush.msra.mxu0 0.0
    %5203 = vmatpush.msra.mxu0 0.0
    %5204 = vmatpush.msra.mxu0 0.0
    %5205 = vmatpush.msra.mxu0 0.0
    %5206 = vmatpush.msra.mxu0 0.0
    %5207 = vmatpush.msra.mxu0 0.0
    %5208 = vmatpush.msra.mxu0 0.0
    %5209 = vmatpush.msra.mxu0 0.0
    %v5210 = vand.u32 %v2674, 4294901760
    %5211 = vmatpush.msra.mxu0 %v5210
    %v5212 = vand.u32 %v2673, 4294901760
    %5213 = vmatpush.msra.mxu0 %v5212
    %v5214 = vand.u32 %v2672, 4294901760
    %5215 = vmatpush.msra.mxu0 %v5214
    %v5216 = vand.u32 %v2671, 4294901760
    %5217 = vmatpush.msra.mxu0 %v5216
    %v5218 = vand.u32 %v5196, 4294901760
    %v5219 = vsub.f32 %v5196, %v5218
    %v5220 = vand.u32 %v5219, 4294901760
    %v5221 = vsub.f32 %v5219, %v5220
    %v5222 = vand.u32 %v5221, 4294901760
    %5223 = vmatmul.f32.gmra.mxu0 %v5222
    %v5224 = vpop.f32.mrf.mxu0
    %v5225 = vadd.f32 %v2677, %v5224
    %5226 = vdwg.mxu0
    %5227 = vmatpush.msra.mxu0 0.0
    %5228 = vmatpush.msra.mxu0 0.0
    %5229 = vmatpush.msra.mxu0 0.0
    %5230 = vmatpush.msra.mxu0 0.0
    %5231 = vmatpush.msra.mxu0 0.0
    %5232 = vmatpush.msra.mxu0 0.0
    %5233 = vmatpush.msra.mxu0 0.0
    %5234 = vmatpush.msra.mxu0 0.0
    %5235 = vmatpush.msra.mxu0 0.0
    %5236 = vmatpush.msra.mxu0 0.0
    %5237 = vmatpush.msra.mxu0 0.0
    %5238 = vmatpush.msra.mxu0 0.0
    %v5239 = vand.u32 %v2674, 4294901760
    %v5240 = vsub.f32 %v2674, %v5239
    %v5241 = vand.u32 %v5240, 4294901760
    %v5242 = vsub.f32 %v5240, %v5241
    %v5243 = vand.u32 %v5242, 4294901760
    %5244 = vmatpush.msra.mxu0 %v5243
    %v5245 = vand.u32 %v2673, 4294901760
    %v5246 = vsub.f32 %v2673, %v5245
    %v5247 = vand.u32 %v5246, 4294901760
    %v5248 = vsub.f32 %v5246, %v5247
    %v5249 = vand.u32 %v5248, 4294901760
    %5250 = vmatpush.msra.mxu0 %v5249
    %v5251 = vand.u32 %v2672, 4294901760
    %v5252 = vsub.f32 %v2672, %v5251
    %v5253 = vand.u32 %v5252, 4294901760
    %v5254 = vsub.f32 %v5252, %v5253
    %v5255 = vand.u32 %v5254, 4294901760
    %5256 = vmatpush.msra.mxu0 %v5255
    %v5257 = vand.u32 %v2671, 4294901760
    %v5258 = vsub.f32 %v2671, %v5257
    %v5259 = vand.u32 %v5258, 4294901760
    %v5260 = vsub.f32 %v5258, %v5259
    %v5261 = vand.u32 %v5260, 4294901760
    %5262 = vmatpush.msra.mxu0 %v5261
    %v5263 = vand.u32 %v5196, 4294901760
    %5264 = vmatmul.f32.gmra.mxu0 %v5263
    %v5265 = vpop.f32.mrf.mxu0
    %v5266 = vadd.f32 %v5225, %v5265
    %5267 = vdwg.mxu0
    %5268 = vmatpush.msra.mxu0 0.0
    %5269 = vmatpush.msra.mxu0 0.0
    %5270 = vmatpush.msra.mxu0 0.0
    %5271 = vmatpush.msra.mxu0 0.0
    %5272 = vmatpush.msra.mxu0 0.0
    %5273 = vmatpush.msra.mxu0 0.0
    %5274 = vmatpush.msra.mxu0 0.0
    %5275 = vmatpush.msra.mxu0 0.0
    %5276 = vmatpush.msra.mxu0 0.0
    %5277 = vmatpush.msra.mxu0 0.0
    %5278 = vmatpush.msra.mxu0 0.0
    %5279 = vmatpush.msra.mxu0 0.0
    %v5280 = vand.u32 %v2674, 4294901760
    %v5281 = vsub.f32 %v2674, %v5280
    %5282 = vmatpush.msra.mxu0 %v5281
    %v5283 = vand.u32 %v2673, 4294901760
    %v5284 = vsub.f32 %v2673, %v5283
    %5285 = vmatpush.msra.mxu0 %v5284
    %v5286 = vand.u32 %v2672, 4294901760
    %v5287 = vsub.f32 %v2672, %v5286
    %5288 = vmatpush.msra.mxu0 %v5287
    %v5289 = vand.u32 %v2671, 4294901760
    %v5290 = vsub.f32 %v2671, %v5289
    %5291 = vmatpush.msra.mxu0 %v5290
    %v5292 = vand.u32 %v5196, 4294901760
    %v5293 = vsub.f32 %v5196, %v5292
    %5294 = vmatmul.f32.gmra.mxu0 %v5293
    %v5295 = vpop.f32.mrf.mxu0
    %v5296 = vadd.f32 %v5266, %v5295
    %5297 = vdwg.mxu0
    %5298 = vmatpush.msra.mxu0 0.0
    %5299 = vmatpush.msra.mxu0 0.0
    %5300 = vmatpush.msra.mxu0 0.0
    %5301 = vmatpush.msra.mxu0 0.0
    %5302 = vmatpush.msra.mxu0 0.0
    %5303 = vmatpush.msra.mxu0 0.0
    %5304 = vmatpush.msra.mxu0 0.0
    %5305 = vmatpush.msra.mxu0 0.0
    %5306 = vmatpush.msra.mxu0 0.0
    %5307 = vmatpush.msra.mxu0 0.0
    %5308 = vmatpush.msra.mxu0 0.0
    %5309 = vmatpush.msra.mxu0 0.0
    %v5310 = vand.u32 %v2674, 4294901760
    %5311 = vmatpush.msra.mxu0 %v5310
    %v5312 = vand.u32 %v2673, 4294901760
    %5313 = vmatpush.msra.mxu0 %v5312
    %v5314 = vand.u32 %v2672, 4294901760
    %5315 = vmatpush.msra.mxu0 %v5314
    %v5316 = vand.u32 %v2671, 4294901760
    %5317 = vmatpush.msra.mxu0 %v5316
    %v5318 = vand.u32 %v5196, 4294901760
    %v5319 = vsub.f32 %v5196, %v5318
    %v5320 = vand.u32 %v5319, 4294901760
    %5321 = vmatmul.f32.gmra.mxu0 %v5320
    %v5322 = vpop.f32.mrf.mxu0
    %v5323 = vadd.f32 %v5296, %v5322
    %5324 = vdwg.mxu0
    %5325 = vmatpush.msra.mxu0 0.0
    %5326 = vmatpush.msra.mxu0 0.0
    %5327 = vmatpush.msra.mxu0 0.0
    %5328 = vmatpush.msra.mxu0 0.0
    %5329 = vmatpush.msra.mxu0 0.0
    %5330 = vmatpush.msra.mxu0 0.0
    %5331 = vmatpush.msra.mxu0 0.0
    %5332 = vmatpush.msra.mxu0 0.0
    %5333 = vmatpush.msra.mxu0 0.0
    %5334 = vmatpush.msra.mxu0 0.0
    %5335 = vmatpush.msra.mxu0 0.0
    %5336 = vmatpush.msra.mxu0 0.0
    %v5337 = vand.u32 %v2674, 4294901760
    %v5338 = vsub.f32 %v2674, %v5337
    %v5339 = vand.u32 %v5338, 4294901760
    %5340 = vmatpush.msra.mxu0 %v5339
    %v5341 = vand.u32 %v2673, 4294901760
    %v5342 = vsub.f32 %v2673, %v5341
    %v5343 = vand.u32 %v5342, 4294901760
    %5344 = vmatpush.msra.mxu0 %v5343
    %v5345 = vand.u32 %v2672, 4294901760
    %v5346 = vsub.f32 %v2672, %v5345
    %v5347 = vand.u32 %v5346, 4294901760
    %5348 = vmatpush.msra.mxu0 %v5347
    %v5349 = vand.u32 %v2671, 4294901760
    %v5350 = vsub.f32 %v2671, %v5349
    %v5351 = vand.u32 %v5350, 4294901760
    %5352 = vmatpush.msra.mxu0 %v5351
    %v5353 = vand.u32 %v5196, 4294901760
    %5354 = vmatmul.f32.gmra.mxu0 %v5353
    %v5355 = vpop.f32.mrf.mxu0
    %v5356 = vadd.f32 %v5323, %v5355
    %5357 = vdwg.mxu0
    %5358 = vmatpush.msra.mxu0 0.0
    %5359 = vmatpush.msra.mxu0 0.0
    %5360 = vmatpush.msra.mxu0 0.0
    %5361 = vmatpush.msra.mxu0 0.0
    %5362 = vmatpush.msra.mxu0 0.0
    %5363 = vmatpush.msra.mxu0 0.0
    %5364 = vmatpush.msra.mxu0 0.0
    %5365 = vmatpush.msra.mxu0 0.0
    %5366 = vmatpush.msra.mxu0 0.0
    %5367 = vmatpush.msra.mxu0 0.0
    %5368 = vmatpush.msra.mxu0 0.0
    %5369 = vmatpush.msra.mxu0 0.0
    %v5370 = vand.u32 %v2674, 4294901760
    %5371 = vmatpush.msra.mxu0 %v5370
    %v5372 = vand.u32 %v2673, 4294901760
    %5373 = vmatpush.msra.mxu0 %v5372
    %v5374 = vand.u32 %v2672, 4294901760
    %5375 = vmatpush.msra.mxu0 %v5374
    %v5376 = vand.u32 %v2671, 4294901760
    %5377 = vmatpush.msra.mxu0 %v5376
    %v5378 = vand.u32 %v5196, 4294901760
    %5379 = vmatmul.f32.gmra.mxu0 %v5378
    %v5380 = vpop.f32.mrf.mxu0
    %v5381 = vadd.f32 %v5356, %v5380
    %5382 = vdwg.mxu0
    %v5383 = vadd.f32 %v2669, %v5381
    %v5384 = vxor.u32 %v5383, 2147483648
    %v5385 = vmul.f32 %v5384, 1.442695
    %v5386 = vpow.pop %v5385
    %v5387 = vadd.f32 %v5386, 1.0
    %v5388 = vrcp.pop %v5387
    %v5389 = vmul.f32 %v5387, %v5388
    %v5390 = vsub.f32 1.0, %v5389
    %v5391 = vmul.f32 %v5388, %v5390
    %v5392 = vadd.f32 %v5388, %v5391
    %vm5393 = vweird.f32 %v5387
    %vm5394 = vweird.f32 %v5388
    %vm5395 = vmor %vm5393, %vm5394
    %v5396 = vsel %vm5395, %v5388, %v5392
    %v5397 = vand.u32 2147483647, %v5387
    %vm5398 = vcmp.eq.f32.partialorder %v5397, 8.507059e+37
    %v5399 = vand.u32 %v5387, 2147483648
    %v5400 = vor.u32 1.1754944e-38, %v5399
    %v5401 = vsel %vm5398, %v5400, %v5396
    %v5402 = vmul.f32 1.0, %v5401
    %5404 = vrot.lane.b32.xlu0 %v5381, 64
    %v5405 = vpop.permute.xlu0 %5404
    %v5407 = vmul.f32 %v5402, %v5405
    %5409 = vrot.lane.b32.xlu0 %v5407, 64
    %v5410 = vpop.permute.xlu0 %5409
    %v5412 = vadd.f32 %v2669, %v5410
    %v5413 = vtanh.pop %v5412
    %v5414 = vsub.f32 1.0, %v5402
    %5416 = vrot.lane.b32.xlu0 %v5413, 96
    %v5417 = vpop.permute.xlu0 %5416
    %v5419 = vmul.f32 %v5414, %v5417
    %v5420 = vmul.f32 %v5402, %v5192
    %v5421 = vadd.f32 %v5419, %v5420
    %5423 = vrot.lane.b32.xlu0 %v5421, 96
    %v5424 = vpop.permute.xlu0 %5423
    %v5425 = vsel %vm642, %v5424, 0
    %5427 = vmatpush.msra.mxu0 0.0
    %5428 = vmatpush.msra.mxu0 0.0
    %5429 = vmatpush.msra.mxu0 0.0
    %5430 = vmatpush.msra.mxu0 0.0
    %5431 = vmatpush.msra.mxu0 0.0
    %5432 = vmatpush.msra.mxu0 0.0
    %5433 = vmatpush.msra.mxu0 0.0
    %5434 = vmatpush.msra.mxu0 0.0
    %5435 = vmatpush.msra.mxu0 0.0
    %5436 = vmatpush.msra.mxu0 0.0
    %5437 = vmatpush.msra.mxu0 0.0
    %5438 = vmatpush.msra.mxu0 0.0
    %v5439 = vand.u32 %v2674, 4294901760
    %5440 = vmatpush.msra.mxu0 %v5439
    %v5441 = vand.u32 %v2673, 4294901760
    %5442 = vmatpush.msra.mxu0 %v5441
    %v5443 = vand.u32 %v2672, 4294901760
    %5444 = vmatpush.msra.mxu0 %v5443
    %v5445 = vand.u32 %v2671, 4294901760
    %5446 = vmatpush.msra.mxu0 %v5445
    %v5447 = vand.u32 %v5425, 4294901760
    %v5448 = vsub.f32 %v5425, %v5447
    %v5449 = vand.u32 %v5448, 4294901760
    %v5450 = vsub.f32 %v5448, %v5449
    %v5451 = vand.u32 %v5450, 4294901760
    %5452 = vmatmul.f32.gmra.mxu0 %v5451
    %v5453 = vpop.f32.mrf.mxu0
    %v5454 = vadd.f32 %v2677, %v5453
    %5455 = vdwg.mxu0
    %5456 = vmatpush.msra.mxu0 0.0
    %5457 = vmatpush.msra.mxu0 0.0
    %5458 = vmatpush.msra.mxu0 0.0
    %5459 = vmatpush.msra.mxu0 0.0
    %5460 = vmatpush.msra.mxu0 0.0
    %5461 = vmatpush.msra.mxu0 0.0
    %5462 = vmatpush.msra.mxu0 0.0
    %5463 = vmatpush.msra.mxu0 0.0
    %5464 = vmatpush.msra.mxu0 0.0
    %5465 = vmatpush.msra.mxu0 0.0
    %5466 = vmatpush.msra.mxu0 0.0
    %5467 = vmatpush.msra.mxu0 0.0
    %v5468 = vand.u32 %v2674, 4294901760
    %v5469 = vsub.f32 %v2674, %v5468
    %v5470 = vand.u32 %v5469, 4294901760
    %v5471 = vsub.f32 %v5469, %v5470
    %v5472 = vand.u32 %v5471, 4294901760
    %5473 = vmatpush.msra.mxu0 %v5472
    %v5474 = vand.u32 %v2673, 4294901760
    %v5475 = vsub.f32 %v2673, %v5474
    %v5476 = vand.u32 %v5475, 4294901760
    %v5477 = vsub.f32 %v5475, %v5476
    %v5478 = vand.u32 %v5477, 4294901760
    %5479 = vmatpush.msra.mxu0 %v5478
    %v5480 = vand.u32 %v2672, 4294901760
    %v5481 = vsub.f32 %v2672, %v5480
    %v5482 = vand.u32 %v5481, 4294901760
    %v5483 = vsub.f32 %v5481, %v5482
    %v5484 = vand.u32 %v5483, 4294901760
    %5485 = vmatpush.msra.mxu0 %v5484
    %v5486 = vand.u32 %v2671, 4294901760
    %v5487 = vsub.f32 %v2671, %v5486
    %v5488 = vand.u32 %v5487, 4294901760
    %v5489 = vsub.f32 %v5487, %v5488
    %v5490 = vand.u32 %v5489, 4294901760
    %5491 = vmatpush.msra.mxu0 %v5490
    %v5492 = vand.u32 %v5425, 4294901760
    %5493 = vmatmul.f32.gmra.mxu0 %v5492
    %v5494 = vpop.f32.mrf.mxu0
    %v5495 = vadd.f32 %v5454, %v5494
    %5496 = vdwg.mxu0
    %5497 = vmatpush.msra.mxu0 0.0
    %5498 = vmatpush.msra.mxu0 0.0
    %5499 = vmatpush.msra.mxu0 0.0
    %5500 = vmatpush.msra.mxu0 0.0
    %5501 = vmatpush.msra.mxu0 0.0
    %5502 = vmatpush.msra.mxu0 0.0
    %5503 = vmatpush.msra.mxu0 0.0
    %5504 = vmatpush.msra.mxu0 0.0
    %5505 = vmatpush.msra.mxu0 0.0
    %5506 = vmatpush.msra.mxu0 0.0
    %5507 = vmatpush.msra.mxu0 0.0
    %5508 = vmatpush.msra.mxu0 0.0
    %v5509 = vand.u32 %v2674, 4294901760
    %v5510 = vsub.f32 %v2674, %v5509
    %5511 = vmatpush.msra.mxu0 %v5510
    %v5512 = vand.u32 %v2673, 4294901760
    %v5513 = vsub.f32 %v2673, %v5512
    %5514 = vmatpush.msra.mxu0 %v5513
    %v5515 = vand.u32 %v2672, 4294901760
    %v5516 = vsub.f32 %v2672, %v5515
    %5517 = vmatpush.msra.mxu0 %v5516
    %v5518 = vand.u32 %v2671, 4294901760
    %v5519 = vsub.f32 %v2671, %v5518
    %5520 = vmatpush.msra.mxu0 %v5519
    %v5521 = vand.u32 %v5425, 4294901760
    %v5522 = vsub.f32 %v5425, %v5521
    %5523 = vmatmul.f32.gmra.mxu0 %v5522
    %v5524 = vpop.f32.mrf.mxu0
    %v5525 = vadd.f32 %v5495, %v5524
    %5526 = vdwg.mxu0
    %5527 = vmatpush.msra.mxu0 0.0
    %5528 = vmatpush.msra.mxu0 0.0
    %5529 = vmatpush.msra.mxu0 0.0
    %5530 = vmatpush.msra.mxu0 0.0
    %5531 = vmatpush.msra.mxu0 0.0
    %5532 = vmatpush.msra.mxu0 0.0
    %5533 = vmatpush.msra.mxu0 0.0
    %5534 = vmatpush.msra.mxu0 0.0
    %5535 = vmatpush.msra.mxu0 0.0
    %5536 = vmatpush.msra.mxu0 0.0
    %5537 = vmatpush.msra.mxu0 0.0
    %5538 = vmatpush.msra.mxu0 0.0
    %v5539 = vand.u32 %v2674, 4294901760
    %5540 = vmatpush.msra.mxu0 %v5539
    %v5541 = vand.u32 %v2673, 4294901760
    %5542 = vmatpush.msra.mxu0 %v5541
    %v5543 = vand.u32 %v2672, 4294901760
    %5544 = vmatpush.msra.mxu0 %v5543
    %v5545 = vand.u32 %v2671, 4294901760
    %5546 = vmatpush.msra.mxu0 %v5545
    %v5547 = vand.u32 %v5425, 4294901760
    %v5548 = vsub.f32 %v5425, %v5547
    %v5549 = vand.u32 %v5548, 4294901760
    %5550 = vmatmul.f32.gmra.mxu0 %v5549
    %v5551 = vpop.f32.mrf.mxu0
    %v5552 = vadd.f32 %v5525, %v5551
    %5553 = vdwg.mxu0
    %5554 = vmatpush.msra.mxu0 0.0
    %5555 = vmatpush.msra.mxu0 0.0
    %5556 = vmatpush.msra.mxu0 0.0
    %5557 = vmatpush.msra.mxu0 0.0
    %5558 = vmatpush.msra.mxu0 0.0
    %5559 = vmatpush.msra.mxu0 0.0
    %5560 = vmatpush.msra.mxu0 0.0
    %5561 = vmatpush.msra.mxu0 0.0
    %5562 = vmatpush.msra.mxu0 0.0
    %5563 = vmatpush.msra.mxu0 0.0
    %5564 = vmatpush.msra.mxu0 0.0
    %5565 = vmatpush.msra.mxu0 0.0
    %v5566 = vand.u32 %v2674, 4294901760
    %v5567 = vsub.f32 %v2674, %v5566
    %v5568 = vand.u32 %v5567, 4294901760
    %5569 = vmatpush.msra.mxu0 %v5568
    %v5570 = vand.u32 %v2673, 4294901760
    %v5571 = vsub.f32 %v2673, %v5570
    %v5572 = vand.u32 %v5571, 4294901760
    %5573 = vmatpush.msra.mxu0 %v5572
    %v5574 = vand.u32 %v2672, 4294901760
    %v5575 = vsub.f32 %v2672, %v5574
    %v5576 = vand.u32 %v5575, 4294901760
    %5577 = vmatpush.msra.mxu0 %v5576
    %v5578 = vand.u32 %v2671, 4294901760
    %v5579 = vsub.f32 %v2671, %v5578
    %v5580 = vand.u32 %v5579, 4294901760
    %5581 = vmatpush.msra.mxu0 %v5580
    %v5582 = vand.u32 %v5425, 4294901760
    %5583 = vmatmul.f32.gmra.mxu0 %v5582
    %v5584 = vpop.f32.mrf.mxu0
    %v5585 = vadd.f32 %v5552, %v5584
    %5586 = vdwg.mxu0
    %5587 = vmatpush.msra.mxu0 0.0
    %5588 = vmatpush.msra.mxu0 0.0
    %5589 = vmatpush.msra.mxu0 0.0
    %5590 = vmatpush.msra.mxu0 0.0
    %5591 = vmatpush.msra.mxu0 0.0
    %5592 = vmatpush.msra.mxu0 0.0
    %5593 = vmatpush.msra.mxu0 0.0
    %5594 = vmatpush.msra.mxu0 0.0
    %5595 = vmatpush.msra.mxu0 0.0
    %5596 = vmatpush.msra.mxu0 0.0
    %5597 = vmatpush.msra.mxu0 0.0
    %5598 = vmatpush.msra.mxu0 0.0
    %v5599 = vand.u32 %v2674, 4294901760
    %5600 = vmatpush.msra.mxu0 %v5599
    %v5601 = vand.u32 %v2673, 4294901760
    %5602 = vmatpush.msra.mxu0 %v5601
    %v5603 = vand.u32 %v2672, 4294901760
    %5604 = vmatpush.msra.mxu0 %v5603
    %v5605 = vand.u32 %v2671, 4294901760
    %5606 = vmatpush.msra.mxu0 %v5605
    %v5607 = vand.u32 %v5425, 4294901760
    %5608 = vmatmul.f32.gmra.mxu0 %v5607
    %v5609 = vpop.f32.mrf.mxu0
    %v5610 = vadd.f32 %v5585, %v5609
    %5611 = vdwg.mxu0
    %v5612 = vadd.f32 %v2669, %v5610
    %v5613 = vxor.u32 %v5612, 2147483648
    %v5614 = vmul.f32 %v5613, 1.442695
    %v5615 = vpow.pop %v5614
    %v5616 = vadd.f32 %v5615, 1.0
    %v5617 = vrcp.pop %v5616
    %v5618 = vmul.f32 %v5616, %v5617
    %v5619 = vsub.f32 1.0, %v5618
    %v5620 = vmul.f32 %v5617, %v5619
    %v5621 = vadd.f32 %v5617, %v5620
    %vm5622 = vweird.f32 %v5616
    %vm5623 = vweird.f32 %v5617
    %vm5624 = vmor %vm5622, %vm5623
    %v5625 = vsel %vm5624, %v5617, %v5621
    %v5626 = vand.u32 2147483647, %v5616
    %vm5627 = vcmp.eq.f32.partialorder %v5626, 8.507059e+37
    %v5628 = vand.u32 %v5616, 2147483648
    %v5629 = vor.u32 1.1754944e-38, %v5628
    %v5630 = vsel %vm5627, %v5629, %v5625
    %v5631 = vmul.f32 1.0, %v5630
    %5633 = vrot.lane.b32.xlu0 %v5610, 64
    %v5634 = vpop.permute.xlu0 %5633
    %v5636 = vmul.f32 %v5631, %v5634
    %5638 = vrot.lane.b32.xlu0 %v5636, 64
    %v5639 = vpop.permute.xlu0 %5638
    %v5641 = vadd.f32 %v2669, %v5639
    %v5642 = vtanh.pop %v5641
    %v5643 = vsub.f32 1.0, %v5631
    %5645 = vrot.lane.b32.xlu0 %v5642, 96
    %v5646 = vpop.permute.xlu0 %5645
    %v5648 = vmul.f32 %v5643, %v5646
    %v5649 = vmul.f32 %v5631, %v5421
    %v5650 = vadd.f32 %v5648, %v5649
    %5652 = vrot.lane.b32.xlu0 %v5650, 96
    %v5653 = vpop.permute.xlu0 %5652
    %v5654 = vsel %vm642, %v5653, 0
    %5656 = vmatpush.msra.mxu0 0.0
    %5657 = vmatpush.msra.mxu0 0.0
    %5658 = vmatpush.msra.mxu0 0.0
    %5659 = vmatpush.msra.mxu0 0.0
    %5660 = vmatpush.msra.mxu0 0.0
    %5661 = vmatpush.msra.mxu0 0.0
    %5662 = vmatpush.msra.mxu0 0.0
    %5663 = vmatpush.msra.mxu0 0.0
    %5664 = vmatpush.msra.mxu0 0.0
    %5665 = vmatpush.msra.mxu0 0.0
    %5666 = vmatpush.msra.mxu0 0.0
    %5667 = vmatpush.msra.mxu0 0.0
    %v5668 = vand.u32 %v2674, 4294901760
    %5669 = vmatpush.msra.mxu0 %v5668
    %v5670 = vand.u32 %v2673, 4294901760
    %5671 = vmatpush.msra.mxu0 %v5670
    %v5672 = vand.u32 %v2672, 4294901760
    %5673 = vmatpush.msra.mxu0 %v5672
    %v5674 = vand.u32 %v2671, 4294901760
    %5675 = vmatpush.msra.mxu0 %v5674
    %v5676 = vand.u32 %v5654, 4294901760
    %v5677 = vsub.f32 %v5654, %v5676
    %v5678 = vand.u32 %v5677, 4294901760
    %v5679 = vsub.f32 %v5677, %v5678
    %v5680 = vand.u32 %v5679, 4294901760
    %5681 = vmatmul.f32.gmra.mxu0 %v5680
    %v5682 = vpop.f32.mrf.mxu0
    %v5683 = vadd.f32 %v2677, %v5682
    %5684 = vdwg.mxu0
    %5685 = vmatpush.msra.mxu0 0.0
    %5686 = vmatpush.msra.mxu0 0.0
    %5687 = vmatpush.msra.mxu0 0.0
    %5688 = vmatpush.msra.mxu0 0.0
    %5689 = vmatpush.msra.mxu0 0.0
    %5690 = vmatpush.msra.mxu0 0.0
    %5691 = vmatpush.msra.mxu0 0.0
    %5692 = vmatpush.msra.mxu0 0.0
    %5693 = vmatpush.msra.mxu0 0.0
    %5694 = vmatpush.msra.mxu0 0.0
    %5695 = vmatpush.msra.mxu0 0.0
    %5696 = vmatpush.msra.mxu0 0.0
    %v5697 = vand.u32 %v2674, 4294901760
    %v5698 = vsub.f32 %v2674, %v5697
    %v5699 = vand.u32 %v5698, 4294901760
    %v5700 = vsub.f32 %v5698, %v5699
    %v5701 = vand.u32 %v5700, 4294901760
    %5702 = vmatpush.msra.mxu0 %v5701
    %v5703 = vand.u32 %v2673, 4294901760
    %v5704 = vsub.f32 %v2673, %v5703
    %v5705 = vand.u32 %v5704, 4294901760
    %v5706 = vsub.f32 %v5704, %v5705
    %v5707 = vand.u32 %v5706, 4294901760
    %5708 = vmatpush.msra.mxu0 %v5707
    %v5709 = vand.u32 %v2672, 4294901760
    %v5710 = vsub.f32 %v2672, %v5709
    %v5711 = vand.u32 %v5710, 4294901760
    %v5712 = vsub.f32 %v5710, %v5711
    %v5713 = vand.u32 %v5712, 4294901760
    %5714 = vmatpush.msra.mxu0 %v5713
    %v5715 = vand.u32 %v2671, 4294901760
    %v5716 = vsub.f32 %v2671, %v5715
    %v5717 = vand.u32 %v5716, 4294901760
    %v5718 = vsub.f32 %v5716, %v5717
    %v5719 = vand.u32 %v5718, 4294901760
    %5720 = vmatpush.msra.mxu0 %v5719
    %v5721 = vand.u32 %v5654, 4294901760
    %5722 = vmatmul.f32.gmra.mxu0 %v5721
    %v5723 = vpop.f32.mrf.mxu0
    %v5724 = vadd.f32 %v5683, %v5723
    %5725 = vdwg.mxu0
    %5726 = vmatpush.msra.mxu0 0.0
    %5727 = vmatpush.msra.mxu0 0.0
    %5728 = vmatpush.msra.mxu0 0.0
    %5729 = vmatpush.msra.mxu0 0.0
    %5730 = vmatpush.msra.mxu0 0.0
    %5731 = vmatpush.msra.mxu0 0.0
    %5732 = vmatpush.msra.mxu0 0.0
    %5733 = vmatpush.msra.mxu0 0.0
    %5734 = vmatpush.msra.mxu0 0.0
    %5735 = vmatpush.msra.mxu0 0.0
    %5736 = vmatpush.msra.mxu0 0.0
    %5737 = vmatpush.msra.mxu0 0.0
    %v5738 = vand.u32 %v2674, 4294901760
    %v5739 = vsub.f32 %v2674, %v5738
    %5740 = vmatpush.msra.mxu0 %v5739
    %v5741 = vand.u32 %v2673, 4294901760
    %v5742 = vsub.f32 %v2673, %v5741
    %5743 = vmatpush.msra.mxu0 %v5742
    %v5744 = vand.u32 %v2672, 4294901760
    %v5745 = vsub.f32 %v2672, %v5744
    %5746 = vmatpush.msra.mxu0 %v5745
    %v5747 = vand.u32 %v2671, 4294901760
    %v5748 = vsub.f32 %v2671, %v5747
    %5749 = vmatpush.msra.mxu0 %v5748
    %v5750 = vand.u32 %v5654, 4294901760
    %v5751 = vsub.f32 %v5654, %v5750
    %5752 = vmatmul.f32.gmra.mxu0 %v5751
    %v5753 = vpop.f32.mrf.mxu0
    %v5754 = vadd.f32 %v5724, %v5753
    %5755 = vdwg.mxu0
    %5756 = vmatpush.msra.mxu0 0.0
    %5757 = vmatpush.msra.mxu0 0.0
    %5758 = vmatpush.msra.mxu0 0.0
    %5759 = vmatpush.msra.mxu0 0.0
    %5760 = vmatpush.msra.mxu0 0.0
    %5761 = vmatpush.msra.mxu0 0.0
    %5762 = vmatpush.msra.mxu0 0.0
    %5763 = vmatpush.msra.mxu0 0.0
    %5764 = vmatpush.msra.mxu0 0.0
    %5765 = vmatpush.msra.mxu0 0.0
    %5766 = vmatpush.msra.mxu0 0.0
    %5767 = vmatpush.msra.mxu0 0.0
    %v5768 = vand.u32 %v2674, 4294901760
    %5769 = vmatpush.msra.mxu0 %v5768
    %v5770 = vand.u32 %v2673, 4294901760
    %5771 = vmatpush.msra.mxu0 %v5770
    %v5772 = vand.u32 %v2672, 4294901760
    %5773 = vmatpush.msra.mxu0 %v5772
    %v5774 = vand.u32 %v2671, 4294901760
    %5775 = vmatpush.msra.mxu0 %v5774
    %v5776 = vand.u32 %v5654, 4294901760
    %v5777 = vsub.f32 %v5654, %v5776
    %v5778 = vand.u32 %v5777, 4294901760
    %5779 = vmatmul.f32.gmra.mxu0 %v5778
    %v5780 = vpop.f32.mrf.mxu0
    %v5781 = vadd.f32 %v5754, %v5780
    %5782 = vdwg.mxu0
    %5783 = vmatpush.msra.mxu0 0.0
    %5784 = vmatpush.msra.mxu0 0.0
    %5785 = vmatpush.msra.mxu0 0.0
    %5786 = vmatpush.msra.mxu0 0.0
    %5787 = vmatpush.msra.mxu0 0.0
    %5788 = vmatpush.msra.mxu0 0.0
    %5789 = vmatpush.msra.mxu0 0.0
    %5790 = vmatpush.msra.mxu0 0.0
    %5791 = vmatpush.msra.mxu0 0.0
    %5792 = vmatpush.msra.mxu0 0.0
    %5793 = vmatpush.msra.mxu0 0.0
    %5794 = vmatpush.msra.mxu0 0.0
    %v5795 = vand.u32 %v2674, 4294901760
    %v5796 = vsub.f32 %v2674, %v5795
    %v5797 = vand.u32 %v5796, 4294901760
    %5798 = vmatpush.msra.mxu0 %v5797
    %v5799 = vand.u32 %v2673, 4294901760
    %v5800 = vsub.f32 %v2673, %v5799
    %v5801 = vand.u32 %v5800, 4294901760
    %5802 = vmatpush.msra.mxu0 %v5801
    %v5803 = vand.u32 %v2672, 4294901760
    %v5804 = vsub.f32 %v2672, %v5803
    %v5805 = vand.u32 %v5804, 4294901760
    %5806 = vmatpush.msra.mxu0 %v5805
    %v5807 = vand.u32 %v2671, 4294901760
    %v5808 = vsub.f32 %v2671, %v5807
    %v5809 = vand.u32 %v5808, 4294901760
    %5810 = vmatpush.msra.mxu0 %v5809
    %v5811 = vand.u32 %v5654, 4294901760
    %5812 = vmatmul.f32.gmra.mxu0 %v5811
    %v5813 = vpop.f32.mrf.mxu0
    %v5814 = vadd.f32 %v5781, %v5813
    %5815 = vdwg.mxu0
    %5816 = vmatpush.msra.mxu0 0.0
    %5817 = vmatpush.msra.mxu0 0.0
    %5818 = vmatpush.msra.mxu0 0.0
    %5819 = vmatpush.msra.mxu0 0.0
    %5820 = vmatpush.msra.mxu0 0.0
    %5821 = vmatpush.msra.mxu0 0.0
    %5822 = vmatpush.msra.mxu0 0.0
    %5823 = vmatpush.msra.mxu0 0.0
    %5824 = vmatpush.msra.mxu0 0.0
    %5825 = vmatpush.msra.mxu0 0.0
    %5826 = vmatpush.msra.mxu0 0.0
    %5827 = vmatpush.msra.mxu0 0.0
    %v5828 = vand.u32 %v2674, 4294901760
    %5829 = vmatpush.msra.mxu0 %v5828
    %v5830 = vand.u32 %v2673, 4294901760
    %5831 = vmatpush.msra.mxu0 %v5830
    %v5832 = vand.u32 %v2672, 4294901760
    %5833 = vmatpush.msra.mxu0 %v5832
    %v5834 = vand.u32 %v2671, 4294901760
    %5835 = vmatpush.msra.mxu0 %v5834
    %v5836 = vand.u32 %v5654, 4294901760
    %5837 = vmatmul.f32.gmra.mxu0 %v5836
    %v5838 = vpop.f32.mrf.mxu0
    %v5839 = vadd.f32 %v5814, %v5838
    %5840 = vdwg.mxu0
    %v5841 = vadd.f32 %v2669, %v5839
    %v5842 = vxor.u32 %v5841, 2147483648
    %v5843 = vmul.f32 %v5842, 1.442695
    %v5844 = vpow.pop %v5843
    %v5845 = vadd.f32 %v5844, 1.0
    %v5846 = vrcp.pop %v5845
    %v5847 = vmul.f32 %v5845, %v5846
    %v5848 = vsub.f32 1.0, %v5847
    %v5849 = vmul.f32 %v5846, %v5848
    %v5850 = vadd.f32 %v5846, %v5849
    %vm5851 = vweird.f32 %v5845
    %vm5852 = vweird.f32 %v5846
    %vm5853 = vmor %vm5851, %vm5852
    %v5854 = vsel %vm5853, %v5846, %v5850
    %v5855 = vand.u32 2147483647, %v5845
    %vm5856 = vcmp.eq.f32.partialorder %v5855, 8.507059e+37
    %v5857 = vand.u32 %v5845, 2147483648
    %v5858 = vor.u32 1.1754944e-38, %v5857
    %v5859 = vsel %vm5856, %v5858, %v5854
    %v5860 = vmul.f32 1.0, %v5859
    %5862 = vrot.lane.b32.xlu0 %v5839, 64
    %v5863 = vpop.permute.xlu0 %5862
    %v5865 = vmul.f32 %v5860, %v5863
    %5867 = vrot.lane.b32.xlu0 %v5865, 64
    %v5868 = vpop.permute.xlu0 %5867
    %v5870 = vadd.f32 %v2669, %v5868
    %v5871 = vtanh.pop %v5870
    %v5872 = vsub.f32 1.0, %v5860
    %5874 = vrot.lane.b32.xlu0 %v5871, 96
    %v5875 = vpop.permute.xlu0 %5874
    %v5877 = vmul.f32 %v5872, %v5875
    %v5878 = vmul.f32 %v5860, %v5650
    %v5879 = vadd.f32 %v5877, %v5878
    %5881 = vrot.lane.b32.xlu0 %v5879, 96
    %v5882 = vpop.permute.xlu0 %5881
    %v5883 = vsel %vm642, %v5882, 0
    %5885 = vmatpush.msra.mxu0 0.0
    %5886 = vmatpush.msra.mxu0 0.0
    %5887 = vmatpush.msra.mxu0 0.0
    %5888 = vmatpush.msra.mxu0 0.0
    %5889 = vmatpush.msra.mxu0 0.0
    %5890 = vmatpush.msra.mxu0 0.0
    %5891 = vmatpush.msra.mxu0 0.0
    %5892 = vmatpush.msra.mxu0 0.0
    %5893 = vmatpush.msra.mxu0 0.0
    %5894 = vmatpush.msra.mxu0 0.0
    %5895 = vmatpush.msra.mxu0 0.0
    %5896 = vmatpush.msra.mxu0 0.0
    %v5897 = vand.u32 %v2674, 4294901760
    %5898 = vmatpush.msra.mxu0 %v5897
    %v5899 = vand.u32 %v2673, 4294901760
    %5900 = vmatpush.msra.mxu0 %v5899
    %v5901 = vand.u32 %v2672, 4294901760
    %5902 = vmatpush.msra.mxu0 %v5901
    %v5903 = vand.u32 %v2671, 4294901760
    %5904 = vmatpush.msra.mxu0 %v5903
    %v5905 = vand.u32 %v5883, 4294901760
    %v5906 = vsub.f32 %v5883, %v5905
    %v5907 = vand.u32 %v5906, 4294901760
    %v5908 = vsub.f32 %v5906, %v5907
    %v5909 = vand.u32 %v5908, 4294901760
    %5910 = vmatmul.f32.gmra.mxu0 %v5909
    %v5911 = vpop.f32.mrf.mxu0
    %v5912 = vadd.f32 %v2677, %v5911
    %5913 = vdwg.mxu0
    %5914 = vmatpush.msra.mxu0 0.0
    %5915 = vmatpush.msra.mxu0 0.0
    %5916 = vmatpush.msra.mxu0 0.0
    %5917 = vmatpush.msra.mxu0 0.0
    %5918 = vmatpush.msra.mxu0 0.0
    %5919 = vmatpush.msra.mxu0 0.0
    %5920 = vmatpush.msra.mxu0 0.0
    %5921 = vmatpush.msra.mxu0 0.0
    %5922 = vmatpush.msra.mxu0 0.0
    %5923 = vmatpush.msra.mxu0 0.0
    %5924 = vmatpush.msra.mxu0 0.0
    %5925 = vmatpush.msra.mxu0 0.0
    %v5926 = vand.u32 %v2674, 4294901760
    %v5927 = vsub.f32 %v2674, %v5926
    %v5928 = vand.u32 %v5927, 4294901760
    %v5929 = vsub.f32 %v5927, %v5928
    %v5930 = vand.u32 %v5929, 4294901760
    %5931 = vmatpush.msra.mxu0 %v5930
    %v5932 = vand.u32 %v2673, 4294901760
    %v5933 = vsub.f32 %v2673, %v5932
    %v5934 = vand.u32 %v5933, 4294901760
    %v5935 = vsub.f32 %v5933, %v5934
    %v5936 = vand.u32 %v5935, 4294901760
    %5937 = vmatpush.msra.mxu0 %v5936
    %v5938 = vand.u32 %v2672, 4294901760
    %v5939 = vsub.f32 %v2672, %v5938
    %v5940 = vand.u32 %v5939, 4294901760
    %v5941 = vsub.f32 %v5939, %v5940
    %v5942 = vand.u32 %v5941, 4294901760
    %5943 = vmatpush.msra.mxu0 %v5942
    %v5944 = vand.u32 %v2671, 4294901760
    %v5945 = vsub.f32 %v2671, %v5944
    %v5946 = vand.u32 %v5945, 4294901760
    %v5947 = vsub.f32 %v5945, %v5946
    %v5948 = vand.u32 %v5947, 4294901760
    %5949 = vmatpush.msra.mxu0 %v5948
    %v5950 = vand.u32 %v5883, 4294901760
    %5951 = vmatmul.f32.gmra.mxu0 %v5950
    %v5952 = vpop.f32.mrf.mxu0
    %v5953 = vadd.f32 %v5912, %v5952
    %5954 = vdwg.mxu0
    %5955 = vmatpush.msra.mxu0 0.0
    %5956 = vmatpush.msra.mxu0 0.0
    %5957 = vmatpush.msra.mxu0 0.0
    %5958 = vmatpush.msra.mxu0 0.0
    %5959 = vmatpush.msra.mxu0 0.0
    %5960 = vmatpush.msra.mxu0 0.0
    %5961 = vmatpush.msra.mxu0 0.0
    %5962 = vmatpush.msra.mxu0 0.0
    %5963 = vmatpush.msra.mxu0 0.0
    %5964 = vmatpush.msra.mxu0 0.0
    %5965 = vmatpush.msra.mxu0 0.0
    %5966 = vmatpush.msra.mxu0 0.0
    %v5967 = vand.u32 %v2674, 4294901760
    %v5968 = vsub.f32 %v2674, %v5967
    %5969 = vmatpush.msra.mxu0 %v5968
    %v5970 = vand.u32 %v2673, 4294901760
    %v5971 = vsub.f32 %v2673, %v5970
    %5972 = vmatpush.msra.mxu0 %v5971
    %v5973 = vand.u32 %v2672, 4294901760
    %v5974 = vsub.f32 %v2672, %v5973
    %5975 = vmatpush.msra.mxu0 %v5974
    %v5976 = vand.u32 %v2671, 4294901760
    %v5977 = vsub.f32 %v2671, %v5976
    %5978 = vmatpush.msra.mxu0 %v5977
    %v5979 = vand.u32 %v5883, 4294901760
    %v5980 = vsub.f32 %v5883, %v5979
    %5981 = vmatmul.f32.gmra.mxu0 %v5980
    %v5982 = vpop.f32.mrf.mxu0
    %v5983 = vadd.f32 %v5953, %v5982
    %5984 = vdwg.mxu0
    %5985 = vmatpush.msra.mxu0 0.0
    %5986 = vmatpush.msra.mxu0 0.0
    %5987 = vmatpush.msra.mxu0 0.0
    %5988 = vmatpush.msra.mxu0 0.0
    %5989 = vmatpush.msra.mxu0 0.0
    %5990 = vmatpush.msra.mxu0 0.0
    %5991 = vmatpush.msra.mxu0 0.0
    %5992 = vmatpush.msra.mxu0 0.0
    %5993 = vmatpush.msra.mxu0 0.0
    %5994 = vmatpush.msra.mxu0 0.0
    %5995 = vmatpush.msra.mxu0 0.0
    %5996 = vmatpush.msra.mxu0 0.0
    %v5997 = vand.u32 %v2674, 4294901760
    %5998 = vmatpush.msra.mxu0 %v5997
    %v5999 = vand.u32 %v2673, 4294901760
    %6000 = vmatpush.msra.mxu0 %v5999
    %v6001 = vand.u32 %v2672, 4294901760
    %6002 = vmatpush.msra.mxu0 %v6001
    %v6003 = vand.u32 %v2671, 4294901760
    %6004 = vmatpush.msra.mxu0 %v6003
    %v6005 = vand.u32 %v5883, 4294901760
    %v6006 = vsub.f32 %v5883, %v6005
    %v6007 = vand.u32 %v6006, 4294901760
    %6008 = vmatmul.f32.gmra.mxu0 %v6007
    %v6009 = vpop.f32.mrf.mxu0
    %v6010 = vadd.f32 %v5983, %v6009
    %6011 = vdwg.mxu0
    %6012 = vmatpush.msra.mxu0 0.0
    %6013 = vmatpush.msra.mxu0 0.0
    %6014 = vmatpush.msra.mxu0 0.0
    %6015 = vmatpush.msra.mxu0 0.0
    %6016 = vmatpush.msra.mxu0 0.0
    %6017 = vmatpush.msra.mxu0 0.0
    %6018 = vmatpush.msra.mxu0 0.0
    %6019 = vmatpush.msra.mxu0 0.0
    %6020 = vmatpush.msra.mxu0 0.0
    %6021 = vmatpush.msra.mxu0 0.0
    %6022 = vmatpush.msra.mxu0 0.0
    %6023 = vmatpush.msra.mxu0 0.0
    %v6024 = vand.u32 %v2674, 4294901760
    %v6025 = vsub.f32 %v2674, %v6024
    %v6026 = vand.u32 %v6025, 4294901760
    %6027 = vmatpush.msra.mxu0 %v6026
    %v6028 = vand.u32 %v2673, 4294901760
    %v6029 = vsub.f32 %v2673, %v6028
    %v6030 = vand.u32 %v6029, 4294901760
    %6031 = vmatpush.msra.mxu0 %v6030
    %v6032 = vand.u32 %v2672, 4294901760
    %v6033 = vsub.f32 %v2672, %v6032
    %v6034 = vand.u32 %v6033, 4294901760
    %6035 = vmatpush.msra.mxu0 %v6034
    %v6036 = vand.u32 %v2671, 4294901760
    %v6037 = vsub.f32 %v2671, %v6036
    %v6038 = vand.u32 %v6037, 4294901760
    %6039 = vmatpush.msra.mxu0 %v6038
    %v6040 = vand.u32 %v5883, 4294901760
    %6041 = vmatmul.f32.gmra.mxu0 %v6040
    %v6042 = vpop.f32.mrf.mxu0
    %v6043 = vadd.f32 %v6010, %v6042
    %6044 = vdwg.mxu0
    %6045 = vmatpush.msra.mxu0 0.0
    %6046 = vmatpush.msra.mxu0 0.0
    %6047 = vmatpush.msra.mxu0 0.0
    %6048 = vmatpush.msra.mxu0 0.0
    %6049 = vmatpush.msra.mxu0 0.0
    %6050 = vmatpush.msra.mxu0 0.0
    %6051 = vmatpush.msra.mxu0 0.0
    %6052 = vmatpush.msra.mxu0 0.0
    %6053 = vmatpush.msra.mxu0 0.0
    %6054 = vmatpush.msra.mxu0 0.0
    %6055 = vmatpush.msra.mxu0 0.0
    %6056 = vmatpush.msra.mxu0 0.0
    %v6057 = vand.u32 %v2674, 4294901760
    %6058 = vmatpush.msra.mxu0 %v6057
    %v6059 = vand.u32 %v2673, 4294901760
    %6060 = vmatpush.msra.mxu0 %v6059
    %v6061 = vand.u32 %v2672, 4294901760
    %6062 = vmatpush.msra.mxu0 %v6061
    %v6063 = vand.u32 %v2671, 4294901760
    %6064 = vmatpush.msra.mxu0 %v6063
    %v6065 = vand.u32 %v5883, 4294901760
    %6066 = vmatmul.f32.gmra.mxu0 %v6065
    %v6067 = vpop.f32.mrf.mxu0
    %v6068 = vadd.f32 %v6043, %v6067
    %6069 = vdwg.mxu0
    %v6070 = vadd.f32 %v2669, %v6068
    %v6071 = vxor.u32 %v6070, 2147483648
    %v6072 = vmul.f32 %v6071, 1.442695
    %v6073 = vpow.pop %v6072
    %v6074 = vadd.f32 %v6073, 1.0
    %v6075 = vrcp.pop %v6074
    %v6076 = vmul.f32 %v6074, %v6075
    %v6077 = vsub.f32 1.0, %v6076
    %v6078 = vmul.f32 %v6075, %v6077
    %v6079 = vadd.f32 %v6075, %v6078
    %vm6080 = vweird.f32 %v6074
    %vm6081 = vweird.f32 %v6075
    %vm6082 = vmor %vm6080, %vm6081
    %v6083 = vsel %vm6082, %v6075, %v6079
    %v6084 = vand.u32 2147483647, %v6074
    %vm6085 = vcmp.eq.f32.partialorder %v6084, 8.507059e+37
    %v6086 = vand.u32 %v6074, 2147483648
    %v6087 = vor.u32 1.1754944e-38, %v6086
    %v6088 = vsel %vm6085, %v6087, %v6083
    %v6089 = vmul.f32 1.0, %v6088
    %6091 = vrot.lane.b32.xlu0 %v6068, 64
    %v6092 = vpop.permute.xlu0 %6091
    %v6094 = vmul.f32 %v6089, %v6092
    %6096 = vrot.lane.b32.xlu0 %v6094, 64
    %v6097 = vpop.permute.xlu0 %6096
    %v6099 = vadd.f32 %v2669, %v6097
    %v6100 = vtanh.pop %v6099
    %v6101 = vsub.f32 1.0, %v6089
    %6103 = vrot.lane.b32.xlu0 %v6100, 96
    %v6104 = vpop.permute.xlu0 %6103
    %v6106 = vmul.f32 %v6101, %v6104
    %v6107 = vmul.f32 %v6089, %v5879
    %v6108 = vadd.f32 %v6106, %v6107
    %6110 = vrot.lane.b32.xlu0 %v6108, 96
    %v6111 = vpop.permute.xlu0 %6110
    %v6112 = vsel %vm642, %v6111, 0
    %6114 = vmatpush.msra.mxu0 0.0
    %6115 = vmatpush.msra.mxu0 0.0
    %6116 = vmatpush.msra.mxu0 0.0
    %6117 = vmatpush.msra.mxu0 0.0
    %6118 = vmatpush.msra.mxu0 0.0
    %6119 = vmatpush.msra.mxu0 0.0
    %6120 = vmatpush.msra.mxu0 0.0
    %6121 = vmatpush.msra.mxu0 0.0
    %6122 = vmatpush.msra.mxu0 0.0
    %6123 = vmatpush.msra.mxu0 0.0
    %6124 = vmatpush.msra.mxu0 0.0
    %6125 = vmatpush.msra.mxu0 0.0
    %v6126 = vand.u32 %v2674, 4294901760
    %6127 = vmatpush.msra.mxu0 %v6126
    %v6128 = vand.u32 %v2673, 4294901760
    %6129 = vmatpush.msra.mxu0 %v6128
    %v6130 = vand.u32 %v2672, 4294901760
    %6131 = vmatpush.msra.mxu0 %v6130
    %v6132 = vand.u32 %v2671, 4294901760
    %6133 = vmatpush.msra.mxu0 %v6132
    %v6134 = vand.u32 %v6112, 4294901760
    %v6135 = vsub.f32 %v6112, %v6134
    %v6136 = vand.u32 %v6135, 4294901760
    %v6137 = vsub.f32 %v6135, %v6136
    %v6138 = vand.u32 %v6137, 4294901760
    %6139 = vmatmul.f32.gmra.mxu0 %v6138
    %v6140 = vpop.f32.mrf.mxu0
    %v6141 = vadd.f32 %v2677, %v6140
    %6142 = vdwg.mxu0
    %6143 = vmatpush.msra.mxu0 0.0
    %6144 = vmatpush.msra.mxu0 0.0
    %6145 = vmatpush.msra.mxu0 0.0
    %6146 = vmatpush.msra.mxu0 0.0
    %6147 = vmatpush.msra.mxu0 0.0
    %6148 = vmatpush.msra.mxu0 0.0
    %6149 = vmatpush.msra.mxu0 0.0
    %6150 = vmatpush.msra.mxu0 0.0
    %6151 = vmatpush.msra.mxu0 0.0
    %6152 = vmatpush.msra.mxu0 0.0
    %6153 = vmatpush.msra.mxu0 0.0
    %6154 = vmatpush.msra.mxu0 0.0
    %v6155 = vand.u32 %v2674, 4294901760
    %v6156 = vsub.f32 %v2674, %v6155
    %v6157 = vand.u32 %v6156, 4294901760
    %v6158 = vsub.f32 %v6156, %v6157
    %v6159 = vand.u32 %v6158, 4294901760
    %6160 = vmatpush.msra.mxu0 %v6159
    %v6161 = vand.u32 %v2673, 4294901760
    %v6162 = vsub.f32 %v2673, %v6161
    %v6163 = vand.u32 %v6162, 4294901760
    %v6164 = vsub.f32 %v6162, %v6163
    %v6165 = vand.u32 %v6164, 4294901760
    %6166 = vmatpush.msra.mxu0 %v6165
    %v6167 = vand.u32 %v2672, 4294901760
    %v6168 = vsub.f32 %v2672, %v6167
    %v6169 = vand.u32 %v6168, 4294901760
    %v6170 = vsub.f32 %v6168, %v6169
    %v6171 = vand.u32 %v6170, 4294901760
    %6172 = vmatpush.msra.mxu0 %v6171
    %v6173 = vand.u32 %v2671, 4294901760
    %v6174 = vsub.f32 %v2671, %v6173
    %v6175 = vand.u32 %v6174, 4294901760
    %v6176 = vsub.f32 %v6174, %v6175
    %v6177 = vand.u32 %v6176, 4294901760
    %6178 = vmatpush.msra.mxu0 %v6177
    %v6179 = vand.u32 %v6112, 4294901760
    %6180 = vmatmul.f32.gmra.mxu0 %v6179
    %v6181 = vpop.f32.mrf.mxu0
    %v6182 = vadd.f32 %v6141, %v6181
    %6183 = vdwg.mxu0
    %6184 = vmatpush.msra.mxu0 0.0
    %6185 = vmatpush.msra.mxu0 0.0
    %6186 = vmatpush.msra.mxu0 0.0
    %6187 = vmatpush.msra.mxu0 0.0
    %6188 = vmatpush.msra.mxu0 0.0
    %6189 = vmatpush.msra.mxu0 0.0
    %6190 = vmatpush.msra.mxu0 0.0
    %6191 = vmatpush.msra.mxu0 0.0
    %6192 = vmatpush.msra.mxu0 0.0
    %6193 = vmatpush.msra.mxu0 0.0
    %6194 = vmatpush.msra.mxu0 0.0
    %6195 = vmatpush.msra.mxu0 0.0
    %v6196 = vand.u32 %v2674, 4294901760
    %v6197 = vsub.f32 %v2674, %v6196
    %6198 = vmatpush.msra.mxu0 %v6197
    %v6199 = vand.u32 %v2673, 4294901760
    %v6200 = vsub.f32 %v2673, %v6199
    %6201 = vmatpush.msra.mxu0 %v6200
    %v6202 = vand.u32 %v2672, 4294901760
    %v6203 = vsub.f32 %v2672, %v6202
    %6204 = vmatpush.msra.mxu0 %v6203
    %v6205 = vand.u32 %v2671, 4294901760
    %v6206 = vsub.f32 %v2671, %v6205
    %6207 = vmatpush.msra.mxu0 %v6206
    %v6208 = vand.u32 %v6112, 4294901760
    %v6209 = vsub.f32 %v6112, %v6208
    %6210 = vmatmul.f32.gmra.mxu0 %v6209
    %v6211 = vpop.f32.mrf.mxu0
    %v6212 = vadd.f32 %v6182, %v6211
    %6213 = vdwg.mxu0
    %6214 = vmatpush.msra.mxu0 0.0
    %6215 = vmatpush.msra.mxu0 0.0
    %6216 = vmatpush.msra.mxu0 0.0
    %6217 = vmatpush.msra.mxu0 0.0
    %6218 = vmatpush.msra.mxu0 0.0
    %6219 = vmatpush.msra.mxu0 0.0
    %6220 = vmatpush.msra.mxu0 0.0
    %6221 = vmatpush.msra.mxu0 0.0
    %6222 = vmatpush.msra.mxu0 0.0
    %6223 = vmatpush.msra.mxu0 0.0
    %6224 = vmatpush.msra.mxu0 0.0
    %6225 = vmatpush.msra.mxu0 0.0
    %v6226 = vand.u32 %v2674, 4294901760
    %6227 = vmatpush.msra.mxu0 %v6226
    %v6228 = vand.u32 %v2673, 4294901760
    %6229 = vmatpush.msra.mxu0 %v6228
    %v6230 = vand.u32 %v2672, 4294901760
    %6231 = vmatpush.msra.mxu0 %v6230
    %v6232 = vand.u32 %v2671, 4294901760
    %6233 = vmatpush.msra.mxu0 %v6232
    %v6234 = vand.u32 %v6112, 4294901760
    %v6235 = vsub.f32 %v6112, %v6234
    %v6236 = vand.u32 %v6235, 4294901760
    %6237 = vmatmul.f32.gmra.mxu0 %v6236
    %v6238 = vpop.f32.mrf.mxu0
    %v6239 = vadd.f32 %v6212, %v6238
    %6240 = vdwg.mxu0
    %6241 = vmatpush.msra.mxu0 0.0
    %6242 = vmatpush.msra.mxu0 0.0
    %6243 = vmatpush.msra.mxu0 0.0
    %6244 = vmatpush.msra.mxu0 0.0
    %6245 = vmatpush.msra.mxu0 0.0
    %6246 = vmatpush.msra.mxu0 0.0
    %6247 = vmatpush.msra.mxu0 0.0
    %6248 = vmatpush.msra.mxu0 0.0
    %6249 = vmatpush.msra.mxu0 0.0
    %6250 = vmatpush.msra.mxu0 0.0
    %6251 = vmatpush.msra.mxu0 0.0
    %6252 = vmatpush.msra.mxu0 0.0
    %v6253 = vand.u32 %v2674, 4294901760
    %v6254 = vsub.f32 %v2674, %v6253
    %v6255 = vand.u32 %v6254, 4294901760
    %6256 = vmatpush.msra.mxu0 %v6255
    %v6257 = vand.u32 %v2673, 4294901760
    %v6258 = vsub.f32 %v2673, %v6257
    %v6259 = vand.u32 %v6258, 4294901760
    %6260 = vmatpush.msra.mxu0 %v6259
    %v6261 = vand.u32 %v2672, 4294901760
    %v6262 = vsub.f32 %v2672, %v6261
    %v6263 = vand.u32 %v6262, 4294901760
    %6264 = vmatpush.msra.mxu0 %v6263
    %v6265 = vand.u32 %v2671, 4294901760
    %v6266 = vsub.f32 %v2671, %v6265
    %v6267 = vand.u32 %v6266, 4294901760
    %6268 = vmatpush.msra.mxu0 %v6267
    %v6269 = vand.u32 %v6112, 4294901760
    %6270 = vmatmul.f32.gmra.mxu0 %v6269
    %v6271 = vpop.f32.mrf.mxu0
    %v6272 = vadd.f32 %v6239, %v6271
    %6273 = vdwg.mxu0
    %6274 = vmatpush.msra.mxu0 0.0
    %6275 = vmatpush.msra.mxu0 0.0
    %6276 = vmatpush.msra.mxu0 0.0
    %6277 = vmatpush.msra.mxu0 0.0
    %6278 = vmatpush.msra.mxu0 0.0
    %6279 = vmatpush.msra.mxu0 0.0
    %6280 = vmatpush.msra.mxu0 0.0
    %6281 = vmatpush.msra.mxu0 0.0
    %6282 = vmatpush.msra.mxu0 0.0
    %6283 = vmatpush.msra.mxu0 0.0
    %6284 = vmatpush.msra.mxu0 0.0
    %6285 = vmatpush.msra.mxu0 0.0
    %v6286 = vand.u32 %v2674, 4294901760
    %6287 = vmatpush.msra.mxu0 %v6286
    %v6288 = vand.u32 %v2673, 4294901760
    %6289 = vmatpush.msra.mxu0 %v6288
    %v6290 = vand.u32 %v2672, 4294901760
    %6291 = vmatpush.msra.mxu0 %v6290
    %v6292 = vand.u32 %v2671, 4294901760
    %6293 = vmatpush.msra.mxu0 %v6292
    %v6294 = vand.u32 %v6112, 4294901760
    %6295 = vmatmul.f32.gmra.mxu0 %v6294
    %v6296 = vpop.f32.mrf.mxu0
    %v6297 = vadd.f32 %v6272, %v6296
    %6298 = vdwg.mxu0
    %v6299 = vadd.f32 %v2669, %v6297
    %v6300 = vxor.u32 %v6299, 2147483648
    %v6301 = vmul.f32 %v6300, 1.442695
    %v6302 = vpow.pop %v6301
    %v6303 = vadd.f32 %v6302, 1.0
    %v6304 = vrcp.pop %v6303
    %v6305 = vmul.f32 %v6303, %v6304
    %v6306 = vsub.f32 1.0, %v6305
    %v6307 = vmul.f32 %v6304, %v6306
    %v6308 = vadd.f32 %v6304, %v6307
    %vm6309 = vweird.f32 %v6303
    %vm6310 = vweird.f32 %v6304
    %vm6311 = vmor %vm6309, %vm6310
    %v6312 = vsel %vm6311, %v6304, %v6308
    %v6313 = vand.u32 2147483647, %v6303
    %vm6314 = vcmp.eq.f32.partialorder %v6313, 8.507059e+37
    %v6315 = vand.u32 %v6303, 2147483648
    %v6316 = vor.u32 1.1754944e-38, %v6315
    %v6317 = vsel %vm6314, %v6316, %v6312
    %v6318 = vmul.f32 1.0, %v6317
    %6320 = vrot.lane.b32.xlu0 %v6297, 64
    %v6321 = vpop.permute.xlu0 %6320
    %v6323 = vmul.f32 %v6318, %v6321
    %6325 = vrot.lane.b32.xlu0 %v6323, 64
    %v6326 = vpop.permute.xlu0 %6325
    %v6328 = vadd.f32 %v2669, %v6326
    %v6329 = vtanh.pop %v6328
    %v6330 = vsub.f32 1.0, %v6318
    %6332 = vrot.lane.b32.xlu0 %v6329, 96
    %v6333 = vpop.permute.xlu0 %6332
    %v6335 = vmul.f32 %v6330, %v6333
    %v6336 = vmul.f32 %v6318, %v6108
    %v6337 = vadd.f32 %v6335, %v6336
    %6339 = vrot.lane.b32.xlu0 %v6337, 96
    %v6340 = vpop.permute.xlu0 %6339
    %v6341 = vsel %vm642, %v6340, 0
    %6343 = vmatpush.msra.mxu0 0.0
    %6344 = vmatpush.msra.mxu0 0.0
    %6345 = vmatpush.msra.mxu0 0.0
    %6346 = vmatpush.msra.mxu0 0.0
    %6347 = vmatpush.msra.mxu0 0.0
    %6348 = vmatpush.msra.mxu0 0.0
    %6349 = vmatpush.msra.mxu0 0.0
    %6350 = vmatpush.msra.mxu0 0.0
    %6351 = vmatpush.msra.mxu0 0.0
    %6352 = vmatpush.msra.mxu0 0.0
    %6353 = vmatpush.msra.mxu0 0.0
    %6354 = vmatpush.msra.mxu0 0.0
    %v6355 = vand.u32 %v2674, 4294901760
    %6356 = vmatpush.msra.mxu0 %v6355
    %v6357 = vand.u32 %v2673, 4294901760
    %6358 = vmatpush.msra.mxu0 %v6357
    %v6359 = vand.u32 %v2672, 4294901760
    %6360 = vmatpush.msra.mxu0 %v6359
    %v6361 = vand.u32 %v2671, 4294901760
    %6362 = vmatpush.msra.mxu0 %v6361
    %v6363 = vand.u32 %v6341, 4294901760
    %v6364 = vsub.f32 %v6341, %v6363
    %v6365 = vand.u32 %v6364, 4294901760
    %v6366 = vsub.f32 %v6364, %v6365
    %v6367 = vand.u32 %v6366, 4294901760
    %6368 = vmatmul.f32.gmra.mxu0 %v6367
    %v6369 = vpop.f32.mrf.mxu0
    %v6370 = vadd.f32 %v2677, %v6369
    %6371 = vdwg.mxu0
    %6372 = vmatpush.msra.mxu0 0.0
    %6373 = vmatpush.msra.mxu0 0.0
    %6374 = vmatpush.msra.mxu0 0.0
    %6375 = vmatpush.msra.mxu0 0.0
    %6376 = vmatpush.msra.mxu0 0.0
    %6377 = vmatpush.msra.mxu0 0.0
    %6378 = vmatpush.msra.mxu0 0.0
    %6379 = vmatpush.msra.mxu0 0.0
    %6380 = vmatpush.msra.mxu0 0.0
    %6381 = vmatpush.msra.mxu0 0.0
    %6382 = vmatpush.msra.mxu0 0.0
    %6383 = vmatpush.msra.mxu0 0.0
    %v6384 = vand.u32 %v2674, 4294901760
    %v6385 = vsub.f32 %v2674, %v6384
    %v6386 = vand.u32 %v6385, 4294901760
    %v6387 = vsub.f32 %v6385, %v6386
    %v6388 = vand.u32 %v6387, 4294901760
    %6389 = vmatpush.msra.mxu0 %v6388
    %v6390 = vand.u32 %v2673, 4294901760
    %v6391 = vsub.f32 %v2673, %v6390
    %v6392 = vand.u32 %v6391, 4294901760
    %v6393 = vsub.f32 %v6391, %v6392
    %v6394 = vand.u32 %v6393, 4294901760
    %6395 = vmatpush.msra.mxu0 %v6394
    %v6396 = vand.u32 %v2672, 4294901760
    %v6397 = vsub.f32 %v2672, %v6396
    %v6398 = vand.u32 %v6397, 4294901760
    %v6399 = vsub.f32 %v6397, %v6398
    %v6400 = vand.u32 %v6399, 4294901760
    %6401 = vmatpush.msra.mxu0 %v6400
    %v6402 = vand.u32 %v2671, 4294901760
    %v6403 = vsub.f32 %v2671, %v6402
    %v6404 = vand.u32 %v6403, 4294901760
    %v6405 = vsub.f32 %v6403, %v6404
    %v6406 = vand.u32 %v6405, 4294901760
    %6407 = vmatpush.msra.mxu0 %v6406
    %v6408 = vand.u32 %v6341, 4294901760
    %6409 = vmatmul.f32.gmra.mxu0 %v6408
    %v6410 = vpop.f32.mrf.mxu0
    %v6411 = vadd.f32 %v6370, %v6410
    %6412 = vdwg.mxu0
    %6413 = vmatpush.msra.mxu0 0.0
    %6414 = vmatpush.msra.mxu0 0.0
    %6415 = vmatpush.msra.mxu0 0.0
    %6416 = vmatpush.msra.mxu0 0.0
    %6417 = vmatpush.msra.mxu0 0.0
    %6418 = vmatpush.msra.mxu0 0.0
    %6419 = vmatpush.msra.mxu0 0.0
    %6420 = vmatpush.msra.mxu0 0.0
    %6421 = vmatpush.msra.mxu0 0.0
    %6422 = vmatpush.msra.mxu0 0.0
    %6423 = vmatpush.msra.mxu0 0.0
    %6424 = vmatpush.msra.mxu0 0.0
    %v6425 = vand.u32 %v2674, 4294901760
    %v6426 = vsub.f32 %v2674, %v6425
    %6427 = vmatpush.msra.mxu0 %v6426
    %v6428 = vand.u32 %v2673, 4294901760
    %v6429 = vsub.f32 %v2673, %v6428
    %6430 = vmatpush.msra.mxu0 %v6429
    %v6431 = vand.u32 %v2672, 4294901760
    %v6432 = vsub.f32 %v2672, %v6431
    %6433 = vmatpush.msra.mxu0 %v6432
    %v6434 = vand.u32 %v2671, 4294901760
    %v6435 = vsub.f32 %v2671, %v6434
    %6436 = vmatpush.msra.mxu0 %v6435
    %v6437 = vand.u32 %v6341, 4294901760
    %v6438 = vsub.f32 %v6341, %v6437
    %6439 = vmatmul.f32.gmra.mxu0 %v6438
    %v6440 = vpop.f32.mrf.mxu0
    %v6441 = vadd.f32 %v6411, %v6440
    %6442 = vdwg.mxu0
    %6443 = vmatpush.msra.mxu0 0.0
    %6444 = vmatpush.msra.mxu0 0.0
    %6445 = vmatpush.msra.mxu0 0.0
    %6446 = vmatpush.msra.mxu0 0.0
    %6447 = vmatpush.msra.mxu0 0.0
    %6448 = vmatpush.msra.mxu0 0.0
    %6449 = vmatpush.msra.mxu0 0.0
    %6450 = vmatpush.msra.mxu0 0.0
    %6451 = vmatpush.msra.mxu0 0.0
    %6452 = vmatpush.msra.mxu0 0.0
    %6453 = vmatpush.msra.mxu0 0.0
    %6454 = vmatpush.msra.mxu0 0.0
    %v6455 = vand.u32 %v2674, 4294901760
    %6456 = vmatpush.msra.mxu0 %v6455
    %v6457 = vand.u32 %v2673, 4294901760
    %6458 = vmatpush.msra.mxu0 %v6457
    %v6459 = vand.u32 %v2672, 4294901760
    %6460 = vmatpush.msra.mxu0 %v6459
    %v6461 = vand.u32 %v2671, 4294901760
    %6462 = vmatpush.msra.mxu0 %v6461
    %v6463 = vand.u32 %v6341, 4294901760
    %v6464 = vsub.f32 %v6341, %v6463
    %v6465 = vand.u32 %v6464, 4294901760
    %6466 = vmatmul.f32.gmra.mxu0 %v6465
    %v6467 = vpop.f32.mrf.mxu0
    %v6468 = vadd.f32 %v6441, %v6467
    %6469 = vdwg.mxu0
    %6470 = vmatpush.msra.mxu0 0.0
    %6471 = vmatpush.msra.mxu0 0.0
    %6472 = vmatpush.msra.mxu0 0.0
    %6473 = vmatpush.msra.mxu0 0.0
    %6474 = vmatpush.msra.mxu0 0.0
    %6475 = vmatpush.msra.mxu0 0.0
    %6476 = vmatpush.msra.mxu0 0.0
    %6477 = vmatpush.msra.mxu0 0.0
    %6478 = vmatpush.msra.mxu0 0.0
    %6479 = vmatpush.msra.mxu0 0.0
    %6480 = vmatpush.msra.mxu0 0.0
    %6481 = vmatpush.msra.mxu0 0.0
    %v6482 = vand.u32 %v2674, 4294901760
    %v6483 = vsub.f32 %v2674, %v6482
    %v6484 = vand.u32 %v6483, 4294901760
    %6485 = vmatpush.msra.mxu0 %v6484
    %v6486 = vand.u32 %v2673, 4294901760
    %v6487 = vsub.f32 %v2673, %v6486
    %v6488 = vand.u32 %v6487, 4294901760
    %6489 = vmatpush.msra.mxu0 %v6488
    %v6490 = vand.u32 %v2672, 4294901760
    %v6491 = vsub.f32 %v2672, %v6490
    %v6492 = vand.u32 %v6491, 4294901760
    %6493 = vmatpush.msra.mxu0 %v6492
    %v6494 = vand.u32 %v2671, 4294901760
    %v6495 = vsub.f32 %v2671, %v6494
    %v6496 = vand.u32 %v6495, 4294901760
    %6497 = vmatpush.msra.mxu0 %v6496
    %v6498 = vand.u32 %v6341, 4294901760
    %6499 = vmatmul.f32.gmra.mxu0 %v6498
    %v6500 = vpop.f32.mrf.mxu0
    %v6501 = vadd.f32 %v6468, %v6500
    %6502 = vdwg.mxu0
    %6503 = vmatpush.msra.mxu0 0.0
    %6504 = vmatpush.msra.mxu0 0.0
    %6505 = vmatpush.msra.mxu0 0.0
    %6506 = vmatpush.msra.mxu0 0.0
    %6507 = vmatpush.msra.mxu0 0.0
    %6508 = vmatpush.msra.mxu0 0.0
    %6509 = vmatpush.msra.mxu0 0.0
    %6510 = vmatpush.msra.mxu0 0.0
    %6511 = vmatpush.msra.mxu0 0.0
    %6512 = vmatpush.msra.mxu0 0.0
    %6513 = vmatpush.msra.mxu0 0.0
    %6514 = vmatpush.msra.mxu0 0.0
    %v6515 = vand.u32 %v2674, 4294901760
    %6516 = vmatpush.msra.mxu0 %v6515
    %v6517 = vand.u32 %v2673, 4294901760
    %6518 = vmatpush.msra.mxu0 %v6517
    %v6519 = vand.u32 %v2672, 4294901760
    %6520 = vmatpush.msra.mxu0 %v6519
    %v6521 = vand.u32 %v2671, 4294901760
    %6522 = vmatpush.msra.mxu0 %v6521
    %v6523 = vand.u32 %v6341, 4294901760
    %6524 = vmatmul.f32.gmra.mxu0 %v6523
    %v6525 = vpop.f32.mrf.mxu0
    %v6526 = vadd.f32 %v6501, %v6525
    %6527 = vdwg.mxu0
    %v6528 = vadd.f32 %v2669, %v6526
    %v6529 = vxor.u32 %v6528, 2147483648
    %v6530 = vmul.f32 %v6529, 1.442695
    %v6531 = vpow.pop %v6530
    %v6532 = vadd.f32 %v6531, 1.0
    %v6533 = vrcp.pop %v6532
    %v6534 = vmul.f32 %v6532, %v6533
    %v6535 = vsub.f32 1.0, %v6534
    %v6536 = vmul.f32 %v6533, %v6535
    %v6537 = vadd.f32 %v6533, %v6536
    %vm6538 = vweird.f32 %v6532
    %vm6539 = vweird.f32 %v6533
    %vm6540 = vmor %vm6538, %vm6539
    %v6541 = vsel %vm6540, %v6533, %v6537
    %v6542 = vand.u32 2147483647, %v6532
    %vm6543 = vcmp.eq.f32.partialorder %v6542, 8.507059e+37
    %v6544 = vand.u32 %v6532, 2147483648
    %v6545 = vor.u32 1.1754944e-38, %v6544
    %v6546 = vsel %vm6543, %v6545, %v6541
    %v6547 = vmul.f32 1.0, %v6546
    %6549 = vrot.lane.b32.xlu0 %v6526, 64
    %v6550 = vpop.permute.xlu0 %6549
    %v6552 = vmul.f32 %v6547, %v6550
    %6554 = vrot.lane.b32.xlu0 %v6552, 64
    %v6555 = vpop.permute.xlu0 %6554
    %v6557 = vadd.f32 %v2669, %v6555
    %v6558 = vtanh.pop %v6557
    %v6559 = vsub.f32 1.0, %v6547
    %6561 = vrot.lane.b32.xlu0 %v6558, 96
    %v6562 = vpop.permute.xlu0 %6561
    %v6564 = vmul.f32 %v6559, %v6562
    %v6565 = vmul.f32 %v6547, %v6337
    %v6566 = vadd.f32 %v6564, %v6565
    %6568 = vrot.lane.b32.xlu0 %v6566, 96
    %v6569 = vpop.permute.xlu0 %6568
    %v6570 = vsel %vm642, %v6569, 0
    %6572 = vmatpush.msra.mxu0 0.0
    %6573 = vmatpush.msra.mxu0 0.0
    %6574 = vmatpush.msra.mxu0 0.0
    %6575 = vmatpush.msra.mxu0 0.0
    %6576 = vmatpush.msra.mxu0 0.0
    %6577 = vmatpush.msra.mxu0 0.0
    %6578 = vmatpush.msra.mxu0 0.0
    %6579 = vmatpush.msra.mxu0 0.0
    %6580 = vmatpush.msra.mxu0 0.0
    %6581 = vmatpush.msra.mxu0 0.0
    %6582 = vmatpush.msra.mxu0 0.0
    %6583 = vmatpush.msra.mxu0 0.0
    %v6584 = vand.u32 %v2674, 4294901760
    %6585 = vmatpush.msra.mxu0 %v6584
    %v6586 = vand.u32 %v2673, 4294901760
    %6587 = vmatpush.msra.mxu0 %v6586
    %v6588 = vand.u32 %v2672, 4294901760
    %6589 = vmatpush.msra.mxu0 %v6588
    %v6590 = vand.u32 %v2671, 4294901760
    %6591 = vmatpush.msra.mxu0 %v6590
    %v6592 = vand.u32 %v6570, 4294901760
    %v6593 = vsub.f32 %v6570, %v6592
    %v6594 = vand.u32 %v6593, 4294901760
    %v6595 = vsub.f32 %v6593, %v6594
    %v6596 = vand.u32 %v6595, 4294901760
    %6597 = vmatmul.f32.gmra.mxu0 %v6596
    %v6598 = vpop.f32.mrf.mxu0
    %v6599 = vadd.f32 %v2677, %v6598
    %6600 = vdwg.mxu0
    %6601 = vmatpush.msra.mxu0 0.0
    %6602 = vmatpush.msra.mxu0 0.0
    %6603 = vmatpush.msra.mxu0 0.0
    %6604 = vmatpush.msra.mxu0 0.0
    %6605 = vmatpush.msra.mxu0 0.0
    %6606 = vmatpush.msra.mxu0 0.0
    %6607 = vmatpush.msra.mxu0 0.0
    %6608 = vmatpush.msra.mxu0 0.0
    %6609 = vmatpush.msra.mxu0 0.0
    %6610 = vmatpush.msra.mxu0 0.0
    %6611 = vmatpush.msra.mxu0 0.0
    %6612 = vmatpush.msra.mxu0 0.0
    %v6613 = vand.u32 %v2674, 4294901760
    %v6614 = vsub.f32 %v2674, %v6613
    %v6615 = vand.u32 %v6614, 4294901760
    %v6616 = vsub.f32 %v6614, %v6615
    %v6617 = vand.u32 %v6616, 4294901760
    %6618 = vmatpush.msra.mxu0 %v6617
    %v6619 = vand.u32 %v2673, 4294901760
    %v6620 = vsub.f32 %v2673, %v6619
    %v6621 = vand.u32 %v6620, 4294901760
    %v6622 = vsub.f32 %v6620, %v6621
    %v6623 = vand.u32 %v6622, 4294901760
    %6624 = vmatpush.msra.mxu0 %v6623
    %v6625 = vand.u32 %v2672, 4294901760
    %v6626 = vsub.f32 %v2672, %v6625
    %v6627 = vand.u32 %v6626, 4294901760
    %v6628 = vsub.f32 %v6626, %v6627
    %v6629 = vand.u32 %v6628, 4294901760
    %6630 = vmatpush.msra.mxu0 %v6629
    %v6631 = vand.u32 %v2671, 4294901760
    %v6632 = vsub.f32 %v2671, %v6631
    %v6633 = vand.u32 %v6632, 4294901760
    %v6634 = vsub.f32 %v6632, %v6633
    %v6635 = vand.u32 %v6634, 4294901760
    %6636 = vmatpush.msra.mxu0 %v6635
    %v6637 = vand.u32 %v6570, 4294901760
    %6638 = vmatmul.f32.gmra.mxu0 %v6637
    %v6639 = vpop.f32.mrf.mxu0
    %v6640 = vadd.f32 %v6599, %v6639
    %6641 = vdwg.mxu0
    %6642 = vmatpush.msra.mxu0 0.0
    %6643 = vmatpush.msra.mxu0 0.0
    %6644 = vmatpush.msra.mxu0 0.0
    %6645 = vmatpush.msra.mxu0 0.0
    %6646 = vmatpush.msra.mxu0 0.0
    %6647 = vmatpush.msra.mxu0 0.0
    %6648 = vmatpush.msra.mxu0 0.0
    %6649 = vmatpush.msra.mxu0 0.0
    %6650 = vmatpush.msra.mxu0 0.0
    %6651 = vmatpush.msra.mxu0 0.0
    %6652 = vmatpush.msra.mxu0 0.0
    %6653 = vmatpush.msra.mxu0 0.0
    %v6654 = vand.u32 %v2674, 4294901760
    %v6655 = vsub.f32 %v2674, %v6654
    %6656 = vmatpush.msra.mxu0 %v6655
    %v6657 = vand.u32 %v2673, 4294901760
    %v6658 = vsub.f32 %v2673, %v6657
    %6659 = vmatpush.msra.mxu0 %v6658
    %v6660 = vand.u32 %v2672, 4294901760
    %v6661 = vsub.f32 %v2672, %v6660
    %6662 = vmatpush.msra.mxu0 %v6661
    %v6663 = vand.u32 %v2671, 4294901760
    %v6664 = vsub.f32 %v2671, %v6663
    %6665 = vmatpush.msra.mxu0 %v6664
    %v6666 = vand.u32 %v6570, 4294901760
    %v6667 = vsub.f32 %v6570, %v6666
    %6668 = vmatmul.f32.gmra.mxu0 %v6667
    %v6669 = vpop.f32.mrf.mxu0
    %v6670 = vadd.f32 %v6640, %v6669
    %6671 = vdwg.mxu0
    %6672 = vmatpush.msra.mxu0 0.0
    %6673 = vmatpush.msra.mxu0 0.0
    %6674 = vmatpush.msra.mxu0 0.0
    %6675 = vmatpush.msra.mxu0 0.0
    %6676 = vmatpush.msra.mxu0 0.0
    %6677 = vmatpush.msra.mxu0 0.0
    %6678 = vmatpush.msra.mxu0 0.0
    %6679 = vmatpush.msra.mxu0 0.0
    %6680 = vmatpush.msra.mxu0 0.0
    %6681 = vmatpush.msra.mxu0 0.0
    %6682 = vmatpush.msra.mxu0 0.0
    %6683 = vmatpush.msra.mxu0 0.0
    %v6684 = vand.u32 %v2674, 4294901760
    %6685 = vmatpush.msra.mxu0 %v6684
    %v6686 = vand.u32 %v2673, 4294901760
    %6687 = vmatpush.msra.mxu0 %v6686
    %v6688 = vand.u32 %v2672, 4294901760
    %6689 = vmatpush.msra.mxu0 %v6688
    %v6690 = vand.u32 %v2671, 4294901760
    %6691 = vmatpush.msra.mxu0 %v6690
    %v6692 = vand.u32 %v6570, 4294901760
    %v6693 = vsub.f32 %v6570, %v6692
    %v6694 = vand.u32 %v6693, 4294901760
    %6695 = vmatmul.f32.gmra.mxu0 %v6694
    %v6696 = vpop.f32.mrf.mxu0
    %v6697 = vadd.f32 %v6670, %v6696
    %6698 = vdwg.mxu0
    %6699 = vmatpush.msra.mxu0 0.0
    %6700 = vmatpush.msra.mxu0 0.0
    %6701 = vmatpush.msra.mxu0 0.0
    %6702 = vmatpush.msra.mxu0 0.0
    %6703 = vmatpush.msra.mxu0 0.0
    %6704 = vmatpush.msra.mxu0 0.0
    %6705 = vmatpush.msra.mxu0 0.0
    %6706 = vmatpush.msra.mxu0 0.0
    %6707 = vmatpush.msra.mxu0 0.0
    %6708 = vmatpush.msra.mxu0 0.0
    %6709 = vmatpush.msra.mxu0 0.0
    %6710 = vmatpush.msra.mxu0 0.0
    %v6711 = vand.u32 %v2674, 4294901760
    %v6712 = vsub.f32 %v2674, %v6711
    %v6713 = vand.u32 %v6712, 4294901760
    %6714 = vmatpush.msra.mxu0 %v6713
    %v6715 = vand.u32 %v2673, 4294901760
    %v6716 = vsub.f32 %v2673, %v6715
    %v6717 = vand.u32 %v6716, 4294901760
    %6718 = vmatpush.msra.mxu0 %v6717
    %v6719 = vand.u32 %v2672, 4294901760
    %v6720 = vsub.f32 %v2672, %v6719
    %v6721 = vand.u32 %v6720, 4294901760
    %6722 = vmatpush.msra.mxu0 %v6721
    %v6723 = vand.u32 %v2671, 4294901760
    %v6724 = vsub.f32 %v2671, %v6723
    %v6725 = vand.u32 %v6724, 4294901760
    %6726 = vmatpush.msra.mxu0 %v6725
    %v6727 = vand.u32 %v6570, 4294901760
    %6728 = vmatmul.f32.gmra.mxu0 %v6727
    %v6729 = vpop.f32.mrf.mxu0
    %v6730 = vadd.f32 %v6697, %v6729
    %6731 = vdwg.mxu0
    %6732 = vmatpush.msra.mxu0 0.0
    %6733 = vmatpush.msra.mxu0 0.0
    %6734 = vmatpush.msra.mxu0 0.0
    %6735 = vmatpush.msra.mxu0 0.0
    %6736 = vmatpush.msra.mxu0 0.0
    %6737 = vmatpush.msra.mxu0 0.0
    %6738 = vmatpush.msra.mxu0 0.0
    %6739 = vmatpush.msra.mxu0 0.0
    %6740 = vmatpush.msra.mxu0 0.0
    %6741 = vmatpush.msra.mxu0 0.0
    %6742 = vmatpush.msra.mxu0 0.0
    %6743 = vmatpush.msra.mxu0 0.0
    %v6744 = vand.u32 %v2674, 4294901760
    %6745 = vmatpush.msra.mxu0 %v6744
    %v6746 = vand.u32 %v2673, 4294901760
    %6747 = vmatpush.msra.mxu0 %v6746
    %v6748 = vand.u32 %v2672, 4294901760
    %6749 = vmatpush.msra.mxu0 %v6748
    %v6750 = vand.u32 %v2671, 4294901760
    %6751 = vmatpush.msra.mxu0 %v6750
    %v6752 = vand.u32 %v6570, 4294901760
    %6753 = vmatmul.f32.gmra.mxu0 %v6752
    %v6754 = vpop.f32.mrf.mxu0
    %v6755 = vadd.f32 %v6730, %v6754
    %6756 = vdwg.mxu0
    %v6757 = vadd.f32 %v2669, %v6755
    %v6758 = vxor.u32 %v6757, 2147483648
    %v6759 = vmul.f32 %v6758, 1.442695
    %v6760 = vpow.pop %v6759
    %v6761 = vadd.f32 %v6760, 1.0
    %v6762 = vrcp.pop %v6761
    %v6763 = vmul.f32 %v6761, %v6762
    %v6764 = vsub.f32 1.0, %v6763
    %v6765 = vmul.f32 %v6762, %v6764
    %v6766 = vadd.f32 %v6762, %v6765
    %vm6767 = vweird.f32 %v6761
    %vm6768 = vweird.f32 %v6762
    %vm6769 = vmor %vm6767, %vm6768
    %v6770 = vsel %vm6769, %v6762, %v6766
    %v6771 = vand.u32 2147483647, %v6761
    %vm6772 = vcmp.eq.f32.partialorder %v6771, 8.507059e+37
    %v6773 = vand.u32 %v6761, 2147483648
    %v6774 = vor.u32 1.1754944e-38, %v6773
    %v6775 = vsel %vm6772, %v6774, %v6770
    %v6776 = vmul.f32 1.0, %v6775
    %6778 = vrot.lane.b32.xlu0 %v6755, 64
    %v6779 = vpop.permute.xlu0 %6778
    %v6781 = vmul.f32 %v6776, %v6779
    %6783 = vrot.lane.b32.xlu0 %v6781, 64
    %v6784 = vpop.permute.xlu0 %6783
    %v6786 = vadd.f32 %v2669, %v6784
    %v6787 = vtanh.pop %v6786
    %v6788 = vsub.f32 1.0, %v6776
    %6790 = vrot.lane.b32.xlu0 %v6787, 96
    %v6791 = vpop.permute.xlu0 %6790
    %v6793 = vmul.f32 %v6788, %v6791
    %v6794 = vmul.f32 %v6776, %v6566
    %v6795 = vadd.f32 %v6793, %v6794
    %6797 = vrot.lane.b32.xlu0 %v6795, 96
    %v6798 = vpop.permute.xlu0 %6797
    %v6799 = vsel %vm642, %v6798, 0
    %6801 = vmatpush.msra.mxu0 0.0
    %6802 = vmatpush.msra.mxu0 0.0
    %6803 = vmatpush.msra.mxu0 0.0
    %6804 = vmatpush.msra.mxu0 0.0
    %6805 = vmatpush.msra.mxu0 0.0
    %6806 = vmatpush.msra.mxu0 0.0
    %6807 = vmatpush.msra.mxu0 0.0
    %6808 = vmatpush.msra.mxu0 0.0
    %6809 = vmatpush.msra.mxu0 0.0
    %6810 = vmatpush.msra.mxu0 0.0
    %6811 = vmatpush.msra.mxu0 0.0
    %6812 = vmatpush.msra.mxu0 0.0
    %v6813 = vand.u32 %v2674, 4294901760
    %6814 = vmatpush.msra.mxu0 %v6813
    %v6815 = vand.u32 %v2673, 4294901760
    %6816 = vmatpush.msra.mxu0 %v6815
    %v6817 = vand.u32 %v2672, 4294901760
    %6818 = vmatpush.msra.mxu0 %v6817
    %v6819 = vand.u32 %v2671, 4294901760
    %6820 = vmatpush.msra.mxu0 %v6819
    %v6821 = vand.u32 %v6799, 4294901760
    %v6822 = vsub.f32 %v6799, %v6821
    %v6823 = vand.u32 %v6822, 4294901760
    %v6824 = vsub.f32 %v6822, %v6823
    %v6825 = vand.u32 %v6824, 4294901760
    %6826 = vmatmul.f32.gmra.mxu0 %v6825
    %v6827 = vpop.f32.mrf.mxu0
    %v6828 = vadd.f32 %v2677, %v6827
    %6829 = vdwg.mxu0
    %6830 = vmatpush.msra.mxu0 0.0
    %6831 = vmatpush.msra.mxu0 0.0
    %6832 = vmatpush.msra.mxu0 0.0
    %6833 = vmatpush.msra.mxu0 0.0
    %6834 = vmatpush.msra.mxu0 0.0
    %6835 = vmatpush.msra.mxu0 0.0
    %6836 = vmatpush.msra.mxu0 0.0
    %6837 = vmatpush.msra.mxu0 0.0
    %6838 = vmatpush.msra.mxu0 0.0
    %6839 = vmatpush.msra.mxu0 0.0
    %6840 = vmatpush.msra.mxu0 0.0
    %6841 = vmatpush.msra.mxu0 0.0
    %v6842 = vand.u32 %v2674, 4294901760
    %v6843 = vsub.f32 %v2674, %v6842
    %v6844 = vand.u32 %v6843, 4294901760
    %v6845 = vsub.f32 %v6843, %v6844
    %v6846 = vand.u32 %v6845, 4294901760
    %6847 = vmatpush.msra.mxu0 %v6846
    %v6848 = vand.u32 %v2673, 4294901760
    %v6849 = vsub.f32 %v2673, %v6848
    %v6850 = vand.u32 %v6849, 4294901760
    %v6851 = vsub.f32 %v6849, %v6850
    %v6852 = vand.u32 %v6851, 4294901760
    %6853 = vmatpush.msra.mxu0 %v6852
    %v6854 = vand.u32 %v2672, 4294901760
    %v6855 = vsub.f32 %v2672, %v6854
    %v6856 = vand.u32 %v6855, 4294901760
    %v6857 = vsub.f32 %v6855, %v6856
    %v6858 = vand.u32 %v6857, 4294901760
    %6859 = vmatpush.msra.mxu0 %v6858
    %v6860 = vand.u32 %v2671, 4294901760
    %v6861 = vsub.f32 %v2671, %v6860
    %v6862 = vand.u32 %v6861, 4294901760
    %v6863 = vsub.f32 %v6861, %v6862
    %v6864 = vand.u32 %v6863, 4294901760
    %6865 = vmatpush.msra.mxu0 %v6864
    %v6866 = vand.u32 %v6799, 4294901760
    %6867 = vmatmul.f32.gmra.mxu0 %v6866
    %v6868 = vpop.f32.mrf.mxu0
    %v6869 = vadd.f32 %v6828, %v6868
    %6870 = vdwg.mxu0
    %6871 = vmatpush.msra.mxu0 0.0
    %6872 = vmatpush.msra.mxu0 0.0
    %6873 = vmatpush.msra.mxu0 0.0
    %6874 = vmatpush.msra.mxu0 0.0
    %6875 = vmatpush.msra.mxu0 0.0
    %6876 = vmatpush.msra.mxu0 0.0
    %6877 = vmatpush.msra.mxu0 0.0
    %6878 = vmatpush.msra.mxu0 0.0
    %6879 = vmatpush.msra.mxu0 0.0
    %6880 = vmatpush.msra.mxu0 0.0
    %6881 = vmatpush.msra.mxu0 0.0
    %6882 = vmatpush.msra.mxu0 0.0
    %v6883 = vand.u32 %v2674, 4294901760
    %v6884 = vsub.f32 %v2674, %v6883
    %6885 = vmatpush.msra.mxu0 %v6884
    %v6886 = vand.u32 %v2673, 4294901760
    %v6887 = vsub.f32 %v2673, %v6886
    %6888 = vmatpush.msra.mxu0 %v6887
    %v6889 = vand.u32 %v2672, 4294901760
    %v6890 = vsub.f32 %v2672, %v6889
    %6891 = vmatpush.msra.mxu0 %v6890
    %v6892 = vand.u32 %v2671, 4294901760
    %v6893 = vsub.f32 %v2671, %v6892
    %6894 = vmatpush.msra.mxu0 %v6893
    %v6895 = vand.u32 %v6799, 4294901760
    %v6896 = vsub.f32 %v6799, %v6895
    %6897 = vmatmul.f32.gmra.mxu0 %v6896
    %v6898 = vpop.f32.mrf.mxu0
    %v6899 = vadd.f32 %v6869, %v6898
    %6900 = vdwg.mxu0
    %6901 = vmatpush.msra.mxu0 0.0
    %6902 = vmatpush.msra.mxu0 0.0
    %6903 = vmatpush.msra.mxu0 0.0
    %6904 = vmatpush.msra.mxu0 0.0
    %6905 = vmatpush.msra.mxu0 0.0
    %6906 = vmatpush.msra.mxu0 0.0
    %6907 = vmatpush.msra.mxu0 0.0
    %6908 = vmatpush.msra.mxu0 0.0
    %6909 = vmatpush.msra.mxu0 0.0
    %6910 = vmatpush.msra.mxu0 0.0
    %6911 = vmatpush.msra.mxu0 0.0
    %6912 = vmatpush.msra.mxu0 0.0
    %v6913 = vand.u32 %v2674, 4294901760
    %6914 = vmatpush.msra.mxu0 %v6913
    %v6915 = vand.u32 %v2673, 4294901760
    %6916 = vmatpush.msra.mxu0 %v6915
    %v6917 = vand.u32 %v2672, 4294901760
    %6918 = vmatpush.msra.mxu0 %v6917
    %v6919 = vand.u32 %v2671, 4294901760
    %6920 = vmatpush.msra.mxu0 %v6919
    %v6921 = vand.u32 %v6799, 4294901760
    %v6922 = vsub.f32 %v6799, %v6921
    %v6923 = vand.u32 %v6922, 4294901760
    %6924 = vmatmul.f32.gmra.mxu0 %v6923
    %v6925 = vpop.f32.mrf.mxu0
    %v6926 = vadd.f32 %v6899, %v6925
    %6927 = vdwg.mxu0
    %6928 = vmatpush.msra.mxu0 0.0
    %6929 = vmatpush.msra.mxu0 0.0
    %6930 = vmatpush.msra.mxu0 0.0
    %6931 = vmatpush.msra.mxu0 0.0
    %6932 = vmatpush.msra.mxu0 0.0
    %6933 = vmatpush.msra.mxu0 0.0
    %6934 = vmatpush.msra.mxu0 0.0
    %6935 = vmatpush.msra.mxu0 0.0
    %6936 = vmatpush.msra.mxu0 0.0
    %6937 = vmatpush.msra.mxu0 0.0
    %6938 = vmatpush.msra.mxu0 0.0
    %6939 = vmatpush.msra.mxu0 0.0
    %v6940 = vand.u32 %v2674, 4294901760
    %v6941 = vsub.f32 %v2674, %v6940
    %v6942 = vand.u32 %v6941, 4294901760
    %6943 = vmatpush.msra.mxu0 %v6942
    %v6944 = vand.u32 %v2673, 4294901760
    %v6945 = vsub.f32 %v2673, %v6944
    %v6946 = vand.u32 %v6945, 4294901760
    %6947 = vmatpush.msra.mxu0 %v6946
    %v6948 = vand.u32 %v2672, 4294901760
    %v6949 = vsub.f32 %v2672, %v6948
    %v6950 = vand.u32 %v6949, 4294901760
    %6951 = vmatpush.msra.mxu0 %v6950
    %v6952 = vand.u32 %v2671, 4294901760
    %v6953 = vsub.f32 %v2671, %v6952
    %v6954 = vand.u32 %v6953, 4294901760
    %6955 = vmatpush.msra.mxu0 %v6954
    %v6956 = vand.u32 %v6799, 4294901760
    %6957 = vmatmul.f32.gmra.mxu0 %v6956
    %v6958 = vpop.f32.mrf.mxu0
    %v6959 = vadd.f32 %v6926, %v6958
    %6960 = vdwg.mxu0
    %6961 = vmatpush.msra.mxu0 0.0
    %6962 = vmatpush.msra.mxu0 0.0
    %6963 = vmatpush.msra.mxu0 0.0
    %6964 = vmatpush.msra.mxu0 0.0
    %6965 = vmatpush.msra.mxu0 0.0
    %6966 = vmatpush.msra.mxu0 0.0
    %6967 = vmatpush.msra.mxu0 0.0
    %6968 = vmatpush.msra.mxu0 0.0
    %6969 = vmatpush.msra.mxu0 0.0
    %6970 = vmatpush.msra.mxu0 0.0
    %6971 = vmatpush.msra.mxu0 0.0
    %6972 = vmatpush.msra.mxu0 0.0
    %v6973 = vand.u32 %v2674, 4294901760
    %6974 = vmatpush.msra.mxu0 %v6973
    %v6975 = vand.u32 %v2673, 4294901760
    %6976 = vmatpush.msra.mxu0 %v6975
    %v6977 = vand.u32 %v2672, 4294901760
    %6978 = vmatpush.msra.mxu0 %v6977
    %v6979 = vand.u32 %v2671, 4294901760
    %6980 = vmatpush.msra.mxu0 %v6979
    %v6981 = vand.u32 %v6799, 4294901760
    %6982 = vmatmul.f32.gmra.mxu0 %v6981
    %v6983 = vpop.f32.mrf.mxu0
    %v6984 = vadd.f32 %v6959, %v6983
    %6985 = vdwg.mxu0
    %v6986 = vadd.f32 %v2669, %v6984
    %v6987 = vxor.u32 %v6986, 2147483648
    %v6988 = vmul.f32 %v6987, 1.442695
    %v6989 = vpow.pop %v6988
    %v6990 = vadd.f32 %v6989, 1.0
    %v6991 = vrcp.pop %v6990
    %v6992 = vmul.f32 %v6990, %v6991
    %v6993 = vsub.f32 1.0, %v6992
    %v6994 = vmul.f32 %v6991, %v6993
    %v6995 = vadd.f32 %v6991, %v6994
    %vm6996 = vweird.f32 %v6990
    %vm6997 = vweird.f32 %v6991
    %vm6998 = vmor %vm6996, %vm6997
    %v6999 = vsel %vm6998, %v6991, %v6995
    %v7000 = vand.u32 2147483647, %v6990
    %vm7001 = vcmp.eq.f32.partialorder %v7000, 8.507059e+37
    %v7002 = vand.u32 %v6990, 2147483648
    %v7003 = vor.u32 1.1754944e-38, %v7002
    %v7004 = vsel %vm7001, %v7003, %v6999
    %v7005 = vmul.f32 1.0, %v7004
    %7007 = vrot.lane.b32.xlu0 %v6984, 64
    %v7008 = vpop.permute.xlu0 %7007
    %v7010 = vmul.f32 %v7005, %v7008
    %7012 = vrot.lane.b32.xlu0 %v7010, 64
    %v7013 = vpop.permute.xlu0 %7012
    %v7015 = vadd.f32 %v2669, %v7013
    %v7016 = vtanh.pop %v7015
    %v7017 = vsub.f32 1.0, %v7005
    %7019 = vrot.lane.b32.xlu0 %v7016, 96
    %v7020 = vpop.permute.xlu0 %7019
    %v7022 = vmul.f32 %v7017, %v7020
    %v7023 = vmul.f32 %v7005, %v6795
    %v7024 = vadd.f32 %v7022, %v7023
    %7026 = vrot.lane.b32.xlu0 %v7024, 96
    %v7027 = vpop.permute.xlu0 %7026
    %v7028 = vsel %vm642, %v7027, 0
    %7030 = vmatpush.msra.mxu0 0.0
    %7031 = vmatpush.msra.mxu0 0.0
    %7032 = vmatpush.msra.mxu0 0.0
    %7033 = vmatpush.msra.mxu0 0.0
    %7034 = vmatpush.msra.mxu0 0.0
    %7035 = vmatpush.msra.mxu0 0.0
    %7036 = vmatpush.msra.mxu0 0.0
    %7037 = vmatpush.msra.mxu0 0.0
    %7038 = vmatpush.msra.mxu0 0.0
    %7039 = vmatpush.msra.mxu0 0.0
    %7040 = vmatpush.msra.mxu0 0.0
    %7041 = vmatpush.msra.mxu0 0.0
    %v7042 = vand.u32 %v2674, 4294901760
    %7043 = vmatpush.msra.mxu0 %v7042
    %v7044 = vand.u32 %v2673, 4294901760
    %7045 = vmatpush.msra.mxu0 %v7044
    %v7046 = vand.u32 %v2672, 4294901760
    %7047 = vmatpush.msra.mxu0 %v7046
    %v7048 = vand.u32 %v2671, 4294901760
    %7049 = vmatpush.msra.mxu0 %v7048
    %v7050 = vand.u32 %v7028, 4294901760
    %v7051 = vsub.f32 %v7028, %v7050
    %v7052 = vand.u32 %v7051, 4294901760
    %v7053 = vsub.f32 %v7051, %v7052
    %v7054 = vand.u32 %v7053, 4294901760
    %7055 = vmatmul.f32.gmra.mxu0 %v7054
    %v7056 = vpop.f32.mrf.mxu0
    %v7057 = vadd.f32 %v2677, %v7056
    %7058 = vdwg.mxu0
    %7059 = vmatpush.msra.mxu0 0.0
    %7060 = vmatpush.msra.mxu0 0.0
    %7061 = vmatpush.msra.mxu0 0.0
    %7062 = vmatpush.msra.mxu0 0.0
    %7063 = vmatpush.msra.mxu0 0.0
    %7064 = vmatpush.msra.mxu0 0.0
    %7065 = vmatpush.msra.mxu0 0.0
    %7066 = vmatpush.msra.mxu0 0.0
    %7067 = vmatpush.msra.mxu0 0.0
    %7068 = vmatpush.msra.mxu0 0.0
    %7069 = vmatpush.msra.mxu0 0.0
    %7070 = vmatpush.msra.mxu0 0.0
    %v7071 = vand.u32 %v2674, 4294901760
    %v7072 = vsub.f32 %v2674, %v7071
    %v7073 = vand.u32 %v7072, 4294901760
    %v7074 = vsub.f32 %v7072, %v7073
    %v7075 = vand.u32 %v7074, 4294901760
    %7076 = vmatpush.msra.mxu0 %v7075
    %v7077 = vand.u32 %v2673, 4294901760
    %v7078 = vsub.f32 %v2673, %v7077
    %v7079 = vand.u32 %v7078, 4294901760
    %v7080 = vsub.f32 %v7078, %v7079
    %v7081 = vand.u32 %v7080, 4294901760
    %7082 = vmatpush.msra.mxu0 %v7081
    %v7083 = vand.u32 %v2672, 4294901760
    %v7084 = vsub.f32 %v2672, %v7083
    %v7085 = vand.u32 %v7084, 4294901760
    %v7086 = vsub.f32 %v7084, %v7085
    %v7087 = vand.u32 %v7086, 4294901760
    %7088 = vmatpush.msra.mxu0 %v7087
    %v7089 = vand.u32 %v2671, 4294901760
    %v7090 = vsub.f32 %v2671, %v7089
    %v7091 = vand.u32 %v7090, 4294901760
    %v7092 = vsub.f32 %v7090, %v7091
    %v7093 = vand.u32 %v7092, 4294901760
    %7094 = vmatpush.msra.mxu0 %v7093
    %v7095 = vand.u32 %v7028, 4294901760
    %7096 = vmatmul.f32.gmra.mxu0 %v7095
    %v7097 = vpop.f32.mrf.mxu0
    %v7098 = vadd.f32 %v7057, %v7097
    %7099 = vdwg.mxu0
    %7100 = vmatpush.msra.mxu0 0.0
    %7101 = vmatpush.msra.mxu0 0.0
    %7102 = vmatpush.msra.mxu0 0.0
    %7103 = vmatpush.msra.mxu0 0.0
    %7104 = vmatpush.msra.mxu0 0.0
    %7105 = vmatpush.msra.mxu0 0.0
    %7106 = vmatpush.msra.mxu0 0.0
    %7107 = vmatpush.msra.mxu0 0.0
    %7108 = vmatpush.msra.mxu0 0.0
    %7109 = vmatpush.msra.mxu0 0.0
    %7110 = vmatpush.msra.mxu0 0.0
    %7111 = vmatpush.msra.mxu0 0.0
    %v7112 = vand.u32 %v2674, 4294901760
    %v7113 = vsub.f32 %v2674, %v7112
    %7114 = vmatpush.msra.mxu0 %v7113
    %v7115 = vand.u32 %v2673, 4294901760
    %v7116 = vsub.f32 %v2673, %v7115
    %7117 = vmatpush.msra.mxu0 %v7116
    %v7118 = vand.u32 %v2672, 4294901760
    %v7119 = vsub.f32 %v2672, %v7118
    %7120 = vmatpush.msra.mxu0 %v7119
    %v7121 = vand.u32 %v2671, 4294901760
    %v7122 = vsub.f32 %v2671, %v7121
    %7123 = vmatpush.msra.mxu0 %v7122
    %v7124 = vand.u32 %v7028, 4294901760
    %v7125 = vsub.f32 %v7028, %v7124
    %7126 = vmatmul.f32.gmra.mxu0 %v7125
    %v7127 = vpop.f32.mrf.mxu0
    %v7128 = vadd.f32 %v7098, %v7127
    %7129 = vdwg.mxu0
    %7130 = vmatpush.msra.mxu0 0.0
    %7131 = vmatpush.msra.mxu0 0.0
    %7132 = vmatpush.msra.mxu0 0.0
    %7133 = vmatpush.msra.mxu0 0.0
    %7134 = vmatpush.msra.mxu0 0.0
    %7135 = vmatpush.msra.mxu0 0.0
    %7136 = vmatpush.msra.mxu0 0.0
    %7137 = vmatpush.msra.mxu0 0.0
    %7138 = vmatpush.msra.mxu0 0.0
    %7139 = vmatpush.msra.mxu0 0.0
    %7140 = vmatpush.msra.mxu0 0.0
    %7141 = vmatpush.msra.mxu0 0.0
    %v7142 = vand.u32 %v2674, 4294901760
    %7143 = vmatpush.msra.mxu0 %v7142
    %v7144 = vand.u32 %v2673, 4294901760
    %7145 = vmatpush.msra.mxu0 %v7144
    %v7146 = vand.u32 %v2672, 4294901760
    %7147 = vmatpush.msra.mxu0 %v7146
    %v7148 = vand.u32 %v2671, 4294901760
    %7149 = vmatpush.msra.mxu0 %v7148
    %v7150 = vand.u32 %v7028, 4294901760
    %v7151 = vsub.f32 %v7028, %v7150
    %v7152 = vand.u32 %v7151, 4294901760
    %7153 = vmatmul.f32.gmra.mxu0 %v7152
    %v7154 = vpop.f32.mrf.mxu0
    %v7155 = vadd.f32 %v7128, %v7154
    %7156 = vdwg.mxu0
    %7157 = vmatpush.msra.mxu0 0.0
    %7158 = vmatpush.msra.mxu0 0.0
    %7159 = vmatpush.msra.mxu0 0.0
    %7160 = vmatpush.msra.mxu0 0.0
    %7161 = vmatpush.msra.mxu0 0.0
    %7162 = vmatpush.msra.mxu0 0.0
    %7163 = vmatpush.msra.mxu0 0.0
    %7164 = vmatpush.msra.mxu0 0.0
    %7165 = vmatpush.msra.mxu0 0.0
    %7166 = vmatpush.msra.mxu0 0.0
    %7167 = vmatpush.msra.mxu0 0.0
    %7168 = vmatpush.msra.mxu0 0.0
    %v7169 = vand.u32 %v2674, 4294901760
    %v7170 = vsub.f32 %v2674, %v7169
    %v7171 = vand.u32 %v7170, 4294901760
    %7172 = vmatpush.msra.mxu0 %v7171
    %v7173 = vand.u32 %v2673, 4294901760
    %v7174 = vsub.f32 %v2673, %v7173
    %v7175 = vand.u32 %v7174, 4294901760
    %7176 = vmatpush.msra.mxu0 %v7175
    %v7177 = vand.u32 %v2672, 4294901760
    %v7178 = vsub.f32 %v2672, %v7177
    %v7179 = vand.u32 %v7178, 4294901760
    %7180 = vmatpush.msra.mxu0 %v7179
    %v7181 = vand.u32 %v2671, 4294901760
    %v7182 = vsub.f32 %v2671, %v7181
    %v7183 = vand.u32 %v7182, 4294901760
    %7184 = vmatpush.msra.mxu0 %v7183
    %v7185 = vand.u32 %v7028, 4294901760
    %7186 = vmatmul.f32.gmra.mxu0 %v7185
    %v7187 = vpop.f32.mrf.mxu0
    %v7188 = vadd.f32 %v7155, %v7187
    %7189 = vdwg.mxu0
    %7190 = vmatpush.msra.mxu0 0.0
    %7191 = vmatpush.msra.mxu0 0.0
    %7192 = vmatpush.msra.mxu0 0.0
    %7193 = vmatpush.msra.mxu0 0.0
    %7194 = vmatpush.msra.mxu0 0.0
    %7195 = vmatpush.msra.mxu0 0.0
    %7196 = vmatpush.msra.mxu0 0.0
    %7197 = vmatpush.msra.mxu0 0.0
    %7198 = vmatpush.msra.mxu0 0.0
    %7199 = vmatpush.msra.mxu0 0.0
    %7200 = vmatpush.msra.mxu0 0.0
    %7201 = vmatpush.msra.mxu0 0.0
    %v7202 = vand.u32 %v2674, 4294901760
    %7203 = vmatpush.msra.mxu0 %v7202
    %v7204 = vand.u32 %v2673, 4294901760
    %7205 = vmatpush.msra.mxu0 %v7204
    %v7206 = vand.u32 %v2672, 4294901760
    %7207 = vmatpush.msra.mxu0 %v7206
    %v7208 = vand.u32 %v2671, 4294901760
    %7209 = vmatpush.msra.mxu0 %v7208
    %v7210 = vand.u32 %v7028, 4294901760
    %7211 = vmatmul.f32.gmra.mxu0 %v7210
    %v7212 = vpop.f32.mrf.mxu0
    %v7213 = vadd.f32 %v7188, %v7212
    %7214 = vdwg.mxu0
    %v7215 = vadd.f32 %v2669, %v7213
    %v7216 = vxor.u32 %v7215, 2147483648
    %v7217 = vmul.f32 %v7216, 1.442695
    %v7218 = vpow.pop %v7217
    %v7219 = vadd.f32 %v7218, 1.0
    %v7220 = vrcp.pop %v7219
    %v7221 = vmul.f32 %v7219, %v7220
    %v7222 = vsub.f32 1.0, %v7221
    %v7223 = vmul.f32 %v7220, %v7222
    %v7224 = vadd.f32 %v7220, %v7223
    %vm7225 = vweird.f32 %v7219
    %vm7226 = vweird.f32 %v7220
    %vm7227 = vmor %vm7225, %vm7226
    %v7228 = vsel %vm7227, %v7220, %v7224
    %v7229 = vand.u32 2147483647, %v7219
    %vm7230 = vcmp.eq.f32.partialorder %v7229, 8.507059e+37
    %v7231 = vand.u32 %v7219, 2147483648
    %v7232 = vor.u32 1.1754944e-38, %v7231
    %v7233 = vsel %vm7230, %v7232, %v7228
    %v7234 = vmul.f32 1.0, %v7233
    %7236 = vrot.lane.b32.xlu0 %v7213, 64
    %v7237 = vpop.permute.xlu0 %7236
    %v7239 = vmul.f32 %v7234, %v7237
    %7241 = vrot.lane.b32.xlu0 %v7239, 64
    %v7242 = vpop.permute.xlu0 %7241
    %v7244 = vadd.f32 %v2669, %v7242
    %v7245 = vtanh.pop %v7244
    %v7246 = vsub.f32 1.0, %v7234
    %7248 = vrot.lane.b32.xlu0 %v7245, 96
    %v7249 = vpop.permute.xlu0 %7248
    %v7251 = vmul.f32 %v7246, %v7249
    %v7252 = vmul.f32 %v7234, %v7024
    %v7253 = vadd.f32 %v7251, %v7252
    %7255 = vrot.lane.b32.xlu0 %v7253, 96
    %v7256 = vpop.permute.xlu0 %7255
    %v7257 = vsel %vm642, %v7256, 0
    %7259 = vmatpush.msra.mxu0 0.0
    %7260 = vmatpush.msra.mxu0 0.0
    %7261 = vmatpush.msra.mxu0 0.0
    %7262 = vmatpush.msra.mxu0 0.0
    %7263 = vmatpush.msra.mxu0 0.0
    %7264 = vmatpush.msra.mxu0 0.0
    %7265 = vmatpush.msra.mxu0 0.0
    %7266 = vmatpush.msra.mxu0 0.0
    %7267 = vmatpush.msra.mxu0 0.0
    %7268 = vmatpush.msra.mxu0 0.0
    %7269 = vmatpush.msra.mxu0 0.0
    %7270 = vmatpush.msra.mxu0 0.0
    %v7271 = vand.u32 %v2674, 4294901760
    %7272 = vmatpush.msra.mxu0 %v7271
    %v7273 = vand.u32 %v2673, 4294901760
    %7274 = vmatpush.msra.mxu0 %v7273
    %v7275 = vand.u32 %v2672, 4294901760
    %7276 = vmatpush.msra.mxu0 %v7275
    %v7277 = vand.u32 %v2671, 4294901760
    %7278 = vmatpush.msra.mxu0 %v7277
    %v7279 = vand.u32 %v7257, 4294901760
    %v7280 = vsub.f32 %v7257, %v7279
    %v7281 = vand.u32 %v7280, 4294901760
    %v7282 = vsub.f32 %v7280, %v7281
    %v7283 = vand.u32 %v7282, 4294901760
    %7284 = vmatmul.f32.gmra.mxu0 %v7283
    %v7285 = vpop.f32.mrf.mxu0
    %v7286 = vadd.f32 %v2677, %v7285
    %7287 = vdwg.mxu0
    %7288 = vmatpush.msra.mxu0 0.0
    %7289 = vmatpush.msra.mxu0 0.0
    %7290 = vmatpush.msra.mxu0 0.0
    %7291 = vmatpush.msra.mxu0 0.0
    %7292 = vmatpush.msra.mxu0 0.0
    %7293 = vmatpush.msra.mxu0 0.0
    %7294 = vmatpush.msra.mxu0 0.0
    %7295 = vmatpush.msra.mxu0 0.0
    %7296 = vmatpush.msra.mxu0 0.0
    %7297 = vmatpush.msra.mxu0 0.0
    %7298 = vmatpush.msra.mxu0 0.0
    %7299 = vmatpush.msra.mxu0 0.0
    %v7300 = vand.u32 %v2674, 4294901760
    %v7301 = vsub.f32 %v2674, %v7300
    %v7302 = vand.u32 %v7301, 4294901760
    %v7303 = vsub.f32 %v7301, %v7302
    %v7304 = vand.u32 %v7303, 4294901760
    %7305 = vmatpush.msra.mxu0 %v7304
    %v7306 = vand.u32 %v2673, 4294901760
    %v7307 = vsub.f32 %v2673, %v7306
    %v7308 = vand.u32 %v7307, 4294901760
    %v7309 = vsub.f32 %v7307, %v7308
    %v7310 = vand.u32 %v7309, 4294901760
    %7311 = vmatpush.msra.mxu0 %v7310
    %v7312 = vand.u32 %v2672, 4294901760
    %v7313 = vsub.f32 %v2672, %v7312
    %v7314 = vand.u32 %v7313, 4294901760
    %v7315 = vsub.f32 %v7313, %v7314
    %v7316 = vand.u32 %v7315, 4294901760
    %7317 = vmatpush.msra.mxu0 %v7316
    %v7318 = vand.u32 %v2671, 4294901760
    %v7319 = vsub.f32 %v2671, %v7318
    %v7320 = vand.u32 %v7319, 4294901760
    %v7321 = vsub.f32 %v7319, %v7320
    %v7322 = vand.u32 %v7321, 4294901760
    %7323 = vmatpush.msra.mxu0 %v7322
    %v7324 = vand.u32 %v7257, 4294901760
    %7325 = vmatmul.f32.gmra.mxu0 %v7324
    %v7326 = vpop.f32.mrf.mxu0
    %v7327 = vadd.f32 %v7286, %v7326
    %7328 = vdwg.mxu0
    %7329 = vmatpush.msra.mxu0 0.0
    %7330 = vmatpush.msra.mxu0 0.0
    %7331 = vmatpush.msra.mxu0 0.0
    %7332 = vmatpush.msra.mxu0 0.0
    %7333 = vmatpush.msra.mxu0 0.0
    %7334 = vmatpush.msra.mxu0 0.0
    %7335 = vmatpush.msra.mxu0 0.0
    %7336 = vmatpush.msra.mxu0 0.0
    %7337 = vmatpush.msra.mxu0 0.0
    %7338 = vmatpush.msra.mxu0 0.0
    %7339 = vmatpush.msra.mxu0 0.0
    %7340 = vmatpush.msra.mxu0 0.0
    %v7341 = vand.u32 %v2674, 4294901760
    %v7342 = vsub.f32 %v2674, %v7341
    %7343 = vmatpush.msra.mxu0 %v7342
    %v7344 = vand.u32 %v2673, 4294901760
    %v7345 = vsub.f32 %v2673, %v7344
    %7346 = vmatpush.msra.mxu0 %v7345
    %v7347 = vand.u32 %v2672, 4294901760
    %v7348 = vsub.f32 %v2672, %v7347
    %7349 = vmatpush.msra.mxu0 %v7348
    %v7350 = vand.u32 %v2671, 4294901760
    %v7351 = vsub.f32 %v2671, %v7350
    %7352 = vmatpush.msra.mxu0 %v7351
    %v7353 = vand.u32 %v7257, 4294901760
    %v7354 = vsub.f32 %v7257, %v7353
    %7355 = vmatmul.f32.gmra.mxu0 %v7354
    %v7356 = vpop.f32.mrf.mxu0
    %v7357 = vadd.f32 %v7327, %v7356
    %7358 = vdwg.mxu0
    %7359 = vmatpush.msra.mxu0 0.0
    %7360 = vmatpush.msra.mxu0 0.0
    %7361 = vmatpush.msra.mxu0 0.0
    %7362 = vmatpush.msra.mxu0 0.0
    %7363 = vmatpush.msra.mxu0 0.0
    %7364 = vmatpush.msra.mxu0 0.0
    %7365 = vmatpush.msra.mxu0 0.0
    %7366 = vmatpush.msra.mxu0 0.0
    %7367 = vmatpush.msra.mxu0 0.0
    %7368 = vmatpush.msra.mxu0 0.0
    %7369 = vmatpush.msra.mxu0 0.0
    %7370 = vmatpush.msra.mxu0 0.0
    %v7371 = vand.u32 %v2674, 4294901760
    %7372 = vmatpush.msra.mxu0 %v7371
    %v7373 = vand.u32 %v2673, 4294901760
    %7374 = vmatpush.msra.mxu0 %v7373
    %v7375 = vand.u32 %v2672, 4294901760
    %7376 = vmatpush.msra.mxu0 %v7375
    %v7377 = vand.u32 %v2671, 4294901760
    %7378 = vmatpush.msra.mxu0 %v7377
    %v7379 = vand.u32 %v7257, 4294901760
    %v7380 = vsub.f32 %v7257, %v7379
    %v7381 = vand.u32 %v7380, 4294901760
    %7382 = vmatmul.f32.gmra.mxu0 %v7381
    %v7383 = vpop.f32.mrf.mxu0
    %v7384 = vadd.f32 %v7357, %v7383
    %7385 = vdwg.mxu0
    %7386 = vmatpush.msra.mxu0 0.0
    %7387 = vmatpush.msra.mxu0 0.0
    %7388 = vmatpush.msra.mxu0 0.0
    %7389 = vmatpush.msra.mxu0 0.0
    %7390 = vmatpush.msra.mxu0 0.0
    %7391 = vmatpush.msra.mxu0 0.0
    %7392 = vmatpush.msra.mxu0 0.0
    %7393 = vmatpush.msra.mxu0 0.0
    %7394 = vmatpush.msra.mxu0 0.0
    %7395 = vmatpush.msra.mxu0 0.0
    %7396 = vmatpush.msra.mxu0 0.0
    %7397 = vmatpush.msra.mxu0 0.0
    %v7398 = vand.u32 %v2674, 4294901760
    %v7399 = vsub.f32 %v2674, %v7398
    %v7400 = vand.u32 %v7399, 4294901760
    %7401 = vmatpush.msra.mxu0 %v7400
    %v7402 = vand.u32 %v2673, 4294901760
    %v7403 = vsub.f32 %v2673, %v7402
    %v7404 = vand.u32 %v7403, 4294901760
    %7405 = vmatpush.msra.mxu0 %v7404
    %v7406 = vand.u32 %v2672, 4294901760
    %v7407 = vsub.f32 %v2672, %v7406
    %v7408 = vand.u32 %v7407, 4294901760
    %7409 = vmatpush.msra.mxu0 %v7408
    %v7410 = vand.u32 %v2671, 4294901760
    %v7411 = vsub.f32 %v2671, %v7410
    %v7412 = vand.u32 %v7411, 4294901760
    %7413 = vmatpush.msra.mxu0 %v7412
    %v7414 = vand.u32 %v7257, 4294901760
    %7415 = vmatmul.f32.gmra.mxu0 %v7414
    %v7416 = vpop.f32.mrf.mxu0
    %v7417 = vadd.f32 %v7384, %v7416
    %7418 = vdwg.mxu0
    %7419 = vmatpush.msra.mxu0 0.0
    %7420 = vmatpush.msra.mxu0 0.0
    %7421 = vmatpush.msra.mxu0 0.0
    %7422 = vmatpush.msra.mxu0 0.0
    %7423 = vmatpush.msra.mxu0 0.0
    %7424 = vmatpush.msra.mxu0 0.0
    %7425 = vmatpush.msra.mxu0 0.0
    %7426 = vmatpush.msra.mxu0 0.0
    %7427 = vmatpush.msra.mxu0 0.0
    %7428 = vmatpush.msra.mxu0 0.0
    %7429 = vmatpush.msra.mxu0 0.0
    %7430 = vmatpush.msra.mxu0 0.0
    %v7431 = vand.u32 %v2674, 4294901760
    %7432 = vmatpush.msra.mxu0 %v7431
    %v7433 = vand.u32 %v2673, 4294901760
    %7434 = vmatpush.msra.mxu0 %v7433
    %v7435 = vand.u32 %v2672, 4294901760
    %7436 = vmatpush.msra.mxu0 %v7435
    %v7437 = vand.u32 %v2671, 4294901760
    %7438 = vmatpush.msra.mxu0 %v7437
    %v7439 = vand.u32 %v7257, 4294901760
    %7440 = vmatmul.f32.gmra.mxu0 %v7439
    %v7441 = vpop.f32.mrf.mxu0
    %v7442 = vadd.f32 %v7417, %v7441
    %7443 = vdwg.mxu0
    %v7444 = vadd.f32 %v2669, %v7442
    %v7445 = vxor.u32 %v7444, 2147483648
    %v7446 = vmul.f32 %v7445, 1.442695
    %v7447 = vpow.pop %v7446
    %v7448 = vadd.f32 %v7447, 1.0
    %v7449 = vrcp.pop %v7448
    %v7450 = vmul.f32 %v7448, %v7449
    %v7451 = vsub.f32 1.0, %v7450
    %v7452 = vmul.f32 %v7449, %v7451
    %v7453 = vadd.f32 %v7449, %v7452
    %vm7454 = vweird.f32 %v7448
    %vm7455 = vweird.f32 %v7449
    %vm7456 = vmor %vm7454, %vm7455
    %v7457 = vsel %vm7456, %v7449, %v7453
    %v7458 = vand.u32 2147483647, %v7448
    %vm7459 = vcmp.eq.f32.partialorder %v7458, 8.507059e+37
    %v7460 = vand.u32 %v7448, 2147483648
    %v7461 = vor.u32 1.1754944e-38, %v7460
    %v7462 = vsel %vm7459, %v7461, %v7457
    %v7463 = vmul.f32 1.0, %v7462
    %7465 = vrot.lane.b32.xlu0 %v7442, 64
    %v7466 = vpop.permute.xlu0 %7465
    %v7468 = vmul.f32 %v7463, %v7466
    %7470 = vrot.lane.b32.xlu0 %v7468, 64
    %v7471 = vpop.permute.xlu0 %7470
    %v7473 = vadd.f32 %v2669, %v7471
    %v7474 = vtanh.pop %v7473
    %v7475 = vsub.f32 1.0, %v7463
    %7477 = vrot.lane.b32.xlu0 %v7474, 96
    %v7478 = vpop.permute.xlu0 %7477
    %v7480 = vmul.f32 %v7475, %v7478
    %v7481 = vmul.f32 %v7463, %v7253
    %v7482 = vadd.f32 %v7480, %v7481
    %7484 = vrot.lane.b32.xlu0 %v7482, 96
    %v7485 = vpop.permute.xlu0 %7484
    %v7486 = vsel %vm642, %v7485, 0
    %7488 = vmatpush.msra.mxu0 0.0
    %7489 = vmatpush.msra.mxu0 0.0
    %7490 = vmatpush.msra.mxu0 0.0
    %7491 = vmatpush.msra.mxu0 0.0
    %7492 = vmatpush.msra.mxu0 0.0
    %7493 = vmatpush.msra.mxu0 0.0
    %7494 = vmatpush.msra.mxu0 0.0
    %7495 = vmatpush.msra.mxu0 0.0
    %7496 = vmatpush.msra.mxu0 0.0
    %7497 = vmatpush.msra.mxu0 0.0
    %7498 = vmatpush.msra.mxu0 0.0
    %7499 = vmatpush.msra.mxu0 0.0
    %v7500 = vand.u32 %v2674, 4294901760
    %7501 = vmatpush.msra.mxu0 %v7500
    %v7502 = vand.u32 %v2673, 4294901760
    %7503 = vmatpush.msra.mxu0 %v7502
    %v7504 = vand.u32 %v2672, 4294901760
    %7505 = vmatpush.msra.mxu0 %v7504
    %v7506 = vand.u32 %v2671, 4294901760
    %7507 = vmatpush.msra.mxu0 %v7506
    %v7508 = vand.u32 %v7486, 4294901760
    %v7509 = vsub.f32 %v7486, %v7508
    %v7510 = vand.u32 %v7509, 4294901760
    %v7511 = vsub.f32 %v7509, %v7510
    %v7512 = vand.u32 %v7511, 4294901760
    %7513 = vmatmul.f32.gmra.mxu0 %v7512
    %v7514 = vpop.f32.mrf.mxu0
    %v7515 = vadd.f32 %v2677, %v7514
    %7516 = vdwg.mxu0
    %7517 = vmatpush.msra.mxu0 0.0
    %7518 = vmatpush.msra.mxu0 0.0
    %7519 = vmatpush.msra.mxu0 0.0
    %7520 = vmatpush.msra.mxu0 0.0
    %7521 = vmatpush.msra.mxu0 0.0
    %7522 = vmatpush.msra.mxu0 0.0
    %7523 = vmatpush.msra.mxu0 0.0
    %7524 = vmatpush.msra.mxu0 0.0
    %7525 = vmatpush.msra.mxu0 0.0
    %7526 = vmatpush.msra.mxu0 0.0
    %7527 = vmatpush.msra.mxu0 0.0
    %7528 = vmatpush.msra.mxu0 0.0
    %v7529 = vand.u32 %v2674, 4294901760
    %v7530 = vsub.f32 %v2674, %v7529
    %v7531 = vand.u32 %v7530, 4294901760
    %v7532 = vsub.f32 %v7530, %v7531
    %v7533 = vand.u32 %v7532, 4294901760
    %7534 = vmatpush.msra.mxu0 %v7533
    %v7535 = vand.u32 %v2673, 4294901760
    %v7536 = vsub.f32 %v2673, %v7535
    %v7537 = vand.u32 %v7536, 4294901760
    %v7538 = vsub.f32 %v7536, %v7537
    %v7539 = vand.u32 %v7538, 4294901760
    %7540 = vmatpush.msra.mxu0 %v7539
    %v7541 = vand.u32 %v2672, 4294901760
    %v7542 = vsub.f32 %v2672, %v7541
    %v7543 = vand.u32 %v7542, 4294901760
    %v7544 = vsub.f32 %v7542, %v7543
    %v7545 = vand.u32 %v7544, 4294901760
    %7546 = vmatpush.msra.mxu0 %v7545
    %v7547 = vand.u32 %v2671, 4294901760
    %v7548 = vsub.f32 %v2671, %v7547
    %v7549 = vand.u32 %v7548, 4294901760
    %v7550 = vsub.f32 %v7548, %v7549
    %v7551 = vand.u32 %v7550, 4294901760
    %7552 = vmatpush.msra.mxu0 %v7551
    %v7553 = vand.u32 %v7486, 4294901760
    %7554 = vmatmul.f32.gmra.mxu0 %v7553
    %v7555 = vpop.f32.mrf.mxu0
    %v7556 = vadd.f32 %v7515, %v7555
    %7557 = vdwg.mxu0
    %7558 = vmatpush.msra.mxu0 0.0
    %7559 = vmatpush.msra.mxu0 0.0
    %7560 = vmatpush.msra.mxu0 0.0
    %7561 = vmatpush.msra.mxu0 0.0
    %7562 = vmatpush.msra.mxu0 0.0
    %7563 = vmatpush.msra.mxu0 0.0
    %7564 = vmatpush.msra.mxu0 0.0
    %7565 = vmatpush.msra.mxu0 0.0
    %7566 = vmatpush.msra.mxu0 0.0
    %7567 = vmatpush.msra.mxu0 0.0
    %7568 = vmatpush.msra.mxu0 0.0
    %7569 = vmatpush.msra.mxu0 0.0
    %v7570 = vand.u32 %v2674, 4294901760
    %v7571 = vsub.f32 %v2674, %v7570
    %7572 = vmatpush.msra.mxu0 %v7571
    %v7573 = vand.u32 %v2673, 4294901760
    %v7574 = vsub.f32 %v2673, %v7573
    %7575 = vmatpush.msra.mxu0 %v7574
    %v7576 = vand.u32 %v2672, 4294901760
    %v7577 = vsub.f32 %v2672, %v7576
    %7578 = vmatpush.msra.mxu0 %v7577
    %v7579 = vand.u32 %v2671, 4294901760
    %v7580 = vsub.f32 %v2671, %v7579
    %7581 = vmatpush.msra.mxu0 %v7580
    %v7582 = vand.u32 %v7486, 4294901760
    %v7583 = vsub.f32 %v7486, %v7582
    %7584 = vmatmul.f32.gmra.mxu0 %v7583
    %v7585 = vpop.f32.mrf.mxu0
    %v7586 = vadd.f32 %v7556, %v7585
    %7587 = vdwg.mxu0
    %7588 = vmatpush.msra.mxu0 0.0
    %7589 = vmatpush.msra.mxu0 0.0
    %7590 = vmatpush.msra.mxu0 0.0
    %7591 = vmatpush.msra.mxu0 0.0
    %7592 = vmatpush.msra.mxu0 0.0
    %7593 = vmatpush.msra.mxu0 0.0
    %7594 = vmatpush.msra.mxu0 0.0
    %7595 = vmatpush.msra.mxu0 0.0
    %7596 = vmatpush.msra.mxu0 0.0
    %7597 = vmatpush.msra.mxu0 0.0
    %7598 = vmatpush.msra.mxu0 0.0
    %7599 = vmatpush.msra.mxu0 0.0
    %v7600 = vand.u32 %v2674, 4294901760
    %7601 = vmatpush.msra.mxu0 %v7600
    %v7602 = vand.u32 %v2673, 4294901760
    %7603 = vmatpush.msra.mxu0 %v7602
    %v7604 = vand.u32 %v2672, 4294901760
    %7605 = vmatpush.msra.mxu0 %v7604
    %v7606 = vand.u32 %v2671, 4294901760
    %7607 = vmatpush.msra.mxu0 %v7606
    %v7608 = vand.u32 %v7486, 4294901760
    %v7609 = vsub.f32 %v7486, %v7608
    %v7610 = vand.u32 %v7609, 4294901760
    %7611 = vmatmul.f32.gmra.mxu0 %v7610
    %v7612 = vpop.f32.mrf.mxu0
    %v7613 = vadd.f32 %v7586, %v7612
    %7614 = vdwg.mxu0
    %7615 = vmatpush.msra.mxu0 0.0
    %7616 = vmatpush.msra.mxu0 0.0
    %7617 = vmatpush.msra.mxu0 0.0
    %7618 = vmatpush.msra.mxu0 0.0
    %7619 = vmatpush.msra.mxu0 0.0
    %7620 = vmatpush.msra.mxu0 0.0
    %7621 = vmatpush.msra.mxu0 0.0
    %7622 = vmatpush.msra.mxu0 0.0
    %7623 = vmatpush.msra.mxu0 0.0
    %7624 = vmatpush.msra.mxu0 0.0
    %7625 = vmatpush.msra.mxu0 0.0
    %7626 = vmatpush.msra.mxu0 0.0
    %v7627 = vand.u32 %v2674, 4294901760
    %v7628 = vsub.f32 %v2674, %v7627
    %v7629 = vand.u32 %v7628, 4294901760
    %7630 = vmatpush.msra.mxu0 %v7629
    %v7631 = vand.u32 %v2673, 4294901760
    %v7632 = vsub.f32 %v2673, %v7631
    %v7633 = vand.u32 %v7632, 4294901760
    %7634 = vmatpush.msra.mxu0 %v7633
    %v7635 = vand.u32 %v2672, 4294901760
    %v7636 = vsub.f32 %v2672, %v7635
    %v7637 = vand.u32 %v7636, 4294901760
    %7638 = vmatpush.msra.mxu0 %v7637
    %v7639 = vand.u32 %v2671, 4294901760
    %v7640 = vsub.f32 %v2671, %v7639
    %v7641 = vand.u32 %v7640, 4294901760
    %7642 = vmatpush.msra.mxu0 %v7641
    %v7643 = vand.u32 %v7486, 4294901760
    %7644 = vmatmul.f32.gmra.mxu0 %v7643
    %v7645 = vpop.f32.mrf.mxu0
    %v7646 = vadd.f32 %v7613, %v7645
    %7647 = vdwg.mxu0
    %7648 = vmatpush.msra.mxu0 0.0
    %7649 = vmatpush.msra.mxu0 0.0
    %7650 = vmatpush.msra.mxu0 0.0
    %7651 = vmatpush.msra.mxu0 0.0
    %7652 = vmatpush.msra.mxu0 0.0
    %7653 = vmatpush.msra.mxu0 0.0
    %7654 = vmatpush.msra.mxu0 0.0
    %7655 = vmatpush.msra.mxu0 0.0
    %7656 = vmatpush.msra.mxu0 0.0
    %7657 = vmatpush.msra.mxu0 0.0
    %7658 = vmatpush.msra.mxu0 0.0
    %7659 = vmatpush.msra.mxu0 0.0
    %v7660 = vand.u32 %v2674, 4294901760
    %7661 = vmatpush.msra.mxu0 %v7660
    %v7662 = vand.u32 %v2673, 4294901760
    %7663 = vmatpush.msra.mxu0 %v7662
    %v7664 = vand.u32 %v2672, 4294901760
    %7665 = vmatpush.msra.mxu0 %v7664
    %v7666 = vand.u32 %v2671, 4294901760
    %7667 = vmatpush.msra.mxu0 %v7666
    %v7668 = vand.u32 %v7486, 4294901760
    %7669 = vmatmul.f32.gmra.mxu0 %v7668
    %v7670 = vpop.f32.mrf.mxu0
    %v7671 = vadd.f32 %v7646, %v7670
    %7672 = vdwg.mxu0
    %v7673 = vadd.f32 %v2669, %v7671
    %v7674 = vxor.u32 %v7673, 2147483648
    %v7675 = vmul.f32 %v7674, 1.442695
    %v7676 = vpow.pop %v7675
    %v7677 = vadd.f32 %v7676, 1.0
    %v7678 = vrcp.pop %v7677
    %v7679 = vmul.f32 %v7677, %v7678
    %v7680 = vsub.f32 1.0, %v7679
    %v7681 = vmul.f32 %v7678, %v7680
    %v7682 = vadd.f32 %v7678, %v7681
    %vm7683 = vweird.f32 %v7677
    %vm7684 = vweird.f32 %v7678
    %vm7685 = vmor %vm7683, %vm7684
    %v7686 = vsel %vm7685, %v7678, %v7682
    %v7687 = vand.u32 2147483647, %v7677
    %vm7688 = vcmp.eq.f32.partialorder %v7687, 8.507059e+37
    %v7689 = vand.u32 %v7677, 2147483648
    %v7690 = vor.u32 1.1754944e-38, %v7689
    %v7691 = vsel %vm7688, %v7690, %v7686
    %v7692 = vmul.f32 1.0, %v7691
    %7694 = vrot.lane.b32.xlu0 %v7671, 64
    %v7695 = vpop.permute.xlu0 %7694
    %v7697 = vmul.f32 %v7692, %v7695
    %7699 = vrot.lane.b32.xlu0 %v7697, 64
    %v7700 = vpop.permute.xlu0 %7699
    %v7702 = vadd.f32 %v2669, %v7700
    %v7703 = vtanh.pop %v7702
    %v7704 = vsub.f32 1.0, %v7692
    %7706 = vrot.lane.b32.xlu0 %v7703, 96
    %v7707 = vpop.permute.xlu0 %7706
    %v7709 = vmul.f32 %v7704, %v7707
    %v7710 = vmul.f32 %v7692, %v7482
    %v7711 = vadd.f32 %v7709, %v7710
    %7713 = vrot.lane.b32.xlu0 %v7711, 96
    %v7714 = vpop.permute.xlu0 %7713
    %v7715 = vsel %vm642, %v7714, 0
    %7717 = vmatpush.msra.mxu0 0.0
    %7718 = vmatpush.msra.mxu0 0.0
    %7719 = vmatpush.msra.mxu0 0.0
    %7720 = vmatpush.msra.mxu0 0.0
    %7721 = vmatpush.msra.mxu0 0.0
    %7722 = vmatpush.msra.mxu0 0.0
    %7723 = vmatpush.msra.mxu0 0.0
    %7724 = vmatpush.msra.mxu0 0.0
    %7725 = vmatpush.msra.mxu0 0.0
    %7726 = vmatpush.msra.mxu0 0.0
    %7727 = vmatpush.msra.mxu0 0.0
    %7728 = vmatpush.msra.mxu0 0.0
    %v7729 = vand.u32 %v2674, 4294901760
    %7730 = vmatpush.msra.mxu0 %v7729
    %v7731 = vand.u32 %v2673, 4294901760
    %7732 = vmatpush.msra.mxu0 %v7731
    %v7733 = vand.u32 %v2672, 4294901760
    %7734 = vmatpush.msra.mxu0 %v7733
    %v7735 = vand.u32 %v2671, 4294901760
    %7736 = vmatpush.msra.mxu0 %v7735
    %v7737 = vand.u32 %v7715, 4294901760
    %v7738 = vsub.f32 %v7715, %v7737
    %v7739 = vand.u32 %v7738, 4294901760
    %v7740 = vsub.f32 %v7738, %v7739
    %v7741 = vand.u32 %v7740, 4294901760
    %7742 = vmatmul.f32.gmra.mxu0 %v7741
    %v7743 = vpop.f32.mrf.mxu0
    %v7744 = vadd.f32 %v2677, %v7743
    %7745 = vdwg.mxu0
    %7746 = vmatpush.msra.mxu0 0.0
    %7747 = vmatpush.msra.mxu0 0.0
    %7748 = vmatpush.msra.mxu0 0.0
    %7749 = vmatpush.msra.mxu0 0.0
    %7750 = vmatpush.msra.mxu0 0.0
    %7751 = vmatpush.msra.mxu0 0.0
    %7752 = vmatpush.msra.mxu0 0.0
    %7753 = vmatpush.msra.mxu0 0.0
    %7754 = vmatpush.msra.mxu0 0.0
    %7755 = vmatpush.msra.mxu0 0.0
    %7756 = vmatpush.msra.mxu0 0.0
    %7757 = vmatpush.msra.mxu0 0.0
    %v7758 = vand.u32 %v2674, 4294901760
    %v7759 = vsub.f32 %v2674, %v7758
    %v7760 = vand.u32 %v7759, 4294901760
    %v7761 = vsub.f32 %v7759, %v7760
    %v7762 = vand.u32 %v7761, 4294901760
    %7763 = vmatpush.msra.mxu0 %v7762
    %v7764 = vand.u32 %v2673, 4294901760
    %v7765 = vsub.f32 %v2673, %v7764
    %v7766 = vand.u32 %v7765, 4294901760
    %v7767 = vsub.f32 %v7765, %v7766
    %v7768 = vand.u32 %v7767, 4294901760
    %7769 = vmatpush.msra.mxu0 %v7768
    %v7770 = vand.u32 %v2672, 4294901760
    %v7771 = vsub.f32 %v2672, %v7770
    %v7772 = vand.u32 %v7771, 4294901760
    %v7773 = vsub.f32 %v7771, %v7772
    %v7774 = vand.u32 %v7773, 4294901760
    %7775 = vmatpush.msra.mxu0 %v7774
    %v7776 = vand.u32 %v2671, 4294901760
    %v7777 = vsub.f32 %v2671, %v7776
    %v7778 = vand.u32 %v7777, 4294901760
    %v7779 = vsub.f32 %v7777, %v7778
    %v7780 = vand.u32 %v7779, 4294901760
    %7781 = vmatpush.msra.mxu0 %v7780
    %v7782 = vand.u32 %v7715, 4294901760
    %7783 = vmatmul.f32.gmra.mxu0 %v7782
    %v7784 = vpop.f32.mrf.mxu0
    %v7785 = vadd.f32 %v7744, %v7784
    %7786 = vdwg.mxu0
    %7787 = vmatpush.msra.mxu0 0.0
    %7788 = vmatpush.msra.mxu0 0.0
    %7789 = vmatpush.msra.mxu0 0.0
    %7790 = vmatpush.msra.mxu0 0.0
    %7791 = vmatpush.msra.mxu0 0.0
    %7792 = vmatpush.msra.mxu0 0.0
    %7793 = vmatpush.msra.mxu0 0.0
    %7794 = vmatpush.msra.mxu0 0.0
    %7795 = vmatpush.msra.mxu0 0.0
    %7796 = vmatpush.msra.mxu0 0.0
    %7797 = vmatpush.msra.mxu0 0.0
    %7798 = vmatpush.msra.mxu0 0.0
    %v7799 = vand.u32 %v2674, 4294901760
    %v7800 = vsub.f32 %v2674, %v7799
    %7801 = vmatpush.msra.mxu0 %v7800
    %v7802 = vand.u32 %v2673, 4294901760
    %v7803 = vsub.f32 %v2673, %v7802
    %7804 = vmatpush.msra.mxu0 %v7803
    %v7805 = vand.u32 %v2672, 4294901760
    %v7806 = vsub.f32 %v2672, %v7805
    %7807 = vmatpush.msra.mxu0 %v7806
    %v7808 = vand.u32 %v2671, 4294901760
    %v7809 = vsub.f32 %v2671, %v7808
    %7810 = vmatpush.msra.mxu0 %v7809
    %v7811 = vand.u32 %v7715, 4294901760
    %v7812 = vsub.f32 %v7715, %v7811
    %7813 = vmatmul.f32.gmra.mxu0 %v7812
    %v7814 = vpop.f32.mrf.mxu0
    %v7815 = vadd.f32 %v7785, %v7814
    %7816 = vdwg.mxu0
    %7817 = vmatpush.msra.mxu0 0.0
    %7818 = vmatpush.msra.mxu0 0.0
    %7819 = vmatpush.msra.mxu0 0.0
    %7820 = vmatpush.msra.mxu0 0.0
    %7821 = vmatpush.msra.mxu0 0.0
    %7822 = vmatpush.msra.mxu0 0.0
    %7823 = vmatpush.msra.mxu0 0.0
    %7824 = vmatpush.msra.mxu0 0.0
    %7825 = vmatpush.msra.mxu0 0.0
    %7826 = vmatpush.msra.mxu0 0.0
    %7827 = vmatpush.msra.mxu0 0.0
    %7828 = vmatpush.msra.mxu0 0.0
    %v7829 = vand.u32 %v2674, 4294901760
    %7830 = vmatpush.msra.mxu0 %v7829
    %v7831 = vand.u32 %v2673, 4294901760
    %7832 = vmatpush.msra.mxu0 %v7831
    %v7833 = vand.u32 %v2672, 4294901760
    %7834 = vmatpush.msra.mxu0 %v7833
    %v7835 = vand.u32 %v2671, 4294901760
    %7836 = vmatpush.msra.mxu0 %v7835
    %v7837 = vand.u32 %v7715, 4294901760
    %v7838 = vsub.f32 %v7715, %v7837
    %v7839 = vand.u32 %v7838, 4294901760
    %7840 = vmatmul.f32.gmra.mxu0 %v7839
    %v7841 = vpop.f32.mrf.mxu0
    %v7842 = vadd.f32 %v7815, %v7841
    %7843 = vdwg.mxu0
    %7844 = vmatpush.msra.mxu0 0.0
    %7845 = vmatpush.msra.mxu0 0.0
    %7846 = vmatpush.msra.mxu0 0.0
    %7847 = vmatpush.msra.mxu0 0.0
    %7848 = vmatpush.msra.mxu0 0.0
    %7849 = vmatpush.msra.mxu0 0.0
    %7850 = vmatpush.msra.mxu0 0.0
    %7851 = vmatpush.msra.mxu0 0.0
    %7852 = vmatpush.msra.mxu0 0.0
    %7853 = vmatpush.msra.mxu0 0.0
    %7854 = vmatpush.msra.mxu0 0.0
    %7855 = vmatpush.msra.mxu0 0.0
    %v7856 = vand.u32 %v2674, 4294901760
    %v7857 = vsub.f32 %v2674, %v7856
    %v7858 = vand.u32 %v7857, 4294901760
    %7859 = vmatpush.msra.mxu0 %v7858
    %v7860 = vand.u32 %v2673, 4294901760
    %v7861 = vsub.f32 %v2673, %v7860
    %v7862 = vand.u32 %v7861, 4294901760
    %7863 = vmatpush.msra.mxu0 %v7862
    %v7864 = vand.u32 %v2672, 4294901760
    %v7865 = vsub.f32 %v2672, %v7864
    %v7866 = vand.u32 %v7865, 4294901760
    %7867 = vmatpush.msra.mxu0 %v7866
    %v7868 = vand.u32 %v2671, 4294901760
    %v7869 = vsub.f32 %v2671, %v7868
    %v7870 = vand.u32 %v7869, 4294901760
    %7871 = vmatpush.msra.mxu0 %v7870
    %v7872 = vand.u32 %v7715, 4294901760
    %7873 = vmatmul.f32.gmra.mxu0 %v7872
    %v7874 = vpop.f32.mrf.mxu0
    %v7875 = vadd.f32 %v7842, %v7874
    %7876 = vdwg.mxu0
    %7877 = vmatpush.msra.mxu0 0.0
    %7878 = vmatpush.msra.mxu0 0.0
    %7879 = vmatpush.msra.mxu0 0.0
    %7880 = vmatpush.msra.mxu0 0.0
    %7881 = vmatpush.msra.mxu0 0.0
    %7882 = vmatpush.msra.mxu0 0.0
    %7883 = vmatpush.msra.mxu0 0.0
    %7884 = vmatpush.msra.mxu0 0.0
    %7885 = vmatpush.msra.mxu0 0.0
    %7886 = vmatpush.msra.mxu0 0.0
    %7887 = vmatpush.msra.mxu0 0.0
    %7888 = vmatpush.msra.mxu0 0.0
    %v7889 = vand.u32 %v2674, 4294901760
    %7890 = vmatpush.msra.mxu0 %v7889
    %v7891 = vand.u32 %v2673, 4294901760
    %7892 = vmatpush.msra.mxu0 %v7891
    %v7893 = vand.u32 %v2672, 4294901760
    %7894 = vmatpush.msra.mxu0 %v7893
    %v7895 = vand.u32 %v2671, 4294901760
    %7896 = vmatpush.msra.mxu0 %v7895
    %v7897 = vand.u32 %v7715, 4294901760
    %7898 = vmatmul.f32.gmra.mxu0 %v7897
    %v7899 = vpop.f32.mrf.mxu0
    %v7900 = vadd.f32 %v7875, %v7899
    %7901 = vdwg.mxu0
    %v7902 = vadd.f32 %v2669, %v7900
    %v7903 = vxor.u32 %v7902, 2147483648
    %v7904 = vmul.f32 %v7903, 1.442695
    %v7905 = vpow.pop %v7904
    %v7906 = vadd.f32 %v7905, 1.0
    %v7907 = vrcp.pop %v7906
    %v7908 = vmul.f32 %v7906, %v7907
    %v7909 = vsub.f32 1.0, %v7908
    %v7910 = vmul.f32 %v7907, %v7909
    %v7911 = vadd.f32 %v7907, %v7910
    %vm7912 = vweird.f32 %v7906
    %vm7913 = vweird.f32 %v7907
    %vm7914 = vmor %vm7912, %vm7913
    %v7915 = vsel %vm7914, %v7907, %v7911
    %v7916 = vand.u32 2147483647, %v7906
    %vm7917 = vcmp.eq.f32.partialorder %v7916, 8.507059e+37
    %v7918 = vand.u32 %v7906, 2147483648
    %v7919 = vor.u32 1.1754944e-38, %v7918
    %v7920 = vsel %vm7917, %v7919, %v7915
    %v7921 = vmul.f32 1.0, %v7920
    %7923 = vrot.lane.b32.xlu0 %v7900, 64
    %v7924 = vpop.permute.xlu0 %7923
    %v7926 = vmul.f32 %v7921, %v7924
    %7928 = vrot.lane.b32.xlu0 %v7926, 64
    %v7929 = vpop.permute.xlu0 %7928
    %v7931 = vadd.f32 %v2669, %v7929
    %v7932 = vtanh.pop %v7931
    %v7933 = vsub.f32 1.0, %v7921
    %7935 = vrot.lane.b32.xlu0 %v7932, 96
    %v7936 = vpop.permute.xlu0 %7935
    %v7938 = vmul.f32 %v7933, %v7936
    %v7939 = vmul.f32 %v7921, %v7711
    %v7940 = vadd.f32 %v7938, %v7939
    %7942 = vrot.lane.b32.xlu0 %v7940, 96
    %v7943 = vpop.permute.xlu0 %7942
    %v7944 = vsel %vm642, %v7943, 0
    %7946 = vmatpush.msra.mxu0 0.0
    %7947 = vmatpush.msra.mxu0 0.0
    %7948 = vmatpush.msra.mxu0 0.0
    %7949 = vmatpush.msra.mxu0 0.0
    %7950 = vmatpush.msra.mxu0 0.0
    %7951 = vmatpush.msra.mxu0 0.0
    %7952 = vmatpush.msra.mxu0 0.0
    %7953 = vmatpush.msra.mxu0 0.0
    %7954 = vmatpush.msra.mxu0 0.0
    %7955 = vmatpush.msra.mxu0 0.0
    %7956 = vmatpush.msra.mxu0 0.0
    %7957 = vmatpush.msra.mxu0 0.0
    %v7958 = vand.u32 %v2674, 4294901760
    %7959 = vmatpush.msra.mxu0 %v7958
    %v7960 = vand.u32 %v2673, 4294901760
    %7961 = vmatpush.msra.mxu0 %v7960
    %v7962 = vand.u32 %v2672, 4294901760
    %7963 = vmatpush.msra.mxu0 %v7962
    %v7964 = vand.u32 %v2671, 4294901760
    %7965 = vmatpush.msra.mxu0 %v7964
    %v7966 = vand.u32 %v7944, 4294901760
    %v7967 = vsub.f32 %v7944, %v7966
    %v7968 = vand.u32 %v7967, 4294901760
    %v7969 = vsub.f32 %v7967, %v7968
    %v7970 = vand.u32 %v7969, 4294901760
    %7971 = vmatmul.f32.gmra.mxu0 %v7970
    %v7972 = vpop.f32.mrf.mxu0
    %v7973 = vadd.f32 %v2677, %v7972
    %7974 = vdwg.mxu0
    %7975 = vmatpush.msra.mxu0 0.0
    %7976 = vmatpush.msra.mxu0 0.0
    %7977 = vmatpush.msra.mxu0 0.0
    %7978 = vmatpush.msra.mxu0 0.0
    %7979 = vmatpush.msra.mxu0 0.0
    %7980 = vmatpush.msra.mxu0 0.0
    %7981 = vmatpush.msra.mxu0 0.0
    %7982 = vmatpush.msra.mxu0 0.0
    %7983 = vmatpush.msra.mxu0 0.0
    %7984 = vmatpush.msra.mxu0 0.0
    %7985 = vmatpush.msra.mxu0 0.0
    %7986 = vmatpush.msra.mxu0 0.0
    %v7987 = vand.u32 %v2674, 4294901760
    %v7988 = vsub.f32 %v2674, %v7987
    %v7989 = vand.u32 %v7988, 4294901760
    %v7990 = vsub.f32 %v7988, %v7989
    %v7991 = vand.u32 %v7990, 4294901760
    %7992 = vmatpush.msra.mxu0 %v7991
    %v7993 = vand.u32 %v2673, 4294901760
    %v7994 = vsub.f32 %v2673, %v7993
    %v7995 = vand.u32 %v7994, 4294901760
    %v7996 = vsub.f32 %v7994, %v7995
    %v7997 = vand.u32 %v7996, 4294901760
    %7998 = vmatpush.msra.mxu0 %v7997
    %v7999 = vand.u32 %v2672, 4294901760
    %v8000 = vsub.f32 %v2672, %v7999
    %v8001 = vand.u32 %v8000, 4294901760
    %v8002 = vsub.f32 %v8000, %v8001
    %v8003 = vand.u32 %v8002, 4294901760
    %8004 = vmatpush.msra.mxu0 %v8003
    %v8005 = vand.u32 %v2671, 4294901760
    %v8006 = vsub.f32 %v2671, %v8005
    %v8007 = vand.u32 %v8006, 4294901760
    %v8008 = vsub.f32 %v8006, %v8007
    %v8009 = vand.u32 %v8008, 4294901760
    %8010 = vmatpush.msra.mxu0 %v8009
    %v8011 = vand.u32 %v7944, 4294901760
    %8012 = vmatmul.f32.gmra.mxu0 %v8011
    %v8013 = vpop.f32.mrf.mxu0
    %v8014 = vadd.f32 %v7973, %v8013
    %8015 = vdwg.mxu0
    %8016 = vmatpush.msra.mxu0 0.0
    %8017 = vmatpush.msra.mxu0 0.0
    %8018 = vmatpush.msra.mxu0 0.0
    %8019 = vmatpush.msra.mxu0 0.0
    %8020 = vmatpush.msra.mxu0 0.0
    %8021 = vmatpush.msra.mxu0 0.0
    %8022 = vmatpush.msra.mxu0 0.0
    %8023 = vmatpush.msra.mxu0 0.0
    %8024 = vmatpush.msra.mxu0 0.0
    %8025 = vmatpush.msra.mxu0 0.0
    %8026 = vmatpush.msra.mxu0 0.0
    %8027 = vmatpush.msra.mxu0 0.0
    %v8028 = vand.u32 %v2674, 4294901760
    %v8029 = vsub.f32 %v2674, %v8028
    %8030 = vmatpush.msra.mxu0 %v8029
    %v8031 = vand.u32 %v2673, 4294901760
    %v8032 = vsub.f32 %v2673, %v8031
    %8033 = vmatpush.msra.mxu0 %v8032
    %v8034 = vand.u32 %v2672, 4294901760
    %v8035 = vsub.f32 %v2672, %v8034
    %8036 = vmatpush.msra.mxu0 %v8035
    %v8037 = vand.u32 %v2671, 4294901760
    %v8038 = vsub.f32 %v2671, %v8037
    %8039 = vmatpush.msra.mxu0 %v8038
    %v8040 = vand.u32 %v7944, 4294901760
    %v8041 = vsub.f32 %v7944, %v8040
    %8042 = vmatmul.f32.gmra.mxu0 %v8041
    %v8043 = vpop.f32.mrf.mxu0
    %v8044 = vadd.f32 %v8014, %v8043
    %8045 = vdwg.mxu0
    %8046 = vmatpush.msra.mxu0 0.0
    %8047 = vmatpush.msra.mxu0 0.0
    %8048 = vmatpush.msra.mxu0 0.0
    %8049 = vmatpush.msra.mxu0 0.0
    %8050 = vmatpush.msra.mxu0 0.0
    %8051 = vmatpush.msra.mxu0 0.0
    %8052 = vmatpush.msra.mxu0 0.0
    %8053 = vmatpush.msra.mxu0 0.0
    %8054 = vmatpush.msra.mxu0 0.0
    %8055 = vmatpush.msra.mxu0 0.0
    %8056 = vmatpush.msra.mxu0 0.0
    %8057 = vmatpush.msra.mxu0 0.0
    %v8058 = vand.u32 %v2674, 4294901760
    %8059 = vmatpush.msra.mxu0 %v8058
    %v8060 = vand.u32 %v2673, 4294901760
    %8061 = vmatpush.msra.mxu0 %v8060
    %v8062 = vand.u32 %v2672, 4294901760
    %8063 = vmatpush.msra.mxu0 %v8062
    %v8064 = vand.u32 %v2671, 4294901760
    %8065 = vmatpush.msra.mxu0 %v8064
    %v8066 = vand.u32 %v7944, 4294901760
    %v8067 = vsub.f32 %v7944, %v8066
    %v8068 = vand.u32 %v8067, 4294901760
    %8069 = vmatmul.f32.gmra.mxu0 %v8068
    %v8070 = vpop.f32.mrf.mxu0
    %v8071 = vadd.f32 %v8044, %v8070
    %8072 = vdwg.mxu0
    %8073 = vmatpush.msra.mxu0 0.0
    %8074 = vmatpush.msra.mxu0 0.0
    %8075 = vmatpush.msra.mxu0 0.0
    %8076 = vmatpush.msra.mxu0 0.0
    %8077 = vmatpush.msra.mxu0 0.0
    %8078 = vmatpush.msra.mxu0 0.0
    %8079 = vmatpush.msra.mxu0 0.0
    %8080 = vmatpush.msra.mxu0 0.0
    %8081 = vmatpush.msra.mxu0 0.0
    %8082 = vmatpush.msra.mxu0 0.0
    %8083 = vmatpush.msra.mxu0 0.0
    %8084 = vmatpush.msra.mxu0 0.0
    %v8085 = vand.u32 %v2674, 4294901760
    %v8086 = vsub.f32 %v2674, %v8085
    %v8087 = vand.u32 %v8086, 4294901760
    %8088 = vmatpush.msra.mxu0 %v8087
    %v8089 = vand.u32 %v2673, 4294901760
    %v8090 = vsub.f32 %v2673, %v8089
    %v8091 = vand.u32 %v8090, 4294901760
    %8092 = vmatpush.msra.mxu0 %v8091
    %v8093 = vand.u32 %v2672, 4294901760
    %v8094 = vsub.f32 %v2672, %v8093
    %v8095 = vand.u32 %v8094, 4294901760
    %8096 = vmatpush.msra.mxu0 %v8095
    %v8097 = vand.u32 %v2671, 4294901760
    %v8098 = vsub.f32 %v2671, %v8097
    %v8099 = vand.u32 %v8098, 4294901760
    %8100 = vmatpush.msra.mxu0 %v8099
    %v8101 = vand.u32 %v7944, 4294901760
    %8102 = vmatmul.f32.gmra.mxu0 %v8101
    %v8103 = vpop.f32.mrf.mxu0
    %v8104 = vadd.f32 %v8071, %v8103
    %8105 = vdwg.mxu0
    %8106 = vmatpush.msra.mxu0 0.0
    %8107 = vmatpush.msra.mxu0 0.0
    %8108 = vmatpush.msra.mxu0 0.0
    %8109 = vmatpush.msra.mxu0 0.0
    %8110 = vmatpush.msra.mxu0 0.0
    %8111 = vmatpush.msra.mxu0 0.0
    %8112 = vmatpush.msra.mxu0 0.0
    %8113 = vmatpush.msra.mxu0 0.0
    %8114 = vmatpush.msra.mxu0 0.0
    %8115 = vmatpush.msra.mxu0 0.0
    %8116 = vmatpush.msra.mxu0 0.0
    %8117 = vmatpush.msra.mxu0 0.0
    %v8118 = vand.u32 %v2674, 4294901760
    %8119 = vmatpush.msra.mxu0 %v8118
    %v8120 = vand.u32 %v2673, 4294901760
    %8121 = vmatpush.msra.mxu0 %v8120
    %v8122 = vand.u32 %v2672, 4294901760
    %8123 = vmatpush.msra.mxu0 %v8122
    %v8124 = vand.u32 %v2671, 4294901760
    %8125 = vmatpush.msra.mxu0 %v8124
    %v8126 = vand.u32 %v7944, 4294901760
    %8127 = vmatmul.f32.gmra.mxu0 %v8126
    %v8128 = vpop.f32.mrf.mxu0
    %v8129 = vadd.f32 %v8104, %v8128
    %8130 = vdwg.mxu0
    %v8131 = vadd.f32 %v2669, %v8129
    %v8132 = vxor.u32 %v8131, 2147483648
    %v8133 = vmul.f32 %v8132, 1.442695
    %v8134 = vpow.pop %v8133
    %v8135 = vadd.f32 %v8134, 1.0
    %v8136 = vrcp.pop %v8135
    %v8137 = vmul.f32 %v8135, %v8136
    %v8138 = vsub.f32 1.0, %v8137
    %v8139 = vmul.f32 %v8136, %v8138
    %v8140 = vadd.f32 %v8136, %v8139
    %vm8141 = vweird.f32 %v8135
    %vm8142 = vweird.f32 %v8136
    %vm8143 = vmor %vm8141, %vm8142
    %v8144 = vsel %vm8143, %v8136, %v8140
    %v8145 = vand.u32 2147483647, %v8135
    %vm8146 = vcmp.eq.f32.partialorder %v8145, 8.507059e+37
    %v8147 = vand.u32 %v8135, 2147483648
    %v8148 = vor.u32 1.1754944e-38, %v8147
    %v8149 = vsel %vm8146, %v8148, %v8144
    %v8150 = vmul.f32 1.0, %v8149
    %8152 = vrot.lane.b32.xlu0 %v8129, 64
    %v8153 = vpop.permute.xlu0 %8152
    %v8155 = vmul.f32 %v8150, %v8153
    %8157 = vrot.lane.b32.xlu0 %v8155, 64
    %v8158 = vpop.permute.xlu0 %8157
    %v8160 = vadd.f32 %v2669, %v8158
    %v8161 = vtanh.pop %v8160
    %v8162 = vsub.f32 1.0, %v8150
    %8164 = vrot.lane.b32.xlu0 %v8161, 96
    %v8165 = vpop.permute.xlu0 %8164
    %v8167 = vmul.f32 %v8162, %v8165
    %v8168 = vmul.f32 %v8150, %v7940
    %v8169 = vadd.f32 %v8167, %v8168
    %8171 = vrot.lane.b32.xlu0 %v8169, 96
    %v8172 = vpop.permute.xlu0 %8171
    %v8173 = vsel %vm642, %v8172, 0
    %8175 = vmatpush.msra.mxu0 0.0
    %8176 = vmatpush.msra.mxu0 0.0
    %8177 = vmatpush.msra.mxu0 0.0
    %8178 = vmatpush.msra.mxu0 0.0
    %8179 = vmatpush.msra.mxu0 0.0
    %8180 = vmatpush.msra.mxu0 0.0
    %8181 = vmatpush.msra.mxu0 0.0
    %8182 = vmatpush.msra.mxu0 0.0
    %8183 = vmatpush.msra.mxu0 0.0
    %8184 = vmatpush.msra.mxu0 0.0
    %8185 = vmatpush.msra.mxu0 0.0
    %8186 = vmatpush.msra.mxu0 0.0
    %v8187 = vand.u32 %v2674, 4294901760
    %8188 = vmatpush.msra.mxu0 %v8187
    %v8189 = vand.u32 %v2673, 4294901760
    %8190 = vmatpush.msra.mxu0 %v8189
    %v8191 = vand.u32 %v2672, 4294901760
    %8192 = vmatpush.msra.mxu0 %v8191
    %v8193 = vand.u32 %v2671, 4294901760
    %8194 = vmatpush.msra.mxu0 %v8193
    %v8195 = vand.u32 %v8173, 4294901760
    %v8196 = vsub.f32 %v8173, %v8195
    %v8197 = vand.u32 %v8196, 4294901760
    %v8198 = vsub.f32 %v8196, %v8197
    %v8199 = vand.u32 %v8198, 4294901760
    %8200 = vmatmul.f32.gmra.mxu0 %v8199
    %v8201 = vpop.f32.mrf.mxu0
    %v8202 = vadd.f32 %v2677, %v8201
    %8203 = vdwg.mxu0
    %8204 = vmatpush.msra.mxu0 0.0
    %8205 = vmatpush.msra.mxu0 0.0
    %8206 = vmatpush.msra.mxu0 0.0
    %8207 = vmatpush.msra.mxu0 0.0
    %8208 = vmatpush.msra.mxu0 0.0
    %8209 = vmatpush.msra.mxu0 0.0
    %8210 = vmatpush.msra.mxu0 0.0
    %8211 = vmatpush.msra.mxu0 0.0
    %8212 = vmatpush.msra.mxu0 0.0
    %8213 = vmatpush.msra.mxu0 0.0
    %8214 = vmatpush.msra.mxu0 0.0
    %8215 = vmatpush.msra.mxu0 0.0
    %v8216 = vand.u32 %v2674, 4294901760
    %v8217 = vsub.f32 %v2674, %v8216
    %v8218 = vand.u32 %v8217, 4294901760
    %v8219 = vsub.f32 %v8217, %v8218
    %v8220 = vand.u32 %v8219, 4294901760
    %8221 = vmatpush.msra.mxu0 %v8220
    %v8222 = vand.u32 %v2673, 4294901760
    %v8223 = vsub.f32 %v2673, %v8222
    %v8224 = vand.u32 %v8223, 4294901760
    %v8225 = vsub.f32 %v8223, %v8224
    %v8226 = vand.u32 %v8225, 4294901760
    %8227 = vmatpush.msra.mxu0 %v8226
    %v8228 = vand.u32 %v2672, 4294901760
    %v8229 = vsub.f32 %v2672, %v8228
    %v8230 = vand.u32 %v8229, 4294901760
    %v8231 = vsub.f32 %v8229, %v8230
    %v8232 = vand.u32 %v8231, 4294901760
    %8233 = vmatpush.msra.mxu0 %v8232
    %v8234 = vand.u32 %v2671, 4294901760
    %v8235 = vsub.f32 %v2671, %v8234
    %v8236 = vand.u32 %v8235, 4294901760
    %v8237 = vsub.f32 %v8235, %v8236
    %v8238 = vand.u32 %v8237, 4294901760
    %8239 = vmatpush.msra.mxu0 %v8238
    %v8240 = vand.u32 %v8173, 4294901760
    %8241 = vmatmul.f32.gmra.mxu0 %v8240
    %v8242 = vpop.f32.mrf.mxu0
    %v8243 = vadd.f32 %v8202, %v8242
    %8244 = vdwg.mxu0
    %8245 = vmatpush.msra.mxu0 0.0
    %8246 = vmatpush.msra.mxu0 0.0
    %8247 = vmatpush.msra.mxu0 0.0
    %8248 = vmatpush.msra.mxu0 0.0
    %8249 = vmatpush.msra.mxu0 0.0
    %8250 = vmatpush.msra.mxu0 0.0
    %8251 = vmatpush.msra.mxu0 0.0
    %8252 = vmatpush.msra.mxu0 0.0
    %8253 = vmatpush.msra.mxu0 0.0
    %8254 = vmatpush.msra.mxu0 0.0
    %8255 = vmatpush.msra.mxu0 0.0
    %8256 = vmatpush.msra.mxu0 0.0
    %v8257 = vand.u32 %v2674, 4294901760
    %v8258 = vsub.f32 %v2674, %v8257
    %8259 = vmatpush.msra.mxu0 %v8258
    %v8260 = vand.u32 %v2673, 4294901760
    %v8261 = vsub.f32 %v2673, %v8260
    %8262 = vmatpush.msra.mxu0 %v8261
    %v8263 = vand.u32 %v2672, 4294901760
    %v8264 = vsub.f32 %v2672, %v8263
    %8265 = vmatpush.msra.mxu0 %v8264
    %v8266 = vand.u32 %v2671, 4294901760
    %v8267 = vsub.f32 %v2671, %v8266
    %8268 = vmatpush.msra.mxu0 %v8267
    %v8269 = vand.u32 %v8173, 4294901760
    %v8270 = vsub.f32 %v8173, %v8269
    %8271 = vmatmul.f32.gmra.mxu0 %v8270
    %v8272 = vpop.f32.mrf.mxu0
    %v8273 = vadd.f32 %v8243, %v8272
    %8274 = vdwg.mxu0
    %8275 = vmatpush.msra.mxu0 0.0
    %8276 = vmatpush.msra.mxu0 0.0
    %8277 = vmatpush.msra.mxu0 0.0
    %8278 = vmatpush.msra.mxu0 0.0
    %8279 = vmatpush.msra.mxu0 0.0
    %8280 = vmatpush.msra.mxu0 0.0
    %8281 = vmatpush.msra.mxu0 0.0
    %8282 = vmatpush.msra.mxu0 0.0
    %8283 = vmatpush.msra.mxu0 0.0
    %8284 = vmatpush.msra.mxu0 0.0
    %8285 = vmatpush.msra.mxu0 0.0
    %8286 = vmatpush.msra.mxu0 0.0
    %v8287 = vand.u32 %v2674, 4294901760
    %8288 = vmatpush.msra.mxu0 %v8287
    %v8289 = vand.u32 %v2673, 4294901760
    %8290 = vmatpush.msra.mxu0 %v8289
    %v8291 = vand.u32 %v2672, 4294901760
    %8292 = vmatpush.msra.mxu0 %v8291
    %v8293 = vand.u32 %v2671, 4294901760
    %8294 = vmatpush.msra.mxu0 %v8293
    %v8295 = vand.u32 %v8173, 4294901760
    %v8296 = vsub.f32 %v8173, %v8295
    %v8297 = vand.u32 %v8296, 4294901760
    %8298 = vmatmul.f32.gmra.mxu0 %v8297
    %v8299 = vpop.f32.mrf.mxu0
    %v8300 = vadd.f32 %v8273, %v8299
    %8301 = vdwg.mxu0
    %8302 = vmatpush.msra.mxu0 0.0
    %8303 = vmatpush.msra.mxu0 0.0
    %8304 = vmatpush.msra.mxu0 0.0
    %8305 = vmatpush.msra.mxu0 0.0
    %8306 = vmatpush.msra.mxu0 0.0
    %8307 = vmatpush.msra.mxu0 0.0
    %8308 = vmatpush.msra.mxu0 0.0
    %8309 = vmatpush.msra.mxu0 0.0
    %8310 = vmatpush.msra.mxu0 0.0
    %8311 = vmatpush.msra.mxu0 0.0
    %8312 = vmatpush.msra.mxu0 0.0
    %8313 = vmatpush.msra.mxu0 0.0
    %v8314 = vand.u32 %v2674, 4294901760
    %v8315 = vsub.f32 %v2674, %v8314
    %v8316 = vand.u32 %v8315, 4294901760
    %8317 = vmatpush.msra.mxu0 %v8316
    %v8318 = vand.u32 %v2673, 4294901760
    %v8319 = vsub.f32 %v2673, %v8318
    %v8320 = vand.u32 %v8319, 4294901760
    %8321 = vmatpush.msra.mxu0 %v8320
    %v8322 = vand.u32 %v2672, 4294901760
    %v8323 = vsub.f32 %v2672, %v8322
    %v8324 = vand.u32 %v8323, 4294901760
    %8325 = vmatpush.msra.mxu0 %v8324
    %v8326 = vand.u32 %v2671, 4294901760
    %v8327 = vsub.f32 %v2671, %v8326
    %v8328 = vand.u32 %v8327, 4294901760
    %8329 = vmatpush.msra.mxu0 %v8328
    %v8330 = vand.u32 %v8173, 4294901760
    %8331 = vmatmul.f32.gmra.mxu0 %v8330
    %v8332 = vpop.f32.mrf.mxu0
    %v8333 = vadd.f32 %v8300, %v8332
    %8334 = vdwg.mxu0
    %8335 = vmatpush.msra.mxu0 0.0
    %8336 = vmatpush.msra.mxu0 0.0
    %8337 = vmatpush.msra.mxu0 0.0
    %8338 = vmatpush.msra.mxu0 0.0
    %8339 = vmatpush.msra.mxu0 0.0
    %8340 = vmatpush.msra.mxu0 0.0
    %8341 = vmatpush.msra.mxu0 0.0
    %8342 = vmatpush.msra.mxu0 0.0
    %8343 = vmatpush.msra.mxu0 0.0
    %8344 = vmatpush.msra.mxu0 0.0
    %8345 = vmatpush.msra.mxu0 0.0
    %8346 = vmatpush.msra.mxu0 0.0
    %v8347 = vand.u32 %v2674, 4294901760
    %8348 = vmatpush.msra.mxu0 %v8347
    %v8349 = vand.u32 %v2673, 4294901760
    %8350 = vmatpush.msra.mxu0 %v8349
    %v8351 = vand.u32 %v2672, 4294901760
    %8352 = vmatpush.msra.mxu0 %v8351
    %v8353 = vand.u32 %v2671, 4294901760
    %8354 = vmatpush.msra.mxu0 %v8353
    %v8355 = vand.u32 %v8173, 4294901760
    %8356 = vmatmul.f32.gmra.mxu0 %v8355
    %v8357 = vpop.f32.mrf.mxu0
    %v8358 = vadd.f32 %v8333, %v8357
    %8359 = vdwg.mxu0
    %v8360 = vadd.f32 %v2669, %v8358
    %v8361 = vxor.u32 %v8360, 2147483648
    %v8362 = vmul.f32 %v8361, 1.442695
    %v8363 = vpow.pop %v8362
    %v8364 = vadd.f32 %v8363, 1.0
    %v8365 = vrcp.pop %v8364
    %v8366 = vmul.f32 %v8364, %v8365
    %v8367 = vsub.f32 1.0, %v8366
    %v8368 = vmul.f32 %v8365, %v8367
    %v8369 = vadd.f32 %v8365, %v8368
    %vm8370 = vweird.f32 %v8364
    %vm8371 = vweird.f32 %v8365
    %vm8372 = vmor %vm8370, %vm8371
    %v8373 = vsel %vm8372, %v8365, %v8369
    %v8374 = vand.u32 2147483647, %v8364
    %vm8375 = vcmp.eq.f32.partialorder %v8374, 8.507059e+37
    %v8376 = vand.u32 %v8364, 2147483648
    %v8377 = vor.u32 1.1754944e-38, %v8376
    %v8378 = vsel %vm8375, %v8377, %v8373
    %v8379 = vmul.f32 1.0, %v8378
    %8381 = vrot.lane.b32.xlu0 %v8358, 64
    %v8382 = vpop.permute.xlu0 %8381
    %v8384 = vmul.f32 %v8379, %v8382
    %8386 = vrot.lane.b32.xlu0 %v8384, 64
    %v8387 = vpop.permute.xlu0 %8386
    %v8389 = vadd.f32 %v2669, %v8387
    %v8390 = vtanh.pop %v8389
    %v8391 = vsub.f32 1.0, %v8379
    %8393 = vrot.lane.b32.xlu0 %v8390, 96
    %v8394 = vpop.permute.xlu0 %8393
    %v8396 = vmul.f32 %v8391, %v8394
    %v8397 = vmul.f32 %v8379, %v8169
    %v8398 = vadd.f32 %v8396, %v8397
    %8400 = vrot.lane.b32.xlu0 %v8398, 96
    %v8401 = vpop.permute.xlu0 %8400
    %v8402 = vsel %vm642, %v8401, 0
    %8404 = vmatpush.msra.mxu0 0.0
    %8405 = vmatpush.msra.mxu0 0.0
    %8406 = vmatpush.msra.mxu0 0.0
    %8407 = vmatpush.msra.mxu0 0.0
    %8408 = vmatpush.msra.mxu0 0.0
    %8409 = vmatpush.msra.mxu0 0.0
    %8410 = vmatpush.msra.mxu0 0.0
    %8411 = vmatpush.msra.mxu0 0.0
    %8412 = vmatpush.msra.mxu0 0.0
    %8413 = vmatpush.msra.mxu0 0.0
    %8414 = vmatpush.msra.mxu0 0.0
    %8415 = vmatpush.msra.mxu0 0.0
    %v8416 = vand.u32 %v2674, 4294901760
    %8417 = vmatpush.msra.mxu0 %v8416
    %v8418 = vand.u32 %v2673, 4294901760
    %8419 = vmatpush.msra.mxu0 %v8418
    %v8420 = vand.u32 %v2672, 4294901760
    %8421 = vmatpush.msra.mxu0 %v8420
    %v8422 = vand.u32 %v2671, 4294901760
    %8423 = vmatpush.msra.mxu0 %v8422
    %v8424 = vand.u32 %v8402, 4294901760
    %v8425 = vsub.f32 %v8402, %v8424
    %v8426 = vand.u32 %v8425, 4294901760
    %v8427 = vsub.f32 %v8425, %v8426
    %v8428 = vand.u32 %v8427, 4294901760
    %8429 = vmatmul.f32.gmra.mxu0 %v8428
    %v8430 = vpop.f32.mrf.mxu0
    %v8431 = vadd.f32 %v2677, %v8430
    %8432 = vdwg.mxu0
    %8433 = vmatpush.msra.mxu0 0.0
    %8434 = vmatpush.msra.mxu0 0.0
    %8435 = vmatpush.msra.mxu0 0.0
    %8436 = vmatpush.msra.mxu0 0.0
    %8437 = vmatpush.msra.mxu0 0.0
    %8438 = vmatpush.msra.mxu0 0.0
    %8439 = vmatpush.msra.mxu0 0.0
    %8440 = vmatpush.msra.mxu0 0.0
    %8441 = vmatpush.msra.mxu0 0.0
    %8442 = vmatpush.msra.mxu0 0.0
    %8443 = vmatpush.msra.mxu0 0.0
    %8444 = vmatpush.msra.mxu0 0.0
    %v8445 = vand.u32 %v2674, 4294901760
    %v8446 = vsub.f32 %v2674, %v8445
    %v8447 = vand.u32 %v8446, 4294901760
    %v8448 = vsub.f32 %v8446, %v8447
    %v8449 = vand.u32 %v8448, 4294901760
    %8450 = vmatpush.msra.mxu0 %v8449
    %v8451 = vand.u32 %v2673, 4294901760
    %v8452 = vsub.f32 %v2673, %v8451
    %v8453 = vand.u32 %v8452, 4294901760
    %v8454 = vsub.f32 %v8452, %v8453
    %v8455 = vand.u32 %v8454, 4294901760
    %8456 = vmatpush.msra.mxu0 %v8455
    %v8457 = vand.u32 %v2672, 4294901760
    %v8458 = vsub.f32 %v2672, %v8457
    %v8459 = vand.u32 %v8458, 4294901760
    %v8460 = vsub.f32 %v8458, %v8459
    %v8461 = vand.u32 %v8460, 4294901760
    %8462 = vmatpush.msra.mxu0 %v8461
    %v8463 = vand.u32 %v2671, 4294901760
    %v8464 = vsub.f32 %v2671, %v8463
    %v8465 = vand.u32 %v8464, 4294901760
    %v8466 = vsub.f32 %v8464, %v8465
    %v8467 = vand.u32 %v8466, 4294901760
    %8468 = vmatpush.msra.mxu0 %v8467
    %v8469 = vand.u32 %v8402, 4294901760
    %8470 = vmatmul.f32.gmra.mxu0 %v8469
    %v8471 = vpop.f32.mrf.mxu0
    %v8472 = vadd.f32 %v8431, %v8471
    %8473 = vdwg.mxu0
    %8474 = vmatpush.msra.mxu0 0.0
    %8475 = vmatpush.msra.mxu0 0.0
    %8476 = vmatpush.msra.mxu0 0.0
    %8477 = vmatpush.msra.mxu0 0.0
    %8478 = vmatpush.msra.mxu0 0.0
    %8479 = vmatpush.msra.mxu0 0.0
    %8480 = vmatpush.msra.mxu0 0.0
    %8481 = vmatpush.msra.mxu0 0.0
    %8482 = vmatpush.msra.mxu0 0.0
    %8483 = vmatpush.msra.mxu0 0.0
    %8484 = vmatpush.msra.mxu0 0.0
    %8485 = vmatpush.msra.mxu0 0.0
    %v8486 = vand.u32 %v2674, 4294901760
    %v8487 = vsub.f32 %v2674, %v8486
    %8488 = vmatpush.msra.mxu0 %v8487
    %v8489 = vand.u32 %v2673, 4294901760
    %v8490 = vsub.f32 %v2673, %v8489
    %8491 = vmatpush.msra.mxu0 %v8490
    %v8492 = vand.u32 %v2672, 4294901760
    %v8493 = vsub.f32 %v2672, %v8492
    %8494 = vmatpush.msra.mxu0 %v8493
    %v8495 = vand.u32 %v2671, 4294901760
    %v8496 = vsub.f32 %v2671, %v8495
    %8497 = vmatpush.msra.mxu0 %v8496
    %v8498 = vand.u32 %v8402, 4294901760
    %v8499 = vsub.f32 %v8402, %v8498
    %8500 = vmatmul.f32.gmra.mxu0 %v8499
    %v8501 = vpop.f32.mrf.mxu0
    %v8502 = vadd.f32 %v8472, %v8501
    %8503 = vdwg.mxu0
    %8504 = vmatpush.msra.mxu0 0.0
    %8505 = vmatpush.msra.mxu0 0.0
    %8506 = vmatpush.msra.mxu0 0.0
    %8507 = vmatpush.msra.mxu0 0.0
    %8508 = vmatpush.msra.mxu0 0.0
    %8509 = vmatpush.msra.mxu0 0.0
    %8510 = vmatpush.msra.mxu0 0.0
    %8511 = vmatpush.msra.mxu0 0.0
    %8512 = vmatpush.msra.mxu0 0.0
    %8513 = vmatpush.msra.mxu0 0.0
    %8514 = vmatpush.msra.mxu0 0.0
    %8515 = vmatpush.msra.mxu0 0.0
    %v8516 = vand.u32 %v2674, 4294901760
    %8517 = vmatpush.msra.mxu0 %v8516
    %v8518 = vand.u32 %v2673, 4294901760
    %8519 = vmatpush.msra.mxu0 %v8518
    %v8520 = vand.u32 %v2672, 4294901760
    %8521 = vmatpush.msra.mxu0 %v8520
    %v8522 = vand.u32 %v2671, 4294901760
    %8523 = vmatpush.msra.mxu0 %v8522
    %v8524 = vand.u32 %v8402, 4294901760
    %v8525 = vsub.f32 %v8402, %v8524
    %v8526 = vand.u32 %v8525, 4294901760
    %8527 = vmatmul.f32.gmra.mxu0 %v8526
    %v8528 = vpop.f32.mrf.mxu0
    %v8529 = vadd.f32 %v8502, %v8528
    %8530 = vdwg.mxu0
    %8531 = vmatpush.msra.mxu0 0.0
    %8532 = vmatpush.msra.mxu0 0.0
    %8533 = vmatpush.msra.mxu0 0.0
    %8534 = vmatpush.msra.mxu0 0.0
    %8535 = vmatpush.msra.mxu0 0.0
    %8536 = vmatpush.msra.mxu0 0.0
    %8537 = vmatpush.msra.mxu0 0.0
    %8538 = vmatpush.msra.mxu0 0.0
    %8539 = vmatpush.msra.mxu0 0.0
    %8540 = vmatpush.msra.mxu0 0.0
    %8541 = vmatpush.msra.mxu0 0.0
    %8542 = vmatpush.msra.mxu0 0.0
    %v8543 = vand.u32 %v2674, 4294901760
    %v8544 = vsub.f32 %v2674, %v8543
    %v8545 = vand.u32 %v8544, 4294901760
    %8546 = vmatpush.msra.mxu0 %v8545
    %v8547 = vand.u32 %v2673, 4294901760
    %v8548 = vsub.f32 %v2673, %v8547
    %v8549 = vand.u32 %v8548, 4294901760
    %8550 = vmatpush.msra.mxu0 %v8549
    %v8551 = vand.u32 %v2672, 4294901760
    %v8552 = vsub.f32 %v2672, %v8551
    %v8553 = vand.u32 %v8552, 4294901760
    %8554 = vmatpush.msra.mxu0 %v8553
    %v8555 = vand.u32 %v2671, 4294901760
    %v8556 = vsub.f32 %v2671, %v8555
    %v8557 = vand.u32 %v8556, 4294901760
    %8558 = vmatpush.msra.mxu0 %v8557
    %v8559 = vand.u32 %v8402, 4294901760
    %8560 = vmatmul.f32.gmra.mxu0 %v8559
    %v8561 = vpop.f32.mrf.mxu0
    %v8562 = vadd.f32 %v8529, %v8561
    %8563 = vdwg.mxu0
    %8564 = vmatpush.msra.mxu0 0.0
    %8565 = vmatpush.msra.mxu0 0.0
    %8566 = vmatpush.msra.mxu0 0.0
    %8567 = vmatpush.msra.mxu0 0.0
    %8568 = vmatpush.msra.mxu0 0.0
    %8569 = vmatpush.msra.mxu0 0.0
    %8570 = vmatpush.msra.mxu0 0.0
    %8571 = vmatpush.msra.mxu0 0.0
    %8572 = vmatpush.msra.mxu0 0.0
    %8573 = vmatpush.msra.mxu0 0.0
    %8574 = vmatpush.msra.mxu0 0.0
    %8575 = vmatpush.msra.mxu0 0.0
    %v8576 = vand.u32 %v2674, 4294901760
    %8577 = vmatpush.msra.mxu0 %v8576
    %v8578 = vand.u32 %v2673, 4294901760
    %8579 = vmatpush.msra.mxu0 %v8578
    %v8580 = vand.u32 %v2672, 4294901760
    %8581 = vmatpush.msra.mxu0 %v8580
    %v8582 = vand.u32 %v2671, 4294901760
    %8583 = vmatpush.msra.mxu0 %v8582
    %v8584 = vand.u32 %v8402, 4294901760
    %8585 = vmatmul.f32.gmra.mxu0 %v8584
    %v8586 = vpop.f32.mrf.mxu0
    %v8587 = vadd.f32 %v8562, %v8586
    %8588 = vdwg.mxu0
    %v8589 = vadd.f32 %v2669, %v8587
    %v8590 = vxor.u32 %v8589, 2147483648
    %v8591 = vmul.f32 %v8590, 1.442695
    %v8592 = vpow.pop %v8591
    %v8593 = vadd.f32 %v8592, 1.0
    %v8594 = vrcp.pop %v8593
    %v8595 = vmul.f32 %v8593, %v8594
    %v8596 = vsub.f32 1.0, %v8595
    %v8597 = vmul.f32 %v8594, %v8596
    %v8598 = vadd.f32 %v8594, %v8597
    %vm8599 = vweird.f32 %v8593
    %vm8600 = vweird.f32 %v8594
    %vm8601 = vmor %vm8599, %vm8600
    %v8602 = vsel %vm8601, %v8594, %v8598
    %v8603 = vand.u32 2147483647, %v8593
    %vm8604 = vcmp.eq.f32.partialorder %v8603, 8.507059e+37
    %v8605 = vand.u32 %v8593, 2147483648
    %v8606 = vor.u32 1.1754944e-38, %v8605
    %v8607 = vsel %vm8604, %v8606, %v8602
    %v8608 = vmul.f32 1.0, %v8607
    %8610 = vrot.lane.b32.xlu0 %v8587, 64
    %v8611 = vpop.permute.xlu0 %8610
    %v8613 = vmul.f32 %v8608, %v8611
    %8615 = vrot.lane.b32.xlu0 %v8613, 64
    %v8616 = vpop.permute.xlu0 %8615
    %v8618 = vadd.f32 %v2669, %v8616
    %v8619 = vtanh.pop %v8618
    %v8620 = vsub.f32 1.0, %v8608
    %8622 = vrot.lane.b32.xlu0 %v8619, 96
    %v8623 = vpop.permute.xlu0 %8622
    %v8625 = vmul.f32 %v8620, %v8623
    %v8626 = vmul.f32 %v8608, %v8398
    %v8627 = vadd.f32 %v8625, %v8626
    %8629 = vrot.lane.b32.xlu0 %v8627, 96
    %v8630 = vpop.permute.xlu0 %8629
    %v8631 = vsel %vm642, %v8630, 0
    %8633 = vmatpush.msra.mxu0 0.0
    %8634 = vmatpush.msra.mxu0 0.0
    %8635 = vmatpush.msra.mxu0 0.0
    %8636 = vmatpush.msra.mxu0 0.0
    %8637 = vmatpush.msra.mxu0 0.0
    %8638 = vmatpush.msra.mxu0 0.0
    %8639 = vmatpush.msra.mxu0 0.0
    %8640 = vmatpush.msra.mxu0 0.0
    %8641 = vmatpush.msra.mxu0 0.0
    %8642 = vmatpush.msra.mxu0 0.0
    %8643 = vmatpush.msra.mxu0 0.0
    %8644 = vmatpush.msra.mxu0 0.0
    %v8645 = vand.u32 %v2674, 4294901760
    %8646 = vmatpush.msra.mxu0 %v8645
    %v8647 = vand.u32 %v2673, 4294901760
    %8648 = vmatpush.msra.mxu0 %v8647
    %v8649 = vand.u32 %v2672, 4294901760
    %8650 = vmatpush.msra.mxu0 %v8649
    %v8651 = vand.u32 %v2671, 4294901760
    %8652 = vmatpush.msra.mxu0 %v8651
    %v8653 = vand.u32 %v8631, 4294901760
    %v8654 = vsub.f32 %v8631, %v8653
    %v8655 = vand.u32 %v8654, 4294901760
    %v8656 = vsub.f32 %v8654, %v8655
    %v8657 = vand.u32 %v8656, 4294901760
    %8658 = vmatmul.f32.gmra.mxu0 %v8657
    %v8659 = vpop.f32.mrf.mxu0
    %v8660 = vadd.f32 %v2677, %v8659
    %8661 = vdwg.mxu0
    %8662 = vmatpush.msra.mxu0 0.0
    %8663 = vmatpush.msra.mxu0 0.0
    %8664 = vmatpush.msra.mxu0 0.0
    %8665 = vmatpush.msra.mxu0 0.0
    %8666 = vmatpush.msra.mxu0 0.0
    %8667 = vmatpush.msra.mxu0 0.0
    %8668 = vmatpush.msra.mxu0 0.0
    %8669 = vmatpush.msra.mxu0 0.0
    %8670 = vmatpush.msra.mxu0 0.0
    %8671 = vmatpush.msra.mxu0 0.0
    %8672 = vmatpush.msra.mxu0 0.0
    %8673 = vmatpush.msra.mxu0 0.0
    %v8674 = vand.u32 %v2674, 4294901760
    %v8675 = vsub.f32 %v2674, %v8674
    %v8676 = vand.u32 %v8675, 4294901760
    %v8677 = vsub.f32 %v8675, %v8676
    %v8678 = vand.u32 %v8677, 4294901760
    %8679 = vmatpush.msra.mxu0 %v8678
    %v8680 = vand.u32 %v2673, 4294901760
    %v8681 = vsub.f32 %v2673, %v8680
    %v8682 = vand.u32 %v8681, 4294901760
    %v8683 = vsub.f32 %v8681, %v8682
    %v8684 = vand.u32 %v8683, 4294901760
    %8685 = vmatpush.msra.mxu0 %v8684
    %v8686 = vand.u32 %v2672, 4294901760
    %v8687 = vsub.f32 %v2672, %v8686
    %v8688 = vand.u32 %v8687, 4294901760
    %v8689 = vsub.f32 %v8687, %v8688
    %v8690 = vand.u32 %v8689, 4294901760
    %8691 = vmatpush.msra.mxu0 %v8690
    %v8692 = vand.u32 %v2671, 4294901760
    %v8693 = vsub.f32 %v2671, %v8692
    %v8694 = vand.u32 %v8693, 4294901760
    %v8695 = vsub.f32 %v8693, %v8694
    %v8696 = vand.u32 %v8695, 4294901760
    %8697 = vmatpush.msra.mxu0 %v8696
    %v8698 = vand.u32 %v8631, 4294901760
    %8699 = vmatmul.f32.gmra.mxu0 %v8698
    %v8700 = vpop.f32.mrf.mxu0
    %v8701 = vadd.f32 %v8660, %v8700
    %8702 = vdwg.mxu0
    %8703 = vmatpush.msra.mxu0 0.0
    %8704 = vmatpush.msra.mxu0 0.0
    %8705 = vmatpush.msra.mxu0 0.0
    %8706 = vmatpush.msra.mxu0 0.0
    %8707 = vmatpush.msra.mxu0 0.0
    %8708 = vmatpush.msra.mxu0 0.0
    %8709 = vmatpush.msra.mxu0 0.0
    %8710 = vmatpush.msra.mxu0 0.0
    %8711 = vmatpush.msra.mxu0 0.0
    %8712 = vmatpush.msra.mxu0 0.0
    %8713 = vmatpush.msra.mxu0 0.0
    %8714 = vmatpush.msra.mxu0 0.0
    %v8715 = vand.u32 %v2674, 4294901760
    %v8716 = vsub.f32 %v2674, %v8715
    %8717 = vmatpush.msra.mxu0 %v8716
    %v8718 = vand.u32 %v2673, 4294901760
    %v8719 = vsub.f32 %v2673, %v8718
    %8720 = vmatpush.msra.mxu0 %v8719
    %v8721 = vand.u32 %v2672, 4294901760
    %v8722 = vsub.f32 %v2672, %v8721
    %8723 = vmatpush.msra.mxu0 %v8722
    %v8724 = vand.u32 %v2671, 4294901760
    %v8725 = vsub.f32 %v2671, %v8724
    %8726 = vmatpush.msra.mxu0 %v8725
    %v8727 = vand.u32 %v8631, 4294901760
    %v8728 = vsub.f32 %v8631, %v8727
    %8729 = vmatmul.f32.gmra.mxu0 %v8728
    %v8730 = vpop.f32.mrf.mxu0
    %v8731 = vadd.f32 %v8701, %v8730
    %8732 = vdwg.mxu0
    %8733 = vmatpush.msra.mxu0 0.0
    %8734 = vmatpush.msra.mxu0 0.0
    %8735 = vmatpush.msra.mxu0 0.0
    %8736 = vmatpush.msra.mxu0 0.0
    %8737 = vmatpush.msra.mxu0 0.0
    %8738 = vmatpush.msra.mxu0 0.0
    %8739 = vmatpush.msra.mxu0 0.0
    %8740 = vmatpush.msra.mxu0 0.0
    %8741 = vmatpush.msra.mxu0 0.0
    %8742 = vmatpush.msra.mxu0 0.0
    %8743 = vmatpush.msra.mxu0 0.0
    %8744 = vmatpush.msra.mxu0 0.0
    %v8745 = vand.u32 %v2674, 4294901760
    %8746 = vmatpush.msra.mxu0 %v8745
    %v8747 = vand.u32 %v2673, 4294901760
    %8748 = vmatpush.msra.mxu0 %v8747
    %v8749 = vand.u32 %v2672, 4294901760
    %8750 = vmatpush.msra.mxu0 %v8749
    %v8751 = vand.u32 %v2671, 4294901760
    %8752 = vmatpush.msra.mxu0 %v8751
    %v8753 = vand.u32 %v8631, 4294901760
    %v8754 = vsub.f32 %v8631, %v8753
    %v8755 = vand.u32 %v8754, 4294901760
    %8756 = vmatmul.f32.gmra.mxu0 %v8755
    %v8757 = vpop.f32.mrf.mxu0
    %v8758 = vadd.f32 %v8731, %v8757
    %8759 = vdwg.mxu0
    %8760 = vmatpush.msra.mxu0 0.0
    %8761 = vmatpush.msra.mxu0 0.0
    %8762 = vmatpush.msra.mxu0 0.0
    %8763 = vmatpush.msra.mxu0 0.0
    %8764 = vmatpush.msra.mxu0 0.0
    %8765 = vmatpush.msra.mxu0 0.0
    %8766 = vmatpush.msra.mxu0 0.0
    %8767 = vmatpush.msra.mxu0 0.0
    %8768 = vmatpush.msra.mxu0 0.0
    %8769 = vmatpush.msra.mxu0 0.0
    %8770 = vmatpush.msra.mxu0 0.0
    %8771 = vmatpush.msra.mxu0 0.0
    %v8772 = vand.u32 %v2674, 4294901760
    %v8773 = vsub.f32 %v2674, %v8772
    %v8774 = vand.u32 %v8773, 4294901760
    %8775 = vmatpush.msra.mxu0 %v8774
    %v8776 = vand.u32 %v2673, 4294901760
    %v8777 = vsub.f32 %v2673, %v8776
    %v8778 = vand.u32 %v8777, 4294901760
    %8779 = vmatpush.msra.mxu0 %v8778
    %v8780 = vand.u32 %v2672, 4294901760
    %v8781 = vsub.f32 %v2672, %v8780
    %v8782 = vand.u32 %v8781, 4294901760
    %8783 = vmatpush.msra.mxu0 %v8782
    %v8784 = vand.u32 %v2671, 4294901760
    %v8785 = vsub.f32 %v2671, %v8784
    %v8786 = vand.u32 %v8785, 4294901760
    %8787 = vmatpush.msra.mxu0 %v8786
    %v8788 = vand.u32 %v8631, 4294901760
    %8789 = vmatmul.f32.gmra.mxu0 %v8788
    %v8790 = vpop.f32.mrf.mxu0
    %v8791 = vadd.f32 %v8758, %v8790
    %8792 = vdwg.mxu0
    %8793 = vmatpush.msra.mxu0 0.0
    %8794 = vmatpush.msra.mxu0 0.0
    %8795 = vmatpush.msra.mxu0 0.0
    %8796 = vmatpush.msra.mxu0 0.0
    %8797 = vmatpush.msra.mxu0 0.0
    %8798 = vmatpush.msra.mxu0 0.0
    %8799 = vmatpush.msra.mxu0 0.0
    %8800 = vmatpush.msra.mxu0 0.0
    %8801 = vmatpush.msra.mxu0 0.0
    %8802 = vmatpush.msra.mxu0 0.0
    %8803 = vmatpush.msra.mxu0 0.0
    %8804 = vmatpush.msra.mxu0 0.0
    %v8805 = vand.u32 %v2674, 4294901760
    %8806 = vmatpush.msra.mxu0 %v8805
    %v8807 = vand.u32 %v2673, 4294901760
    %8808 = vmatpush.msra.mxu0 %v8807
    %v8809 = vand.u32 %v2672, 4294901760
    %8810 = vmatpush.msra.mxu0 %v8809
    %v8811 = vand.u32 %v2671, 4294901760
    %8812 = vmatpush.msra.mxu0 %v8811
    %v8813 = vand.u32 %v8631, 4294901760
    %8814 = vmatmul.f32.gmra.mxu0 %v8813
    %v8815 = vpop.f32.mrf.mxu0
    %v8816 = vadd.f32 %v8791, %v8815
    %8817 = vdwg.mxu0
    %v8818 = vadd.f32 %v2669, %v8816
    %v8819 = vxor.u32 %v8818, 2147483648
    %v8820 = vmul.f32 %v8819, 1.442695
    %v8821 = vpow.pop %v8820
    %v8822 = vadd.f32 %v8821, 1.0
    %v8823 = vrcp.pop %v8822
    %v8824 = vmul.f32 %v8822, %v8823
    %v8825 = vsub.f32 1.0, %v8824
    %v8826 = vmul.f32 %v8823, %v8825
    %v8827 = vadd.f32 %v8823, %v8826
    %vm8828 = vweird.f32 %v8822
    %vm8829 = vweird.f32 %v8823
    %vm8830 = vmor %vm8828, %vm8829
    %v8831 = vsel %vm8830, %v8823, %v8827
    %v8832 = vand.u32 2147483647, %v8822
    %vm8833 = vcmp.eq.f32.partialorder %v8832, 8.507059e+37
    %v8834 = vand.u32 %v8822, 2147483648
    %v8835 = vor.u32 1.1754944e-38, %v8834
    %v8836 = vsel %vm8833, %v8835, %v8831
    %v8837 = vmul.f32 1.0, %v8836
    %8839 = vrot.lane.b32.xlu0 %v8816, 64
    %v8840 = vpop.permute.xlu0 %8839
    %v8842 = vmul.f32 %v8837, %v8840
    %8844 = vrot.lane.b32.xlu0 %v8842, 64
    %v8845 = vpop.permute.xlu0 %8844
    %v8847 = vadd.f32 %v2669, %v8845
    %v8848 = vtanh.pop %v8847
    %v8849 = vsub.f32 1.0, %v8837
    %8851 = vrot.lane.b32.xlu0 %v8848, 96
    %v8852 = vpop.permute.xlu0 %8851
    %v8854 = vmul.f32 %v8849, %v8852
    %v8855 = vmul.f32 %v8837, %v8627
    %v8856 = vadd.f32 %v8854, %v8855
    %8858 = vrot.lane.b32.xlu0 %v8856, 96
    %v8859 = vpop.permute.xlu0 %8858
    %v8860 = vsel %vm642, %v8859, 0
    %8862 = vmatpush.msra.mxu0 0.0
    %8863 = vmatpush.msra.mxu0 0.0
    %8864 = vmatpush.msra.mxu0 0.0
    %8865 = vmatpush.msra.mxu0 0.0
    %8866 = vmatpush.msra.mxu0 0.0
    %8867 = vmatpush.msra.mxu0 0.0
    %8868 = vmatpush.msra.mxu0 0.0
    %8869 = vmatpush.msra.mxu0 0.0
    %8870 = vmatpush.msra.mxu0 0.0
    %8871 = vmatpush.msra.mxu0 0.0
    %8872 = vmatpush.msra.mxu0 0.0
    %8873 = vmatpush.msra.mxu0 0.0
    %v8874 = vand.u32 %v2674, 4294901760
    %8875 = vmatpush.msra.mxu0 %v8874
    %v8876 = vand.u32 %v2673, 4294901760
    %8877 = vmatpush.msra.mxu0 %v8876
    %v8878 = vand.u32 %v2672, 4294901760
    %8879 = vmatpush.msra.mxu0 %v8878
    %v8880 = vand.u32 %v2671, 4294901760
    %8881 = vmatpush.msra.mxu0 %v8880
    %v8882 = vand.u32 %v8860, 4294901760
    %v8883 = vsub.f32 %v8860, %v8882
    %v8884 = vand.u32 %v8883, 4294901760
    %v8885 = vsub.f32 %v8883, %v8884
    %v8886 = vand.u32 %v8885, 4294901760
    %8887 = vmatmul.f32.gmra.mxu0 %v8886
    %v8888 = vpop.f32.mrf.mxu0
    %v8889 = vadd.f32 %v2677, %v8888
    %8890 = vdwg.mxu0
    %8891 = vmatpush.msra.mxu0 0.0
    %8892 = vmatpush.msra.mxu0 0.0
    %8893 = vmatpush.msra.mxu0 0.0
    %8894 = vmatpush.msra.mxu0 0.0
    %8895 = vmatpush.msra.mxu0 0.0
    %8896 = vmatpush.msra.mxu0 0.0
    %8897 = vmatpush.msra.mxu0 0.0
    %8898 = vmatpush.msra.mxu0 0.0
    %8899 = vmatpush.msra.mxu0 0.0
    %8900 = vmatpush.msra.mxu0 0.0
    %8901 = vmatpush.msra.mxu0 0.0
    %8902 = vmatpush.msra.mxu0 0.0
    %v8903 = vand.u32 %v2674, 4294901760
    %v8904 = vsub.f32 %v2674, %v8903
    %v8905 = vand.u32 %v8904, 4294901760
    %v8906 = vsub.f32 %v8904, %v8905
    %v8907 = vand.u32 %v8906, 4294901760
    %8908 = vmatpush.msra.mxu0 %v8907
    %v8909 = vand.u32 %v2673, 4294901760
    %v8910 = vsub.f32 %v2673, %v8909
    %v8911 = vand.u32 %v8910, 4294901760
    %v8912 = vsub.f32 %v8910, %v8911
    %v8913 = vand.u32 %v8912, 4294901760
    %8914 = vmatpush.msra.mxu0 %v8913
    %v8915 = vand.u32 %v2672, 4294901760
    %v8916 = vsub.f32 %v2672, %v8915
    %v8917 = vand.u32 %v8916, 4294901760
    %v8918 = vsub.f32 %v8916, %v8917
    %v8919 = vand.u32 %v8918, 4294901760
    %8920 = vmatpush.msra.mxu0 %v8919
    %v8921 = vand.u32 %v2671, 4294901760
    %v8922 = vsub.f32 %v2671, %v8921
    %v8923 = vand.u32 %v8922, 4294901760
    %v8924 = vsub.f32 %v8922, %v8923
    %v8925 = vand.u32 %v8924, 4294901760
    %8926 = vmatpush.msra.mxu0 %v8925
    %v8927 = vand.u32 %v8860, 4294901760
    %8928 = vmatmul.f32.gmra.mxu0 %v8927
    %v8929 = vpop.f32.mrf.mxu0
    %v8930 = vadd.f32 %v8889, %v8929
    %8931 = vdwg.mxu0
    %8932 = vmatpush.msra.mxu0 0.0
    %8933 = vmatpush.msra.mxu0 0.0
    %8934 = vmatpush.msra.mxu0 0.0
    %8935 = vmatpush.msra.mxu0 0.0
    %8936 = vmatpush.msra.mxu0 0.0
    %8937 = vmatpush.msra.mxu0 0.0
    %8938 = vmatpush.msra.mxu0 0.0
    %8939 = vmatpush.msra.mxu0 0.0
    %8940 = vmatpush.msra.mxu0 0.0
    %8941 = vmatpush.msra.mxu0 0.0
    %8942 = vmatpush.msra.mxu0 0.0
    %8943 = vmatpush.msra.mxu0 0.0
    %v8944 = vand.u32 %v2674, 4294901760
    %v8945 = vsub.f32 %v2674, %v8944
    %8946 = vmatpush.msra.mxu0 %v8945
    %v8947 = vand.u32 %v2673, 4294901760
    %v8948 = vsub.f32 %v2673, %v8947
    %8949 = vmatpush.msra.mxu0 %v8948
    %v8950 = vand.u32 %v2672, 4294901760
    %v8951 = vsub.f32 %v2672, %v8950
    %8952 = vmatpush.msra.mxu0 %v8951
    %v8953 = vand.u32 %v2671, 4294901760
    %v8954 = vsub.f32 %v2671, %v8953
    %8955 = vmatpush.msra.mxu0 %v8954
    %v8956 = vand.u32 %v8860, 4294901760
    %v8957 = vsub.f32 %v8860, %v8956
    %8958 = vmatmul.f32.gmra.mxu0 %v8957
    %v8959 = vpop.f32.mrf.mxu0
    %v8960 = vadd.f32 %v8930, %v8959
    %8961 = vdwg.mxu0
    %8962 = vmatpush.msra.mxu0 0.0
    %8963 = vmatpush.msra.mxu0 0.0
    %8964 = vmatpush.msra.mxu0 0.0
    %8965 = vmatpush.msra.mxu0 0.0
    %8966 = vmatpush.msra.mxu0 0.0
    %8967 = vmatpush.msra.mxu0 0.0
    %8968 = vmatpush.msra.mxu0 0.0
    %8969 = vmatpush.msra.mxu0 0.0
    %8970 = vmatpush.msra.mxu0 0.0
    %8971 = vmatpush.msra.mxu0 0.0
    %8972 = vmatpush.msra.mxu0 0.0
    %8973 = vmatpush.msra.mxu0 0.0
    %v8974 = vand.u32 %v2674, 4294901760
    %8975 = vmatpush.msra.mxu0 %v8974
    %v8976 = vand.u32 %v2673, 4294901760
    %8977 = vmatpush.msra.mxu0 %v8976
    %v8978 = vand.u32 %v2672, 4294901760
    %8979 = vmatpush.msra.mxu0 %v8978
    %v8980 = vand.u32 %v2671, 4294901760
    %8981 = vmatpush.msra.mxu0 %v8980
    %v8982 = vand.u32 %v8860, 4294901760
    %v8983 = vsub.f32 %v8860, %v8982
    %v8984 = vand.u32 %v8983, 4294901760
    %8985 = vmatmul.f32.gmra.mxu0 %v8984
    %v8986 = vpop.f32.mrf.mxu0
    %v8987 = vadd.f32 %v8960, %v8986
    %8988 = vdwg.mxu0
    %8989 = vmatpush.msra.mxu0 0.0
    %8990 = vmatpush.msra.mxu0 0.0
    %8991 = vmatpush.msra.mxu0 0.0
    %8992 = vmatpush.msra.mxu0 0.0
    %8993 = vmatpush.msra.mxu0 0.0
    %8994 = vmatpush.msra.mxu0 0.0
    %8995 = vmatpush.msra.mxu0 0.0
    %8996 = vmatpush.msra.mxu0 0.0
    %8997 = vmatpush.msra.mxu0 0.0
    %8998 = vmatpush.msra.mxu0 0.0
    %8999 = vmatpush.msra.mxu0 0.0
    %9000 = vmatpush.msra.mxu0 0.0
    %v9001 = vand.u32 %v2674, 4294901760
    %v9002 = vsub.f32 %v2674, %v9001
    %v9003 = vand.u32 %v9002, 4294901760
    %9004 = vmatpush.msra.mxu0 %v9003
    %v9005 = vand.u32 %v2673, 4294901760
    %v9006 = vsub.f32 %v2673, %v9005
    %v9007 = vand.u32 %v9006, 4294901760
    %9008 = vmatpush.msra.mxu0 %v9007
    %v9009 = vand.u32 %v2672, 4294901760
    %v9010 = vsub.f32 %v2672, %v9009
    %v9011 = vand.u32 %v9010, 4294901760
    %9012 = vmatpush.msra.mxu0 %v9011
    %v9013 = vand.u32 %v2671, 4294901760
    %v9014 = vsub.f32 %v2671, %v9013
    %v9015 = vand.u32 %v9014, 4294901760
    %9016 = vmatpush.msra.mxu0 %v9015
    %v9017 = vand.u32 %v8860, 4294901760
    %9018 = vmatmul.f32.gmra.mxu0 %v9017
    %v9019 = vpop.f32.mrf.mxu0
    %v9020 = vadd.f32 %v8987, %v9019
    %9021 = vdwg.mxu0
    %9022 = vmatpush.msra.mxu0 0.0
    %9023 = vmatpush.msra.mxu0 0.0
    %9024 = vmatpush.msra.mxu0 0.0
    %9025 = vmatpush.msra.mxu0 0.0
    %9026 = vmatpush.msra.mxu0 0.0
    %9027 = vmatpush.msra.mxu0 0.0
    %9028 = vmatpush.msra.mxu0 0.0
    %9029 = vmatpush.msra.mxu0 0.0
    %9030 = vmatpush.msra.mxu0 0.0
    %9031 = vmatpush.msra.mxu0 0.0
    %9032 = vmatpush.msra.mxu0 0.0
    %9033 = vmatpush.msra.mxu0 0.0
    %v9034 = vand.u32 %v2674, 4294901760
    %9035 = vmatpush.msra.mxu0 %v9034
    %v9036 = vand.u32 %v2673, 4294901760
    %9037 = vmatpush.msra.mxu0 %v9036
    %v9038 = vand.u32 %v2672, 4294901760
    %9039 = vmatpush.msra.mxu0 %v9038
    %v9040 = vand.u32 %v2671, 4294901760
    %9041 = vmatpush.msra.mxu0 %v9040
    %v9042 = vand.u32 %v8860, 4294901760
    %9043 = vmatmul.f32.gmra.mxu0 %v9042
    %v9044 = vpop.f32.mrf.mxu0
    %v9045 = vadd.f32 %v9020, %v9044
    %9046 = vdwg.mxu0
    %v9047 = vadd.f32 %v2669, %v9045
    %v9048 = vxor.u32 %v9047, 2147483648
    %v9049 = vmul.f32 %v9048, 1.442695
    %v9050 = vpow.pop %v9049
    %v9051 = vadd.f32 %v9050, 1.0
    %v9052 = vrcp.pop %v9051
    %v9053 = vmul.f32 %v9051, %v9052
    %v9054 = vsub.f32 1.0, %v9053
    %v9055 = vmul.f32 %v9052, %v9054
    %v9056 = vadd.f32 %v9052, %v9055
    %vm9057 = vweird.f32 %v9051
    %vm9058 = vweird.f32 %v9052
    %vm9059 = vmor %vm9057, %vm9058
    %v9060 = vsel %vm9059, %v9052, %v9056
    %v9061 = vand.u32 2147483647, %v9051
    %vm9062 = vcmp.eq.f32.partialorder %v9061, 8.507059e+37
    %v9063 = vand.u32 %v9051, 2147483648
    %v9064 = vor.u32 1.1754944e-38, %v9063
    %v9065 = vsel %vm9062, %v9064, %v9060
    %v9066 = vmul.f32 1.0, %v9065
    %9068 = vrot.lane.b32.xlu0 %v9045, 64
    %v9069 = vpop.permute.xlu0 %9068
    %v9071 = vmul.f32 %v9066, %v9069
    %9073 = vrot.lane.b32.xlu0 %v9071, 64
    %v9074 = vpop.permute.xlu0 %9073
    %v9076 = vadd.f32 %v2669, %v9074
    %v9077 = vtanh.pop %v9076
    %v9078 = vsub.f32 1.0, %v9066
    %9080 = vrot.lane.b32.xlu0 %v9077, 96
    %v9081 = vpop.permute.xlu0 %9080
    %v9083 = vmul.f32 %v9078, %v9081
    %v9084 = vmul.f32 %v9066, %v8856
    %v9085 = vadd.f32 %v9083, %v9084
    %9087 = vrot.lane.b32.xlu0 %v9085, 96
    %v9088 = vpop.permute.xlu0 %9087
    %v9089 = vsel %vm642, %v9088, 0
    %9091 = vmatpush.msra.mxu0 0.0
    %9092 = vmatpush.msra.mxu0 0.0
    %9093 = vmatpush.msra.mxu0 0.0
    %9094 = vmatpush.msra.mxu0 0.0
    %9095 = vmatpush.msra.mxu0 0.0
    %9096 = vmatpush.msra.mxu0 0.0
    %9097 = vmatpush.msra.mxu0 0.0
    %9098 = vmatpush.msra.mxu0 0.0
    %9099 = vmatpush.msra.mxu0 0.0
    %9100 = vmatpush.msra.mxu0 0.0
    %9101 = vmatpush.msra.mxu0 0.0
    %9102 = vmatpush.msra.mxu0 0.0
    %v9103 = vand.u32 %v2674, 4294901760
    %9104 = vmatpush.msra.mxu0 %v9103
    %v9105 = vand.u32 %v2673, 4294901760
    %9106 = vmatpush.msra.mxu0 %v9105
    %v9107 = vand.u32 %v2672, 4294901760
    %9108 = vmatpush.msra.mxu0 %v9107
    %v9109 = vand.u32 %v2671, 4294901760
    %9110 = vmatpush.msra.mxu0 %v9109
    %v9111 = vand.u32 %v9089, 4294901760
    %v9112 = vsub.f32 %v9089, %v9111
    %v9113 = vand.u32 %v9112, 4294901760
    %v9114 = vsub.f32 %v9112, %v9113
    %v9115 = vand.u32 %v9114, 4294901760
    %9116 = vmatmul.f32.gmra.mxu0 %v9115
    %v9117 = vpop.f32.mrf.mxu0
    %v9118 = vadd.f32 %v2677, %v9117
    %9119 = vdwg.mxu0
    %9120 = vmatpush.msra.mxu0 0.0
    %9121 = vmatpush.msra.mxu0 0.0
    %9122 = vmatpush.msra.mxu0 0.0
    %9123 = vmatpush.msra.mxu0 0.0
    %9124 = vmatpush.msra.mxu0 0.0
    %9125 = vmatpush.msra.mxu0 0.0
    %9126 = vmatpush.msra.mxu0 0.0
    %9127 = vmatpush.msra.mxu0 0.0
    %9128 = vmatpush.msra.mxu0 0.0
    %9129 = vmatpush.msra.mxu0 0.0
    %9130 = vmatpush.msra.mxu0 0.0
    %9131 = vmatpush.msra.mxu0 0.0
    %v9132 = vand.u32 %v2674, 4294901760
    %v9133 = vsub.f32 %v2674, %v9132
    %v9134 = vand.u32 %v9133, 4294901760
    %v9135 = vsub.f32 %v9133, %v9134
    %v9136 = vand.u32 %v9135, 4294901760
    %9137 = vmatpush.msra.mxu0 %v9136
    %v9138 = vand.u32 %v2673, 4294901760
    %v9139 = vsub.f32 %v2673, %v9138
    %v9140 = vand.u32 %v9139, 4294901760
    %v9141 = vsub.f32 %v9139, %v9140
    %v9142 = vand.u32 %v9141, 4294901760
    %9143 = vmatpush.msra.mxu0 %v9142
    %v9144 = vand.u32 %v2672, 4294901760
    %v9145 = vsub.f32 %v2672, %v9144
    %v9146 = vand.u32 %v9145, 4294901760
    %v9147 = vsub.f32 %v9145, %v9146
    %v9148 = vand.u32 %v9147, 4294901760
    %9149 = vmatpush.msra.mxu0 %v9148
    %v9150 = vand.u32 %v2671, 4294901760
    %v9151 = vsub.f32 %v2671, %v9150
    %v9152 = vand.u32 %v9151, 4294901760
    %v9153 = vsub.f32 %v9151, %v9152
    %v9154 = vand.u32 %v9153, 4294901760
    %9155 = vmatpush.msra.mxu0 %v9154
    %v9156 = vand.u32 %v9089, 4294901760
    %9157 = vmatmul.f32.gmra.mxu0 %v9156
    %v9158 = vpop.f32.mrf.mxu0
    %v9159 = vadd.f32 %v9118, %v9158
    %9160 = vdwg.mxu0
    %9161 = vmatpush.msra.mxu0 0.0
    %9162 = vmatpush.msra.mxu0 0.0
    %9163 = vmatpush.msra.mxu0 0.0
    %9164 = vmatpush.msra.mxu0 0.0
    %9165 = vmatpush.msra.mxu0 0.0
    %9166 = vmatpush.msra.mxu0 0.0
    %9167 = vmatpush.msra.mxu0 0.0
    %9168 = vmatpush.msra.mxu0 0.0
    %9169 = vmatpush.msra.mxu0 0.0
    %9170 = vmatpush.msra.mxu0 0.0
    %9171 = vmatpush.msra.mxu0 0.0
    %9172 = vmatpush.msra.mxu0 0.0
    %v9173 = vand.u32 %v2674, 4294901760
    %v9174 = vsub.f32 %v2674, %v9173
    %9175 = vmatpush.msra.mxu0 %v9174
    %v9176 = vand.u32 %v2673, 4294901760
    %v9177 = vsub.f32 %v2673, %v9176
    %9178 = vmatpush.msra.mxu0 %v9177
    %v9179 = vand.u32 %v2672, 4294901760
    %v9180 = vsub.f32 %v2672, %v9179
    %9181 = vmatpush.msra.mxu0 %v9180
    %v9182 = vand.u32 %v2671, 4294901760
    %v9183 = vsub.f32 %v2671, %v9182
    %9184 = vmatpush.msra.mxu0 %v9183
    %v9185 = vand.u32 %v9089, 4294901760
    %v9186 = vsub.f32 %v9089, %v9185
    %9187 = vmatmul.f32.gmra.mxu0 %v9186
    %v9188 = vpop.f32.mrf.mxu0
    %v9189 = vadd.f32 %v9159, %v9188
    %9190 = vdwg.mxu0
    %9191 = vmatpush.msra.mxu0 0.0
    %9192 = vmatpush.msra.mxu0 0.0
    %9193 = vmatpush.msra.mxu0 0.0
    %9194 = vmatpush.msra.mxu0 0.0
    %9195 = vmatpush.msra.mxu0 0.0
    %9196 = vmatpush.msra.mxu0 0.0
    %9197 = vmatpush.msra.mxu0 0.0
    %9198 = vmatpush.msra.mxu0 0.0
    %9199 = vmatpush.msra.mxu0 0.0
    %9200 = vmatpush.msra.mxu0 0.0
    %9201 = vmatpush.msra.mxu0 0.0
    %9202 = vmatpush.msra.mxu0 0.0
    %v9203 = vand.u32 %v2674, 4294901760
    %9204 = vmatpush.msra.mxu0 %v9203
    %v9205 = vand.u32 %v2673, 4294901760
    %9206 = vmatpush.msra.mxu0 %v9205
    %v9207 = vand.u32 %v2672, 4294901760
    %9208 = vmatpush.msra.mxu0 %v9207
    %v9209 = vand.u32 %v2671, 4294901760
    %9210 = vmatpush.msra.mxu0 %v9209
    %v9211 = vand.u32 %v9089, 4294901760
    %v9212 = vsub.f32 %v9089, %v9211
    %v9213 = vand.u32 %v9212, 4294901760
    %9214 = vmatmul.f32.gmra.mxu0 %v9213
    %v9215 = vpop.f32.mrf.mxu0
    %v9216 = vadd.f32 %v9189, %v9215
    %9217 = vdwg.mxu0
    %9218 = vmatpush.msra.mxu0 0.0
    %9219 = vmatpush.msra.mxu0 0.0
    %9220 = vmatpush.msra.mxu0 0.0
    %9221 = vmatpush.msra.mxu0 0.0
    %9222 = vmatpush.msra.mxu0 0.0
    %9223 = vmatpush.msra.mxu0 0.0
    %9224 = vmatpush.msra.mxu0 0.0
    %9225 = vmatpush.msra.mxu0 0.0
    %9226 = vmatpush.msra.mxu0 0.0
    %9227 = vmatpush.msra.mxu0 0.0
    %9228 = vmatpush.msra.mxu0 0.0
    %9229 = vmatpush.msra.mxu0 0.0
    %v9230 = vand.u32 %v2674, 4294901760
    %v9231 = vsub.f32 %v2674, %v9230
    %v9232 = vand.u32 %v9231, 4294901760
    %9233 = vmatpush.msra.mxu0 %v9232
    %v9234 = vand.u32 %v2673, 4294901760
    %v9235 = vsub.f32 %v2673, %v9234
    %v9236 = vand.u32 %v9235, 4294901760
    %9237 = vmatpush.msra.mxu0 %v9236
    %v9238 = vand.u32 %v2672, 4294901760
    %v9239 = vsub.f32 %v2672, %v9238
    %v9240 = vand.u32 %v9239, 4294901760
    %9241 = vmatpush.msra.mxu0 %v9240
    %v9242 = vand.u32 %v2671, 4294901760
    %v9243 = vsub.f32 %v2671, %v9242
    %v9244 = vand.u32 %v9243, 4294901760
    %9245 = vmatpush.msra.mxu0 %v9244
    %v9246 = vand.u32 %v9089, 4294901760
    %9247 = vmatmul.f32.gmra.mxu0 %v9246
    %v9248 = vpop.f32.mrf.mxu0
    %v9249 = vadd.f32 %v9216, %v9248
    %9250 = vdwg.mxu0
    %9251 = vmatpush.msra.mxu0 0.0
    %9252 = vmatpush.msra.mxu0 0.0
    %9253 = vmatpush.msra.mxu0 0.0
    %9254 = vmatpush.msra.mxu0 0.0
    %9255 = vmatpush.msra.mxu0 0.0
    %9256 = vmatpush.msra.mxu0 0.0
    %9257 = vmatpush.msra.mxu0 0.0
    %9258 = vmatpush.msra.mxu0 0.0
    %9259 = vmatpush.msra.mxu0 0.0
    %9260 = vmatpush.msra.mxu0 0.0
    %9261 = vmatpush.msra.mxu0 0.0
    %9262 = vmatpush.msra.mxu0 0.0
    %v9263 = vand.u32 %v2674, 4294901760
    %9264 = vmatpush.msra.mxu0 %v9263
    %v9265 = vand.u32 %v2673, 4294901760
    %9266 = vmatpush.msra.mxu0 %v9265
    %v9267 = vand.u32 %v2672, 4294901760
    %9268 = vmatpush.msra.mxu0 %v9267
    %v9269 = vand.u32 %v2671, 4294901760
    %9270 = vmatpush.msra.mxu0 %v9269
    %v9271 = vand.u32 %v9089, 4294901760
    %9272 = vmatmul.f32.gmra.mxu0 %v9271
    %v9273 = vpop.f32.mrf.mxu0
    %v9274 = vadd.f32 %v9249, %v9273
    %9275 = vdwg.mxu0
    %v9276 = vadd.f32 %v2669, %v9274
    %v9277 = vxor.u32 %v9276, 2147483648
    %v9278 = vmul.f32 %v9277, 1.442695
    %v9279 = vpow.pop %v9278
    %v9280 = vadd.f32 %v9279, 1.0
    %v9281 = vrcp.pop %v9280
    %v9282 = vmul.f32 %v9280, %v9281
    %v9283 = vsub.f32 1.0, %v9282
    %v9284 = vmul.f32 %v9281, %v9283
    %v9285 = vadd.f32 %v9281, %v9284
    %vm9286 = vweird.f32 %v9280
    %vm9287 = vweird.f32 %v9281
    %vm9288 = vmor %vm9286, %vm9287
    %v9289 = vsel %vm9288, %v9281, %v9285
    %v9290 = vand.u32 2147483647, %v9280
    %vm9291 = vcmp.eq.f32.partialorder %v9290, 8.507059e+37
    %v9292 = vand.u32 %v9280, 2147483648
    %v9293 = vor.u32 1.1754944e-38, %v9292
    %v9294 = vsel %vm9291, %v9293, %v9289
    %v9295 = vmul.f32 1.0, %v9294
    %9297 = vrot.lane.b32.xlu0 %v9274, 64
    %v9298 = vpop.permute.xlu0 %9297
    %v9300 = vmul.f32 %v9295, %v9298
    %9302 = vrot.lane.b32.xlu0 %v9300, 64
    %v9303 = vpop.permute.xlu0 %9302
    %v9305 = vadd.f32 %v2669, %v9303
    %v9306 = vtanh.pop %v9305
    %v9307 = vsub.f32 1.0, %v9295
    %9309 = vrot.lane.b32.xlu0 %v9306, 96
    %v9310 = vpop.permute.xlu0 %9309
    %v9312 = vmul.f32 %v9307, %v9310
    %v9313 = vmul.f32 %v9295, %v9085
    %v9314 = vadd.f32 %v9312, %v9313
    %9316 = vrot.lane.b32.xlu0 %v9314, 96
    %v9317 = vpop.permute.xlu0 %9316
    %v9318 = vsel %vm642, %v9317, 0
    %9320 = vmatpush.msra.mxu0 0.0
    %9321 = vmatpush.msra.mxu0 0.0
    %9322 = vmatpush.msra.mxu0 0.0
    %9323 = vmatpush.msra.mxu0 0.0
    %9324 = vmatpush.msra.mxu0 0.0
    %9325 = vmatpush.msra.mxu0 0.0
    %9326 = vmatpush.msra.mxu0 0.0
    %9327 = vmatpush.msra.mxu0 0.0
    %9328 = vmatpush.msra.mxu0 0.0
    %9329 = vmatpush.msra.mxu0 0.0
    %9330 = vmatpush.msra.mxu0 0.0
    %9331 = vmatpush.msra.mxu0 0.0
    %v9332 = vand.u32 %v2674, 4294901760
    %9333 = vmatpush.msra.mxu0 %v9332
    %v9334 = vand.u32 %v2673, 4294901760
    %9335 = vmatpush.msra.mxu0 %v9334
    %v9336 = vand.u32 %v2672, 4294901760
    %9337 = vmatpush.msra.mxu0 %v9336
    %v9338 = vand.u32 %v2671, 4294901760
    %9339 = vmatpush.msra.mxu0 %v9338
    %v9340 = vand.u32 %v9318, 4294901760
    %v9341 = vsub.f32 %v9318, %v9340
    %v9342 = vand.u32 %v9341, 4294901760
    %v9343 = vsub.f32 %v9341, %v9342
    %v9344 = vand.u32 %v9343, 4294901760
    %9345 = vmatmul.f32.gmra.mxu0 %v9344
    %v9346 = vpop.f32.mrf.mxu0
    %v9347 = vadd.f32 %v2677, %v9346
    %9348 = vdwg.mxu0
    %9349 = vmatpush.msra.mxu0 0.0
    %9350 = vmatpush.msra.mxu0 0.0
    %9351 = vmatpush.msra.mxu0 0.0
    %9352 = vmatpush.msra.mxu0 0.0
    %9353 = vmatpush.msra.mxu0 0.0
    %9354 = vmatpush.msra.mxu0 0.0
    %9355 = vmatpush.msra.mxu0 0.0
    %9356 = vmatpush.msra.mxu0 0.0
    %9357 = vmatpush.msra.mxu0 0.0
    %9358 = vmatpush.msra.mxu0 0.0
    %9359 = vmatpush.msra.mxu0 0.0
    %9360 = vmatpush.msra.mxu0 0.0
    %v9361 = vand.u32 %v2674, 4294901760
    %v9362 = vsub.f32 %v2674, %v9361
    %v9363 = vand.u32 %v9362, 4294901760
    %v9364 = vsub.f32 %v9362, %v9363
    %v9365 = vand.u32 %v9364, 4294901760
    %9366 = vmatpush.msra.mxu0 %v9365
    %v9367 = vand.u32 %v2673, 4294901760
    %v9368 = vsub.f32 %v2673, %v9367
    %v9369 = vand.u32 %v9368, 4294901760
    %v9370 = vsub.f32 %v9368, %v9369
    %v9371 = vand.u32 %v9370, 4294901760
    %9372 = vmatpush.msra.mxu0 %v9371
    %v9373 = vand.u32 %v2672, 4294901760
    %v9374 = vsub.f32 %v2672, %v9373
    %v9375 = vand.u32 %v9374, 4294901760
    %v9376 = vsub.f32 %v9374, %v9375
    %v9377 = vand.u32 %v9376, 4294901760
    %9378 = vmatpush.msra.mxu0 %v9377
    %v9379 = vand.u32 %v2671, 4294901760
    %v9380 = vsub.f32 %v2671, %v9379
    %v9381 = vand.u32 %v9380, 4294901760
    %v9382 = vsub.f32 %v9380, %v9381
    %v9383 = vand.u32 %v9382, 4294901760
    %9384 = vmatpush.msra.mxu0 %v9383
    %v9385 = vand.u32 %v9318, 4294901760
    %9386 = vmatmul.f32.gmra.mxu0 %v9385
    %v9387 = vpop.f32.mrf.mxu0
    %v9388 = vadd.f32 %v9347, %v9387
    %9389 = vdwg.mxu0
    %9390 = vmatpush.msra.mxu0 0.0
    %9391 = vmatpush.msra.mxu0 0.0
    %9392 = vmatpush.msra.mxu0 0.0
    %9393 = vmatpush.msra.mxu0 0.0
    %9394 = vmatpush.msra.mxu0 0.0
    %9395 = vmatpush.msra.mxu0 0.0
    %9396 = vmatpush.msra.mxu0 0.0
    %9397 = vmatpush.msra.mxu0 0.0
    %9398 = vmatpush.msra.mxu0 0.0
    %9399 = vmatpush.msra.mxu0 0.0
    %9400 = vmatpush.msra.mxu0 0.0
    %9401 = vmatpush.msra.mxu0 0.0
    %v9402 = vand.u32 %v2674, 4294901760
    %v9403 = vsub.f32 %v2674, %v9402
    %9404 = vmatpush.msra.mxu0 %v9403
    %v9405 = vand.u32 %v2673, 4294901760
    %v9406 = vsub.f32 %v2673, %v9405
    %9407 = vmatpush.msra.mxu0 %v9406
    %v9408 = vand.u32 %v2672, 4294901760
    %v9409 = vsub.f32 %v2672, %v9408
    %9410 = vmatpush.msra.mxu0 %v9409
    %v9411 = vand.u32 %v2671, 4294901760
    %v9412 = vsub.f32 %v2671, %v9411
    %9413 = vmatpush.msra.mxu0 %v9412
    %v9414 = vand.u32 %v9318, 4294901760
    %v9415 = vsub.f32 %v9318, %v9414
    %9416 = vmatmul.f32.gmra.mxu0 %v9415
    %v9417 = vpop.f32.mrf.mxu0
    %v9418 = vadd.f32 %v9388, %v9417
    %9419 = vdwg.mxu0
    %9420 = vmatpush.msra.mxu0 0.0
    %9421 = vmatpush.msra.mxu0 0.0
    %9422 = vmatpush.msra.mxu0 0.0
    %9423 = vmatpush.msra.mxu0 0.0
    %9424 = vmatpush.msra.mxu0 0.0
    %9425 = vmatpush.msra.mxu0 0.0
    %9426 = vmatpush.msra.mxu0 0.0
    %9427 = vmatpush.msra.mxu0 0.0
    %9428 = vmatpush.msra.mxu0 0.0
    %9429 = vmatpush.msra.mxu0 0.0
    %9430 = vmatpush.msra.mxu0 0.0
    %9431 = vmatpush.msra.mxu0 0.0
    %v9432 = vand.u32 %v2674, 4294901760
    %9433 = vmatpush.msra.mxu0 %v9432
    %v9434 = vand.u32 %v2673, 4294901760
    %9435 = vmatpush.msra.mxu0 %v9434
    %v9436 = vand.u32 %v2672, 4294901760
    %9437 = vmatpush.msra.mxu0 %v9436
    %v9438 = vand.u32 %v2671, 4294901760
    %9439 = vmatpush.msra.mxu0 %v9438
    %v9440 = vand.u32 %v9318, 4294901760
    %v9441 = vsub.f32 %v9318, %v9440
    %v9442 = vand.u32 %v9441, 4294901760
    %9443 = vmatmul.f32.gmra.mxu0 %v9442
    %v9444 = vpop.f32.mrf.mxu0
    %v9445 = vadd.f32 %v9418, %v9444
    %9446 = vdwg.mxu0
    %9447 = vmatpush.msra.mxu0 0.0
    %9448 = vmatpush.msra.mxu0 0.0
    %9449 = vmatpush.msra.mxu0 0.0
    %9450 = vmatpush.msra.mxu0 0.0
    %9451 = vmatpush.msra.mxu0 0.0
    %9452 = vmatpush.msra.mxu0 0.0
    %9453 = vmatpush.msra.mxu0 0.0
    %9454 = vmatpush.msra.mxu0 0.0
    %9455 = vmatpush.msra.mxu0 0.0
    %9456 = vmatpush.msra.mxu0 0.0
    %9457 = vmatpush.msra.mxu0 0.0
    %9458 = vmatpush.msra.mxu0 0.0
    %v9459 = vand.u32 %v2674, 4294901760
    %v9460 = vsub.f32 %v2674, %v9459
    %v9461 = vand.u32 %v9460, 4294901760
    %9462 = vmatpush.msra.mxu0 %v9461
    %v9463 = vand.u32 %v2673, 4294901760
    %v9464 = vsub.f32 %v2673, %v9463
    %v9465 = vand.u32 %v9464, 4294901760
    %9466 = vmatpush.msra.mxu0 %v9465
    %v9467 = vand.u32 %v2672, 4294901760
    %v9468 = vsub.f32 %v2672, %v9467
    %v9469 = vand.u32 %v9468, 4294901760
    %9470 = vmatpush.msra.mxu0 %v9469
    %v9471 = vand.u32 %v2671, 4294901760
    %v9472 = vsub.f32 %v2671, %v9471
    %v9473 = vand.u32 %v9472, 4294901760
    %9474 = vmatpush.msra.mxu0 %v9473
    %v9475 = vand.u32 %v9318, 4294901760
    %9476 = vmatmul.f32.gmra.mxu0 %v9475
    %v9477 = vpop.f32.mrf.mxu0
    %v9478 = vadd.f32 %v9445, %v9477
    %9479 = vdwg.mxu0
    %9480 = vmatpush.msra.mxu0 0.0
    %9481 = vmatpush.msra.mxu0 0.0
    %9482 = vmatpush.msra.mxu0 0.0
    %9483 = vmatpush.msra.mxu0 0.0
    %9484 = vmatpush.msra.mxu0 0.0
    %9485 = vmatpush.msra.mxu0 0.0
    %9486 = vmatpush.msra.mxu0 0.0
    %9487 = vmatpush.msra.mxu0 0.0
    %9488 = vmatpush.msra.mxu0 0.0
    %9489 = vmatpush.msra.mxu0 0.0
    %9490 = vmatpush.msra.mxu0 0.0
    %9491 = vmatpush.msra.mxu0 0.0
    %v9492 = vand.u32 %v2674, 4294901760
    %9493 = vmatpush.msra.mxu0 %v9492
    %v9494 = vand.u32 %v2673, 4294901760
    %9495 = vmatpush.msra.mxu0 %v9494
    %v9496 = vand.u32 %v2672, 4294901760
    %9497 = vmatpush.msra.mxu0 %v9496
    %v9498 = vand.u32 %v2671, 4294901760
    %9499 = vmatpush.msra.mxu0 %v9498
    %v9500 = vand.u32 %v9318, 4294901760
    %9501 = vmatmul.f32.gmra.mxu0 %v9500
    %v9502 = vpop.f32.mrf.mxu0
    %v9503 = vadd.f32 %v9478, %v9502
    %9504 = vdwg.mxu0
    %v9505 = vadd.f32 %v2669, %v9503
    %v9506 = vxor.u32 %v9505, 2147483648
    %v9507 = vmul.f32 %v9506, 1.442695
    %v9508 = vpow.pop %v9507
    %v9509 = vadd.f32 %v9508, 1.0
    %v9510 = vrcp.pop %v9509
    %v9511 = vmul.f32 %v9509, %v9510
    %v9512 = vsub.f32 1.0, %v9511
    %v9513 = vmul.f32 %v9510, %v9512
    %v9514 = vadd.f32 %v9510, %v9513
    %vm9515 = vweird.f32 %v9509
    %vm9516 = vweird.f32 %v9510
    %vm9517 = vmor %vm9515, %vm9516
    %v9518 = vsel %vm9517, %v9510, %v9514
    %v9519 = vand.u32 2147483647, %v9509
    %vm9520 = vcmp.eq.f32.partialorder %v9519, 8.507059e+37
    %v9521 = vand.u32 %v9509, 2147483648
    %v9522 = vor.u32 1.1754944e-38, %v9521
    %v9523 = vsel %vm9520, %v9522, %v9518
    %v9524 = vmul.f32 1.0, %v9523
    %9526 = vrot.lane.b32.xlu0 %v9503, 64
    %v9527 = vpop.permute.xlu0 %9526
    %v9529 = vmul.f32 %v9524, %v9527
    %9531 = vrot.lane.b32.xlu0 %v9529, 64
    %v9532 = vpop.permute.xlu0 %9531
    %v9534 = vadd.f32 %v2669, %v9532
    %v9535 = vtanh.pop %v9534
    %v9536 = vsub.f32 1.0, %v9524
    %9538 = vrot.lane.b32.xlu0 %v9535, 96
    %v9539 = vpop.permute.xlu0 %9538
    %v9541 = vmul.f32 %v9536, %v9539
    %v9542 = vmul.f32 %v9524, %v9314
    %v9543 = vadd.f32 %v9541, %v9542
    %9545 = vrot.lane.b32.xlu0 %v9543, 96
    %v9546 = vpop.permute.xlu0 %9545
    %v9547 = vsel %vm642, %v9546, 0
    %9549 = vmatpush.msra.mxu0 0.0
    %9550 = vmatpush.msra.mxu0 0.0
    %9551 = vmatpush.msra.mxu0 0.0
    %9552 = vmatpush.msra.mxu0 0.0
    %9553 = vmatpush.msra.mxu0 0.0
    %9554 = vmatpush.msra.mxu0 0.0
    %9555 = vmatpush.msra.mxu0 0.0
    %9556 = vmatpush.msra.mxu0 0.0
    %9557 = vmatpush.msra.mxu0 0.0
    %9558 = vmatpush.msra.mxu0 0.0
    %9559 = vmatpush.msra.mxu0 0.0
    %9560 = vmatpush.msra.mxu0 0.0
    %v9561 = vand.u32 %v2674, 4294901760
    %9562 = vmatpush.msra.mxu0 %v9561
    %v9563 = vand.u32 %v2673, 4294901760
    %9564 = vmatpush.msra.mxu0 %v9563
    %v9565 = vand.u32 %v2672, 4294901760
    %9566 = vmatpush.msra.mxu0 %v9565
    %v9567 = vand.u32 %v2671, 4294901760
    %9568 = vmatpush.msra.mxu0 %v9567
    %v9569 = vand.u32 %v9547, 4294901760
    %v9570 = vsub.f32 %v9547, %v9569
    %v9571 = vand.u32 %v9570, 4294901760
    %v9572 = vsub.f32 %v9570, %v9571
    %v9573 = vand.u32 %v9572, 4294901760
    %9574 = vmatmul.f32.gmra.mxu0 %v9573
    %v9575 = vpop.f32.mrf.mxu0
    %v9576 = vadd.f32 %v2677, %v9575
    %9577 = vdwg.mxu0
    %9578 = vmatpush.msra.mxu0 0.0
    %9579 = vmatpush.msra.mxu0 0.0
    %9580 = vmatpush.msra.mxu0 0.0
    %9581 = vmatpush.msra.mxu0 0.0
    %9582 = vmatpush.msra.mxu0 0.0
    %9583 = vmatpush.msra.mxu0 0.0
    %9584 = vmatpush.msra.mxu0 0.0
    %9585 = vmatpush.msra.mxu0 0.0
    %9586 = vmatpush.msra.mxu0 0.0
    %9587 = vmatpush.msra.mxu0 0.0
    %9588 = vmatpush.msra.mxu0 0.0
    %9589 = vmatpush.msra.mxu0 0.0
    %v9590 = vand.u32 %v2674, 4294901760
    %v9591 = vsub.f32 %v2674, %v9590
    %v9592 = vand.u32 %v9591, 4294901760
    %v9593 = vsub.f32 %v9591, %v9592
    %v9594 = vand.u32 %v9593, 4294901760
    %9595 = vmatpush.msra.mxu0 %v9594
    %v9596 = vand.u32 %v2673, 4294901760
    %v9597 = vsub.f32 %v2673, %v9596
    %v9598 = vand.u32 %v9597, 4294901760
    %v9599 = vsub.f32 %v9597, %v9598
    %v9600 = vand.u32 %v9599, 4294901760
    %9601 = vmatpush.msra.mxu0 %v9600
    %v9602 = vand.u32 %v2672, 4294901760
    %v9603 = vsub.f32 %v2672, %v9602
    %v9604 = vand.u32 %v9603, 4294901760
    %v9605 = vsub.f32 %v9603, %v9604
    %v9606 = vand.u32 %v9605, 4294901760
    %9607 = vmatpush.msra.mxu0 %v9606
    %v9608 = vand.u32 %v2671, 4294901760
    %v9609 = vsub.f32 %v2671, %v9608
    %v9610 = vand.u32 %v9609, 4294901760
    %v9611 = vsub.f32 %v9609, %v9610
    %v9612 = vand.u32 %v9611, 4294901760
    %9613 = vmatpush.msra.mxu0 %v9612
    %v9614 = vand.u32 %v9547, 4294901760
    %9615 = vmatmul.f32.gmra.mxu0 %v9614
    %v9616 = vpop.f32.mrf.mxu0
    %v9617 = vadd.f32 %v9576, %v9616
    %9618 = vdwg.mxu0
    %9619 = vmatpush.msra.mxu0 0.0
    %9620 = vmatpush.msra.mxu0 0.0
    %9621 = vmatpush.msra.mxu0 0.0
    %9622 = vmatpush.msra.mxu0 0.0
    %9623 = vmatpush.msra.mxu0 0.0
    %9624 = vmatpush.msra.mxu0 0.0
    %9625 = vmatpush.msra.mxu0 0.0
    %9626 = vmatpush.msra.mxu0 0.0
    %9627 = vmatpush.msra.mxu0 0.0
    %9628 = vmatpush.msra.mxu0 0.0
    %9629 = vmatpush.msra.mxu0 0.0
    %9630 = vmatpush.msra.mxu0 0.0
    %v9631 = vand.u32 %v2674, 4294901760
    %v9632 = vsub.f32 %v2674, %v9631
    %9633 = vmatpush.msra.mxu0 %v9632
    %v9634 = vand.u32 %v2673, 4294901760
    %v9635 = vsub.f32 %v2673, %v9634
    %9636 = vmatpush.msra.mxu0 %v9635
    %v9637 = vand.u32 %v2672, 4294901760
    %v9638 = vsub.f32 %v2672, %v9637
    %9639 = vmatpush.msra.mxu0 %v9638
    %v9640 = vand.u32 %v2671, 4294901760
    %v9641 = vsub.f32 %v2671, %v9640
    %9642 = vmatpush.msra.mxu0 %v9641
    %v9643 = vand.u32 %v9547, 4294901760
    %v9644 = vsub.f32 %v9547, %v9643
    %9645 = vmatmul.f32.gmra.mxu0 %v9644
    %v9646 = vpop.f32.mrf.mxu0
    %v9647 = vadd.f32 %v9617, %v9646
    %9648 = vdwg.mxu0
    %9649 = vmatpush.msra.mxu0 0.0
    %9650 = vmatpush.msra.mxu0 0.0
    %9651 = vmatpush.msra.mxu0 0.0
    %9652 = vmatpush.msra.mxu0 0.0
    %9653 = vmatpush.msra.mxu0 0.0
    %9654 = vmatpush.msra.mxu0 0.0
    %9655 = vmatpush.msra.mxu0 0.0
    %9656 = vmatpush.msra.mxu0 0.0
    %9657 = vmatpush.msra.mxu0 0.0
    %9658 = vmatpush.msra.mxu0 0.0
    %9659 = vmatpush.msra.mxu0 0.0
    %9660 = vmatpush.msra.mxu0 0.0
    %v9661 = vand.u32 %v2674, 4294901760
    %9662 = vmatpush.msra.mxu0 %v9661
    %v9663 = vand.u32 %v2673, 4294901760
    %9664 = vmatpush.msra.mxu0 %v9663
    %v9665 = vand.u32 %v2672, 4294901760
    %9666 = vmatpush.msra.mxu0 %v9665
    %v9667 = vand.u32 %v2671, 4294901760
    %9668 = vmatpush.msra.mxu0 %v9667
    %v9669 = vand.u32 %v9547, 4294901760
    %v9670 = vsub.f32 %v9547, %v9669
    %v9671 = vand.u32 %v9670, 4294901760
    %9672 = vmatmul.f32.gmra.mxu0 %v9671
    %v9673 = vpop.f32.mrf.mxu0
    %v9674 = vadd.f32 %v9647, %v9673
    %9675 = vdwg.mxu0
    %9676 = vmatpush.msra.mxu0 0.0
    %9677 = vmatpush.msra.mxu0 0.0
    %9678 = vmatpush.msra.mxu0 0.0
    %9679 = vmatpush.msra.mxu0 0.0
    %9680 = vmatpush.msra.mxu0 0.0
    %9681 = vmatpush.msra.mxu0 0.0
    %9682 = vmatpush.msra.mxu0 0.0
    %9683 = vmatpush.msra.mxu0 0.0
    %9684 = vmatpush.msra.mxu0 0.0
    %9685 = vmatpush.msra.mxu0 0.0
    %9686 = vmatpush.msra.mxu0 0.0
    %9687 = vmatpush.msra.mxu0 0.0
    %v9688 = vand.u32 %v2674, 4294901760
    %v9689 = vsub.f32 %v2674, %v9688
    %v9690 = vand.u32 %v9689, 4294901760
    %9691 = vmatpush.msra.mxu0 %v9690
    %v9692 = vand.u32 %v2673, 4294901760
    %v9693 = vsub.f32 %v2673, %v9692
    %v9694 = vand.u32 %v9693, 4294901760
    %9695 = vmatpush.msra.mxu0 %v9694
    %v9696 = vand.u32 %v2672, 4294901760
    %v9697 = vsub.f32 %v2672, %v9696
    %v9698 = vand.u32 %v9697, 4294901760
    %9699 = vmatpush.msra.mxu0 %v9698
    %v9700 = vand.u32 %v2671, 4294901760
    %v9701 = vsub.f32 %v2671, %v9700
    %v9702 = vand.u32 %v9701, 4294901760
    %9703 = vmatpush.msra.mxu0 %v9702
    %v9704 = vand.u32 %v9547, 4294901760
    %9705 = vmatmul.f32.gmra.mxu0 %v9704
    %v9706 = vpop.f32.mrf.mxu0
    %v9707 = vadd.f32 %v9674, %v9706
    %9708 = vdwg.mxu0
    %9709 = vmatpush.msra.mxu0 0.0
    %9710 = vmatpush.msra.mxu0 0.0
    %9711 = vmatpush.msra.mxu0 0.0
    %9712 = vmatpush.msra.mxu0 0.0
    %9713 = vmatpush.msra.mxu0 0.0
    %9714 = vmatpush.msra.mxu0 0.0
    %9715 = vmatpush.msra.mxu0 0.0
    %9716 = vmatpush.msra.mxu0 0.0
    %9717 = vmatpush.msra.mxu0 0.0
    %9718 = vmatpush.msra.mxu0 0.0
    %9719 = vmatpush.msra.mxu0 0.0
    %9720 = vmatpush.msra.mxu0 0.0
    %v9721 = vand.u32 %v2674, 4294901760
    %9722 = vmatpush.msra.mxu0 %v9721
    %v9723 = vand.u32 %v2673, 4294901760
    %9724 = vmatpush.msra.mxu0 %v9723
    %v9725 = vand.u32 %v2672, 4294901760
    %9726 = vmatpush.msra.mxu0 %v9725
    %v9727 = vand.u32 %v2671, 4294901760
    %9728 = vmatpush.msra.mxu0 %v9727
    %v9729 = vand.u32 %v9547, 4294901760
    %9730 = vmatmul.f32.gmra.mxu0 %v9729
    %v9731 = vpop.f32.mrf.mxu0
    %v9732 = vadd.f32 %v9707, %v9731
    %9733 = vdwg.mxu0
    %v9734 = vadd.f32 %v2669, %v9732
    %v9735 = vxor.u32 %v9734, 2147483648
    %v9736 = vmul.f32 %v9735, 1.442695
    %v9737 = vpow.pop %v9736
    %v9738 = vadd.f32 %v9737, 1.0
    %v9739 = vrcp.pop %v9738
    %v9740 = vmul.f32 %v9738, %v9739
    %v9741 = vsub.f32 1.0, %v9740
    %v9742 = vmul.f32 %v9739, %v9741
    %v9743 = vadd.f32 %v9739, %v9742
    %vm9744 = vweird.f32 %v9738
    %vm9745 = vweird.f32 %v9739
    %vm9746 = vmor %vm9744, %vm9745
    %v9747 = vsel %vm9746, %v9739, %v9743
    %v9748 = vand.u32 2147483647, %v9738
    %vm9749 = vcmp.eq.f32.partialorder %v9748, 8.507059e+37
    %v9750 = vand.u32 %v9738, 2147483648
    %v9751 = vor.u32 1.1754944e-38, %v9750
    %v9752 = vsel %vm9749, %v9751, %v9747
    %v9753 = vmul.f32 1.0, %v9752
    %9755 = vrot.lane.b32.xlu0 %v9732, 64
    %v9756 = vpop.permute.xlu0 %9755
    %v9758 = vmul.f32 %v9753, %v9756
    %9760 = vrot.lane.b32.xlu0 %v9758, 64
    %v9761 = vpop.permute.xlu0 %9760
    %v9763 = vadd.f32 %v2669, %v9761
    %v9764 = vtanh.pop %v9763
    %v9765 = vsub.f32 1.0, %v9753
    %9767 = vrot.lane.b32.xlu0 %v9764, 96
    %v9768 = vpop.permute.xlu0 %9767
    %v9770 = vmul.f32 %v9765, %v9768
    %v9771 = vmul.f32 %v9753, %v9543
    %v9772 = vadd.f32 %v9770, %v9771
    %9774 = vrot.lane.b32.xlu0 %v9772, 96
    %v9775 = vpop.permute.xlu0 %9774
    %v9776 = vsel %vm642, %v9775, 0
    %9778 = vmatpush.msra.mxu0 0.0
    %9779 = vmatpush.msra.mxu0 0.0
    %9780 = vmatpush.msra.mxu0 0.0
    %9781 = vmatpush.msra.mxu0 0.0
    %9782 = vmatpush.msra.mxu0 0.0
    %9783 = vmatpush.msra.mxu0 0.0
    %9784 = vmatpush.msra.mxu0 0.0
    %9785 = vmatpush.msra.mxu0 0.0
    %9786 = vmatpush.msra.mxu0 0.0
    %9787 = vmatpush.msra.mxu0 0.0
    %9788 = vmatpush.msra.mxu0 0.0
    %9789 = vmatpush.msra.mxu0 0.0
    %v9790 = vand.u32 %v2674, 4294901760
    %9791 = vmatpush.msra.mxu0 %v9790
    %v9792 = vand.u32 %v2673, 4294901760
    %9793 = vmatpush.msra.mxu0 %v9792
    %v9794 = vand.u32 %v2672, 4294901760
    %9795 = vmatpush.msra.mxu0 %v9794
    %v9796 = vand.u32 %v2671, 4294901760
    %9797 = vmatpush.msra.mxu0 %v9796
    %v9798 = vand.u32 %v9776, 4294901760
    %v9799 = vsub.f32 %v9776, %v9798
    %v9800 = vand.u32 %v9799, 4294901760
    %v9801 = vsub.f32 %v9799, %v9800
    %v9802 = vand.u32 %v9801, 4294901760
    %9803 = vmatmul.f32.gmra.mxu0 %v9802
    %v9804 = vpop.f32.mrf.mxu0
    %v9805 = vadd.f32 %v2677, %v9804
    %9806 = vdwg.mxu0
    %9807 = vmatpush.msra.mxu0 0.0
    %9808 = vmatpush.msra.mxu0 0.0
    %9809 = vmatpush.msra.mxu0 0.0
    %9810 = vmatpush.msra.mxu0 0.0
    %9811 = vmatpush.msra.mxu0 0.0
    %9812 = vmatpush.msra.mxu0 0.0
    %9813 = vmatpush.msra.mxu0 0.0
    %9814 = vmatpush.msra.mxu0 0.0
    %9815 = vmatpush.msra.mxu0 0.0
    %9816 = vmatpush.msra.mxu0 0.0
    %9817 = vmatpush.msra.mxu0 0.0
    %9818 = vmatpush.msra.mxu0 0.0
    %v9819 = vand.u32 %v2674, 4294901760
    %v9820 = vsub.f32 %v2674, %v9819
    %v9821 = vand.u32 %v9820, 4294901760
    %v9822 = vsub.f32 %v9820, %v9821
    %v9823 = vand.u32 %v9822, 4294901760
    %9824 = vmatpush.msra.mxu0 %v9823
    %v9825 = vand.u32 %v2673, 4294901760
    %v9826 = vsub.f32 %v2673, %v9825
    %v9827 = vand.u32 %v9826, 4294901760
    %v9828 = vsub.f32 %v9826, %v9827
    %v9829 = vand.u32 %v9828, 4294901760
    %9830 = vmatpush.msra.mxu0 %v9829
    %v9831 = vand.u32 %v2672, 4294901760
    %v9832 = vsub.f32 %v2672, %v9831
    %v9833 = vand.u32 %v9832, 4294901760
    %v9834 = vsub.f32 %v9832, %v9833
    %v9835 = vand.u32 %v9834, 4294901760
    %9836 = vmatpush.msra.mxu0 %v9835
    %v9837 = vand.u32 %v2671, 4294901760
    %v9838 = vsub.f32 %v2671, %v9837
    %v9839 = vand.u32 %v9838, 4294901760
    %v9840 = vsub.f32 %v9838, %v9839
    %v9841 = vand.u32 %v9840, 4294901760
    %9842 = vmatpush.msra.mxu0 %v9841
    %v9843 = vand.u32 %v9776, 4294901760
    %9844 = vmatmul.f32.gmra.mxu0 %v9843
    %v9845 = vpop.f32.mrf.mxu0
    %v9846 = vadd.f32 %v9805, %v9845
    %9847 = vdwg.mxu0
    %9848 = vmatpush.msra.mxu0 0.0
    %9849 = vmatpush.msra.mxu0 0.0
    %9850 = vmatpush.msra.mxu0 0.0
    %9851 = vmatpush.msra.mxu0 0.0
    %9852 = vmatpush.msra.mxu0 0.0
    %9853 = vmatpush.msra.mxu0 0.0
    %9854 = vmatpush.msra.mxu0 0.0
    %9855 = vmatpush.msra.mxu0 0.0
    %9856 = vmatpush.msra.mxu0 0.0
    %9857 = vmatpush.msra.mxu0 0.0
    %9858 = vmatpush.msra.mxu0 0.0
    %9859 = vmatpush.msra.mxu0 0.0
    %v9860 = vand.u32 %v2674, 4294901760
    %v9861 = vsub.f32 %v2674, %v9860
    %9862 = vmatpush.msra.mxu0 %v9861
    %v9863 = vand.u32 %v2673, 4294901760
    %v9864 = vsub.f32 %v2673, %v9863
    %9865 = vmatpush.msra.mxu0 %v9864
    %v9866 = vand.u32 %v2672, 4294901760
    %v9867 = vsub.f32 %v2672, %v9866
    %9868 = vmatpush.msra.mxu0 %v9867
    %v9869 = vand.u32 %v2671, 4294901760
    %v9870 = vsub.f32 %v2671, %v9869
    %9871 = vmatpush.msra.mxu0 %v9870
    %v9872 = vand.u32 %v9776, 4294901760
    %v9873 = vsub.f32 %v9776, %v9872
    %9874 = vmatmul.f32.gmra.mxu0 %v9873
    %v9875 = vpop.f32.mrf.mxu0
    %v9876 = vadd.f32 %v9846, %v9875
    %9877 = vdwg.mxu0
    %9878 = vmatpush.msra.mxu0 0.0
    %9879 = vmatpush.msra.mxu0 0.0
    %9880 = vmatpush.msra.mxu0 0.0
    %9881 = vmatpush.msra.mxu0 0.0
    %9882 = vmatpush.msra.mxu0 0.0
    %9883 = vmatpush.msra.mxu0 0.0
    %9884 = vmatpush.msra.mxu0 0.0
    %9885 = vmatpush.msra.mxu0 0.0
    %9886 = vmatpush.msra.mxu0 0.0
    %9887 = vmatpush.msra.mxu0 0.0
    %9888 = vmatpush.msra.mxu0 0.0
    %9889 = vmatpush.msra.mxu0 0.0
    %v9890 = vand.u32 %v2674, 4294901760
    %9891 = vmatpush.msra.mxu0 %v9890
    %v9892 = vand.u32 %v2673, 4294901760
    %9893 = vmatpush.msra.mxu0 %v9892
    %v9894 = vand.u32 %v2672, 4294901760
    %9895 = vmatpush.msra.mxu0 %v9894
    %v9896 = vand.u32 %v2671, 4294901760
    %9897 = vmatpush.msra.mxu0 %v9896
    %v9898 = vand.u32 %v9776, 4294901760
    %v9899 = vsub.f32 %v9776, %v9898
    %v9900 = vand.u32 %v9899, 4294901760
    %9901 = vmatmul.f32.gmra.mxu0 %v9900
    %v9902 = vpop.f32.mrf.mxu0
    %v9903 = vadd.f32 %v9876, %v9902
    %9904 = vdwg.mxu0
    %9905 = vmatpush.msra.mxu0 0.0
    %9906 = vmatpush.msra.mxu0 0.0
    %9907 = vmatpush.msra.mxu0 0.0
    %9908 = vmatpush.msra.mxu0 0.0
    %9909 = vmatpush.msra.mxu0 0.0
    %9910 = vmatpush.msra.mxu0 0.0
    %9911 = vmatpush.msra.mxu0 0.0
    %9912 = vmatpush.msra.mxu0 0.0
    %9913 = vmatpush.msra.mxu0 0.0
    %9914 = vmatpush.msra.mxu0 0.0
    %9915 = vmatpush.msra.mxu0 0.0
    %9916 = vmatpush.msra.mxu0 0.0
    %v9917 = vand.u32 %v2674, 4294901760
    %v9918 = vsub.f32 %v2674, %v9917
    %v9919 = vand.u32 %v9918, 4294901760
    %9920 = vmatpush.msra.mxu0 %v9919
    %v9921 = vand.u32 %v2673, 4294901760
    %v9922 = vsub.f32 %v2673, %v9921
    %v9923 = vand.u32 %v9922, 4294901760
    %9924 = vmatpush.msra.mxu0 %v9923
    %v9925 = vand.u32 %v2672, 4294901760
    %v9926 = vsub.f32 %v2672, %v9925
    %v9927 = vand.u32 %v9926, 4294901760
    %9928 = vmatpush.msra.mxu0 %v9927
    %v9929 = vand.u32 %v2671, 4294901760
    %v9930 = vsub.f32 %v2671, %v9929
    %v9931 = vand.u32 %v9930, 4294901760
    %9932 = vmatpush.msra.mxu0 %v9931
    %v9933 = vand.u32 %v9776, 4294901760
    %9934 = vmatmul.f32.gmra.mxu0 %v9933
    %v9935 = vpop.f32.mrf.mxu0
    %v9936 = vadd.f32 %v9903, %v9935
    %9937 = vdwg.mxu0
    %9938 = vmatpush.msra.mxu0 0.0
    %9939 = vmatpush.msra.mxu0 0.0
    %9940 = vmatpush.msra.mxu0 0.0
    %9941 = vmatpush.msra.mxu0 0.0
    %9942 = vmatpush.msra.mxu0 0.0
    %9943 = vmatpush.msra.mxu0 0.0
    %9944 = vmatpush.msra.mxu0 0.0
    %9945 = vmatpush.msra.mxu0 0.0
    %9946 = vmatpush.msra.mxu0 0.0
    %9947 = vmatpush.msra.mxu0 0.0
    %9948 = vmatpush.msra.mxu0 0.0
    %9949 = vmatpush.msra.mxu0 0.0
    %v9950 = vand.u32 %v2674, 4294901760
    %9951 = vmatpush.msra.mxu0 %v9950
    %v9952 = vand.u32 %v2673, 4294901760
    %9953 = vmatpush.msra.mxu0 %v9952
    %v9954 = vand.u32 %v2672, 4294901760
    %9955 = vmatpush.msra.mxu0 %v9954
    %v9956 = vand.u32 %v2671, 4294901760
    %9957 = vmatpush.msra.mxu0 %v9956
    %v9958 = vand.u32 %v9776, 4294901760
    %9959 = vmatmul.f32.gmra.mxu0 %v9958
    %v9960 = vpop.f32.mrf.mxu0
    %v9961 = vadd.f32 %v9936, %v9960
    %9962 = vdwg.mxu0
    %v9963 = vadd.f32 %v2669, %v9961
    %v9964 = vxor.u32 %v9963, 2147483648
    %v9965 = vmul.f32 %v9964, 1.442695
    %v9966 = vpow.pop %v9965
    %v9967 = vadd.f32 %v9966, 1.0
    %v9968 = vrcp.pop %v9967
    %v9969 = vmul.f32 %v9967, %v9968
    %v9970 = vsub.f32 1.0, %v9969
    %v9971 = vmul.f32 %v9968, %v9970
    %v9972 = vadd.f32 %v9968, %v9971
    %vm9973 = vweird.f32 %v9967
    %vm9974 = vweird.f32 %v9968
    %vm9975 = vmor %vm9973, %vm9974
    %v9976 = vsel %vm9975, %v9968, %v9972
    %v9977 = vand.u32 2147483647, %v9967
    %vm9978 = vcmp.eq.f32.partialorder %v9977, 8.507059e+37
    %v9979 = vand.u32 %v9967, 2147483648
    %v9980 = vor.u32 1.1754944e-38, %v9979
    %v9981 = vsel %vm9978, %v9980, %v9976
    %v9982 = vmul.f32 1.0, %v9981
    %9984 = vrot.lane.b32.xlu0 %v9961, 64
    %v9985 = vpop.permute.xlu0 %9984
    %v9987 = vmul.f32 %v9982, %v9985
    %9989 = vrot.lane.b32.xlu0 %v9987, 64
    %v9990 = vpop.permute.xlu0 %9989
    %v9992 = vadd.f32 %v2669, %v9990
    %v9993 = vtanh.pop %v9992
    %v9994 = vsub.f32 1.0, %v9982
    %9996 = vrot.lane.b32.xlu0 %v9993, 96
    %v9997 = vpop.permute.xlu0 %9996
    %v9999 = vmul.f32 %v9994, %v9997
    %v10000 = vmul.f32 %v9982, %v9772
    %v10001 = vadd.f32 %v9999, %v10000
    %v10002 = vld [vmem:[#allocation6] sm:$0xff]
    %v10003 = vld [vmem:[#allocation6 + $0x8] sm:$0xff]
    %v10004 = vld [vmem:[#allocation6 + $0x10] sm:$0xff]
    %v10005 = vld [vmem:[#allocation6 + $0x18] sm:$0xff]
    %v10006 = vld [vmem:[%s10] sm:$0x1]
    %v10008 = vperm.slane %v10006, 0
    %10011 = vrot.lane.b32.xlu0 %v10001, 96
    %v10012 = vpop.permute.xlu0 %10011
    %v10013 = vsel %vm642, %v10012, 0
    %10015 = vmatpush.msra.mxu0 0.0
    %10016 = vmatpush.msra.mxu0 0.0
    %10017 = vmatpush.msra.mxu0 0.0
    %10018 = vmatpush.msra.mxu0 0.0
    %10019 = vmatpush.msra.mxu0 0.0
    %10020 = vmatpush.msra.mxu0 0.0
    %10021 = vmatpush.msra.mxu0 0.0
    %10022 = vmatpush.msra.mxu0 0.0
    %10023 = vmatpush.msra.mxu0 0.0
    %10024 = vmatpush.msra.mxu0 0.0
    %10025 = vmatpush.msra.mxu0 0.0
    %10026 = vmatpush.msra.mxu0 0.0
    %v10027 = vand.u32 %v10005, 4294901760
    %10028 = vmatpush.msra.mxu0 %v10027
    %v10029 = vand.u32 %v10004, 4294901760
    %10030 = vmatpush.msra.mxu0 %v10029
    %v10031 = vand.u32 %v10003, 4294901760
    %10032 = vmatpush.msra.mxu0 %v10031
    %v10033 = vand.u32 %v10002, 4294901760
    %10034 = vmatpush.msra.mxu0 %v10033
    %v10035 = vand.u32 %v10013, 4294901760
    %v10036 = vsub.f32 %v10013, %v10035
    %v10037 = vand.u32 %v10036, 4294901760
    %v10038 = vsub.f32 %v10036, %v10037
    %v10039 = vand.u32 %v10038, 4294901760
    %10040 = vmatmul.f32.gmra.mxu0 %v10039
    %v10041 = vpop.f32.mrf.mxu0
    %v10042 = vadd.f32 %v10008, %v10041
    %10043 = vdwg.mxu0
    %10044 = vmatpush.msra.mxu0 0.0
    %10045 = vmatpush.msra.mxu0 0.0
    %10046 = vmatpush.msra.mxu0 0.0
    %10047 = vmatpush.msra.mxu0 0.0
    %10048 = vmatpush.msra.mxu0 0.0
    %10049 = vmatpush.msra.mxu0 0.0
    %10050 = vmatpush.msra.mxu0 0.0
    %10051 = vmatpush.msra.mxu0 0.0
    %10052 = vmatpush.msra.mxu0 0.0
    %10053 = vmatpush.msra.mxu0 0.0
    %10054 = vmatpush.msra.mxu0 0.0
    %10055 = vmatpush.msra.mxu0 0.0
    %v10056 = vand.u32 %v10005, 4294901760
    %v10057 = vsub.f32 %v10005, %v10056
    %v10058 = vand.u32 %v10057, 4294901760
    %v10059 = vsub.f32 %v10057, %v10058
    %v10060 = vand.u32 %v10059, 4294901760
    %10061 = vmatpush.msra.mxu0 %v10060
    %v10062 = vand.u32 %v10004, 4294901760
    %v10063 = vsub.f32 %v10004, %v10062
    %v10064 = vand.u32 %v10063, 4294901760
    %v10065 = vsub.f32 %v10063, %v10064
    %v10066 = vand.u32 %v10065, 4294901760
    %10067 = vmatpush.msra.mxu0 %v10066
    %v10068 = vand.u32 %v10003, 4294901760
    %v10069 = vsub.f32 %v10003, %v10068
    %v10070 = vand.u32 %v10069, 4294901760
    %v10071 = vsub.f32 %v10069, %v10070
    %v10072 = vand.u32 %v10071, 4294901760
    %10073 = vmatpush.msra.mxu0 %v10072
    %v10074 = vand.u32 %v10002, 4294901760
    %v10075 = vsub.f32 %v10002, %v10074
    %v10076 = vand.u32 %v10075, 4294901760
    %v10077 = vsub.f32 %v10075, %v10076
    %v10078 = vand.u32 %v10077, 4294901760
    %10079 = vmatpush.msra.mxu0 %v10078
    %v10080 = vand.u32 %v10013, 4294901760
    %10081 = vmatmul.f32.gmra.mxu0 %v10080
    %v10082 = vpop.f32.mrf.mxu0
    %v10083 = vadd.f32 %v10042, %v10082
    %10084 = vdwg.mxu0
    %10085 = vmatpush.msra.mxu0 0.0
    %10086 = vmatpush.msra.mxu0 0.0
    %10087 = vmatpush.msra.mxu0 0.0
    %10088 = vmatpush.msra.mxu0 0.0
    %10089 = vmatpush.msra.mxu0 0.0
    %10090 = vmatpush.msra.mxu0 0.0
    %10091 = vmatpush.msra.mxu0 0.0
    %10092 = vmatpush.msra.mxu0 0.0
    %10093 = vmatpush.msra.mxu0 0.0
    %10094 = vmatpush.msra.mxu0 0.0
    %10095 = vmatpush.msra.mxu0 0.0
    %10096 = vmatpush.msra.mxu0 0.0
    %v10097 = vand.u32 %v10005, 4294901760
    %v10098 = vsub.f32 %v10005, %v10097
    %10099 = vmatpush.msra.mxu0 %v10098
    %v10100 = vand.u32 %v10004, 4294901760
    %v10101 = vsub.f32 %v10004, %v10100
    %10102 = vmatpush.msra.mxu0 %v10101
    %v10103 = vand.u32 %v10003, 4294901760
    %v10104 = vsub.f32 %v10003, %v10103
    %10105 = vmatpush.msra.mxu0 %v10104
    %v10106 = vand.u32 %v10002, 4294901760
    %v10107 = vsub.f32 %v10002, %v10106
    %10108 = vmatpush.msra.mxu0 %v10107
    %v10109 = vand.u32 %v10013, 4294901760
    %v10110 = vsub.f32 %v10013, %v10109
    %10111 = vmatmul.f32.gmra.mxu0 %v10110
    %v10112 = vpop.f32.mrf.mxu0
    %v10113 = vadd.f32 %v10083, %v10112
    %10114 = vdwg.mxu0
    %10115 = vmatpush.msra.mxu0 0.0
    %10116 = vmatpush.msra.mxu0 0.0
    %10117 = vmatpush.msra.mxu0 0.0
    %10118 = vmatpush.msra.mxu0 0.0
    %10119 = vmatpush.msra.mxu0 0.0
    %10120 = vmatpush.msra.mxu0 0.0
    %10121 = vmatpush.msra.mxu0 0.0
    %10122 = vmatpush.msra.mxu0 0.0
    %10123 = vmatpush.msra.mxu0 0.0
    %10124 = vmatpush.msra.mxu0 0.0
    %10125 = vmatpush.msra.mxu0 0.0
    %10126 = vmatpush.msra.mxu0 0.0
    %v10127 = vand.u32 %v10005, 4294901760
    %10128 = vmatpush.msra.mxu0 %v10127
    %v10129 = vand.u32 %v10004, 4294901760
    %10130 = vmatpush.msra.mxu0 %v10129
    %v10131 = vand.u32 %v10003, 4294901760
    %10132 = vmatpush.msra.mxu0 %v10131
    %v10133 = vand.u32 %v10002, 4294901760
    %10134 = vmatpush.msra.mxu0 %v10133
    %v10135 = vand.u32 %v10013, 4294901760
    %v10136 = vsub.f32 %v10013, %v10135
    %v10137 = vand.u32 %v10136, 4294901760
    %10138 = vmatmul.f32.gmra.mxu0 %v10137
    %v10139 = vpop.f32.mrf.mxu0
    %v10140 = vadd.f32 %v10113, %v10139
    %10141 = vdwg.mxu0
    %10142 = vmatpush.msra.mxu0 0.0
    %10143 = vmatpush.msra.mxu0 0.0
    %10144 = vmatpush.msra.mxu0 0.0
    %10145 = vmatpush.msra.mxu0 0.0
    %10146 = vmatpush.msra.mxu0 0.0
    %10147 = vmatpush.msra.mxu0 0.0
    %10148 = vmatpush.msra.mxu0 0.0
    %10149 = vmatpush.msra.mxu0 0.0
    %10150 = vmatpush.msra.mxu0 0.0
    %10151 = vmatpush.msra.mxu0 0.0
    %10152 = vmatpush.msra.mxu0 0.0
    %10153 = vmatpush.msra.mxu0 0.0
    %v10154 = vand.u32 %v10005, 4294901760
    %v10155 = vsub.f32 %v10005, %v10154
    %v10156 = vand.u32 %v10155, 4294901760
    %10157 = vmatpush.msra.mxu0 %v10156
    %v10158 = vand.u32 %v10004, 4294901760
    %v10159 = vsub.f32 %v10004, %v10158
    %v10160 = vand.u32 %v10159, 4294901760
    %10161 = vmatpush.msra.mxu0 %v10160
    %v10162 = vand.u32 %v10003, 4294901760
    %v10163 = vsub.f32 %v10003, %v10162
    %v10164 = vand.u32 %v10163, 4294901760
    %10165 = vmatpush.msra.mxu0 %v10164
    %v10166 = vand.u32 %v10002, 4294901760
    %v10167 = vsub.f32 %v10002, %v10166
    %v10168 = vand.u32 %v10167, 4294901760
    %10169 = vmatpush.msra.mxu0 %v10168
    %v10170 = vand.u32 %v10013, 4294901760
    %10171 = vmatmul.f32.gmra.mxu0 %v10170
    %v10172 = vpop.f32.mrf.mxu0
    %v10173 = vadd.f32 %v10140, %v10172
    %10174 = vdwg.mxu0
    %10175 = vmatpush.msra.mxu0 0.0
    %10176 = vmatpush.msra.mxu0 0.0
    %10177 = vmatpush.msra.mxu0 0.0
    %10178 = vmatpush.msra.mxu0 0.0
    %10179 = vmatpush.msra.mxu0 0.0
    %10180 = vmatpush.msra.mxu0 0.0
    %10181 = vmatpush.msra.mxu0 0.0
    %10182 = vmatpush.msra.mxu0 0.0
    %10183 = vmatpush.msra.mxu0 0.0
    %10184 = vmatpush.msra.mxu0 0.0
    %10185 = vmatpush.msra.mxu0 0.0
    %10186 = vmatpush.msra.mxu0 0.0
    %v10187 = vand.u32 %v10005, 4294901760
    %10188 = vmatpush.msra.mxu0 %v10187
    %v10189 = vand.u32 %v10004, 4294901760
    %10190 = vmatpush.msra.mxu0 %v10189
    %v10191 = vand.u32 %v10003, 4294901760
    %10192 = vmatpush.msra.mxu0 %v10191
    %v10193 = vand.u32 %v10002, 4294901760
    %10194 = vmatpush.msra.mxu0 %v10193
    %v10195 = vand.u32 %v10013, 4294901760
    %10196 = vmatmul.f32.gmra.mxu0 %v10195
    %v10197 = vpop.f32.mrf.mxu0
    %v10198 = vadd.f32 %v10173, %v10197
    %10199 = vdwg.mxu0
    %10200 = vst.msk [vmem:[%s11] sm:$0xff] %vm155, %v10198
    // Predicated region
    $region58: #{autoencoder_forward.1} parent=1 // pred_check
      _
    $region59: #{autoencoder_forward.1} parent=1 // pred_check_branch
      %10202 = sbr.rel (0) target = $region61
    $region60: #{autoencoder_forward.1} parent=1 // pred_region
      _
    $region61: #{autoencoder_forward.1} parent=1 // pred_fallthru
      _
    // Predicated region
    $region62: #{autoencoder_forward.1} parent=1 // pred_check
      _
    $region63: #{autoencoder_forward.1} parent=1 // pred_check_branch
      %10204 = sbr.rel (0) target = $region65
    $region64: #{autoencoder_forward.1} parent=1 // pred_region
      _
    $region65: #{autoencoder_forward.1} parent=1 // pred_fallthru
      _
    %10205 = vsyncpa [#allocation3], 1
    %10206 = vsyncpa [#allocation5], 1

</llo_original>
